<compile_context>
chip_gen: v5e
topology: v5e:2x2
jax: 0.10.0
libtpu: 0.0.40
codegen_flags: <defaults>
</compile_context>

<pallas_src>
import numpy as np
import jax
import jax.numpy as jnp
from jax.experimental import pallas as pl
from jax.experimental.pallas import tpu as pltpu


# ----------------------------------------------------------------------------
# Fused kernel: up(x2) ++ x1  ->  conv3x3+BN+ReLU  ->  conv3x3+BN+ReLU
# One grid step per batch element; everything stays in VMEM.
# ----------------------------------------------------------------------------
def upsampling_fused_kernel(x1_ref, x2_ref, u_ref, w1_ref, w2_ref,
                            s1_ref, b1_ref, s2_ref, b2_ref,
                            o_ref, p1_ref, p2_ref):
    # x1_ref: (1, C1, H*W)   f32  skip connection, NCHW flattened spatially
    # x2_ref: (1, C2, Hi*Wi) f32  coarse map, NCHW flattened spatially
    # u_ref : (H*W, Hi*Wi)   f32  bilinear align_corners interpolation matrix
    # w1_ref: (9*(C2+C1), Cout) bf16  conv1 weights, im2col layout (HWIO flat)
    # w2_ref: (9*Cout, Cout)    bf16  conv2 weights, im2col layout
    # s*/b* : (1, Cout) f32  folded BN scale / (conv-bias + BN shift)
    # o_ref : (1, Cout, H*W)      lane-dense output (NCHW flattened spatially)
    # p1_ref: (H+2, W+2, C2+C1) bf16 VMEM scratch (zero-padded conv1 input)
    # p2_ref: (H+2, W+2, Cout)  bf16 VMEM scratch (zero-padded conv2 input)
    hp, wp, cin1 = p1_ref.shape
    H, W = hp - 2, wp - 2
    HW = H * W
    cout = o_ref.shape[1]

    def pad_hw(x_hwc):
        # (H, W, C) -> zero-padded (H+2, W+2, C), padding=1, built in-register.
        c = x_hwc.shape[-1]
        zr = jnp.zeros((1, W, c), x_hwc.dtype)
        zc = jnp.zeros((H + 2, 1, c), x_hwc.dtype)
        rows = jnp.concatenate([zr, x_hwc, zr], axis=0)          # (H+2, W, C)
        return jnp.concatenate([zc, rows, zc], axis=1)           # (H+2, W+2, C)

    def im2col(p_ref, c):
        # padded ref (H+2, W+2, c) -> (H*W, 9*c); tap order (dy, dx) row-major
        # with channels innermost, matching HWIO weights reshaped to (9*c, Cout).
        cols = [p_ref[dy:dy + H, dx:dx + W, :].reshape(HW, c)
                for dy in range(3) for dx in range(3)]
        return jnp.concatenate(cols, axis=-1)

    # ---- bilinear upsample (align_corners=True) as one MXU matmul ----------
    x2_flat = x2_ref[0].T                                        # (Hi*Wi, C2) f32
    x2u = jnp.dot(u_ref[...], x2_flat,
                  preferred_element_type=jnp.float32)            # (H*W, C2)

    # ---- channel concat [up(x2), x1], cast to bf16, zero-pad into VMEM -----
    x1_hwc = x1_ref[0].T                                         # (H*W, C1) f32
    xin = jnp.concatenate([x2u, x1_hwc], axis=-1).astype(jnp.bfloat16)
    p1_ref[...] = pad_hw(xin.reshape(H, W, cin1))

    # ---- conv1: single K = 9*Cin matmul + folded BN + ReLU -----------------
    acc1 = jnp.dot(im2col(p1_ref, cin1), w1_ref[...],
                   preferred_element_type=jnp.float32)           # (H*W, Cout) f32
    y1 = jnp.maximum(acc1 * s1_ref[...] + b1_ref[...], 0.0)

    # ---- conv2: intermediate stays in VMEM ----------------------------------
    p2_ref[...] = pad_hw(y1.astype(jnp.bfloat16).reshape(H, W, cout))
    acc2 = jnp.dot(im2col(p2_ref, cout), w2_ref[...],
                   preferred_element_type=jnp.float32)           # (H*W, Cout) f32
    y2 = jnp.maximum(acc2 * s2_ref[...] + b2_ref[...], 0.0)

    # ---- lane-dense store: (H*W, Cout) -> (Cout, H*W) ----------------------
    o_ref[0] = y2.T.astype(o_ref.dtype)


# ----------------------------------------------------------------------------
# Interpolation matrices (torch UpsamplingBilinear2d == align_corners=True)
# ----------------------------------------------------------------------------
def _interp_matrix(in_size, out_size):
    """1-D bilinear weights, align_corners=True; shape (out_size, in_size)."""
    if out_size == 1 or in_size == 1:
        src = np.zeros((out_size,), np.float64)
    else:
        src = np.arange(out_size, dtype=np.float64) * (in_size - 1) / (out_size - 1)
    lo = np.clip(np.floor(src).astype(np.int64), 0, in_size - 1)
    hi = np.minimum(lo + 1, in_size - 1)
    frac = (src - lo).astype(np.float32)
    m = np.zeros((out_size, in_size), np.float32)
    m[np.arange(out_size), lo] += 1.0 - frac
    m[np.arange(out_size), hi] += frac
    return m


# ----------------------------------------------------------------------------
# Upsampling module forward (NCHW in/out, like PyTorch).
# ----------------------------------------------------------------------------
def upsampling_forward(x1, x2, params):
    """x1: (N, C1, H, W); x2: (N, C2, H/2, W/2); returns (N, Cout, H, W)."""
    N, C1, H1, W1 = x1.shape
    _, C2, Hi, Wi = x2.shape
    Ho, Wo = 2 * Hi, 2 * Wi

    ry = _interp_matrix(Hi, Ho)
    rx = _interp_matrix(Wi, Wo)
    if Wo != W1:                              # torch gates the crop on width only
        ry, rx = ry[:H1], rx[:W1]
    assert ry.shape[0] == H1 and rx.shape[0] == W1, "x2 upsample / x1 size mismatch"
    # Combined 2-D interpolation:  x2u[(y,x), c] = sum_{h,w} U[(y,x),(h,w)] x2[c,(h,w)]
    u = jnp.asarray(np.kron(ry, rx), jnp.float32)                # (H1*W1, Hi*Wi)

    HW, HiWi = H1 * W1, Hi * Wi
    Cin = C1 + C2
    Cout = params["w1"].shape[-1]

    # Free reshapes only -- no HBM transposes, no jnp.pad in the wrapper.
    x1f = x1.reshape(N, C1, HW)
    x2f = x2.reshape(N, C2, HiWi)
    w1 = params["w1"].reshape(9 * Cin, Cout).astype(jnp.bfloat16)
    w2 = params["w2"].reshape(9 * Cout, Cout).astype(jnp.bfloat16)
    s1 = params["s1"].reshape(1, Cout).astype(jnp.float32)
    b1 = params["b1"].reshape(1, Cout).astype(jnp.float32)
    s2 = params["s2"].reshape(1, Cout).astype(jnp.float32)
    b2 = params["b2"].reshape(1, Cout).astype(jnp.float32)

    out = pl.pallas_call(
        upsampling_fused_kernel,
        out_shape=jax.ShapeDtypeStruct((N, Cout, HW), jnp.float32),
        grid_spec=pltpu.PrefetchScalarGridSpec(
            num_scalar_prefetch=0,
            grid=(N,),
            in_specs=[
                pl.BlockSpec((1, C1, HW), lambda n: (n, 0, 0)),
                pl.BlockSpec((1, C2, HiWi), lambda n: (n, 0, 0)),
                pl.BlockSpec((HW, HiWi), lambda n: (0, 0)),
                pl.BlockSpec((9 * Cin, Cout), lambda n: (0, 0)),
                pl.BlockSpec((9 * Cout, Cout), lambda n: (0, 0)),
                pl.BlockSpec((1, Cout), lambda n: (0, 0)),
                pl.BlockSpec((1, Cout), lambda n: (0, 0)),
                pl.BlockSpec((1, Cout), lambda n: (0, 0)),
                pl.BlockSpec((1, Cout), lambda n: (0, 0)),
            ],
            out_specs=pl.BlockSpec((1, Cout, HW), lambda n: (n, 0, 0)),
            scratch_shapes=[
                pltpu.VMEM((H1 + 2, W1 + 2, Cin), jnp.bfloat16),
                pltpu.VMEM((H1 + 2, W1 + 2, Cout), jnp.bfloat16),
            ]),
        compiler_params=pltpu.CompilerParams(
            dimension_semantics=("parallel",)),
    )(x1f, x2f, u, w1, w2, s1, b1, s2, b2)

    return out.reshape(N, Cout, H1, W1)


# ----------------------------------------------------------------------------
# Pure-JAX reference (for a silent correctness check) + BN-folded params.
# ----------------------------------------------------------------------------
def _bilinear_up2_ref(x):
    """x: (N, H, W, C) -> (N, 2H, 2W, C), align_corners=True."""
    N, H, W, C = x.shape
    Ho, Wo = 2 * H, 2 * W

    def idx_w(in_size, out_size):
        if out_size == 1 or in_size == 1:
            src = jnp.zeros((out_size,), jnp.float32)
        else:
            src = jnp.arange(out_size, dtype=jnp.float32) * (in_size - 1) / (out_size - 1)
        lo = jnp.floor(src).astype(jnp.int32)
        hi = jnp.minimum(lo + 1, in_size - 1)
        return lo, hi, src - lo.astype(jnp.float32)

    ylo, yhi, yf = idx_w(H, Ho)
    xlo, xhi, xf = idx_w(W, Wo)
    rows = (x[:, ylo] * (1.0 - yf)[None, :, None, None]
            + x[:, yhi] * yf[None, :, None, None])
    return (rows[:, :, xlo] * (1.0 - xf)[None, None, :, None]
            + rows[:, :, xhi] * xf[None, None, :, None])


def _ref_conv_bn_relu(x, w, scale, bias):
    y = jax.lax.conv_general_dilated(
        x, w, window_strides=(1, 1), padding=((1, 1), (1, 1)),
        dimension_numbers=("NHWC", "HWIO", "NHWC"))
    return jnp.maximum(y * scale + bias, 0.0)


def _make_params(key, in_ch, out_ch):
    ks = jax.random.split(key, 12)
    eps = 1e-5

    def fold(kw, kb, kg, kbe, km, kv, cin, cout):
        w = jax.random.normal(kw, (3, 3, cin, cout), jnp.float32) * 0.1
        b_conv = jax.random.normal(kb, (cout,), jnp.float32) * 0.1
        gamma = 1.0 + 0.1 * jax.random.normal(kg, (cout,), jnp.float32)
        beta = 0.1 * jax.random.normal(kbe, (cout,), jnp.float32)
        mean = 0.1 * jax.random.normal(km, (cout,), jnp.float32)
        var = 0.5 + jnp.abs(jax.random.normal(kv, (cout,), jnp.float32))
        scale = gamma / jnp.sqrt(var + eps)
        bias = beta + (b_conv - mean) * scale
        return w, scale, bias

    w1, s1, b1 = fold(ks[0], ks[1], ks[2], ks[3], ks[4], ks[5], in_ch, out_ch)
    w2, s2, b2 = fold(ks[6], ks[7], ks[8], ks[9], ks[10], ks[11], out_ch, out_ch)
    return {"w1": w1, "s1": s1, "b1": b1, "w2": w2, "s2": s2, "b2": b2}


if __name__ == "__main__":
    key = jax.random.PRNGKey(0)
    k_x1, k_x2, k_p = jax.random.split(key, 3)

    # x1: skip connection (N, C1, H, W); x2: coarse map (N, C2, H/2, W/2).
    # in_channel = C1 + C2 = 8, out_channel = 4.
    x1 = jax.random.normal(k_x1, (2, 4, 16, 16), jnp.float32)
    x2 = jax.random.normal(k_x2, (2, 4, 8, 8), jnp.float32)
    params = _make_params(k_p, in_ch=8, out_ch=4)

    fwd = jax.jit(upsampling_forward)
    out = jax.block_until_ready(fwd(x1, x2, params))
    assert out.shape == (2, 4, 16, 16)

    # Silent correctness check of the fused Pallas kernel vs an f32 JAX reference
    # (kernel uses bf16 matmul operands with f32 accumulation -> loose tolerance).
    x1n = jnp.transpose(x1, (0, 2, 3, 1))
    x2u = _bilinear_up2_ref(jnp.transpose(x2, (0, 2, 3, 1)))
    xin = jnp.concatenate([x2u, x1n], axis=-1)
    ref = _ref_conv_bn_relu(xin, params["w1"], params["s1"], params["b1"])
    ref = _ref_conv_bn_relu(ref, params["w2"], params["s2"], params["b2"])
    ref = jnp.transpose(ref, (0, 3, 1, 2))
    np.testing.assert_allclose(np.asarray(out), np.asarray(ref), rtol=2e-2, atol=2e-2)

    print("KERNEL_OK")
</pallas_src>

<mosaic_0001>
module attributes {stable_mosaic.version = 11 : i64} {
  func.func @upsampling_fused_kernel(%arg0: i32, %arg1: memref<1x4x256xf32, #tpu.memory_space<vmem>>, %arg2: memref<1x4x64xf32, #tpu.memory_space<vmem>>, %arg3: memref<256x64xf32, #tpu.memory_space<vmem>>, %arg4: memref<72x4xbf16, #tpu.memory_space<vmem>>, %arg5: memref<36x4xbf16, #tpu.memory_space<vmem>>, %arg6: memref<1x4xf32, #tpu.memory_space<vmem>>, %arg7: memref<1x4xf32, #tpu.memory_space<vmem>>, %arg8: memref<1x4xf32, #tpu.memory_space<vmem>>, %arg9: memref<1x4xf32, #tpu.memory_space<vmem>>, %arg10: memref<1x4x256xf32, #tpu.memory_space<vmem>>, %arg11: memref<18x18x8xbf16, #tpu.memory_space<vmem>>, %arg12: memref<18x18x4xbf16, #tpu.memory_space<vmem>>) attributes {dimension_semantics = [#tpu.dimension_semantics<parallel>], iteration_bounds = array<i64: 2>, scalar_prefetch = 0 : i64, scratch_operands = 2 : i64, tpu.core_type = #tpu.core_type<tc>, window_params = [{transform_indices = @transform_0, window_bounds = array<i64: 1, 4, 256>}, {transform_indices = @transform_1, window_bounds = array<i64: 1, 4, 64>}, {pipeline_mode = #tpu.pipeline_mode<synchronous>, transform_indices = @transform_2, window_bounds = array<i64: 256, 64>}, {pipeline_mode = #tpu.pipeline_mode<synchronous>, transform_indices = @transform_3, window_bounds = array<i64: 72, 4>}, {pipeline_mode = #tpu.pipeline_mode<synchronous>, transform_indices = @transform_4, window_bounds = array<i64: 36, 4>}, {pipeline_mode = #tpu.pipeline_mode<synchronous>, transform_indices = @transform_5, window_bounds = array<i64: 1, 4>}, {pipeline_mode = #tpu.pipeline_mode<synchronous>, transform_indices = @transform_6, window_bounds = array<i64: 1, 4>}, {pipeline_mode = #tpu.pipeline_mode<synchronous>, transform_indices = @transform_7, window_bounds = array<i64: 1, 4>}, {pipeline_mode = #tpu.pipeline_mode<synchronous>, transform_indices = @transform_8, window_bounds = array<i64: 1, 4>}, {transform_indices = @transform_9, window_bounds = array<i64: 1, 4, 256>}]} {
    %c0 = arith.constant 0 : index
    %c0_0 = arith.constant 0 : index
    %c0_1 = arith.constant 0 : index
    %0 = vector.load %arg2[%c0, %c0_0, %c0_1] : memref<1x4x64xf32, #tpu.memory_space<vmem>>, vector<1x4x64xf32>
    %1 = vector.shape_cast %0 : vector<1x4x64xf32> to vector<4x64xf32>
    %2 = tpu.transpose %1, [1, 0] : vector<4x64xf32> -> vector<64x4xf32>
    %c0_2 = arith.constant 0 : index
    %c0_3 = arith.constant 0 : index
    %3 = vector.load %arg3[%c0_2, %c0_3] : memref<256x64xf32, #tpu.memory_space<vmem>>, vector<256x64xf32>
    %cst = arith.constant dense<0.000000e+00> : vector<256x4xf32>
    %4 = tpu.matmul %3, %2, %cst {dimension_numbers = #tpu.dot_dimension_numbers<[1], [0], [0], [1], [0, 0, 1, 1], [], []>} : vector<256x64xf32>, vector<64x4xf32>, vector<256x4xf32> -> vector<256x4xf32>
    %c0_4 = arith.constant 0 : index
    %c0_5 = arith.constant 0 : index
    %c0_6 = arith.constant 0 : index
    %5 = vector.load %arg1[%c0_4, %c0_5, %c0_6] : memref<1x4x256xf32, #tpu.memory_space<vmem>>, vector<1x4x256xf32>
    %6 = vector.shape_cast %5 : vector<1x4x256xf32> to vector<4x256xf32>
    %7 = tpu.transpose %6, [1, 0] : vector<4x256xf32> -> vector<256x4xf32>
    %8 = tpu.concatenate %4, %7 in 1 : vector<256x4xf32>, vector<256x4xf32> -> vector<256x8xf32>
    %9 = arith.truncf %8 : vector<256x8xf32> to vector<256x8xbf16>
    %10 = vector.shape_cast %9 : vector<256x8xbf16> to vector<16x16x8xbf16>
    %cst_7 = arith.constant 0.000000e+00 : bf16
    %11 = vector.broadcast %cst_7 : bf16 to vector<1x16x8xbf16>
    %cst_8 = arith.constant 0.000000e+00 : bf16
    %12 = vector.broadcast %cst_8 : bf16 to vector<18x1x8xbf16>
    %13 = tpu.concatenate %11, %10, %11 in 0 : vector<1x16x8xbf16>, vector<16x16x8xbf16>, vector<1x16x8xbf16> -> vector<18x16x8xbf16>
    %14 = tpu.concatenate %12, %13, %12 in 1 : vector<18x1x8xbf16>, vector<18x16x8xbf16>, vector<18x1x8xbf16> -> vector<18x18x8xbf16>
    %c0_9 = arith.constant 0 : index
    %c0_10 = arith.constant 0 : index
    %c0_11 = arith.constant 0 : index
    %15 = vector.load %arg11[%c0_9, %c0_10, %c0_11] : memref<18x18x8xbf16, #tpu.memory_space<vmem>>, vector<18x18x8xbf16>
    tpu.vector_store %arg11[%c0_9, %c0_10, %c0_11], %14 {strides = array<i32>} : memref<18x18x8xbf16, #tpu.memory_space<vmem>>, vector<18x18x8xbf16>,
    %c0_12 = arith.constant 0 : index
    %c0_13 = arith.constant 0 : index
    %c0_14 = arith.constant 0 : index
    %16 = vector.load %arg11[%c0_12, %c0_13, %c0_14] : memref<18x18x8xbf16, #tpu.memory_space<vmem>>, vector<16x16x8xbf16>
    %17 = vector.shape_cast %16 : vector<16x16x8xbf16> to vector<256x8xbf16>
    %c0_15 = arith.constant 0 : index
    %c1 = arith.constant 1 : index
    %c0_16 = arith.constant 0 : index
    %18 = vector.load %arg11[%c0_15, %c1, %c0_16] : memref<18x18x8xbf16, #tpu.memory_space<vmem>>, vector<16x16x8xbf16>
    %19 = vector.shape_cast %18 : vector<16x16x8xbf16> to vector<256x8xbf16>
    %c0_17 = arith.constant 0 : index
    %c2 = arith.constant 2 : index
    %c0_18 = arith.constant 0 : index
    %20 = vector.load %arg11[%c0_17, %c2, %c0_18] : memref<18x18x8xbf16, #tpu.memory_space<vmem>>, vector<16x16x8xbf16>
    %21 = vector.shape_cast %20 : vector<16x16x8xbf16> to vector<256x8xbf16>
    %c1_19 = arith.constant 1 : index
    %c0_20 = arith.constant 0 : index
    %c0_21 = arith.constant 0 : index
    %22 = vector.load %arg11[%c1_19, %c0_20, %c0_21] : memref<18x18x8xbf16, #tpu.memory_space<vmem>>, vector<16x16x8xbf16>
    %23 = vector.shape_cast %22 : vector<16x16x8xbf16> to vector<256x8xbf16>
    %c1_22 = arith.constant 1 : index
    %c1_23 = arith.constant 1 : index
    %c0_24 = arith.constant 0 : index
    %24 = vector.load %arg11[%c1_22, %c1_23, %c0_24] : memref<18x18x8xbf16, #tpu.memory_space<vmem>>, vector<16x16x8xbf16>
    %25 = vector.shape_cast %24 : vector<16x16x8xbf16> to vector<256x8xbf16>
    %c1_25 = arith.constant 1 : index
    %c2_26 = arith.constant 2 : index
    %c0_27 = arith.constant 0 : index
    %26 = vector.load %arg11[%c1_25, %c2_26, %c0_27] : memref<18x18x8xbf16, #tpu.memory_space<vmem>>, vector<16x16x8xbf16>
    %27 = vector.shape_cast %26 : vector<16x16x8xbf16> to vector<256x8xbf16>
    %c2_28 = arith.constant 2 : index
    %c0_29 = arith.constant 0 : index
    %c0_30 = arith.constant 0 : index
    %28 = vector.load %arg11[%c2_28, %c0_29, %c0_30] : memref<18x18x8xbf16, #tpu.memory_space<vmem>>, vector<16x16x8xbf16>
    %29 = vector.shape_cast %28 : vector<16x16x8xbf16> to vector<256x8xbf16>
    %c2_31 = arith.constant 2 : index
    %c1_32 = arith.constant 1 : index
    %c0_33 = arith.constant 0 : index
    %30 = vector.load %arg11[%c2_31, %c1_32, %c0_33] : memref<18x18x8xbf16, #tpu.memory_space<vmem>>, vector<16x16x8xbf16>
    %31 = vector.shape_cast %30 : vector<16x16x8xbf16> to vector<256x8xbf16>
    %c2_34 = arith.constant 2 : index
    %c2_35 = arith.constant 2 : index
    %c0_36 = arith.constant 0 : index
    %32 = vector.load %arg11[%c2_34, %c2_35, %c0_36] : memref<18x18x8xbf16, #tpu.memory_space<vmem>>, vector<16x16x8xbf16>
    %33 = vector.shape_cast %32 : vector<16x16x8xbf16> to vector<256x8xbf16>
    %34 = tpu.concatenate %17, %19, %21, %23, %25, %27, %29, %31, %33 in 1 : vector<256x8xbf16>, vector<256x8xbf16>, vector<256x8xbf16>, vector<256x8xbf16>, vector<256x8xbf16>, vector<256x8xbf16>, vector<256x8xbf16>, vector<256x8xbf16>, vector<256x8xbf16> -> vector<256x72xbf16>
    %c0_37 = arith.constant 0 : index
    %c0_38 = arith.constant 0 : index
    %35 = vector.load %arg4[%c0_37, %c0_38] : memref<72x4xbf16, #tpu.memory_space<vmem>>, vector<72x4xbf16>
    %cst_39 = arith.constant dense<0.000000e+00> : vector<256x4xf32>
    %36 = tpu.matmul %34, %35, %cst_39 {dimension_numbers = #tpu.dot_dimension_numbers<[1], [0], [0], [1], [0, 0, 1, 1], [], []>} : vector<256x72xbf16>, vector<72x4xbf16>, vector<256x4xf32> -> vector<256x4xf32>
    %c0_40 = arith.constant 0 : index
    %c0_41 = arith.constant 0 : index
    %37 = vector.load %arg6[%c0_40, %c0_41] : memref<1x4xf32, #tpu.memory_space<vmem>>, vector<1x4xf32>
    %38 = vector.broadcast %37 : vector<1x4xf32> to vector<256x4xf32>
    %39 = arith.mulf %36, %38 : vector<256x4xf32>
    %c0_42 = arith.constant 0 : index
    %c0_43 = arith.constant 0 : index
    %40 = vector.load %arg7[%c0_42, %c0_43] : memref<1x4xf32, #tpu.memory_space<vmem>>, vector<1x4xf32>
    %41 = vector.broadcast %40 : vector<1x4xf32> to vector<256x4xf32>
    %42 = arith.addf %39, %41 : vector<256x4xf32>
    %cst_44 = arith.constant 0.000000e+00 : f32
    %43 = vector.broadcast %cst_44 : f32 to vector<256x4xf32>
    %44 = arith.maximumf %42, %43 : vector<256x4xf32>
    %45 = arith.truncf %44 : vector<256x4xf32> to vector<256x4xbf16>
    %46 = vector.shape_cast %45 : vector<256x4xbf16> to vector<16x16x4xbf16>
    %cst_45 = arith.constant 0.000000e+00 : bf16
    %47 = vector.broadcast %cst_45 : bf16 to vector<1x16x4xbf16>
    %cst_46 = arith.constant 0.000000e+00 : bf16
    %48 = vector.broadcast %cst_46 : bf16 to vector<18x1x4xbf16>
    %49 = tpu.concatenate %47, %46, %47 in 0 : vector<1x16x4xbf16>, vector<16x16x4xbf16>, vector<1x16x4xbf16> -> vector<18x16x4xbf16>
    %50 = tpu.concatenate %48, %49, %48 in 1 : vector<18x1x4xbf16>, vector<18x16x4xbf16>, vector<18x1x4xbf16> -> vector<18x18x4xbf16>
    %c0_47 = arith.constant 0 : index
    %c0_48 = arith.constant 0 : index
    %c0_49 = arith.constant 0 : index
    %51 = vector.load %arg12[%c0_47, %c0_48, %c0_49] : memref<18x18x4xbf16, #tpu.memory_space<vmem>>, vector<18x18x4xbf16>
    tpu.vector_store %arg12[%c0_47, %c0_48, %c0_49], %50 {strides = array<i32>} : memref<18x18x4xbf16, #tpu.memory_space<vmem>>, vector<18x18x4xbf16>,
    %c0_50 = arith.constant 0 : index
    %c0_51 = arith.constant 0 : index
    %c0_52 = arith.constant 0 : index
    %52 = vector.load %arg12[%c0_50, %c0_51, %c0_52] : memref<18x18x4xbf16, #tpu.memory_space<vmem>>, vector<16x16x4xbf16>
    %53 = vector.shape_cast %52 : vector<16x16x4xbf16> to vector<256x4xbf16>
    %c0_53 = arith.constant 0 : index
    %c1_54 = arith.constant 1 : index
    %c0_55 = arith.constant 0 : index
    %54 = vector.load %arg12[%c0_53, %c1_54, %c0_55] : memref<18x18x4xbf16, #tpu.memory_space<vmem>>, vector<16x16x4xbf16>
    %55 = vector.shape_cast %54 : vector<16x16x4xbf16> to vector<256x4xbf16>
    %c0_56 = arith.constant 0 : index
    %c2_57 = arith.constant 2 : index
    %c0_58 = arith.constant 0 : index
    %56 = vector.load %arg12[%c0_56, %c2_57, %c0_58] : memref<18x18x4xbf16, #tpu.memory_space<vmem>>, vector<16x16x4xbf16>
    %57 = vector.shape_cast %56 : vector<16x16x4xbf16> to vector<256x4xbf16>
    %c1_59 = arith.constant 1 : index
    %c0_60 = arith.constant 0 : index
    %c0_61 = arith.constant 0 : index
    %58 = vector.load %arg12[%c1_59, %c0_60, %c0_61] : memref<18x18x4xbf16, #tpu.memory_space<vmem>>, vector<16x16x4xbf16>
    %59 = vector.shape_cast %58 : vector<16x16x4xbf16> to vector<256x4xbf16>
    %c1_62 = arith.constant 1 : index
    %c1_63 = arith.constant 1 : index
    %c0_64 = arith.constant 0 : index
    %60 = vector.load %arg12[%c1_62, %c1_63, %c0_64] : memref<18x18x4xbf16, #tpu.memory_space<vmem>>, vector<16x16x4xbf16>
    %61 = vector.shape_cast %60 : vector<16x16x4xbf16> to vector<256x4xbf16>
    %c1_65 = arith.constant 1 : index
    %c2_66 = arith.constant 2 : index
    %c0_67 = arith.constant 0 : index
    %62 = vector.load %arg12[%c1_65, %c2_66, %c0_67] : memref<18x18x4xbf16, #tpu.memory_space<vmem>>, vector<16x16x4xbf16>
    %63 = vector.shape_cast %62 : vector<16x16x4xbf16> to vector<256x4xbf16>
    %c2_68 = arith.constant 2 : index
    %c0_69 = arith.constant 0 : index
    %c0_70 = arith.constant 0 : index
    %64 = vector.load %arg12[%c2_68, %c0_69, %c0_70] : memref<18x18x4xbf16, #tpu.memory_space<vmem>>, vector<16x16x4xbf16>
    %65 = vector.shape_cast %64 : vector<16x16x4xbf16> to vector<256x4xbf16>
    %c2_71 = arith.constant 2 : index
    %c1_72 = arith.constant 1 : index
    %c0_73 = arith.constant 0 : index
    %66 = vector.load %arg12[%c2_71, %c1_72, %c0_73] : memref<18x18x4xbf16, #tpu.memory_space<vmem>>, vector<16x16x4xbf16>
    %67 = vector.shape_cast %66 : vector<16x16x4xbf16> to vector<256x4xbf16>
    %c2_74 = arith.constant 2 : index
    %c2_75 = arith.constant 2 : index
    %c0_76 = arith.constant 0 : index
    %68 = vector.load %arg12[%c2_74, %c2_75, %c0_76] : memref<18x18x4xbf16, #tpu.memory_space<vmem>>, vector<16x16x4xbf16>
    %69 = vector.shape_cast %68 : vector<16x16x4xbf16> to vector<256x4xbf16>
    %70 = tpu.concatenate %53, %55, %57, %59, %61, %63, %65, %67, %69 in 1 : vector<256x4xbf16>, vector<256x4xbf16>, vector<256x4xbf16>, vector<256x4xbf16>, vector<256x4xbf16>, vector<256x4xbf16>, vector<256x4xbf16>, vector<256x4xbf16>, vector<256x4xbf16> -> vector<256x36xbf16>
    %c0_77 = arith.constant 0 : index
    %c0_78 = arith.constant 0 : index
    %71 = vector.load %arg5[%c0_77, %c0_78] : memref<36x4xbf16, #tpu.memory_space<vmem>>, vector<36x4xbf16>
    %cst_79 = arith.constant dense<0.000000e+00> : vector<256x4xf32>
    %72 = tpu.matmul %70, %71, %cst_79 {dimension_numbers = #tpu.dot_dimension_numbers<[1], [0], [0], [1], [0, 0, 1, 1], [], []>} : vector<256x36xbf16>, vector<36x4xbf16>, vector<256x4xf32> -> vector<256x4xf32>
    %c0_80 = arith.constant 0 : index
    %c0_81 = arith.constant 0 : index
    %73 = vector.load %arg8[%c0_80, %c0_81] : memref<1x4xf32, #tpu.memory_space<vmem>>, vector<1x4xf32>
    %74 = vector.broadcast %73 : vector<1x4xf32> to vector<256x4xf32>
    %75 = arith.mulf %72, %74 : vector<256x4xf32>
    %c0_82 = arith.constant 0 : index
    %c0_83 = arith.constant 0 : index
    %76 = vector.load %arg9[%c0_82, %c0_83] : memref<1x4xf32, #tpu.memory_space<vmem>>, vector<1x4xf32>
    %77 = vector.broadcast %76 : vector<1x4xf32> to vector<256x4xf32>
    %78 = arith.addf %75, %77 : vector<256x4xf32>
    %cst_84 = arith.constant 0.000000e+00 : f32
    %79 = vector.broadcast %cst_84 : f32 to vector<256x4xf32>
    %80 = arith.maximumf %78, %79 : vector<256x4xf32>
    %81 = tpu.transpose %80, [1, 0] : vector<256x4xf32> -> vector<4x256xf32>
    %c0_85 = arith.constant 0 : index
    %c0_86 = arith.constant 0 : index
    %c0_87 = arith.constant 0 : index
    %82 = vector.load %arg10[%c0_85, %c0_86, %c0_87] : memref<1x4x256xf32, #tpu.memory_space<vmem>>, vector<1x4x256xf32>
    %83 = vector.shape_cast %82 : vector<1x4x256xf32> to vector<4x256xf32>
    %84 = vector.shape_cast %81 : vector<4x256xf32> to vector<1x4x256xf32>
    tpu.vector_store %arg10[%c0_85, %c0_86, %c0_87], %84 {strides = array<i32>} : memref<1x4x256xf32, #tpu.memory_space<vmem>>, vector<1x4x256xf32>,
    return
  }
  func.func @transform_0(%arg0: i32) -> (i32, i32, i32) {
    %c0_i32 = arith.constant 0 : i32
    %c0_i32_0 = arith.constant 0 : i32
    %c0_i32_1 = arith.constant 0 : i32
    return %arg0, %c0_i32, %c0_i32_0 : i32, i32, i32
  }
  func.func @transform_1(%arg0: i32) -> (i32, i32, i32) {
    %c0_i32 = arith.constant 0 : i32
    %c0_i32_0 = arith.constant 0 : i32
    %c0_i32_1 = arith.constant 0 : i32
    return %arg0, %c0_i32, %c0_i32_0 : i32, i32, i32
  }
  func.func @transform_2(%arg0: i32) -> (i32, i32) {
    %c0_i32 = arith.constant 0 : i32
    %c0_i32_0 = arith.constant 0 : i32
    %c0_i32_1 = arith.constant 0 : i32
    return %c0_i32, %c0_i32_0 : i32, i32
  }
  func.func @transform_3(%arg0: i32) -> (i32, i32) {
    %c0_i32 = arith.constant 0 : i32
    %c0_i32_0 = arith.constant 0 : i32
    %c0_i32_1 = arith.constant 0 : i32
    return %c0_i32, %c0_i32_0 : i32, i32
  }
  func.func @transform_4(%arg0: i32) -> (i32, i32) {
    %c0_i32 = arith.constant 0 : i32
    %c0_i32_0 = arith.constant 0 : i32
    %c0_i32_1 = arith.constant 0 : i32
    return %c0_i32, %c0_i32_0 : i32, i32
  }
  func.func @transform_5(%arg0: i32) -> (i32, i32) {
    %c0_i32 = arith.constant 0 : i32
    %c0_i32_0 = arith.constant 0 : i32
    %c0_i32_1 = arith.constant 0 : i32
    return %c0_i32, %c0_i32_0 : i32, i32
  }
  func.func @transform_6(%arg0: i32) -> (i32, i32) {
    %c0_i32 = arith.constant 0 : i32
    %c0_i32_0 = arith.constant 0 : i32
    %c0_i32_1 = arith.constant 0 : i32
    return %c0_i32, %c0_i32_0 : i32, i32
  }
  func.func @transform_7(%arg0: i32) -> (i32, i32) {
    %c0_i32 = arith.constant 0 : i32
    %c0_i32_0 = arith.constant 0 : i32
    %c0_i32_1 = arith.constant 0 : i32
    return %c0_i32, %c0_i32_0 : i32, i32
  }
  func.func @transform_8(%arg0: i32) -> (i32, i32) {
    %c0_i32 = arith.constant 0 : i32
    %c0_i32_0 = arith.constant 0 : i32
    %c0_i32_1 = arith.constant 0 : i32
    return %c0_i32, %c0_i32_0 : i32, i32
  }
  func.func @transform_9(%arg0: i32) -> (i32, i32, i32) {
    %c0_i32 = arith.constant 0 : i32
    %c0_i32_0 = arith.constant 0 : i32
    %c0_i32_1 = arith.constant 0 : i32
    return %arg0, %c0_i32, %c0_i32_0 : i32, i32, i32
  }
}

</mosaic_0001>

<llo_original>
// kernel: upsampling_forward.1
$region0: #{upsampling_forward.1}
  #allocation0 [shape = 'u32[]', space=smem, size = 0x4, offset = 0x4, fixed_abs, tag = 'smem constant byte address 0x4 - core index']
  #allocation1 [shape = 'u32[72,128]{1,0:T(1,128)}', space=vmem, size = 0x9000, scoped, tag = 'internal scratch']
  #allocation2 [shape = 'bf16[18,18,8]{2,1,0:T(8,128)(2,1)}', space=vmem, size = 0x1b000, scoped, tag = 'scratch operand']
  #allocation3 [shape = 'bf16[18,18,4]{2,1,0:T(8,128)(2,1)}', space=vmem, size = 0x1b000, scoped, tag = 'scratch operand']
  %s0 = inlined_call_operand.vmem [shape: f32[2,4,256], index: 0, kind: input, shape index: {}]
  %s1 = inlined_call_operand.vmem [shape: f32[2,4,64], index: 1, kind: input, shape index: {}]
  %s2 = inlined_call_operand.hbm [shape: f32[256,64], index: 2, kind: input, shape index: {}]
  %s3 = inlined_call_operand.vmem [shape: bf16[72,4], index: 3, kind: input, shape index: {}]
  %s4 = inlined_call_operand.vmem [shape: bf16[36,4], index: 4, kind: input, shape index: {}]
  %s5 = inlined_call_operand.vmem [shape: f32[1,4], index: 5, kind: input, shape index: {}]
  %s6 = inlined_call_operand.vmem [shape: f32[1,4], index: 6, kind: input, shape index: {}]
  %s7 = inlined_call_operand.vmem [shape: f32[1,4], index: 7, kind: input, shape index: {}]
  %s8 = inlined_call_operand.vmem [shape: f32[1,4], index: 8, kind: input, shape index: {}]
  %s9 = inlined_call_operand.vmem [shape: f32[2,4,256], index: 9, kind: output, shape index: {}]
  %s10 = sld [smem:[#allocation0]]
  $region73: #{upsampling_forward.1} parent=0
    _
  %s12 = ssub.s32 1, %s10
  %s13 = scalar_select 0, %s12, %s10
  $region1: #{upsampling_forward.1} parent=0
    #allocation4 [shape = 'u8[131072]{0}', space=vmem, size = 0x20000, scoped, tag = 'input window, operand 2, single buffered']
    #allocation5 [shape = 's32[2]{0}', space=sflag, size = 0x8, scoped, tag = 'scoped memory for upsampling_forward.1']
    %14 = vsyncpa [#allocation5], 0
    loop: start=0, step=1, limit=4
    $region2: #{upsampling_forward.1} parent=1 // loop_pre_header
      _
    $region3: #{upsampling_forward.1} parent=1 // loop_header
      %s16 = sphi 0, %s20
      %p17 = scmp.ge.s32.totalorder %s16, 4
      %s26 = sphi 0, %s28
      %s29 = sphi 0, %s26
      %s30 = sphi 0, %s29
      %s46 = sphi 0, %s30
      %s52 = sphi 0, %s54
      %s55 = sphi 0, %s52
      %s56 = sphi 0, %s55
      %s72 = sphi 0, %s56
      %s76 = sphi 0, %s76
      %s78 = sphi 0, %s76
      %s79 = sphi 0, %s78
      %s93 = sphi 0, %s79
      %s97 = sphi 0, %s97
      %s99 = sphi 0, %s97
      %s100 = sphi 0, %s99
      %s114 = sphi 0, %s100
      %s118 = sphi 0, %s118
      %s120 = sphi 0, %s118
      %s121 = sphi 0, %s120
      %s135 = sphi 0, %s121
      %s139 = sphi 0, %s139
      %s141 = sphi 0, %s139
      %s142 = sphi 0, %s141
      %s156 = sphi 0, %s142
      %s160 = sphi 0, %s160
      %s162 = sphi 0, %s160
      %s163 = sphi 0, %s162
      %s177 = sphi 0, %s163
      %s181 = sphi 0, %s181
      %s183 = sphi 0, %s181
      %s184 = sphi 0, %s183
      %s198 = sphi 0, %s184
      %s202 = sphi 0, %s202
      %s204 = sphi 0, %s202
      %s205 = sphi 0, %s204
      %s219 = sphi 0, %s205
      %s225 = sphi 0, %s227
      %s228 = sphi 0, %s225
      %s229 = sphi 0, %s228
      %s245 = sphi 0, %s229
    $region4: #{upsampling_forward.1} parent=1 // loop_header_branch
      %19 = sbr.rel (%p17) target = $region8
    $region5: #{upsampling_forward.1} parent=1 // loop_body
      %s21 = ssub.s32 %s16, 1
      %s22 = ssub.s32 %s16, 2
      %s23 = sadd.s32 %s16, 1
      %s24 = ssub.s32 %s16, %s23
      %p25 = scmp.eq.s32.totalorder %s24, 0
      %s27 = sadd.s32 %s26, 1
      %s28 = scalar_select %p25, %s26, %s27
      %p31 = pneg %p25
      %p32 = scmp.eq.s32.totalorder %s16, 1
      %p33 = por %p31, %p32
      %p34 = scmp.ne.s32.totalorder %s26, %s29
      %p35 = scmp.eq.s32.totalorder %s16, 0
      %p36 = por %p34, %p35
      %p37 = scmp.ne.s32.totalorder %s26, %s29
      %p38 = scmp.eq.s32.totalorder %s21, 1
      %p39 = por %p37, %p38
      %p40 = scmp.ne.s32.totalorder %s29, %s30
      %p41 = scmp.eq.s32.totalorder %s21, 0
      %p42 = por %p40, %p41
      %p43 = scmp.ne.s32.totalorder %s29, %s30
      %p44 = scmp.eq.s32.totalorder %s22, 1
      %p45 = por %p43, %p44
      %p47 = scmp.ne.s32.totalorder %s30, %s46
      %p48 = scmp.eq.s32.totalorder %s22, 0
      %p49 = por %p47, %p48
      %s50 = ssub.s32 %s16, %s23
      %p51 = scmp.eq.s32.totalorder %s50, 0
      %s53 = sadd.s32 %s52, 1
      %s54 = scalar_select %p51, %s52, %s53
      %p57 = pneg %p51
      %p58 = scmp.eq.s32.totalorder %s16, 1
      %p59 = por %p57, %p58
      %p60 = scmp.ne.s32.totalorder %s52, %s55
      %p61 = scmp.eq.s32.totalorder %s16, 0
      %p62 = por %p60, %p61
      %p63 = scmp.ne.s32.totalorder %s52, %s55
      %p64 = scmp.eq.s32.totalorder %s21, 1
      %p65 = por %p63, %p64
      %p66 = scmp.ne.s32.totalorder %s55, %s56
      %p67 = scmp.eq.s32.totalorder %s21, 0
      %p68 = por %p66, %p67
      %p69 = scmp.ne.s32.totalorder %s55, %s56
      %p70 = scmp.eq.s32.totalorder %s22, 1
      %p71 = por %p69, %p70
      %p73 = scmp.ne.s32.totalorder %s56, %s72
      %p74 = scmp.eq.s32.totalorder %s22, 0
      %p75 = por %p73, %p74
      %s77 = sadd.s32 %s76, 1
      %p80 = scmp.eq.s32.totalorder %s16, 1
      %p81 = scmp.ne.s32.totalorder %s76, %s78
      %p82 = scmp.eq.s32.totalorder %s16, 0
      %p83 = por %p81, %p82
      %p84 = scmp.ne.s32.totalorder %s76, %s78
      %p85 = scmp.eq.s32.totalorder %s21, 1
      %p86 = por %p84, %p85
      %p87 = scmp.ne.s32.totalorder %s78, %s79
      %p88 = scmp.eq.s32.totalorder %s21, 0
      %p89 = por %p87, %p88
      %p90 = scmp.ne.s32.totalorder %s78, %s79
      %p91 = scmp.eq.s32.totalorder %s22, 1
      %p92 = por %p90, %p91
      %p94 = scmp.ne.s32.totalorder %s79, %s93
      %p95 = scmp.eq.s32.totalorder %s22, 0
      %p96 = por %p94, %p95
      %s98 = sadd.s32 %s97, 1
      %p101 = scmp.eq.s32.totalorder %s16, 1
      %p102 = scmp.ne.s32.totalorder %s97, %s99
      %p103 = scmp.eq.s32.totalorder %s16, 0
      %p104 = por %p102, %p103
      %p105 = scmp.ne.s32.totalorder %s97, %s99
      %p106 = scmp.eq.s32.totalorder %s21, 1
      %p107 = por %p105, %p106
      %p108 = scmp.ne.s32.totalorder %s99, %s100
      %p109 = scmp.eq.s32.totalorder %s21, 0
      %p110 = por %p108, %p109
      %p111 = scmp.ne.s32.totalorder %s99, %s100
      %p112 = scmp.eq.s32.totalorder %s22, 1
      %p113 = por %p111, %p112
      %p115 = scmp.ne.s32.totalorder %s100, %s114
      %p116 = scmp.eq.s32.totalorder %s22, 0
      %p117 = por %p115, %p116
      %s119 = sadd.s32 %s118, 1
      %p122 = scmp.eq.s32.totalorder %s16, 1
      %p123 = scmp.ne.s32.totalorder %s118, %s120
      %p124 = scmp.eq.s32.totalorder %s16, 0
      %p125 = por %p123, %p124
      %p126 = scmp.ne.s32.totalorder %s118, %s120
      %p127 = scmp.eq.s32.totalorder %s21, 1
      %p128 = por %p126, %p127
      %p129 = scmp.ne.s32.totalorder %s120, %s121
      %p130 = scmp.eq.s32.totalorder %s21, 0
      %p131 = por %p129, %p130
      %p132 = scmp.ne.s32.totalorder %s120, %s121
      %p133 = scmp.eq.s32.totalorder %s22, 1
      %p134 = por %p132, %p133
      %p136 = scmp.ne.s32.totalorder %s121, %s135
      %p137 = scmp.eq.s32.totalorder %s22, 0
      %p138 = por %p136, %p137
      %s140 = sadd.s32 %s139, 1
      %p143 = scmp.eq.s32.totalorder %s16, 1
      %p144 = scmp.ne.s32.totalorder %s139, %s141
      %p145 = scmp.eq.s32.totalorder %s16, 0
      %p146 = por %p144, %p145
      %p147 = scmp.ne.s32.totalorder %s139, %s141
      %p148 = scmp.eq.s32.totalorder %s21, 1
      %p149 = por %p147, %p148
      %p150 = scmp.ne.s32.totalorder %s141, %s142
      %p151 = scmp.eq.s32.totalorder %s21, 0
      %p152 = por %p150, %p151
      %p153 = scmp.ne.s32.totalorder %s141, %s142
      %p154 = scmp.eq.s32.totalorder %s22, 1
      %p155 = por %p153, %p154
      %p157 = scmp.ne.s32.totalorder %s142, %s156
      %p158 = scmp.eq.s32.totalorder %s22, 0
      %p159 = por %p157, %p158
      %s161 = sadd.s32 %s160, 1
      %p164 = scmp.eq.s32.totalorder %s16, 1
      %p165 = scmp.ne.s32.totalorder %s160, %s162
      %p166 = scmp.eq.s32.totalorder %s16, 0
      %p167 = por %p165, %p166
      %p168 = scmp.ne.s32.totalorder %s160, %s162
      %p169 = scmp.eq.s32.totalorder %s21, 1
      %p170 = por %p168, %p169
      %p171 = scmp.ne.s32.totalorder %s162, %s163
      %p172 = scmp.eq.s32.totalorder %s21, 0
      %p173 = por %p171, %p172
      %p174 = scmp.ne.s32.totalorder %s162, %s163
      %p175 = scmp.eq.s32.totalorder %s22, 1
      %p176 = por %p174, %p175
      %p178 = scmp.ne.s32.totalorder %s163, %s177
      %p179 = scmp.eq.s32.totalorder %s22, 0
      %p180 = por %p178, %p179
      %s182 = sadd.s32 %s181, 1
      %p185 = scmp.eq.s32.totalorder %s16, 1
      %p186 = scmp.ne.s32.totalorder %s181, %s183
      %p187 = scmp.eq.s32.totalorder %s16, 0
      %p188 = por %p186, %p187
      %p189 = scmp.ne.s32.totalorder %s181, %s183
      %p190 = scmp.eq.s32.totalorder %s21, 1
      %p191 = por %p189, %p190
      %p192 = scmp.ne.s32.totalorder %s183, %s184
      %p193 = scmp.eq.s32.totalorder %s21, 0
      %p194 = por %p192, %p193
      %p195 = scmp.ne.s32.totalorder %s183, %s184
      %p196 = scmp.eq.s32.totalorder %s22, 1
      %p197 = por %p195, %p196
      %p199 = scmp.ne.s32.totalorder %s184, %s198
      %p200 = scmp.eq.s32.totalorder %s22, 0
      %p201 = por %p199, %p200
      %s203 = sadd.s32 %s202, 1
      %p206 = scmp.eq.s32.totalorder %s16, 1
      %p207 = scmp.ne.s32.totalorder %s202, %s204
      %p208 = scmp.eq.s32.totalorder %s16, 0
      %p209 = por %p207, %p208
      %p210 = scmp.ne.s32.totalorder %s202, %s204
      %p211 = scmp.eq.s32.totalorder %s21, 1
      %p212 = por %p210, %p211
      %p213 = scmp.ne.s32.totalorder %s204, %s205
      %p214 = scmp.eq.s32.totalorder %s21, 0
      %p215 = por %p213, %p214
      %p216 = scmp.ne.s32.totalorder %s204, %s205
      %p217 = scmp.eq.s32.totalorder %s22, 1
      %p218 = por %p216, %p217
      %p220 = scmp.ne.s32.totalorder %s205, %s219
      %p221 = scmp.eq.s32.totalorder %s22, 0
      %p222 = por %p220, %p221
      %s223 = ssub.s32 %s16, %s23
      %p224 = scmp.eq.s32.totalorder %s223, 0
      %s226 = sadd.s32 %s225, 1
      %s227 = scalar_select %p224, %s225, %s226
      %p230 = pneg %p224
      %p231 = scmp.eq.s32.totalorder %s16, 1
      %p232 = por %p230, %p231
      %p233 = scmp.ne.s32.totalorder %s225, %s228
      %p234 = scmp.eq.s32.totalorder %s16, 0
      %p235 = por %p233, %p234
      %p236 = scmp.ne.s32.totalorder %s225, %s228
      %p237 = scmp.eq.s32.totalorder %s21, 1
      %p238 = por %p236, %p237
      %p239 = scmp.ne.s32.totalorder %s228, %s229
      %p240 = scmp.eq.s32.totalorder %s21, 0
      %p241 = por %p239, %p240
      %p242 = scmp.ne.s32.totalorder %s228, %s229
      %p243 = scmp.eq.s32.totalorder %s22, 1
      %p244 = por %p242, %p243
      %p246 = scmp.ne.s32.totalorder %s229, %s245
      %p247 = scmp.eq.s32.totalorder %s22, 0
      %p248 = por %p246, %p247
      %p249 = scmp.le.s32.totalorder 1, %s16
      %p250 = scmp.lt.s32.totalorder %s16, 3
      %p251 = pnand %p249, %p250
      %p252 = pneg %p251
      // Predicated region
      $region9: #{upsampling_forward.1} parent=5 // pred_check
        _
      $region10: #{upsampling_forward.1} parent=5 // pred_check_branch
        %254 = sbr.rel (%p251) target = $region12
      $region11: #{upsampling_forward.1} parent=5 // pred_region
        %s255 = ssub.s32 %s16, 1
        // Predicated region
        $region13: #{upsampling_forward.1} parent=11 // pred_check
          %p256 = pneg %p89
        $region14: #{upsampling_forward.1} parent=11 // pred_check_branch
          %258 = sbr.rel (%p256) target = $region16
        $region15: #{upsampling_forward.1} parent=11 // pred_region
          %260 = vsyncadd [#allocation5], 0
          %s261 = sshll.u32 %s2, 4
          %s262 = int_to_ptr.hbm [resolvable:$true] %s261
          %s263 = sshll.u32 [#allocation4], 4
          %s264 = int_to_ptr.vmem [resolvable:$true] %s263
          %269 = dma.hbm_to_vmem [thread:$0]  %s262, 4096, %s264, [#allocation5], 128, 128, 8
        $region16: #{upsampling_forward.1} parent=11 // pred_fallthru
          _
        // Predicated region
        $region17: #{upsampling_forward.1} parent=11 // pred_check
          %p270 = pneg %p110
        $region18: #{upsampling_forward.1} parent=11 // pred_check_branch
          %272 = sbr.rel (%p270) target = $region20
        $region19: #{upsampling_forward.1} parent=11 // pred_region
          _
        $region20: #{upsampling_forward.1} parent=11 // pred_fallthru
          _
        // Predicated region
        $region21: #{upsampling_forward.1} parent=11 // pred_check
          %p273 = pneg %p131
        $region22: #{upsampling_forward.1} parent=11 // pred_check_branch
          %275 = sbr.rel (%p273) target = $region24
        $region23: #{upsampling_forward.1} parent=11 // pred_region
          _
        $region24: #{upsampling_forward.1} parent=11 // pred_fallthru
          _
        // Predicated region
        $region25: #{upsampling_forward.1} parent=11 // pred_check
          %p276 = pneg %p152
        $region26: #{upsampling_forward.1} parent=11 // pred_check_branch
          %278 = sbr.rel (%p276) target = $region28
        $region27: #{upsampling_forward.1} parent=11 // pred_region
          _
        $region28: #{upsampling_forward.1} parent=11 // pred_fallthru
          _
        // Predicated region
        $region29: #{upsampling_forward.1} parent=11 // pred_check
          %p279 = pneg %p173
        $region30: #{upsampling_forward.1} parent=11 // pred_check_branch
          %281 = sbr.rel (%p279) target = $region32
        $region31: #{upsampling_forward.1} parent=11 // pred_region
          _
        $region32: #{upsampling_forward.1} parent=11 // pred_fallthru
          _
        // Predicated region
        $region33: #{upsampling_forward.1} parent=11 // pred_check
          %p282 = pneg %p194
        $region34: #{upsampling_forward.1} parent=11 // pred_check_branch
          %284 = sbr.rel (%p282) target = $region36
        $region35: #{upsampling_forward.1} parent=11 // pred_region
          _
        $region36: #{upsampling_forward.1} parent=11 // pred_fallthru
          _
        // Predicated region
        $region37: #{upsampling_forward.1} parent=11 // pred_check
          %p285 = pneg %p215
        $region38: #{upsampling_forward.1} parent=11 // pred_check_branch
          %287 = sbr.rel (%p285) target = $region40
        $region39: #{upsampling_forward.1} parent=11 // pred_region
          _
        $region40: #{upsampling_forward.1} parent=11 // pred_fallthru
          _
      $region12: #{upsampling_forward.1} parent=5 // pred_fallthru
        _
      %p288 = scmp.lt.s32.totalorder %s16, 2
      // Predicated region
      $region41: #{upsampling_forward.1} parent=5 // pred_check
        %p289 = pneg %p288
      $region42: #{upsampling_forward.1} parent=5 // pred_check_branch
        %291 = sbr.rel (%p289) target = $region44
      $region43: #{upsampling_forward.1} parent=5 // pred_region
        // Predicated region
        $region45: #{upsampling_forward.1} parent=43 // pred_check
          %p292 = pneg %p36
        $region46: #{upsampling_forward.1} parent=43 // pred_check_branch
          %294 = sbr.rel (%p292) target = $region48
        $region47: #{upsampling_forward.1} parent=43 // pred_region
          %p295 = scmp.lt.s32.totalorder %s16, 1
          %s296 = scalar_select %p295, %s16, 1
          %s297 = smul.addr %s296, 2
          %s298 = smul.addr %s297, 4
          %s299 = scalar_lea.vmem %s0, %s298
        $region48: #{upsampling_forward.1} parent=43 // pred_fallthru
          _
        // Predicated region
        $region49: #{upsampling_forward.1} parent=43 // pred_check
          %p300 = pneg %p62
        $region50: #{upsampling_forward.1} parent=43 // pred_check_branch
          %302 = sbr.rel (%p300) target = $region52
        $region51: #{upsampling_forward.1} parent=43 // pred_region
          %p303 = scmp.lt.s32.totalorder %s16, 1
          %s304 = scalar_select %p303, %s16, 1
          %s305 = smul.addr %s304, 4
          %s306 = scalar_lea.vmem %s1, %s305
        $region52: #{upsampling_forward.1} parent=43 // pred_fallthru
          _
      $region44: #{upsampling_forward.1} parent=5 // pred_fallthru
        _
      %p307 = scmp.le.s32.totalorder 1, %s16
      %p308 = scmp.lt.s32.totalorder %s16, 3
      %p309 = pnand %p307, %p308
      %p310 = pneg %p309
      // Predicated region
      $region53: #{upsampling_forward.1} parent=5 // pred_check
        _
      $region54: #{upsampling_forward.1} parent=5 // pred_check_branch
        %312 = sbr.rel (%p309) target = $region56
      $region55: #{upsampling_forward.1} parent=5 // pred_region
        %s313 = ssub.s32 %s16, 1
        // Predicated region
        $region57: #{upsampling_forward.1} parent=55 // pred_check
          %p314 = pneg %p89
        $region58: #{upsampling_forward.1} parent=55 // pred_check_branch
          %316 = sbr.rel (%p314) target = $region60
        $region59: #{upsampling_forward.1} parent=55 // pred_region
          %318 = dma.done [#allocation5], 4096
        $region60: #{upsampling_forward.1} parent=55 // pred_fallthru
          _
        %p319 = scmp.lt.s32.totalorder %s21, 1
        %s320 = scalar_select %p319, %s21, 1
        %s321 = smul.addr %s320, 2
        %s322 = smul.addr %s321, 4
        %s323 = scalar_lea.vmem %s0, %s322
        %p324 = pneg %p42
        %p325 = pneg %p39
        %p326 = scmp.lt.s32.totalorder %s21, 1
        %s327 = scalar_select %p326, %s21, 1
        %s328 = smul.addr %s327, 4
        %s329 = scalar_lea.vmem %s1, %s328
        %p330 = pneg %p68
        %p331 = pneg %p65
        %p332 = pneg %p89
        %p333 = pneg %p86
        %p334 = pneg %p110
        %p335 = pneg %p107
        %p336 = pneg %p131
        %p337 = pneg %p128
        %p338 = pneg %p152
        %p339 = pneg %p149
        %p340 = pneg %p173
        %p341 = pneg %p170
        %p342 = pneg %p194
        %p343 = pneg %p191
        %p344 = pneg %p215
        %p345 = pneg %p212
        %p346 = pneg %p241
        %p347 = pneg %p238
        %p348 = scmp.lt.s32.totalorder %s21, 1
        %s349 = scalar_select %p348, %s21, 1
        %s350 = smul.addr %s349, 2
        %s351 = smul.addr %s350, 4
        %s352 = scalar_lea.vmem %s9, %s351
        %p353 = scmp.lt.s32.totalorder %s21, 1
        %s354 = scalar_select %p353, %s21, 1
        %s355 = smul.addr %s354, 2
        %s356 = smul.addr %s355, 4
        %s357 = scalar_lea.vmem %s0, %s356
        %p358 = scmp.lt.s32.totalorder %s21, 1
        %s359 = scalar_select %p358, %s21, 1
        %s360 = smul.addr %s359, 4
        %s361 = scalar_lea.vmem %s1, %s360
        %p362 = scmp.lt.s32.totalorder %s21, 1
        %s363 = scalar_select %p362, %s21, 1
        %s364 = smul.addr %s363, 2
        %s365 = smul.addr %s364, 4
        %s366 = scalar_lea.vmem %s9, %s365
        %v368 = vld [vmem:[%s361] sm:$0xf]
        %v369 = vld [vmem:[#allocation4] sm:$0xff]
        %v370 = vld [vmem:[#allocation4 + $0x8] sm:$0xff]
        %v371 = vld [vmem:[#allocation4 + $0x10] sm:$0xff]
        %v372 = vld [vmem:[#allocation4 + $0x18] sm:$0xff]
        %v373 = vld [vmem:[#allocation4 + $0x20] sm:$0xff]
        %v374 = vld [vmem:[#allocation4 + $0x28] sm:$0xff]
        %v375 = vld [vmem:[#allocation4 + $0x30] sm:$0xff]
        %v376 = vld [vmem:[#allocation4 + $0x38] sm:$0xff]
        %v377 = vld [vmem:[#allocation4 + $0x40] sm:$0xff]
        %v378 = vld [vmem:[#allocation4 + $0x48] sm:$0xff]
        %v379 = vld [vmem:[#allocation4 + $0x50] sm:$0xff]
        %v380 = vld [vmem:[#allocation4 + $0x58] sm:$0xff]
        %v381 = vld [vmem:[#allocation4 + $0x60] sm:$0xff]
        %v382 = vld [vmem:[#allocation4 + $0x68] sm:$0xff]
        %v383 = vld [vmem:[#allocation4 + $0x70] sm:$0xff]
        %v384 = vld [vmem:[#allocation4 + $0x78] sm:$0xff]
        %v385 = vld [vmem:[#allocation4 + $0x80] sm:$0xff]
        %v386 = vld [vmem:[#allocation4 + $0x88] sm:$0xff]
        %v387 = vld [vmem:[#allocation4 + $0x90] sm:$0xff]
        %v388 = vld [vmem:[#allocation4 + $0x98] sm:$0xff]
        %v389 = vld [vmem:[#allocation4 + $0xa0] sm:$0xff]
        %v390 = vld [vmem:[#allocation4 + $0xa8] sm:$0xff]
        %v391 = vld [vmem:[#allocation4 + $0xb0] sm:$0xff]
        %v392 = vld [vmem:[#allocation4 + $0xb8] sm:$0xff]
        %v393 = vld [vmem:[#allocation4 + $0xc0] sm:$0xff]
        %v394 = vld [vmem:[#allocation4 + $0xc8] sm:$0xff]
        %v395 = vld [vmem:[#allocation4 + $0xd0] sm:$0xff]
        %v396 = vld [vmem:[#allocation4 + $0xd8] sm:$0xff]
        %v397 = vld [vmem:[#allocation4 + $0xe0] sm:$0xff]
        %v398 = vld [vmem:[#allocation4 + $0xe8] sm:$0xff]
        %v399 = vld [vmem:[#allocation4 + $0xf0] sm:$0xff]
        %v400 = vld [vmem:[#allocation4 + $0xf8] sm:$0xff]
        %vm401 = vcmask 523264
        %v403 = vsel %vm401, %v369, 0
        %v406 = vsel %vm401, %v370, 0
        %v409 = vsel %vm401, %v371, 0
        %v412 = vsel %vm401, %v372, 0
        %v415 = vsel %vm401, %v373, 0
        %v418 = vsel %vm401, %v374, 0
        %v421 = vsel %vm401, %v375, 0
        %v424 = vsel %vm401, %v376, 0
        %v427 = vsel %vm401, %v377, 0
        %v430 = vsel %vm401, %v378, 0
        %v433 = vsel %vm401, %v379, 0
        %v436 = vsel %vm401, %v380, 0
        %v439 = vsel %vm401, %v381, 0
        %v442 = vsel %vm401, %v382, 0
        %v445 = vsel %vm401, %v383, 0
        %v448 = vsel %vm401, %v384, 0
        %v451 = vsel %vm401, %v385, 0
        %v454 = vsel %vm401, %v386, 0
        %v457 = vsel %vm401, %v387, 0
        %v460 = vsel %vm401, %v388, 0
        %v463 = vsel %vm401, %v389, 0
        %v466 = vsel %vm401, %v390, 0
        %v469 = vsel %vm401, %v391, 0
        %v472 = vsel %vm401, %v392, 0
        %v475 = vsel %vm401, %v393, 0
        %v478 = vsel %vm401, %v394, 0
        %v481 = vsel %vm401, %v395, 0
        %v484 = vsel %vm401, %v396, 0
        %v487 = vsel %vm401, %v397, 0
        %v490 = vsel %vm401, %v398, 0
        %v493 = vsel %vm401, %v399, 0
        %v496 = vsel %vm401, %v400, 0
        %v499 = vsel %vm401, %v368, 0
        %501 = vmatpush.xpose.msra.mxu0 0.0
        %502 = vmatpush.xpose.msra.mxu0 0.0
        %503 = vmatpush.xpose.msra.mxu0 0.0
        %504 = vmatpush.xpose.msra.mxu0 0.0
        %505 = vmatpush.xpose.msra.mxu0 0.0
        %506 = vmatpush.xpose.msra.mxu0 0.0
        %507 = vmatpush.xpose.msra.mxu0 0.0
        %508 = vmatpush.xpose.msra.mxu0 0.0
        %509 = vmatpush.xpose.msra.mxu0 0.0
        %510 = vmatpush.xpose.msra.mxu0 0.0
        %511 = vmatpush.xpose.msra.mxu0 0.0
        %512 = vmatpush.xpose.msra.mxu0 0.0
        %513 = vmatpush.xpose.msra.mxu0 0.0
        %514 = vmatpush.xpose.msra.mxu0 0.0
        %515 = vmatpush.xpose.msra.mxu0 0.0
        %516 = vmatpush.xpose.msra.mxu0 %v499
        %517 = vmatmul.f32.gmra.mxu0 %v403
        %v518 = vpop.f32.mrf.mxu0
        %v519 = vadd.f32 0.0, %v518
        %520 = vmatmul.f32.gmra.mxu0 %v406
        %v521 = vpop.f32.mrf.mxu0
        %v522 = vadd.f32 0.0, %v521
        %523 = vmatmul.f32.gmra.mxu0 %v409
        %v524 = vpop.f32.mrf.mxu0
        %v525 = vadd.f32 0.0, %v524
        %526 = vmatmul.f32.gmra.mxu0 %v412
        %v527 = vpop.f32.mrf.mxu0
        %v528 = vadd.f32 0.0, %v527
        %529 = vmatmul.f32.gmra.mxu0 %v415
        %v530 = vpop.f32.mrf.mxu0
        %v531 = vadd.f32 0.0, %v530
        %532 = vmatmul.f32.gmra.mxu0 %v418
        %v533 = vpop.f32.mrf.mxu0
        %v534 = vadd.f32 0.0, %v533
        %535 = vmatmul.f32.gmra.mxu0 %v421
        %v536 = vpop.f32.mrf.mxu0
        %v537 = vadd.f32 0.0, %v536
        %538 = vmatmul.f32.gmra.mxu0 %v424
        %v539 = vpop.f32.mrf.mxu0
        %v540 = vadd.f32 0.0, %v539
        %541 = vmatmul.f32.gmra.mxu0 %v427
        %v542 = vpop.f32.mrf.mxu0
        %v543 = vadd.f32 0.0, %v542
        %544 = vmatmul.f32.gmra.mxu0 %v430
        %v545 = vpop.f32.mrf.mxu0
        %v546 = vadd.f32 0.0, %v545
        %547 = vmatmul.f32.gmra.mxu0 %v433
        %v548 = vpop.f32.mrf.mxu0
        %v549 = vadd.f32 0.0, %v548
        %550 = vmatmul.f32.gmra.mxu0 %v436
        %v551 = vpop.f32.mrf.mxu0
        %v552 = vadd.f32 0.0, %v551
        %553 = vmatmul.f32.gmra.mxu0 %v439
        %v554 = vpop.f32.mrf.mxu0
        %v555 = vadd.f32 0.0, %v554
        %556 = vmatmul.f32.gmra.mxu0 %v442
        %v557 = vpop.f32.mrf.mxu0
        %v558 = vadd.f32 0.0, %v557
        %559 = vmatmul.f32.gmra.mxu0 %v445
        %v560 = vpop.f32.mrf.mxu0
        %v561 = vadd.f32 0.0, %v560
        %562 = vmatmul.f32.gmra.mxu0 %v448
        %v563 = vpop.f32.mrf.mxu0
        %v564 = vadd.f32 0.0, %v563
        %565 = vmatmul.f32.gmra.mxu0 %v451
        %v566 = vpop.f32.mrf.mxu0
        %v567 = vadd.f32 0.0, %v566
        %568 = vmatmul.f32.gmra.mxu0 %v454
        %v569 = vpop.f32.mrf.mxu0
        %v570 = vadd.f32 0.0, %v569
        %571 = vmatmul.f32.gmra.mxu0 %v457
        %v572 = vpop.f32.mrf.mxu0
        %v573 = vadd.f32 0.0, %v572
        %574 = vmatmul.f32.gmra.mxu0 %v460
        %v575 = vpop.f32.mrf.mxu0
        %v576 = vadd.f32 0.0, %v575
        %577 = vmatmul.f32.gmra.mxu0 %v463
        %v578 = vpop.f32.mrf.mxu0
        %v579 = vadd.f32 0.0, %v578
        %580 = vmatmul.f32.gmra.mxu0 %v466
        %v581 = vpop.f32.mrf.mxu0
        %v582 = vadd.f32 0.0, %v581
        %583 = vmatmul.f32.gmra.mxu0 %v469
        %v584 = vpop.f32.mrf.mxu0
        %v585 = vadd.f32 0.0, %v584
        %586 = vmatmul.f32.gmra.mxu0 %v472
        %v587 = vpop.f32.mrf.mxu0
        %v588 = vadd.f32 0.0, %v587
        %589 = vmatmul.f32.gmra.mxu0 %v475
        %v590 = vpop.f32.mrf.mxu0
        %v591 = vadd.f32 0.0, %v590
        %592 = vmatmul.f32.gmra.mxu0 %v478
        %v593 = vpop.f32.mrf.mxu0
        %v594 = vadd.f32 0.0, %v593
        %595 = vmatmul.f32.gmra.mxu0 %v481
        %v596 = vpop.f32.mrf.mxu0
        %v597 = vadd.f32 0.0, %v596
        %598 = vmatmul.f32.gmra.mxu0 %v484
        %v599 = vpop.f32.mrf.mxu0
        %v600 = vadd.f32 0.0, %v599
        %601 = vmatmul.f32.gmra.mxu0 %v487
        %v602 = vpop.f32.mrf.mxu0
        %v603 = vadd.f32 0.0, %v602
        %604 = vmatmul.f32.gmra.mxu0 %v490
        %v605 = vpop.f32.mrf.mxu0
        %v606 = vadd.f32 0.0, %v605
        %607 = vmatmul.f32.gmra.mxu0 %v493
        %v608 = vpop.f32.mrf.mxu0
        %v609 = vadd.f32 0.0, %v608
        %610 = vmatmul.f32.gmra.mxu0 %v496
        %v611 = vpop.f32.mrf.mxu0
        %v612 = vadd.f32 0.0, %v611
        %613 = vdwg.mxu0
        %v614 = vld [vmem:[%s357] sm:$0xff]
        %616 = vst [vmem:[#allocation1] ss:$2 sm:$0xff] %v614
        %v617 = vld.sshfl [vmem:[#allocation1] sm:$0xff pattern:$0x75316420]
        %v618 = vld.sshfl [vmem:[#allocation1 + $0x8] sm:$0xff pattern:$0x75316420]
        %621 = vxpose.xlu0.b32.start [1/16] %v617, 128
        %622 = vxpose.xlu0.b32.cont [2/16] 0.0, 128
        %623 = vxpose.xlu0.b32.cont [3/16] 0.0, 128
        %624 = vxpose.xlu0.b32.cont [4/16] 0.0, 128
        %625 = vxpose.xlu0.b32.cont [5/16] 0.0, 128
        %626 = vxpose.xlu0.b32.cont [6/16] 0.0, 128
        %627 = vxpose.xlu0.b32.cont [7/16] 0.0, 128
        %628 = vxpose.xlu0.b32.cont [8/16] 0.0, 128
        %629 = vxpose.xlu0.b32.cont [9/16] 0.0, 128
        %630 = vxpose.xlu0.b32.cont [10/16] 0.0, 128
        %631 = vxpose.xlu0.b32.cont [11/16] 0.0, 128
        %632 = vxpose.xlu0.b32.cont [12/16] 0.0, 128
        %633 = vxpose.xlu0.b32.cont [13/16] 0.0, 128
        %634 = vxpose.xlu0.b32.cont [14/16] 0.0, 128
        %635 = vxpose.xlu0.b32.cont [15/16] 0.0, 128
        %636 = vxpose.xlu0.b32.end [16/16] 0.0, 128
        %v637 = vpop.trf.xlu0
        %v638 = vpop.trf.xlu0
        %v639 = vpop.trf.xlu0
        %v640 = vpop.trf.xlu0
        %v641 = vpop.trf.xlu0
        %v642 = vpop.trf.xlu0
        %v643 = vpop.trf.xlu0
        %v644 = vpop.trf.xlu0
        %v645 = vpop.trf.xlu0
        %v646 = vpop.trf.xlu0
        %v647 = vpop.trf.xlu0
        %v648 = vpop.trf.xlu0
        %v649 = vpop.trf.xlu0
        %v650 = vpop.trf.xlu0
        %v651 = vpop.trf.xlu0
        %v652 = vpop.trf.xlu0
        %653 = vxpose.xlu0.b32.start [1/16] %v618, 128
        %654 = vxpose.xlu0.b32.cont [2/16] 0.0, 128
        %655 = vxpose.xlu0.b32.cont [3/16] 0.0, 128
        %656 = vxpose.xlu0.b32.cont [4/16] 0.0, 128
        %657 = vxpose.xlu0.b32.cont [5/16] 0.0, 128
        %658 = vxpose.xlu0.b32.cont [6/16] 0.0, 128
        %659 = vxpose.xlu0.b32.cont [7/16] 0.0, 128
        %660 = vxpose.xlu0.b32.cont [8/16] 0.0, 128
        %661 = vxpose.xlu0.b32.cont [9/16] 0.0, 128
        %662 = vxpose.xlu0.b32.cont [10/16] 0.0, 128
        %663 = vxpose.xlu0.b32.cont [11/16] 0.0, 128
        %664 = vxpose.xlu0.b32.cont [12/16] 0.0, 128
        %665 = vxpose.xlu0.b32.cont [13/16] 0.0, 128
        %666 = vxpose.xlu0.b32.cont [14/16] 0.0, 128
        %667 = vxpose.xlu0.b32.cont [15/16] 0.0, 128
        %668 = vxpose.xlu0.b32.end [16/16] 0.0, 128
        %v669 = vpop.trf.xlu0
        %v670 = vpop.trf.xlu0
        %v671 = vpop.trf.xlu0
        %v672 = vpop.trf.xlu0
        %v673 = vpop.trf.xlu0
        %v674 = vpop.trf.xlu0
        %v675 = vpop.trf.xlu0
        %v676 = vpop.trf.xlu0
        %v677 = vpop.trf.xlu0
        %v678 = vpop.trf.xlu0
        %v679 = vpop.trf.xlu0
        %v680 = vpop.trf.xlu0
        %v681 = vpop.trf.xlu0
        %v682 = vpop.trf.xlu0
        %v683 = vpop.trf.xlu0
        %v684 = vpop.trf.xlu0
        %717 = vrot.lane.b32.xlu0 %v637, 4
        %v718 = vpop.permute.xlu0 %717
        %719 = vrot.lane.b32.xlu0 %v638, 4
        %v720 = vpop.permute.xlu0 %719
        %721 = vrot.lane.b32.xlu0 %v639, 4
        %v722 = vpop.permute.xlu0 %721
        %723 = vrot.lane.b32.xlu0 %v640, 4
        %v724 = vpop.permute.xlu0 %723
        %725 = vrot.lane.b32.xlu0 %v641, 4
        %v726 = vpop.permute.xlu0 %725
        %727 = vrot.lane.b32.xlu0 %v642, 4
        %v728 = vpop.permute.xlu0 %727
        %729 = vrot.lane.b32.xlu0 %v643, 4
        %v730 = vpop.permute.xlu0 %729
        %731 = vrot.lane.b32.xlu0 %v644, 4
        %v732 = vpop.permute.xlu0 %731
        %733 = vrot.lane.b32.xlu0 %v645, 4
        %v734 = vpop.permute.xlu0 %733
        %735 = vrot.lane.b32.xlu0 %v646, 4
        %v736 = vpop.permute.xlu0 %735
        %737 = vrot.lane.b32.xlu0 %v647, 4
        %v738 = vpop.permute.xlu0 %737
        %739 = vrot.lane.b32.xlu0 %v648, 4
        %v740 = vpop.permute.xlu0 %739
        %741 = vrot.lane.b32.xlu0 %v649, 4
        %v742 = vpop.permute.xlu0 %741
        %743 = vrot.lane.b32.xlu0 %v650, 4
        %v744 = vpop.permute.xlu0 %743
        %745 = vrot.lane.b32.xlu0 %v651, 4
        %v746 = vpop.permute.xlu0 %745
        %747 = vrot.lane.b32.xlu0 %v652, 4
        %v748 = vpop.permute.xlu0 %747
        %749 = vrot.lane.b32.xlu0 %v669, 4
        %v750 = vpop.permute.xlu0 %749
        %751 = vrot.lane.b32.xlu0 %v670, 4
        %v752 = vpop.permute.xlu0 %751
        %753 = vrot.lane.b32.xlu0 %v671, 4
        %v754 = vpop.permute.xlu0 %753
        %755 = vrot.lane.b32.xlu0 %v672, 4
        %v756 = vpop.permute.xlu0 %755
        %757 = vrot.lane.b32.xlu0 %v673, 4
        %v758 = vpop.permute.xlu0 %757
        %759 = vrot.lane.b32.xlu0 %v674, 4
        %v760 = vpop.permute.xlu0 %759
        %761 = vrot.lane.b32.xlu0 %v675, 4
        %v762 = vpop.permute.xlu0 %761
        %763 = vrot.lane.b32.xlu0 %v676, 4
        %v764 = vpop.permute.xlu0 %763
        %765 = vrot.lane.b32.xlu0 %v677, 4
        %v766 = vpop.permute.xlu0 %765
        %767 = vrot.lane.b32.xlu0 %v678, 4
        %v768 = vpop.permute.xlu0 %767
        %769 = vrot.lane.b32.xlu0 %v679, 4
        %v770 = vpop.permute.xlu0 %769
        %771 = vrot.lane.b32.xlu0 %v680, 4
        %v772 = vpop.permute.xlu0 %771
        %773 = vrot.lane.b32.xlu0 %v681, 4
        %v774 = vpop.permute.xlu0 %773
        %775 = vrot.lane.b32.xlu0 %v682, 4
        %v776 = vpop.permute.xlu0 %775
        %777 = vrot.lane.b32.xlu0 %v683, 4
        %v778 = vpop.permute.xlu0 %777
        %779 = vrot.lane.b32.xlu0 %v684, 4
        %v780 = vpop.permute.xlu0 %779
        %vm813 = vcmask 31744
        %v814 = vsel %vm813, %v519, %v718
        %v815 = vsel %vm813, %v522, %v720
        %v816 = vsel %vm813, %v525, %v722
        %v817 = vsel %vm813, %v528, %v724
        %v818 = vsel %vm813, %v531, %v726
        %v819 = vsel %vm813, %v534, %v728
        %v820 = vsel %vm813, %v537, %v730
        %v821 = vsel %vm813, %v540, %v732
        %v822 = vsel %vm813, %v543, %v734
        %v823 = vsel %vm813, %v546, %v736
        %v824 = vsel %vm813, %v549, %v738
        %v825 = vsel %vm813, %v552, %v740
        %v826 = vsel %vm813, %v555, %v742
        %v827 = vsel %vm813, %v558, %v744
        %v828 = vsel %vm813, %v561, %v746
        %v829 = vsel %vm813, %v564, %v748
        %v830 = vsel %vm813, %v567, %v750
        %v831 = vsel %vm813, %v570, %v752
        %v832 = vsel %vm813, %v573, %v754
        %v833 = vsel %vm813, %v576, %v756
        %v834 = vsel %vm813, %v579, %v758
        %v835 = vsel %vm813, %v582, %v760
        %v836 = vsel %vm813, %v585, %v762
        %v837 = vsel %vm813, %v588, %v764
        %v838 = vsel %vm813, %v591, %v766
        %v839 = vsel %vm813, %v594, %v768
        %v840 = vsel %vm813, %v597, %v770
        %v841 = vsel %vm813, %v600, %v772
        %v842 = vsel %vm813, %v603, %v774
        %v843 = vsel %vm813, %v606, %v776
        %v844 = vsel %vm813, %v609, %v778
        %v845 = vsel %vm813, %v612, %v780
        %v846 = vpack.c.bf16 %v814, %v814
        %v847 = vpack.c.bf16 %v815, %v815
        %v848 = vpack.c.bf16 %v816, %v816
        %v849 = vpack.c.bf16 %v817, %v817
        %v850 = vpack.c.bf16 %v818, %v818
        %v851 = vpack.c.bf16 %v819, %v819
        %v852 = vpack.c.bf16 %v820, %v820
        %v853 = vpack.c.bf16 %v821, %v821
        %v854 = vpack.c.bf16 %v822, %v822
        %v855 = vpack.c.bf16 %v823, %v823
        %v856 = vpack.c.bf16 %v824, %v824
        %v857 = vpack.c.bf16 %v825, %v825
        %v858 = vpack.c.bf16 %v826, %v826
        %v859 = vpack.c.bf16 %v827, %v827
        %v860 = vpack.c.bf16 %v828, %v828
        %v861 = vpack.c.bf16 %v829, %v829
        %v862 = vpack.c.bf16 %v830, %v830
        %v863 = vpack.c.bf16 %v831, %v831
        %v864 = vpack.c.bf16 %v832, %v832
        %v865 = vpack.c.bf16 %v833, %v833
        %v866 = vpack.c.bf16 %v834, %v834
        %v867 = vpack.c.bf16 %v835, %v835
        %v868 = vpack.c.bf16 %v836, %v836
        %v869 = vpack.c.bf16 %v837, %v837
        %v870 = vpack.c.bf16 %v838, %v838
        %v871 = vpack.c.bf16 %v839, %v839
        %v872 = vpack.c.bf16 %v840, %v840
        %v873 = vpack.c.bf16 %v841, %v841
        %v874 = vpack.c.bf16 %v842, %v842
        %v875 = vpack.c.bf16 %v843, %v843
        %v876 = vpack.c.bf16 %v844, %v844
        %v877 = vpack.c.bf16 %v845, %v845
        %v910 = vunpack.c.l.b16 %v846
        %v911 = vunpack.c.l.b16 %v847
        %v912 = vunpack.c.l.b16 %v848
        %v913 = vunpack.c.l.b16 %v849
        %v914 = vunpack.c.l.b16 %v850
        %v915 = vunpack.c.l.b16 %v851
        %v916 = vunpack.c.l.b16 %v852
        %v917 = vunpack.c.l.b16 %v853
        %v918 = vunpack.c.l.b16 %v854
        %v919 = vunpack.c.l.b16 %v855
        %v920 = vunpack.c.l.b16 %v856
        %v921 = vunpack.c.l.b16 %v857
        %v922 = vunpack.c.l.b16 %v858
        %v923 = vunpack.c.l.b16 %v859
        %v924 = vunpack.c.l.b16 %v860
        %v925 = vunpack.c.l.b16 %v861
        %v926 = vunpack.c.l.b16 %v862
        %v927 = vunpack.c.l.b16 %v863
        %v928 = vunpack.c.l.b16 %v864
        %v929 = vunpack.c.l.b16 %v865
        %v930 = vunpack.c.l.b16 %v866
        %v931 = vunpack.c.l.b16 %v867
        %v932 = vunpack.c.l.b16 %v868
        %v933 = vunpack.c.l.b16 %v869
        %v934 = vunpack.c.l.b16 %v870
        %v935 = vunpack.c.l.b16 %v871
        %v936 = vunpack.c.l.b16 %v872
        %v937 = vunpack.c.l.b16 %v873
        %v938 = vunpack.c.l.b16 %v874
        %v939 = vunpack.c.l.b16 %v875
        %v940 = vunpack.c.l.b16 %v876
        %v941 = vunpack.c.l.b16 %v877
        %v942 = vpack.c.b16 %v911, %v910
        %v943 = vpack.c.b16 %v913, %v912
        %v944 = vpack.c.b16 %v915, %v914
        %v945 = vpack.c.b16 %v917, %v916
        %v946 = vpack.c.b16 %v919, %v918
        %v947 = vpack.c.b16 %v921, %v920
        %v948 = vpack.c.b16 %v923, %v922
        %v949 = vpack.c.b16 %v925, %v924
        %v950 = vpack.c.b16 %v927, %v926
        %v951 = vpack.c.b16 %v929, %v928
        %v952 = vpack.c.b16 %v931, %v930
        %v953 = vpack.c.b16 %v933, %v932
        %v954 = vpack.c.b16 %v935, %v934
        %v955 = vpack.c.b16 %v937, %v936
        %v956 = vpack.c.b16 %v939, %v938
        %v957 = vpack.c.b16 %v941, %v940
        %v959 = vshrl.u32 0, 16
        %v961 = vrot.slane %v959, 7
        %v962 = vshll.u32 0, 16
        %v964 = vor.u32 %v961, %v962
        %v966 = vshrl.u32 %v942, 16
        %v968 = vrot.slane %v966, 7
        %v969 = vshll.u32 %v942, 16
        %v971 = vor.u32 %v968, %v969
        %v973 = vshrl.u32 %v943, 16
        %v975 = vrot.slane %v973, 7
        %v976 = vshll.u32 %v943, 16
        %v978 = vor.u32 %v975, %v976
        %v980 = vshrl.u32 %v944, 16
        %v982 = vrot.slane %v980, 7
        %v983 = vshll.u32 %v944, 16
        %v985 = vor.u32 %v982, %v983
        %v987 = vshrl.u32 %v945, 16
        %v989 = vrot.slane %v987, 7
        %v990 = vshll.u32 %v945, 16
        %v992 = vor.u32 %v989, %v990
        %v994 = vshrl.u32 %v946, 16
        %v996 = vrot.slane %v994, 7
        %v997 = vshll.u32 %v946, 16
        %v999 = vor.u32 %v996, %v997
        %v1001 = vshrl.u32 %v947, 16
        %v1003 = vrot.slane %v1001, 7
        %v1004 = vshll.u32 %v947, 16
        %v1006 = vor.u32 %v1003, %v1004
        %v1008 = vshrl.u32 %v948, 16
        %v1010 = vrot.slane %v1008, 7
        %v1011 = vshll.u32 %v948, 16
        %v1013 = vor.u32 %v1010, %v1011
        %v1015 = vshrl.u32 %v949, 16
        %v1017 = vrot.slane %v1015, 7
        %v1018 = vshll.u32 %v949, 16
        %v1020 = vor.u32 %v1017, %v1018
        %v1022 = vshrl.u32 %v950, 16
        %v1024 = vrot.slane %v1022, 7
        %v1025 = vshll.u32 %v950, 16
        %v1027 = vor.u32 %v1024, %v1025
        %v1029 = vshrl.u32 %v951, 16
        %v1031 = vrot.slane %v1029, 7
        %v1032 = vshll.u32 %v951, 16
        %v1034 = vor.u32 %v1031, %v1032
        %v1036 = vshrl.u32 %v952, 16
        %v1038 = vrot.slane %v1036, 7
        %v1039 = vshll.u32 %v952, 16
        %v1041 = vor.u32 %v1038, %v1039
        %v1043 = vshrl.u32 %v953, 16
        %v1045 = vrot.slane %v1043, 7
        %v1046 = vshll.u32 %v953, 16
        %v1048 = vor.u32 %v1045, %v1046
        %v1050 = vshrl.u32 %v954, 16
        %v1052 = vrot.slane %v1050, 7
        %v1053 = vshll.u32 %v954, 16
        %v1055 = vor.u32 %v1052, %v1053
        %v1057 = vshrl.u32 %v955, 16
        %v1059 = vrot.slane %v1057, 7
        %v1060 = vshll.u32 %v955, 16
        %v1062 = vor.u32 %v1059, %v1060
        %v1064 = vshrl.u32 %v956, 16
        %v1066 = vrot.slane %v1064, 7
        %v1067 = vshll.u32 %v956, 16
        %v1069 = vor.u32 %v1066, %v1067
        %v1071 = vshrl.u32 %v957, 16
        %v1073 = vrot.slane %v1071, 7
        %v1074 = vshll.u32 %v957, 16
        %v1076 = vor.u32 %v1073, %v1074
        %vm1111 = vcmask 1040384
        %vm1112 = vsmask.f32 256
        %vm1113 = vmand %vm1111, %vm1112
        %v1114 = vsel %vm1113, 0, %v964
        %v1115 = vsel %vm1113, 0, %v971
        %v1116 = vsel %vm1113, 0, %v978
        %v1117 = vsel %vm1113, 0, %v985
        %v1118 = vsel %vm1113, 0, %v992
        %v1119 = vsel %vm1113, 0, %v999
        %v1120 = vsel %vm1113, 0, %v1006
        %v1121 = vsel %vm1113, 0, %v1013
        %v1122 = vsel %vm1113, 0, %v1020
        %v1123 = vsel %vm1113, 0, %v1027
        %v1124 = vsel %vm1113, 0, %v1034
        %v1125 = vsel %vm1113, 0, %v1041
        %v1126 = vsel %vm1113, 0, %v1048
        %v1127 = vsel %vm1113, 0, %v1055
        %v1128 = vsel %vm1113, 0, %v1062
        %v1129 = vsel %vm1113, 0, %v1069
        %v1130 = vsel %vm1113, 0, %v1076
        %v1131 = vsel %vm1113, %v961, 0
        %v1132 = vsel %vm1113, %v968, 0
        %v1133 = vsel %vm1113, %v975, 0
        %v1134 = vsel %vm1113, %v982, 0
        %v1135 = vsel %vm1113, %v989, 0
        %v1136 = vsel %vm1113, %v996, 0
        %v1137 = vsel %vm1113, %v1003, 0
        %v1138 = vsel %vm1113, %v1010, 0
        %v1139 = vsel %vm1113, %v1017, 0
        %v1140 = vsel %vm1113, %v1024, 0
        %v1141 = vsel %vm1113, %v1031, 0
        %v1142 = vsel %vm1113, %v1038, 0
        %v1143 = vsel %vm1113, %v1045, 0
        %v1144 = vsel %vm1113, %v1052, 0
        %v1145 = vsel %vm1113, %v1059, 0
        %v1146 = vsel %vm1113, %v1066, 0
        %v1147 = vsel %vm1113, %v1073, 0
        %v1182 = vunpack.c.l.b16 %v1114
        %v1183 = vunpack.c.h.b16 %v1114
        %v1184 = vunpack.c.l.b16 %v1131
        %v1185 = vunpack.c.l.b16 %v1115
        %v1186 = vunpack.c.h.b16 %v1115
        %v1187 = vunpack.c.l.b16 %v1132
        %v1188 = vunpack.c.l.b16 %v1116
        %v1189 = vunpack.c.h.b16 %v1116
        %v1190 = vunpack.c.l.b16 %v1133
        %v1191 = vunpack.c.l.b16 %v1117
        %v1192 = vunpack.c.h.b16 %v1117
        %v1193 = vunpack.c.l.b16 %v1134
        %v1194 = vunpack.c.l.b16 %v1118
        %v1195 = vunpack.c.h.b16 %v1118
        %v1196 = vunpack.c.l.b16 %v1135
        %v1197 = vunpack.c.l.b16 %v1119
        %v1198 = vunpack.c.h.b16 %v1119
        %v1199 = vunpack.c.l.b16 %v1136
        %v1200 = vunpack.c.l.b16 %v1120
        %v1201 = vunpack.c.h.b16 %v1120
        %v1202 = vunpack.c.l.b16 %v1137
        %v1203 = vunpack.c.l.b16 %v1121
        %v1204 = vunpack.c.h.b16 %v1121
        %v1205 = vunpack.c.l.b16 %v1138
        %v1206 = vunpack.c.l.b16 %v1122
        %v1207 = vunpack.c.h.b16 %v1122
        %v1208 = vunpack.c.l.b16 %v1139
        %v1209 = vunpack.c.l.b16 %v1123
        %v1210 = vunpack.c.h.b16 %v1123
        %v1211 = vunpack.c.l.b16 %v1140
        %v1212 = vunpack.c.l.b16 %v1124
        %v1213 = vunpack.c.h.b16 %v1124
        %v1214 = vunpack.c.l.b16 %v1141
        %v1215 = vunpack.c.l.b16 %v1125
        %v1216 = vunpack.c.h.b16 %v1125
        %v1217 = vunpack.c.l.b16 %v1142
        %v1218 = vunpack.c.l.b16 %v1126
        %v1219 = vunpack.c.h.b16 %v1126
        %v1220 = vunpack.c.l.b16 %v1143
        %v1221 = vunpack.c.l.b16 %v1127
        %v1222 = vunpack.c.h.b16 %v1127
        %v1223 = vunpack.c.l.b16 %v1144
        %v1224 = vunpack.c.l.b16 %v1128
        %v1225 = vunpack.c.h.b16 %v1128
        %v1226 = vunpack.c.l.b16 %v1145
        %v1227 = vunpack.c.l.b16 %v1129
        %v1228 = vunpack.c.h.b16 %v1129
        %v1229 = vunpack.c.l.b16 %v1146
        %v1230 = vunpack.c.l.b16 %v1130
        %v1231 = vunpack.c.h.b16 %v1130
        %v1232 = vunpack.c.l.b16 %v1147
        %v1233 = vpack.c.b16 %v1182, %v1182
        %v1234 = vpack.c.b16 %v1183, %v1183
        %v1235 = vpack.c.b16 %v1184, %v1184
        %v1236 = vpack.c.b16 %v1185, %v1185
        %v1237 = vpack.c.b16 %v1186, %v1186
        %v1238 = vpack.c.b16 %v1187, %v1187
        %v1239 = vpack.c.b16 %v1188, %v1188
        %v1240 = vpack.c.b16 %v1189, %v1189
        %v1241 = vpack.c.b16 %v1190, %v1190
        %v1242 = vpack.c.b16 %v1191, %v1191
        %v1243 = vpack.c.b16 %v1192, %v1192
        %v1244 = vpack.c.b16 %v1193, %v1193
        %v1245 = vpack.c.b16 %v1194, %v1194
        %v1246 = vpack.c.b16 %v1195, %v1195
        %v1247 = vpack.c.b16 %v1196, %v1196
        %v1248 = vpack.c.b16 %v1197, %v1197
        %v1249 = vpack.c.b16 %v1198, %v1198
        %v1250 = vpack.c.b16 %v1199, %v1199
        %v1251 = vpack.c.b16 %v1200, %v1200
        %v1252 = vpack.c.b16 %v1201, %v1201
        %v1253 = vpack.c.b16 %v1202, %v1202
        %v1254 = vpack.c.b16 %v1203, %v1203
        %v1255 = vpack.c.b16 %v1204, %v1204
        %v1256 = vpack.c.b16 %v1205, %v1205
        %v1257 = vpack.c.b16 %v1206, %v1206
        %v1258 = vpack.c.b16 %v1207, %v1207
        %v1259 = vpack.c.b16 %v1208, %v1208
        %v1260 = vpack.c.b16 %v1209, %v1209
        %v1261 = vpack.c.b16 %v1210, %v1210
        %v1262 = vpack.c.b16 %v1211, %v1211
        %v1263 = vpack.c.b16 %v1212, %v1212
        %v1264 = vpack.c.b16 %v1213, %v1213
        %v1265 = vpack.c.b16 %v1214, %v1214
        %v1266 = vpack.c.b16 %v1215, %v1215
        %v1267 = vpack.c.b16 %v1216, %v1216
        %v1268 = vpack.c.b16 %v1217, %v1217
        %v1269 = vpack.c.b16 %v1218, %v1218
        %v1270 = vpack.c.b16 %v1219, %v1219
        %v1271 = vpack.c.b16 %v1220, %v1220
        %v1272 = vpack.c.b16 %v1221, %v1221
        %v1273 = vpack.c.b16 %v1222, %v1222
        %v1274 = vpack.c.b16 %v1223, %v1223
        %v1275 = vpack.c.b16 %v1224, %v1224
        %v1276 = vpack.c.b16 %v1225, %v1225
        %v1277 = vpack.c.b16 %v1226, %v1226
        %v1278 = vpack.c.b16 %v1227, %v1227
        %v1279 = vpack.c.b16 %v1228, %v1228
        %v1280 = vpack.c.b16 %v1229, %v1229
        %v1281 = vpack.c.b16 %v1230, %v1230
        %v1282 = vpack.c.b16 %v1231, %v1231
        %v1283 = vpack.c.b16 %v1232, %v1232
        %vm1335 = vcmask 60416
        %1336 = vst.msk [vmem:[#allocation2] sm:$0xf] %vm1335, %v1233
        %1337 = vst.msk [vmem:[#allocation2 + $0x4] sm:$0xf] %vm1335, %v1234
        %vm1338 = vcmask 57344
        %1339 = vst.msk [vmem:[#allocation2 + $0x8] sm:$0x1] %vm1338, %v1235
        %1340 = vst.msk [vmem:[#allocation2 + $0xc] sm:$0xf] %vm1335, %v1236
        %1341 = vst.msk [vmem:[#allocation2 + $0x10] sm:$0xf] %vm1335, %v1237
        %1342 = vst.msk [vmem:[#allocation2 + $0x14] sm:$0x1] %vm1338, %v1238
        %1343 = vst.msk [vmem:[#allocation2 + $0x18] sm:$0xf] %vm1335, %v1239
        %1344 = vst.msk [vmem:[#allocation2 + $0x1c] sm:$0xf] %vm1335, %v1240
        %1345 = vst.msk [vmem:[#allocation2 + $0x20] sm:$0x1] %vm1338, %v1241
        %1346 = vst.msk [vmem:[#allocation2 + $0x24] sm:$0xf] %vm1335, %v1242
        %1347 = vst.msk [vmem:[#allocation2 + $0x28] sm:$0xf] %vm1335, %v1243
        %1348 = vst.msk [vmem:[#allocation2 + $0x2c] sm:$0x1] %vm1338, %v1244
        %1349 = vst.msk [vmem:[#allocation2 + $0x30] sm:$0xf] %vm1335, %v1245
        %1350 = vst.msk [vmem:[#allocation2 + $0x34] sm:$0xf] %vm1335, %v1246
        %1351 = vst.msk [vmem:[#allocation2 + $0x38] sm:$0x1] %vm1338, %v1247
        %1352 = vst.msk [vmem:[#allocation2 + $0x3c] sm:$0xf] %vm1335, %v1248
        %1353 = vst.msk [vmem:[#allocation2 + $0x40] sm:$0xf] %vm1335, %v1249
        %1354 = vst.msk [vmem:[#allocation2 + $0x44] sm:$0x1] %vm1338, %v1250
        %1355 = vst.msk [vmem:[#allocation2 + $0x48] sm:$0xf] %vm1335, %v1251
        %1356 = vst.msk [vmem:[#allocation2 + $0x4c] sm:$0xf] %vm1335, %v1252
        %1357 = vst.msk [vmem:[#allocation2 + $0x50] sm:$0x1] %vm1338, %v1253
        %1358 = vst.msk [vmem:[#allocation2 + $0x54] sm:$0xf] %vm1335, %v1254
        %1359 = vst.msk [vmem:[#allocation2 + $0x58] sm:$0xf] %vm1335, %v1255
        %1360 = vst.msk [vmem:[#allocation2 + $0x5c] sm:$0x1] %vm1338, %v1256
        %1361 = vst.msk [vmem:[#allocation2 + $0x60] sm:$0xf] %vm1335, %v1257
        %1362 = vst.msk [vmem:[#allocation2 + $0x64] sm:$0xf] %vm1335, %v1258
        %1363 = vst.msk [vmem:[#allocation2 + $0x68] sm:$0x1] %vm1338, %v1259
        %1364 = vst.msk [vmem:[#allocation2 + $0x6c] sm:$0xf] %vm1335, %v1260
        %1365 = vst.msk [vmem:[#allocation2 + $0x70] sm:$0xf] %vm1335, %v1261
        %1366 = vst.msk [vmem:[#allocation2 + $0x74] sm:$0x1] %vm1338, %v1262
        %1367 = vst.msk [vmem:[#allocation2 + $0x78] sm:$0xf] %vm1335, %v1263
        %1368 = vst.msk [vmem:[#allocation2 + $0x7c] sm:$0xf] %vm1335, %v1264
        %1369 = vst.msk [vmem:[#allocation2 + $0x80] sm:$0x1] %vm1338, %v1265
        %1370 = vst.msk [vmem:[#allocation2 + $0x84] sm:$0xf] %vm1335, %v1266
        %1371 = vst.msk [vmem:[#allocation2 + $0x88] sm:$0xf] %vm1335, %v1267
        %1372 = vst.msk [vmem:[#allocation2 + $0x8c] sm:$0x1] %vm1338, %v1268
        %1373 = vst.msk [vmem:[#allocation2 + $0x90] sm:$0xf] %vm1335, %v1269
        %1374 = vst.msk [vmem:[#allocation2 + $0x94] sm:$0xf] %vm1335, %v1270
        %1375 = vst.msk [vmem:[#allocation2 + $0x98] sm:$0x1] %vm1338, %v1271
        %1376 = vst.msk [vmem:[#allocation2 + $0x9c] sm:$0xf] %vm1335, %v1272
        %1377 = vst.msk [vmem:[#allocation2 + $0xa0] sm:$0xf] %vm1335, %v1273
        %1378 = vst.msk [vmem:[#allocation2 + $0xa4] sm:$0x1] %vm1338, %v1274
        %1379 = vst.msk [vmem:[#allocation2 + $0xa8] sm:$0xf] %vm1335, %v1275
        %1380 = vst.msk [vmem:[#allocation2 + $0xac] sm:$0xf] %vm1335, %v1276
        %1381 = vst.msk [vmem:[#allocation2 + $0xb0] sm:$0x1] %vm1338, %v1277
        %1382 = vst.msk [vmem:[#allocation2 + $0xb4] sm:$0xf] %vm1335, %v1278
        %1383 = vst.msk [vmem:[#allocation2 + $0xb8] sm:$0xf] %vm1335, %v1279
        %1384 = vst.msk [vmem:[#allocation2 + $0xbc] sm:$0x1] %vm1338, %v1280
        %1385 = vst.msk [vmem:[#allocation2 + $0xc0] sm:$0xf] %vm1335, %v1281
        %1386 = vst.msk [vmem:[#allocation2 + $0xc4] sm:$0xf] %vm1335, %v1282
        %1387 = vst.msk [vmem:[#allocation2 + $0xc8] sm:$0x1] %vm1338, %v1283
        %1388 = vst.msk [vmem:[#allocation2 + $0xcc] sm:$0xf] %vm1335, %v1233
        %1389 = vst.msk [vmem:[#allocation2 + $0xd0] sm:$0xf] %vm1335, %v1234
        %1390 = vst.msk [vmem:[#allocation2 + $0xd4] sm:$0x1] %vm1338, %v1235
        %v1391 = vld [vmem:[#allocation2] sm:$0xf]
        %v1392 = vld [vmem:[#allocation2 + $0x4] sm:$0xf]
        %v1393 = vld [vmem:[#allocation2 + $0xc] sm:$0xf]
        %v1394 = vld [vmem:[#allocation2 + $0x10] sm:$0xf]
        %v1395 = vld [vmem:[#allocation2 + $0x18] sm:$0xf]
        %v1396 = vld [vmem:[#allocation2 + $0x1c] sm:$0xf]
        %v1397 = vld [vmem:[#allocation2 + $0x24] sm:$0xf]
        %v1398 = vld [vmem:[#allocation2 + $0x28] sm:$0xf]
        %v1399 = vld [vmem:[#allocation2 + $0x30] sm:$0xf]
        %v1400 = vld [vmem:[#allocation2 + $0x34] sm:$0xf]
        %v1401 = vld [vmem:[#allocation2 + $0x3c] sm:$0xf]
        %v1402 = vld [vmem:[#allocation2 + $0x40] sm:$0xf]
        %v1403 = vld [vmem:[#allocation2 + $0x48] sm:$0xf]
        %v1404 = vld [vmem:[#allocation2 + $0x4c] sm:$0xf]
        %v1405 = vld [vmem:[#allocation2 + $0x54] sm:$0xf]
        %v1406 = vld [vmem:[#allocation2 + $0x58] sm:$0xf]
        %v1407 = vld [vmem:[#allocation2 + $0x60] sm:$0xf]
        %v1408 = vld [vmem:[#allocation2 + $0x64] sm:$0xf]
        %v1409 = vld [vmem:[#allocation2 + $0x6c] sm:$0xf]
        %v1410 = vld [vmem:[#allocation2 + $0x70] sm:$0xf]
        %v1411 = vld [vmem:[#allocation2 + $0x78] sm:$0xf]
        %v1412 = vld [vmem:[#allocation2 + $0x7c] sm:$0xf]
        %v1413 = vld [vmem:[#allocation2 + $0x84] sm:$0xf]
        %v1414 = vld [vmem:[#allocation2 + $0x88] sm:$0xf]
        %v1415 = vld [vmem:[#allocation2 + $0x90] sm:$0xf]
        %v1416 = vld [vmem:[#allocation2 + $0x94] sm:$0xf]
        %v1417 = vld [vmem:[#allocation2 + $0x9c] sm:$0xf]
        %v1418 = vld [vmem:[#allocation2 + $0xa0] sm:$0xf]
        %v1419 = vld [vmem:[#allocation2 + $0xa8] sm:$0xf]
        %v1420 = vld [vmem:[#allocation2 + $0xac] sm:$0xf]
        %v1421 = vld [vmem:[#allocation2 + $0xb4] sm:$0xf]
        %v1422 = vld [vmem:[#allocation2 + $0xb8] sm:$0xf]
        %v1423 = vld [vmem:[#allocation2 + $0x8] sm:$0x1]
        %v1424 = vld [vmem:[#allocation2 + $0x14] sm:$0x1]
        %v1425 = vld [vmem:[#allocation2 + $0x20] sm:$0x1]
        %v1426 = vld [vmem:[#allocation2 + $0x2c] sm:$0x1]
        %v1427 = vld [vmem:[#allocation2 + $0x38] sm:$0x1]
        %v1428 = vld [vmem:[#allocation2 + $0x44] sm:$0x1]
        %v1429 = vld [vmem:[#allocation2 + $0x50] sm:$0x1]
        %v1430 = vld [vmem:[#allocation2 + $0x5c] sm:$0x1]
        %v1431 = vld [vmem:[#allocation2 + $0x68] sm:$0x1]
        %v1432 = vld [vmem:[#allocation2 + $0x74] sm:$0x1]
        %v1433 = vld [vmem:[#allocation2 + $0x80] sm:$0x1]
        %v1434 = vld [vmem:[#allocation2 + $0x8c] sm:$0x1]
        %v1435 = vld [vmem:[#allocation2 + $0x98] sm:$0x1]
        %v1436 = vld [vmem:[#allocation2 + $0xa4] sm:$0x1]
        %v1437 = vld [vmem:[#allocation2 + $0xb0] sm:$0x1]
        %v1438 = vld [vmem:[#allocation2 + $0xbc] sm:$0x1]
        %vm1439 = vsmask.f32 3328
        %vm1440 = vsmask.f32 7440
        %vm1441 = vmor %vm1439, %vm1440
        %v1443 = vshrl.u32 %v1391, 16
        %v1445 = vrot.slane %v1443, 4
        %v1446 = vshll.u32 %v1391, 16
        %v1448 = vrot.slane %v1446, 5
        %v1449 = vor.u32 %v1445, %v1448
        %v1450 = vrot.slane %v1449, 4
        %v1452 = vshll.u32 %v1392, 16
        %v1454 = vrot.slane %v1452, 5
        %v1455 = vsel %vm1441, %v1450, %v1454
        %v1456 = vshrl.u32 %v1392, 16
        %v1458 = vrot.slane %v1456, 4
        %v1459 = vor.u32 %v1458, %v1454
        %v1460 = vrot.slane %v1459, 4
        %v1462 = vshll.u32 %v1423, 16
        %v1464 = vrot.slane %v1462, 5
        %v1465 = vsel %vm1441, %v1460, %v1464
        %v1467 = vshrl.u32 %v1393, 16
        %v1469 = vrot.slane %v1467, 4
        %v1470 = vshll.u32 %v1393, 16
        %v1472 = vrot.slane %v1470, 5
        %v1473 = vor.u32 %v1469, %v1472
        %v1474 = vrot.slane %v1473, 4
        %v1476 = vshll.u32 %v1394, 16
        %v1478 = vrot.slane %v1476, 5
        %v1479 = vsel %vm1441, %v1474, %v1478
        %v1480 = vshrl.u32 %v1394, 16
        %v1482 = vrot.slane %v1480, 4
        %v1483 = vor.u32 %v1482, %v1478
        %v1484 = vrot.slane %v1483, 4
        %v1486 = vshll.u32 %v1424, 16
        %v1488 = vrot.slane %v1486, 5
        %v1489 = vsel %vm1441, %v1484, %v1488
        %v1491 = vshrl.u32 %v1395, 16
        %v1493 = vrot.slane %v1491, 4
        %v1494 = vshll.u32 %v1395, 16
        %v1496 = vrot.slane %v1494, 5
        %v1497 = vor.u32 %v1493, %v1496
        %v1498 = vrot.slane %v1497, 4
        %v1500 = vshll.u32 %v1396, 16
        %v1502 = vrot.slane %v1500, 5
        %v1503 = vsel %vm1441, %v1498, %v1502
        %v1504 = vshrl.u32 %v1396, 16
        %v1506 = vrot.slane %v1504, 4
        %v1507 = vor.u32 %v1506, %v1502
        %v1508 = vrot.slane %v1507, 4
        %v1510 = vshll.u32 %v1425, 16
        %v1512 = vrot.slane %v1510, 5
        %v1513 = vsel %vm1441, %v1508, %v1512
        %v1515 = vshrl.u32 %v1397, 16
        %v1517 = vrot.slane %v1515, 4
        %v1518 = vshll.u32 %v1397, 16
        %v1520 = vrot.slane %v1518, 5
        %v1521 = vor.u32 %v1517, %v1520
        %v1522 = vrot.slane %v1521, 4
        %v1524 = vshll.u32 %v1398, 16
        %v1526 = vrot.slane %v1524, 5
        %v1527 = vsel %vm1441, %v1522, %v1526
        %v1528 = vshrl.u32 %v1398, 16
        %v1530 = vrot.slane %v1528, 4
        %v1531 = vor.u32 %v1530, %v1526
        %v1532 = vrot.slane %v1531, 4
        %v1534 = vshll.u32 %v1426, 16
        %v1536 = vrot.slane %v1534, 5
        %v1537 = vsel %vm1441, %v1532, %v1536
        %v1539 = vshrl.u32 %v1399, 16
        %v1541 = vrot.slane %v1539, 4
        %v1542 = vshll.u32 %v1399, 16
        %v1544 = vrot.slane %v1542, 5
        %v1545 = vor.u32 %v1541, %v1544
        %v1546 = vrot.slane %v1545, 4
        %v1548 = vshll.u32 %v1400, 16
        %v1550 = vrot.slane %v1548, 5
        %v1551 = vsel %vm1441, %v1546, %v1550
        %v1552 = vshrl.u32 %v1400, 16
        %v1554 = vrot.slane %v1552, 4
        %v1555 = vor.u32 %v1554, %v1550
        %v1556 = vrot.slane %v1555, 4
        %v1558 = vshll.u32 %v1427, 16
        %v1560 = vrot.slane %v1558, 5
        %v1561 = vsel %vm1441, %v1556, %v1560
        %v1563 = vshrl.u32 %v1401, 16
        %v1565 = vrot.slane %v1563, 4
        %v1566 = vshll.u32 %v1401, 16
        %v1568 = vrot.slane %v1566, 5
        %v1569 = vor.u32 %v1565, %v1568
        %v1570 = vrot.slane %v1569, 4
        %v1572 = vshll.u32 %v1402, 16
        %v1574 = vrot.slane %v1572, 5
        %v1575 = vsel %vm1441, %v1570, %v1574
        %v1576 = vshrl.u32 %v1402, 16
        %v1578 = vrot.slane %v1576, 4
        %v1579 = vor.u32 %v1578, %v1574
        %v1580 = vrot.slane %v1579, 4
        %v1582 = vshll.u32 %v1428, 16
        %v1584 = vrot.slane %v1582, 5
        %v1585 = vsel %vm1441, %v1580, %v1584
        %v1587 = vshrl.u32 %v1403, 16
        %v1589 = vrot.slane %v1587, 4
        %v1590 = vshll.u32 %v1403, 16
        %v1592 = vrot.slane %v1590, 5
        %v1593 = vor.u32 %v1589, %v1592
        %v1594 = vrot.slane %v1593, 4
        %v1596 = vshll.u32 %v1404, 16
        %v1598 = vrot.slane %v1596, 5
        %v1599 = vsel %vm1441, %v1594, %v1598
        %v1600 = vshrl.u32 %v1404, 16
        %v1602 = vrot.slane %v1600, 4
        %v1603 = vor.u32 %v1602, %v1598
        %v1604 = vrot.slane %v1603, 4
        %v1606 = vshll.u32 %v1429, 16
        %v1608 = vrot.slane %v1606, 5
        %v1609 = vsel %vm1441, %v1604, %v1608
        %v1611 = vshrl.u32 %v1405, 16
        %v1613 = vrot.slane %v1611, 4
        %v1614 = vshll.u32 %v1405, 16
        %v1616 = vrot.slane %v1614, 5
        %v1617 = vor.u32 %v1613, %v1616
        %v1618 = vrot.slane %v1617, 4
        %v1620 = vshll.u32 %v1406, 16
        %v1622 = vrot.slane %v1620, 5
        %v1623 = vsel %vm1441, %v1618, %v1622
        %v1624 = vshrl.u32 %v1406, 16
        %v1626 = vrot.slane %v1624, 4
        %v1627 = vor.u32 %v1626, %v1622
        %v1628 = vrot.slane %v1627, 4
        %v1630 = vshll.u32 %v1430, 16
        %v1632 = vrot.slane %v1630, 5
        %v1633 = vsel %vm1441, %v1628, %v1632
        %v1635 = vshrl.u32 %v1407, 16
        %v1637 = vrot.slane %v1635, 4
        %v1638 = vshll.u32 %v1407, 16
        %v1640 = vrot.slane %v1638, 5
        %v1641 = vor.u32 %v1637, %v1640
        %v1642 = vrot.slane %v1641, 4
        %v1644 = vshll.u32 %v1408, 16
        %v1646 = vrot.slane %v1644, 5
        %v1647 = vsel %vm1441, %v1642, %v1646
        %v1648 = vshrl.u32 %v1408, 16
        %v1650 = vrot.slane %v1648, 4
        %v1651 = vor.u32 %v1650, %v1646
        %v1652 = vrot.slane %v1651, 4
        %v1654 = vshll.u32 %v1431, 16
        %v1656 = vrot.slane %v1654, 5
        %v1657 = vsel %vm1441, %v1652, %v1656
        %v1659 = vshrl.u32 %v1409, 16
        %v1661 = vrot.slane %v1659, 4
        %v1662 = vshll.u32 %v1409, 16
        %v1664 = vrot.slane %v1662, 5
        %v1665 = vor.u32 %v1661, %v1664
        %v1666 = vrot.slane %v1665, 4
        %v1668 = vshll.u32 %v1410, 16
        %v1670 = vrot.slane %v1668, 5
        %v1671 = vsel %vm1441, %v1666, %v1670
        %v1672 = vshrl.u32 %v1410, 16
        %v1674 = vrot.slane %v1672, 4
        %v1675 = vor.u32 %v1674, %v1670
        %v1676 = vrot.slane %v1675, 4
        %v1678 = vshll.u32 %v1432, 16
        %v1680 = vrot.slane %v1678, 5
        %v1681 = vsel %vm1441, %v1676, %v1680
        %v1683 = vshrl.u32 %v1411, 16
        %v1685 = vrot.slane %v1683, 4
        %v1686 = vshll.u32 %v1411, 16
        %v1688 = vrot.slane %v1686, 5
        %v1689 = vor.u32 %v1685, %v1688
        %v1690 = vrot.slane %v1689, 4
        %v1692 = vshll.u32 %v1412, 16
        %v1694 = vrot.slane %v1692, 5
        %v1695 = vsel %vm1441, %v1690, %v1694
        %v1696 = vshrl.u32 %v1412, 16
        %v1698 = vrot.slane %v1696, 4
        %v1699 = vor.u32 %v1698, %v1694
        %v1700 = vrot.slane %v1699, 4
        %v1702 = vshll.u32 %v1433, 16
        %v1704 = vrot.slane %v1702, 5
        %v1705 = vsel %vm1441, %v1700, %v1704
        %v1707 = vshrl.u32 %v1413, 16
        %v1709 = vrot.slane %v1707, 4
        %v1710 = vshll.u32 %v1413, 16
        %v1712 = vrot.slane %v1710, 5
        %v1713 = vor.u32 %v1709, %v1712
        %v1714 = vrot.slane %v1713, 4
        %v1716 = vshll.u32 %v1414, 16
        %v1718 = vrot.slane %v1716, 5
        %v1719 = vsel %vm1441, %v1714, %v1718
        %v1720 = vshrl.u32 %v1414, 16
        %v1722 = vrot.slane %v1720, 4
        %v1723 = vor.u32 %v1722, %v1718
        %v1724 = vrot.slane %v1723, 4
        %v1726 = vshll.u32 %v1434, 16
        %v1728 = vrot.slane %v1726, 5
        %v1729 = vsel %vm1441, %v1724, %v1728
        %v1731 = vshrl.u32 %v1415, 16
        %v1733 = vrot.slane %v1731, 4
        %v1734 = vshll.u32 %v1415, 16
        %v1736 = vrot.slane %v1734, 5
        %v1737 = vor.u32 %v1733, %v1736
        %v1738 = vrot.slane %v1737, 4
        %v1740 = vshll.u32 %v1416, 16
        %v1742 = vrot.slane %v1740, 5
        %v1743 = vsel %vm1441, %v1738, %v1742
        %v1744 = vshrl.u32 %v1416, 16
        %v1746 = vrot.slane %v1744, 4
        %v1747 = vor.u32 %v1746, %v1742
        %v1748 = vrot.slane %v1747, 4
        %v1750 = vshll.u32 %v1435, 16
        %v1752 = vrot.slane %v1750, 5
        %v1753 = vsel %vm1441, %v1748, %v1752
        %v1755 = vshrl.u32 %v1417, 16
        %v1757 = vrot.slane %v1755, 4
        %v1758 = vshll.u32 %v1417, 16
        %v1760 = vrot.slane %v1758, 5
        %v1761 = vor.u32 %v1757, %v1760
        %v1762 = vrot.slane %v1761, 4
        %v1764 = vshll.u32 %v1418, 16
        %v1766 = vrot.slane %v1764, 5
        %v1767 = vsel %vm1441, %v1762, %v1766
        %v1768 = vshrl.u32 %v1418, 16
        %v1770 = vrot.slane %v1768, 4
        %v1771 = vor.u32 %v1770, %v1766
        %v1772 = vrot.slane %v1771, 4
        %v1774 = vshll.u32 %v1436, 16
        %v1776 = vrot.slane %v1774, 5
        %v1777 = vsel %vm1441, %v1772, %v1776
        %v1779 = vshrl.u32 %v1419, 16
        %v1781 = vrot.slane %v1779, 4
        %v1782 = vshll.u32 %v1419, 16
        %v1784 = vrot.slane %v1782, 5
        %v1785 = vor.u32 %v1781, %v1784
        %v1786 = vrot.slane %v1785, 4
        %v1788 = vshll.u32 %v1420, 16
        %v1790 = vrot.slane %v1788, 5
        %v1791 = vsel %vm1441, %v1786, %v1790
        %v1792 = vshrl.u32 %v1420, 16
        %v1794 = vrot.slane %v1792, 4
        %v1795 = vor.u32 %v1794, %v1790
        %v1796 = vrot.slane %v1795, 4
        %v1798 = vshll.u32 %v1437, 16
        %v1800 = vrot.slane %v1798, 5
        %v1801 = vsel %vm1441, %v1796, %v1800
        %v1803 = vshrl.u32 %v1421, 16
        %v1805 = vrot.slane %v1803, 4
        %v1806 = vshll.u32 %v1421, 16
        %v1808 = vrot.slane %v1806, 5
        %v1809 = vor.u32 %v1805, %v1808
        %v1810 = vrot.slane %v1809, 4
        %v1812 = vshll.u32 %v1422, 16
        %v1814 = vrot.slane %v1812, 5
        %v1815 = vsel %vm1441, %v1810, %v1814
        %v1816 = vshrl.u32 %v1422, 16
        %v1818 = vrot.slane %v1816, 4
        %v1819 = vor.u32 %v1818, %v1814
        %v1820 = vrot.slane %v1819, 4
        %v1822 = vshll.u32 %v1438, 16
        %v1824 = vrot.slane %v1822, 5
        %v1825 = vsel %vm1441, %v1820, %v1824
        %v1826 = vld [vmem:[#allocation2] sm:$0xe]
        %v1827 = vld [vmem:[#allocation2 + $0xc] sm:$0xe]
        %v1828 = vld [vmem:[#allocation2 + $0x18] sm:$0xe]
        %v1829 = vld [vmem:[#allocation2 + $0x24] sm:$0xe]
        %v1830 = vld [vmem:[#allocation2 + $0x30] sm:$0xe]
        %v1831 = vld [vmem:[#allocation2 + $0x3c] sm:$0xe]
        %v1832 = vld [vmem:[#allocation2 + $0x48] sm:$0xe]
        %v1833 = vld [vmem:[#allocation2 + $0x54] sm:$0xe]
        %v1834 = vld [vmem:[#allocation2 + $0x60] sm:$0xe]
        %v1835 = vld [vmem:[#allocation2 + $0x6c] sm:$0xe]
        %v1836 = vld [vmem:[#allocation2 + $0x78] sm:$0xe]
        %v1837 = vld [vmem:[#allocation2 + $0x84] sm:$0xe]
        %v1838 = vld [vmem:[#allocation2 + $0x90] sm:$0xe]
        %v1839 = vld [vmem:[#allocation2 + $0x9c] sm:$0xe]
        %v1840 = vld [vmem:[#allocation2 + $0xa8] sm:$0xe]
        %v1841 = vld [vmem:[#allocation2 + $0xb4] sm:$0xe]
        %vm1890 = vcmask 1042432
        %vm1891 = vcmask 1046532
        %vm1892 = vmor %vm1890, %vm1891
        %v1893 = vrot.slane %v1826, 5
        %v1894 = vrot.slane %v1893, 4
        %v1895 = vrot.slane %v1392, 5
        %v1896 = vsel %vm1892, %v1894, %v1895
        %v1897 = vrot.slane %v1895, 4
        %v1898 = vrot.slane %v1423, 5
        %v1899 = vsel %vm1892, %v1897, %v1898
        %v1900 = vrot.slane %v1827, 5
        %v1901 = vrot.slane %v1900, 4
        %v1902 = vrot.slane %v1394, 5
        %v1903 = vsel %vm1892, %v1901, %v1902
        %v1904 = vrot.slane %v1902, 4
        %v1905 = vrot.slane %v1424, 5
        %v1906 = vsel %vm1892, %v1904, %v1905
        %v1907 = vrot.slane %v1828, 5
        %v1908 = vrot.slane %v1907, 4
        %v1909 = vrot.slane %v1396, 5
        %v1910 = vsel %vm1892, %v1908, %v1909
        %v1911 = vrot.slane %v1909, 4
        %v1912 = vrot.slane %v1425, 5
        %v1913 = vsel %vm1892, %v1911, %v1912
        %v1914 = vrot.slane %v1829, 5
        %v1915 = vrot.slane %v1914, 4
        %v1916 = vrot.slane %v1398, 5
        %v1917 = vsel %vm1892, %v1915, %v1916
        %v1918 = vrot.slane %v1916, 4
        %v1919 = vrot.slane %v1426, 5
        %v1920 = vsel %vm1892, %v1918, %v1919
        %v1921 = vrot.slane %v1830, 5
        %v1922 = vrot.slane %v1921, 4
        %v1923 = vrot.slane %v1400, 5
        %v1924 = vsel %vm1892, %v1922, %v1923
        %v1925 = vrot.slane %v1923, 4
        %v1926 = vrot.slane %v1427, 5
        %v1927 = vsel %vm1892, %v1925, %v1926
        %v1928 = vrot.slane %v1831, 5
        %v1929 = vrot.slane %v1928, 4
        %v1930 = vrot.slane %v1402, 5
        %v1931 = vsel %vm1892, %v1929, %v1930
        %v1932 = vrot.slane %v1930, 4
        %v1933 = vrot.slane %v1428, 5
        %v1934 = vsel %vm1892, %v1932, %v1933
        %v1935 = vrot.slane %v1832, 5
        %v1936 = vrot.slane %v1935, 4
        %v1937 = vrot.slane %v1404, 5
        %v1938 = vsel %vm1892, %v1936, %v1937
        %v1939 = vrot.slane %v1937, 4
        %v1940 = vrot.slane %v1429, 5
        %v1941 = vsel %vm1892, %v1939, %v1940
        %v1942 = vrot.slane %v1833, 5
        %v1943 = vrot.slane %v1942, 4
        %v1944 = vrot.slane %v1406, 5
        %v1945 = vsel %vm1892, %v1943, %v1944
        %v1946 = vrot.slane %v1944, 4
        %v1947 = vrot.slane %v1430, 5
        %v1948 = vsel %vm1892, %v1946, %v1947
        %v1949 = vrot.slane %v1834, 5
        %v1950 = vrot.slane %v1949, 4
        %v1951 = vrot.slane %v1408, 5
        %v1952 = vsel %vm1892, %v1950, %v1951
        %v1953 = vrot.slane %v1951, 4
        %v1954 = vrot.slane %v1431, 5
        %v1955 = vsel %vm1892, %v1953, %v1954
        %v1956 = vrot.slane %v1835, 5
        %v1957 = vrot.slane %v1956, 4
        %v1958 = vrot.slane %v1410, 5
        %v1959 = vsel %vm1892, %v1957, %v1958
        %v1960 = vrot.slane %v1958, 4
        %v1961 = vrot.slane %v1432, 5
        %v1962 = vsel %vm1892, %v1960, %v1961
        %v1963 = vrot.slane %v1836, 5
        %v1964 = vrot.slane %v1963, 4
        %v1965 = vrot.slane %v1412, 5
        %v1966 = vsel %vm1892, %v1964, %v1965
        %v1967 = vrot.slane %v1965, 4
        %v1968 = vrot.slane %v1433, 5
        %v1969 = vsel %vm1892, %v1967, %v1968
        %v1970 = vrot.slane %v1837, 5
        %v1971 = vrot.slane %v1970, 4
        %v1972 = vrot.slane %v1414, 5
        %v1973 = vsel %vm1892, %v1971, %v1972
        %v1974 = vrot.slane %v1972, 4
        %v1975 = vrot.slane %v1434, 5
        %v1976 = vsel %vm1892, %v1974, %v1975
        %v1977 = vrot.slane %v1838, 5
        %v1978 = vrot.slane %v1977, 4
        %v1979 = vrot.slane %v1416, 5
        %v1980 = vsel %vm1892, %v1978, %v1979
        %v1981 = vrot.slane %v1979, 4
        %v1982 = vrot.slane %v1435, 5
        %v1983 = vsel %vm1892, %v1981, %v1982
        %v1984 = vrot.slane %v1839, 5
        %v1985 = vrot.slane %v1984, 4
        %v1986 = vrot.slane %v1418, 5
        %v1987 = vsel %vm1892, %v1985, %v1986
        %v1988 = vrot.slane %v1986, 4
        %v1989 = vrot.slane %v1436, 5
        %v1990 = vsel %vm1892, %v1988, %v1989
        %v1991 = vrot.slane %v1840, 5
        %v1992 = vrot.slane %v1991, 4
        %v1993 = vrot.slane %v1420, 5
        %v1994 = vsel %vm1892, %v1992, %v1993
        %v1995 = vrot.slane %v1993, 4
        %v1996 = vrot.slane %v1437, 5
        %v1997 = vsel %vm1892, %v1995, %v1996
        %v1998 = vrot.slane %v1841, 5
        %v1999 = vrot.slane %v1998, 4
        %v2000 = vrot.slane %v1422, 5
        %v2001 = vsel %vm1892, %v1999, %v2000
        %v2002 = vrot.slane %v2000, 4
        %v2003 = vrot.slane %v1438, 5
        %v2004 = vsel %vm1892, %v2002, %v2003
        %s2005 = scalar_lea.vmem [#allocation2], 12
        %v2006 = vld [vmem:[%s2005] sm:$0xf]
        %v2007 = vld [vmem:[%s2005 + $0x4] sm:$0xf]
        %v2008 = vld [vmem:[%s2005 + $0xc] sm:$0xf]
        %v2009 = vld [vmem:[%s2005 + $0x10] sm:$0xf]
        %v2010 = vld [vmem:[%s2005 + $0x18] sm:$0xf]
        %v2011 = vld [vmem:[%s2005 + $0x1c] sm:$0xf]
        %v2012 = vld [vmem:[%s2005 + $0x24] sm:$0xf]
        %v2013 = vld [vmem:[%s2005 + $0x28] sm:$0xf]
        %v2014 = vld [vmem:[%s2005 + $0x30] sm:$0xf]
        %v2015 = vld [vmem:[%s2005 + $0x34] sm:$0xf]
        %v2016 = vld [vmem:[%s2005 + $0x3c] sm:$0xf]
        %v2017 = vld [vmem:[%s2005 + $0x40] sm:$0xf]
        %v2018 = vld [vmem:[%s2005 + $0x48] sm:$0xf]
        %v2019 = vld [vmem:[%s2005 + $0x4c] sm:$0xf]
        %v2020 = vld [vmem:[%s2005 + $0x54] sm:$0xf]
        %v2021 = vld [vmem:[%s2005 + $0x58] sm:$0xf]
        %v2022 = vld [vmem:[%s2005 + $0x60] sm:$0xf]
        %v2023 = vld [vmem:[%s2005 + $0x64] sm:$0xf]
        %v2024 = vld [vmem:[%s2005 + $0x6c] sm:$0xf]
        %v2025 = vld [vmem:[%s2005 + $0x70] sm:$0xf]
        %v2026 = vld [vmem:[%s2005 + $0x78] sm:$0xf]
        %v2027 = vld [vmem:[%s2005 + $0x7c] sm:$0xf]
        %v2028 = vld [vmem:[%s2005 + $0x84] sm:$0xf]
        %v2029 = vld [vmem:[%s2005 + $0x88] sm:$0xf]
        %v2030 = vld [vmem:[%s2005 + $0x90] sm:$0xf]
        %v2031 = vld [vmem:[%s2005 + $0x94] sm:$0xf]
        %v2032 = vld [vmem:[%s2005 + $0x9c] sm:$0xf]
        %v2033 = vld [vmem:[%s2005 + $0xa0] sm:$0xf]
        %v2034 = vld [vmem:[%s2005 + $0xa8] sm:$0xf]
        %v2035 = vld [vmem:[%s2005 + $0xac] sm:$0xf]
        %v2036 = vld [vmem:[%s2005 + $0xb4] sm:$0xf]
        %v2037 = vld [vmem:[%s2005 + $0xb8] sm:$0xf]
        %v2038 = vld [vmem:[%s2005 + $0x8] sm:$0x1]
        %v2039 = vld [vmem:[%s2005 + $0x14] sm:$0x1]
        %v2040 = vld [vmem:[%s2005 + $0x20] sm:$0x1]
        %v2041 = vld [vmem:[%s2005 + $0x2c] sm:$0x1]
        %v2042 = vld [vmem:[%s2005 + $0x38] sm:$0x1]
        %v2043 = vld [vmem:[%s2005 + $0x44] sm:$0x1]
        %v2044 = vld [vmem:[%s2005 + $0x50] sm:$0x1]
        %v2045 = vld [vmem:[%s2005 + $0x5c] sm:$0x1]
        %v2046 = vld [vmem:[%s2005 + $0x68] sm:$0x1]
        %v2047 = vld [vmem:[%s2005 + $0x74] sm:$0x1]
        %v2048 = vld [vmem:[%s2005 + $0x80] sm:$0x1]
        %v2049 = vld [vmem:[%s2005 + $0x8c] sm:$0x1]
        %v2050 = vld [vmem:[%s2005 + $0x98] sm:$0x1]
        %v2051 = vld [vmem:[%s2005 + $0xa4] sm:$0x1]
        %v2052 = vld [vmem:[%s2005 + $0xb0] sm:$0x1]
        %v2053 = vld [vmem:[%s2005 + $0xbc] sm:$0x1]
        %v2055 = vshrl.u32 %v2006, 16
        %v2057 = vrot.slane %v2055, 4
        %v2058 = vshll.u32 %v2006, 16
        %v2060 = vrot.slane %v2058, 5
        %v2061 = vor.u32 %v2057, %v2060
        %v2062 = vrot.slane %v2061, 4
        %v2064 = vshll.u32 %v2007, 16
        %v2066 = vrot.slane %v2064, 5
        %v2067 = vsel %vm1441, %v2062, %v2066
        %v2068 = vshrl.u32 %v2007, 16
        %v2070 = vrot.slane %v2068, 4
        %v2071 = vor.u32 %v2070, %v2066
        %v2072 = vrot.slane %v2071, 4
        %v2074 = vshll.u32 %v2038, 16
        %v2076 = vrot.slane %v2074, 5
        %v2077 = vsel %vm1441, %v2072, %v2076
        %v2079 = vshrl.u32 %v2008, 16
        %v2081 = vrot.slane %v2079, 4
        %v2082 = vshll.u32 %v2008, 16
        %v2084 = vrot.slane %v2082, 5
        %v2085 = vor.u32 %v2081, %v2084
        %v2086 = vrot.slane %v2085, 4
        %v2088 = vshll.u32 %v2009, 16
        %v2090 = vrot.slane %v2088, 5
        %v2091 = vsel %vm1441, %v2086, %v2090
        %v2092 = vshrl.u32 %v2009, 16
        %v2094 = vrot.slane %v2092, 4
        %v2095 = vor.u32 %v2094, %v2090
        %v2096 = vrot.slane %v2095, 4
        %v2098 = vshll.u32 %v2039, 16
        %v2100 = vrot.slane %v2098, 5
        %v2101 = vsel %vm1441, %v2096, %v2100
        %v2103 = vshrl.u32 %v2010, 16
        %v2105 = vrot.slane %v2103, 4
        %v2106 = vshll.u32 %v2010, 16
        %v2108 = vrot.slane %v2106, 5
        %v2109 = vor.u32 %v2105, %v2108
        %v2110 = vrot.slane %v2109, 4
        %v2112 = vshll.u32 %v2011, 16
        %v2114 = vrot.slane %v2112, 5
        %v2115 = vsel %vm1441, %v2110, %v2114
        %v2116 = vshrl.u32 %v2011, 16
        %v2118 = vrot.slane %v2116, 4
        %v2119 = vor.u32 %v2118, %v2114
        %v2120 = vrot.slane %v2119, 4
        %v2122 = vshll.u32 %v2040, 16
        %v2124 = vrot.slane %v2122, 5
        %v2125 = vsel %vm1441, %v2120, %v2124
        %v2127 = vshrl.u32 %v2012, 16
        %v2129 = vrot.slane %v2127, 4
        %v2130 = vshll.u32 %v2012, 16
        %v2132 = vrot.slane %v2130, 5
        %v2133 = vor.u32 %v2129, %v2132
        %v2134 = vrot.slane %v2133, 4
        %v2136 = vshll.u32 %v2013, 16
        %v2138 = vrot.slane %v2136, 5
        %v2139 = vsel %vm1441, %v2134, %v2138
        %v2140 = vshrl.u32 %v2013, 16
        %v2142 = vrot.slane %v2140, 4
        %v2143 = vor.u32 %v2142, %v2138
        %v2144 = vrot.slane %v2143, 4
        %v2146 = vshll.u32 %v2041, 16
        %v2148 = vrot.slane %v2146, 5
        %v2149 = vsel %vm1441, %v2144, %v2148
        %v2151 = vshrl.u32 %v2014, 16
        %v2153 = vrot.slane %v2151, 4
        %v2154 = vshll.u32 %v2014, 16
        %v2156 = vrot.slane %v2154, 5
        %v2157 = vor.u32 %v2153, %v2156
        %v2158 = vrot.slane %v2157, 4
        %v2160 = vshll.u32 %v2015, 16
        %v2162 = vrot.slane %v2160, 5
        %v2163 = vsel %vm1441, %v2158, %v2162
        %v2164 = vshrl.u32 %v2015, 16
        %v2166 = vrot.slane %v2164, 4
        %v2167 = vor.u32 %v2166, %v2162
        %v2168 = vrot.slane %v2167, 4
        %v2170 = vshll.u32 %v2042, 16
        %v2172 = vrot.slane %v2170, 5
        %v2173 = vsel %vm1441, %v2168, %v2172
        %v2175 = vshrl.u32 %v2016, 16
        %v2177 = vrot.slane %v2175, 4
        %v2178 = vshll.u32 %v2016, 16
        %v2180 = vrot.slane %v2178, 5
        %v2181 = vor.u32 %v2177, %v2180
        %v2182 = vrot.slane %v2181, 4
        %v2184 = vshll.u32 %v2017, 16
        %v2186 = vrot.slane %v2184, 5
        %v2187 = vsel %vm1441, %v2182, %v2186
        %v2188 = vshrl.u32 %v2017, 16
        %v2190 = vrot.slane %v2188, 4
        %v2191 = vor.u32 %v2190, %v2186
        %v2192 = vrot.slane %v2191, 4
        %v2194 = vshll.u32 %v2043, 16
        %v2196 = vrot.slane %v2194, 5
        %v2197 = vsel %vm1441, %v2192, %v2196
        %v2199 = vshrl.u32 %v2018, 16
        %v2201 = vrot.slane %v2199, 4
        %v2202 = vshll.u32 %v2018, 16
        %v2204 = vrot.slane %v2202, 5
        %v2205 = vor.u32 %v2201, %v2204
        %v2206 = vrot.slane %v2205, 4
        %v2208 = vshll.u32 %v2019, 16
        %v2210 = vrot.slane %v2208, 5
        %v2211 = vsel %vm1441, %v2206, %v2210
        %v2212 = vshrl.u32 %v2019, 16
        %v2214 = vrot.slane %v2212, 4
        %v2215 = vor.u32 %v2214, %v2210
        %v2216 = vrot.slane %v2215, 4
        %v2218 = vshll.u32 %v2044, 16
        %v2220 = vrot.slane %v2218, 5
        %v2221 = vsel %vm1441, %v2216, %v2220
        %v2223 = vshrl.u32 %v2020, 16
        %v2225 = vrot.slane %v2223, 4
        %v2226 = vshll.u32 %v2020, 16
        %v2228 = vrot.slane %v2226, 5
        %v2229 = vor.u32 %v2225, %v2228
        %v2230 = vrot.slane %v2229, 4
        %v2232 = vshll.u32 %v2021, 16
        %v2234 = vrot.slane %v2232, 5
        %v2235 = vsel %vm1441, %v2230, %v2234
        %v2236 = vshrl.u32 %v2021, 16
        %v2238 = vrot.slane %v2236, 4
        %v2239 = vor.u32 %v2238, %v2234
        %v2240 = vrot.slane %v2239, 4
        %v2242 = vshll.u32 %v2045, 16
        %v2244 = vrot.slane %v2242, 5
        %v2245 = vsel %vm1441, %v2240, %v2244
        %v2247 = vshrl.u32 %v2022, 16
        %v2249 = vrot.slane %v2247, 4
        %v2250 = vshll.u32 %v2022, 16
        %v2252 = vrot.slane %v2250, 5
        %v2253 = vor.u32 %v2249, %v2252
        %v2254 = vrot.slane %v2253, 4
        %v2256 = vshll.u32 %v2023, 16
        %v2258 = vrot.slane %v2256, 5
        %v2259 = vsel %vm1441, %v2254, %v2258
        %v2260 = vshrl.u32 %v2023, 16
        %v2262 = vrot.slane %v2260, 4
        %v2263 = vor.u32 %v2262, %v2258
        %v2264 = vrot.slane %v2263, 4
        %v2266 = vshll.u32 %v2046, 16
        %v2268 = vrot.slane %v2266, 5
        %v2269 = vsel %vm1441, %v2264, %v2268
        %v2271 = vshrl.u32 %v2024, 16
        %v2273 = vrot.slane %v2271, 4
        %v2274 = vshll.u32 %v2024, 16
        %v2276 = vrot.slane %v2274, 5
        %v2277 = vor.u32 %v2273, %v2276
        %v2278 = vrot.slane %v2277, 4
        %v2280 = vshll.u32 %v2025, 16
        %v2282 = vrot.slane %v2280, 5
        %v2283 = vsel %vm1441, %v2278, %v2282
        %v2284 = vshrl.u32 %v2025, 16
        %v2286 = vrot.slane %v2284, 4
        %v2287 = vor.u32 %v2286, %v2282
        %v2288 = vrot.slane %v2287, 4
        %v2290 = vshll.u32 %v2047, 16
        %v2292 = vrot.slane %v2290, 5
        %v2293 = vsel %vm1441, %v2288, %v2292
        %v2295 = vshrl.u32 %v2026, 16
        %v2297 = vrot.slane %v2295, 4
        %v2298 = vshll.u32 %v2026, 16
        %v2300 = vrot.slane %v2298, 5
        %v2301 = vor.u32 %v2297, %v2300
        %v2302 = vrot.slane %v2301, 4
        %v2304 = vshll.u32 %v2027, 16
        %v2306 = vrot.slane %v2304, 5
        %v2307 = vsel %vm1441, %v2302, %v2306
        %v2308 = vshrl.u32 %v2027, 16
        %v2310 = vrot.slane %v2308, 4
        %v2311 = vor.u32 %v2310, %v2306
        %v2312 = vrot.slane %v2311, 4
        %v2314 = vshll.u32 %v2048, 16
        %v2316 = vrot.slane %v2314, 5
        %v2317 = vsel %vm1441, %v2312, %v2316
        %v2319 = vshrl.u32 %v2028, 16
        %v2321 = vrot.slane %v2319, 4
        %v2322 = vshll.u32 %v2028, 16
        %v2324 = vrot.slane %v2322, 5
        %v2325 = vor.u32 %v2321, %v2324
        %v2326 = vrot.slane %v2325, 4
        %v2328 = vshll.u32 %v2029, 16
        %v2330 = vrot.slane %v2328, 5
        %v2331 = vsel %vm1441, %v2326, %v2330
        %v2332 = vshrl.u32 %v2029, 16
        %v2334 = vrot.slane %v2332, 4
        %v2335 = vor.u32 %v2334, %v2330
        %v2336 = vrot.slane %v2335, 4
        %v2338 = vshll.u32 %v2049, 16
        %v2340 = vrot.slane %v2338, 5
        %v2341 = vsel %vm1441, %v2336, %v2340
        %v2343 = vshrl.u32 %v2030, 16
        %v2345 = vrot.slane %v2343, 4
        %v2346 = vshll.u32 %v2030, 16
        %v2348 = vrot.slane %v2346, 5
        %v2349 = vor.u32 %v2345, %v2348
        %v2350 = vrot.slane %v2349, 4
        %v2352 = vshll.u32 %v2031, 16
        %v2354 = vrot.slane %v2352, 5
        %v2355 = vsel %vm1441, %v2350, %v2354
        %v2356 = vshrl.u32 %v2031, 16
        %v2358 = vrot.slane %v2356, 4
        %v2359 = vor.u32 %v2358, %v2354
        %v2360 = vrot.slane %v2359, 4
        %v2362 = vshll.u32 %v2050, 16
        %v2364 = vrot.slane %v2362, 5
        %v2365 = vsel %vm1441, %v2360, %v2364
        %v2367 = vshrl.u32 %v2032, 16
        %v2369 = vrot.slane %v2367, 4
        %v2370 = vshll.u32 %v2032, 16
        %v2372 = vrot.slane %v2370, 5
        %v2373 = vor.u32 %v2369, %v2372
        %v2374 = vrot.slane %v2373, 4
        %v2376 = vshll.u32 %v2033, 16
        %v2378 = vrot.slane %v2376, 5
        %v2379 = vsel %vm1441, %v2374, %v2378
        %v2380 = vshrl.u32 %v2033, 16
        %v2382 = vrot.slane %v2380, 4
        %v2383 = vor.u32 %v2382, %v2378
        %v2384 = vrot.slane %v2383, 4
        %v2386 = vshll.u32 %v2051, 16
        %v2388 = vrot.slane %v2386, 5
        %v2389 = vsel %vm1441, %v2384, %v2388
        %v2391 = vshrl.u32 %v2034, 16
        %v2393 = vrot.slane %v2391, 4
        %v2394 = vshll.u32 %v2034, 16
        %v2396 = vrot.slane %v2394, 5
        %v2397 = vor.u32 %v2393, %v2396
        %v2398 = vrot.slane %v2397, 4
        %v2400 = vshll.u32 %v2035, 16
        %v2402 = vrot.slane %v2400, 5
        %v2403 = vsel %vm1441, %v2398, %v2402
        %v2404 = vshrl.u32 %v2035, 16
        %v2406 = vrot.slane %v2404, 4
        %v2407 = vor.u32 %v2406, %v2402
        %v2408 = vrot.slane %v2407, 4
        %v2410 = vshll.u32 %v2052, 16
        %v2412 = vrot.slane %v2410, 5
        %v2413 = vsel %vm1441, %v2408, %v2412
        %v2415 = vshrl.u32 %v2036, 16
        %v2417 = vrot.slane %v2415, 4
        %v2418 = vshll.u32 %v2036, 16
        %v2420 = vrot.slane %v2418, 5
        %v2421 = vor.u32 %v2417, %v2420
        %v2422 = vrot.slane %v2421, 4
        %v2424 = vshll.u32 %v2037, 16
        %v2426 = vrot.slane %v2424, 5
        %v2427 = vsel %vm1441, %v2422, %v2426
        %v2428 = vshrl.u32 %v2037, 16
        %v2430 = vrot.slane %v2428, 4
        %v2431 = vor.u32 %v2430, %v2426
        %v2432 = vrot.slane %v2431, 4
        %v2434 = vshll.u32 %v2053, 16
        %v2436 = vrot.slane %v2434, 5
        %v2437 = vsel %vm1441, %v2432, %v2436
        %v2438 = vld [vmem:[%s2005] sm:$0xe]
        %v2439 = vld [vmem:[%s2005 + $0xc] sm:$0xe]
        %v2440 = vld [vmem:[%s2005 + $0x18] sm:$0xe]
        %v2441 = vld [vmem:[%s2005 + $0x24] sm:$0xe]
        %v2442 = vld [vmem:[%s2005 + $0x30] sm:$0xe]
        %v2443 = vld [vmem:[%s2005 + $0x3c] sm:$0xe]
        %v2444 = vld [vmem:[%s2005 + $0x48] sm:$0xe]
        %v2445 = vld [vmem:[%s2005 + $0x54] sm:$0xe]
        %v2446 = vld [vmem:[%s2005 + $0x60] sm:$0xe]
        %v2447 = vld [vmem:[%s2005 + $0x6c] sm:$0xe]
        %v2448 = vld [vmem:[%s2005 + $0x78] sm:$0xe]
        %v2449 = vld [vmem:[%s2005 + $0x84] sm:$0xe]
        %v2450 = vld [vmem:[%s2005 + $0x90] sm:$0xe]
        %v2451 = vld [vmem:[%s2005 + $0x9c] sm:$0xe]
        %v2452 = vld [vmem:[%s2005 + $0xa8] sm:$0xe]
        %v2453 = vld [vmem:[%s2005 + $0xb4] sm:$0xe]
        %v2502 = vrot.slane %v2438, 5
        %v2503 = vrot.slane %v2502, 4
        %v2504 = vrot.slane %v2007, 5
        %v2505 = vsel %vm1892, %v2503, %v2504
        %v2506 = vrot.slane %v2504, 4
        %v2507 = vrot.slane %v2038, 5
        %v2508 = vsel %vm1892, %v2506, %v2507
        %v2509 = vrot.slane %v2439, 5
        %v2510 = vrot.slane %v2509, 4
        %v2511 = vrot.slane %v2009, 5
        %v2512 = vsel %vm1892, %v2510, %v2511
        %v2513 = vrot.slane %v2511, 4
        %v2514 = vrot.slane %v2039, 5
        %v2515 = vsel %vm1892, %v2513, %v2514
        %v2516 = vrot.slane %v2440, 5
        %v2517 = vrot.slane %v2516, 4
        %v2518 = vrot.slane %v2011, 5
        %v2519 = vsel %vm1892, %v2517, %v2518
        %v2520 = vrot.slane %v2518, 4
        %v2521 = vrot.slane %v2040, 5
        %v2522 = vsel %vm1892, %v2520, %v2521
        %v2523 = vrot.slane %v2441, 5
        %v2524 = vrot.slane %v2523, 4
        %v2525 = vrot.slane %v2013, 5
        %v2526 = vsel %vm1892, %v2524, %v2525
        %v2527 = vrot.slane %v2525, 4
        %v2528 = vrot.slane %v2041, 5
        %v2529 = vsel %vm1892, %v2527, %v2528
        %v2530 = vrot.slane %v2442, 5
        %v2531 = vrot.slane %v2530, 4
        %v2532 = vrot.slane %v2015, 5
        %v2533 = vsel %vm1892, %v2531, %v2532
        %v2534 = vrot.slane %v2532, 4
        %v2535 = vrot.slane %v2042, 5
        %v2536 = vsel %vm1892, %v2534, %v2535
        %v2537 = vrot.slane %v2443, 5
        %v2538 = vrot.slane %v2537, 4
        %v2539 = vrot.slane %v2017, 5
        %v2540 = vsel %vm1892, %v2538, %v2539
        %v2541 = vrot.slane %v2539, 4
        %v2542 = vrot.slane %v2043, 5
        %v2543 = vsel %vm1892, %v2541, %v2542
        %v2544 = vrot.slane %v2444, 5
        %v2545 = vrot.slane %v2544, 4
        %v2546 = vrot.slane %v2019, 5
        %v2547 = vsel %vm1892, %v2545, %v2546
        %v2548 = vrot.slane %v2546, 4
        %v2549 = vrot.slane %v2044, 5
        %v2550 = vsel %vm1892, %v2548, %v2549
        %v2551 = vrot.slane %v2445, 5
        %v2552 = vrot.slane %v2551, 4
        %v2553 = vrot.slane %v2021, 5
        %v2554 = vsel %vm1892, %v2552, %v2553
        %v2555 = vrot.slane %v2553, 4
        %v2556 = vrot.slane %v2045, 5
        %v2557 = vsel %vm1892, %v2555, %v2556
        %v2558 = vrot.slane %v2446, 5
        %v2559 = vrot.slane %v2558, 4
        %v2560 = vrot.slane %v2023, 5
        %v2561 = vsel %vm1892, %v2559, %v2560
        %v2562 = vrot.slane %v2560, 4
        %v2563 = vrot.slane %v2046, 5
        %v2564 = vsel %vm1892, %v2562, %v2563
        %v2565 = vrot.slane %v2447, 5
        %v2566 = vrot.slane %v2565, 4
        %v2567 = vrot.slane %v2025, 5
        %v2568 = vsel %vm1892, %v2566, %v2567
        %v2569 = vrot.slane %v2567, 4
        %v2570 = vrot.slane %v2047, 5
        %v2571 = vsel %vm1892, %v2569, %v2570
        %v2572 = vrot.slane %v2448, 5
        %v2573 = vrot.slane %v2572, 4
        %v2574 = vrot.slane %v2027, 5
        %v2575 = vsel %vm1892, %v2573, %v2574
        %v2576 = vrot.slane %v2574, 4
        %v2577 = vrot.slane %v2048, 5
        %v2578 = vsel %vm1892, %v2576, %v2577
        %v2579 = vrot.slane %v2449, 5
        %v2580 = vrot.slane %v2579, 4
        %v2581 = vrot.slane %v2029, 5
        %v2582 = vsel %vm1892, %v2580, %v2581
        %v2583 = vrot.slane %v2581, 4
        %v2584 = vrot.slane %v2049, 5
        %v2585 = vsel %vm1892, %v2583, %v2584
        %v2586 = vrot.slane %v2450, 5
        %v2587 = vrot.slane %v2586, 4
        %v2588 = vrot.slane %v2031, 5
        %v2589 = vsel %vm1892, %v2587, %v2588
        %v2590 = vrot.slane %v2588, 4
        %v2591 = vrot.slane %v2050, 5
        %v2592 = vsel %vm1892, %v2590, %v2591
        %v2593 = vrot.slane %v2451, 5
        %v2594 = vrot.slane %v2593, 4
        %v2595 = vrot.slane %v2033, 5
        %v2596 = vsel %vm1892, %v2594, %v2595
        %v2597 = vrot.slane %v2595, 4
        %v2598 = vrot.slane %v2051, 5
        %v2599 = vsel %vm1892, %v2597, %v2598
        %v2600 = vrot.slane %v2452, 5
        %v2601 = vrot.slane %v2600, 4
        %v2602 = vrot.slane %v2035, 5
        %v2603 = vsel %vm1892, %v2601, %v2602
        %v2604 = vrot.slane %v2602, 4
        %v2605 = vrot.slane %v2052, 5
        %v2606 = vsel %vm1892, %v2604, %v2605
        %v2607 = vrot.slane %v2453, 5
        %v2608 = vrot.slane %v2607, 4
        %v2609 = vrot.slane %v2037, 5
        %v2610 = vsel %vm1892, %v2608, %v2609
        %v2611 = vrot.slane %v2609, 4
        %v2612 = vrot.slane %v2053, 5
        %v2613 = vsel %vm1892, %v2611, %v2612
        %s2614 = scalar_lea.vmem [#allocation2], 24
        %v2615 = vld [vmem:[%s2614] sm:$0xf]
        %v2616 = vld [vmem:[%s2614 + $0x4] sm:$0xf]
        %v2617 = vld [vmem:[%s2614 + $0xc] sm:$0xf]
        %v2618 = vld [vmem:[%s2614 + $0x10] sm:$0xf]
        %v2619 = vld [vmem:[%s2614 + $0x18] sm:$0xf]
        %v2620 = vld [vmem:[%s2614 + $0x1c] sm:$0xf]
        %v2621 = vld [vmem:[%s2614 + $0x24] sm:$0xf]
        %v2622 = vld [vmem:[%s2614 + $0x28] sm:$0xf]
        %v2623 = vld [vmem:[%s2614 + $0x30] sm:$0xf]
        %v2624 = vld [vmem:[%s2614 + $0x34] sm:$0xf]
        %v2625 = vld [vmem:[%s2614 + $0x3c] sm:$0xf]
        %v2626 = vld [vmem:[%s2614 + $0x40] sm:$0xf]
        %v2627 = vld [vmem:[%s2614 + $0x48] sm:$0xf]
        %v2628 = vld [vmem:[%s2614 + $0x4c] sm:$0xf]
        %v2629 = vld [vmem:[%s2614 + $0x54] sm:$0xf]
        %v2630 = vld [vmem:[%s2614 + $0x58] sm:$0xf]
        %v2631 = vld [vmem:[%s2614 + $0x60] sm:$0xf]
        %v2632 = vld [vmem:[%s2614 + $0x64] sm:$0xf]
        %v2633 = vld [vmem:[%s2614 + $0x6c] sm:$0xf]
        %v2634 = vld [vmem:[%s2614 + $0x70] sm:$0xf]
        %v2635 = vld [vmem:[%s2614 + $0x78] sm:$0xf]
        %v2636 = vld [vmem:[%s2614 + $0x7c] sm:$0xf]
        %v2637 = vld [vmem:[%s2614 + $0x84] sm:$0xf]
        %v2638 = vld [vmem:[%s2614 + $0x88] sm:$0xf]
        %v2639 = vld [vmem:[%s2614 + $0x90] sm:$0xf]
        %v2640 = vld [vmem:[%s2614 + $0x94] sm:$0xf]
        %v2641 = vld [vmem:[%s2614 + $0x9c] sm:$0xf]
        %v2642 = vld [vmem:[%s2614 + $0xa0] sm:$0xf]
        %v2643 = vld [vmem:[%s2614 + $0xa8] sm:$0xf]
        %v2644 = vld [vmem:[%s2614 + $0xac] sm:$0xf]
        %v2645 = vld [vmem:[%s2614 + $0xb4] sm:$0xf]
        %v2646 = vld [vmem:[%s2614 + $0xb8] sm:$0xf]
        %v2647 = vld [vmem:[%s2614 + $0x8] sm:$0x1]
        %v2648 = vld [vmem:[%s2614 + $0x14] sm:$0x1]
        %v2649 = vld [vmem:[%s2614 + $0x20] sm:$0x1]
        %v2650 = vld [vmem:[%s2614 + $0x2c] sm:$0x1]
        %v2651 = vld [vmem:[%s2614 + $0x38] sm:$0x1]
        %v2652 = vld [vmem:[%s2614 + $0x44] sm:$0x1]
        %v2653 = vld [vmem:[%s2614 + $0x50] sm:$0x1]
        %v2654 = vld [vmem:[%s2614 + $0x5c] sm:$0x1]
        %v2655 = vld [vmem:[%s2614 + $0x68] sm:$0x1]
        %v2656 = vld [vmem:[%s2614 + $0x74] sm:$0x1]
        %v2657 = vld [vmem:[%s2614 + $0x80] sm:$0x1]
        %v2658 = vld [vmem:[%s2614 + $0x8c] sm:$0x1]
        %v2659 = vld [vmem:[%s2614 + $0x98] sm:$0x1]
        %v2660 = vld [vmem:[%s2614 + $0xa4] sm:$0x1]
        %v2661 = vld [vmem:[%s2614 + $0xb0] sm:$0x1]
        %v2662 = vld [vmem:[%s2614 + $0xbc] sm:$0x1]
        %v2664 = vshrl.u32 %v2615, 16
        %v2666 = vrot.slane %v2664, 4
        %v2667 = vshll.u32 %v2615, 16
        %v2669 = vrot.slane %v2667, 5
        %v2670 = vor.u32 %v2666, %v2669
        %v2671 = vrot.slane %v2670, 4
        %v2673 = vshll.u32 %v2616, 16
        %v2675 = vrot.slane %v2673, 5
        %v2676 = vsel %vm1441, %v2671, %v2675
        %v2677 = vshrl.u32 %v2616, 16
        %v2679 = vrot.slane %v2677, 4
        %v2680 = vor.u32 %v2679, %v2675
        %v2681 = vrot.slane %v2680, 4
        %v2683 = vshll.u32 %v2647, 16
        %v2685 = vrot.slane %v2683, 5
        %v2686 = vsel %vm1441, %v2681, %v2685
        %v2688 = vshrl.u32 %v2617, 16
        %v2690 = vrot.slane %v2688, 4
        %v2691 = vshll.u32 %v2617, 16
        %v2693 = vrot.slane %v2691, 5
        %v2694 = vor.u32 %v2690, %v2693
        %v2695 = vrot.slane %v2694, 4
        %v2697 = vshll.u32 %v2618, 16
        %v2699 = vrot.slane %v2697, 5
        %v2700 = vsel %vm1441, %v2695, %v2699
        %v2701 = vshrl.u32 %v2618, 16
        %v2703 = vrot.slane %v2701, 4
        %v2704 = vor.u32 %v2703, %v2699
        %v2705 = vrot.slane %v2704, 4
        %v2707 = vshll.u32 %v2648, 16
        %v2709 = vrot.slane %v2707, 5
        %v2710 = vsel %vm1441, %v2705, %v2709
        %v2712 = vshrl.u32 %v2619, 16
        %v2714 = vrot.slane %v2712, 4
        %v2715 = vshll.u32 %v2619, 16
        %v2717 = vrot.slane %v2715, 5
        %v2718 = vor.u32 %v2714, %v2717
        %v2719 = vrot.slane %v2718, 4
        %v2721 = vshll.u32 %v2620, 16
        %v2723 = vrot.slane %v2721, 5
        %v2724 = vsel %vm1441, %v2719, %v2723
        %v2725 = vshrl.u32 %v2620, 16
        %v2727 = vrot.slane %v2725, 4
        %v2728 = vor.u32 %v2727, %v2723
        %v2729 = vrot.slane %v2728, 4
        %v2731 = vshll.u32 %v2649, 16
        %v2733 = vrot.slane %v2731, 5
        %v2734 = vsel %vm1441, %v2729, %v2733
        %v2736 = vshrl.u32 %v2621, 16
        %v2738 = vrot.slane %v2736, 4
        %v2739 = vshll.u32 %v2621, 16
        %v2741 = vrot.slane %v2739, 5
        %v2742 = vor.u32 %v2738, %v2741
        %v2743 = vrot.slane %v2742, 4
        %v2745 = vshll.u32 %v2622, 16
        %v2747 = vrot.slane %v2745, 5
        %v2748 = vsel %vm1441, %v2743, %v2747
        %v2749 = vshrl.u32 %v2622, 16
        %v2751 = vrot.slane %v2749, 4
        %v2752 = vor.u32 %v2751, %v2747
        %v2753 = vrot.slane %v2752, 4
        %v2755 = vshll.u32 %v2650, 16
        %v2757 = vrot.slane %v2755, 5
        %v2758 = vsel %vm1441, %v2753, %v2757
        %v2760 = vshrl.u32 %v2623, 16
        %v2762 = vrot.slane %v2760, 4
        %v2763 = vshll.u32 %v2623, 16
        %v2765 = vrot.slane %v2763, 5
        %v2766 = vor.u32 %v2762, %v2765
        %v2767 = vrot.slane %v2766, 4
        %v2769 = vshll.u32 %v2624, 16
        %v2771 = vrot.slane %v2769, 5
        %v2772 = vsel %vm1441, %v2767, %v2771
        %v2773 = vshrl.u32 %v2624, 16
        %v2775 = vrot.slane %v2773, 4
        %v2776 = vor.u32 %v2775, %v2771
        %v2777 = vrot.slane %v2776, 4
        %v2779 = vshll.u32 %v2651, 16
        %v2781 = vrot.slane %v2779, 5
        %v2782 = vsel %vm1441, %v2777, %v2781
        %v2784 = vshrl.u32 %v2625, 16
        %v2786 = vrot.slane %v2784, 4
        %v2787 = vshll.u32 %v2625, 16
        %v2789 = vrot.slane %v2787, 5
        %v2790 = vor.u32 %v2786, %v2789
        %v2791 = vrot.slane %v2790, 4
        %v2793 = vshll.u32 %v2626, 16
        %v2795 = vrot.slane %v2793, 5
        %v2796 = vsel %vm1441, %v2791, %v2795
        %v2797 = vshrl.u32 %v2626, 16
        %v2799 = vrot.slane %v2797, 4
        %v2800 = vor.u32 %v2799, %v2795
        %v2801 = vrot.slane %v2800, 4
        %v2803 = vshll.u32 %v2652, 16
        %v2805 = vrot.slane %v2803, 5
        %v2806 = vsel %vm1441, %v2801, %v2805
        %v2808 = vshrl.u32 %v2627, 16
        %v2810 = vrot.slane %v2808, 4
        %v2811 = vshll.u32 %v2627, 16
        %v2813 = vrot.slane %v2811, 5
        %v2814 = vor.u32 %v2810, %v2813
        %v2815 = vrot.slane %v2814, 4
        %v2817 = vshll.u32 %v2628, 16
        %v2819 = vrot.slane %v2817, 5
        %v2820 = vsel %vm1441, %v2815, %v2819
        %v2821 = vshrl.u32 %v2628, 16
        %v2823 = vrot.slane %v2821, 4
        %v2824 = vor.u32 %v2823, %v2819
        %v2825 = vrot.slane %v2824, 4
        %v2827 = vshll.u32 %v2653, 16
        %v2829 = vrot.slane %v2827, 5
        %v2830 = vsel %vm1441, %v2825, %v2829
        %v2832 = vshrl.u32 %v2629, 16
        %v2834 = vrot.slane %v2832, 4
        %v2835 = vshll.u32 %v2629, 16
        %v2837 = vrot.slane %v2835, 5
        %v2838 = vor.u32 %v2834, %v2837
        %v2839 = vrot.slane %v2838, 4
        %v2841 = vshll.u32 %v2630, 16
        %v2843 = vrot.slane %v2841, 5
        %v2844 = vsel %vm1441, %v2839, %v2843
        %v2845 = vshrl.u32 %v2630, 16
        %v2847 = vrot.slane %v2845, 4
        %v2848 = vor.u32 %v2847, %v2843
        %v2849 = vrot.slane %v2848, 4
        %v2851 = vshll.u32 %v2654, 16
        %v2853 = vrot.slane %v2851, 5
        %v2854 = vsel %vm1441, %v2849, %v2853
        %v2856 = vshrl.u32 %v2631, 16
        %v2858 = vrot.slane %v2856, 4
        %v2859 = vshll.u32 %v2631, 16
        %v2861 = vrot.slane %v2859, 5
        %v2862 = vor.u32 %v2858, %v2861
        %v2863 = vrot.slane %v2862, 4
        %v2865 = vshll.u32 %v2632, 16
        %v2867 = vrot.slane %v2865, 5
        %v2868 = vsel %vm1441, %v2863, %v2867
        %v2869 = vshrl.u32 %v2632, 16
        %v2871 = vrot.slane %v2869, 4
        %v2872 = vor.u32 %v2871, %v2867
        %v2873 = vrot.slane %v2872, 4
        %v2875 = vshll.u32 %v2655, 16
        %v2877 = vrot.slane %v2875, 5
        %v2878 = vsel %vm1441, %v2873, %v2877
        %v2880 = vshrl.u32 %v2633, 16
        %v2882 = vrot.slane %v2880, 4
        %v2883 = vshll.u32 %v2633, 16
        %v2885 = vrot.slane %v2883, 5
        %v2886 = vor.u32 %v2882, %v2885
        %v2887 = vrot.slane %v2886, 4
        %v2889 = vshll.u32 %v2634, 16
        %v2891 = vrot.slane %v2889, 5
        %v2892 = vsel %vm1441, %v2887, %v2891
        %v2893 = vshrl.u32 %v2634, 16
        %v2895 = vrot.slane %v2893, 4
        %v2896 = vor.u32 %v2895, %v2891
        %v2897 = vrot.slane %v2896, 4
        %v2899 = vshll.u32 %v2656, 16
        %v2901 = vrot.slane %v2899, 5
        %v2902 = vsel %vm1441, %v2897, %v2901
        %v2904 = vshrl.u32 %v2635, 16
        %v2906 = vrot.slane %v2904, 4
        %v2907 = vshll.u32 %v2635, 16
        %v2909 = vrot.slane %v2907, 5
        %v2910 = vor.u32 %v2906, %v2909
        %v2911 = vrot.slane %v2910, 4
        %v2913 = vshll.u32 %v2636, 16
        %v2915 = vrot.slane %v2913, 5
        %v2916 = vsel %vm1441, %v2911, %v2915
        %v2917 = vshrl.u32 %v2636, 16
        %v2919 = vrot.slane %v2917, 4
        %v2920 = vor.u32 %v2919, %v2915
        %v2921 = vrot.slane %v2920, 4
        %v2923 = vshll.u32 %v2657, 16
        %v2925 = vrot.slane %v2923, 5
        %v2926 = vsel %vm1441, %v2921, %v2925
        %v2928 = vshrl.u32 %v2637, 16
        %v2930 = vrot.slane %v2928, 4
        %v2931 = vshll.u32 %v2637, 16
        %v2933 = vrot.slane %v2931, 5
        %v2934 = vor.u32 %v2930, %v2933
        %v2935 = vrot.slane %v2934, 4
        %v2937 = vshll.u32 %v2638, 16
        %v2939 = vrot.slane %v2937, 5
        %v2940 = vsel %vm1441, %v2935, %v2939
        %v2941 = vshrl.u32 %v2638, 16
        %v2943 = vrot.slane %v2941, 4
        %v2944 = vor.u32 %v2943, %v2939
        %v2945 = vrot.slane %v2944, 4
        %v2947 = vshll.u32 %v2658, 16
        %v2949 = vrot.slane %v2947, 5
        %v2950 = vsel %vm1441, %v2945, %v2949
        %v2952 = vshrl.u32 %v2639, 16
        %v2954 = vrot.slane %v2952, 4
        %v2955 = vshll.u32 %v2639, 16
        %v2957 = vrot.slane %v2955, 5
        %v2958 = vor.u32 %v2954, %v2957
        %v2959 = vrot.slane %v2958, 4
        %v2961 = vshll.u32 %v2640, 16
        %v2963 = vrot.slane %v2961, 5
        %v2964 = vsel %vm1441, %v2959, %v2963
        %v2965 = vshrl.u32 %v2640, 16
        %v2967 = vrot.slane %v2965, 4
        %v2968 = vor.u32 %v2967, %v2963
        %v2969 = vrot.slane %v2968, 4
        %v2971 = vshll.u32 %v2659, 16
        %v2973 = vrot.slane %v2971, 5
        %v2974 = vsel %vm1441, %v2969, %v2973
        %v2976 = vshrl.u32 %v2641, 16
        %v2978 = vrot.slane %v2976, 4
        %v2979 = vshll.u32 %v2641, 16
        %v2981 = vrot.slane %v2979, 5
        %v2982 = vor.u32 %v2978, %v2981
        %v2983 = vrot.slane %v2982, 4
        %v2985 = vshll.u32 %v2642, 16
        %v2987 = vrot.slane %v2985, 5
        %v2988 = vsel %vm1441, %v2983, %v2987
        %v2989 = vshrl.u32 %v2642, 16
        %v2991 = vrot.slane %v2989, 4
        %v2992 = vor.u32 %v2991, %v2987
        %v2993 = vrot.slane %v2992, 4
        %v2995 = vshll.u32 %v2660, 16
        %v2997 = vrot.slane %v2995, 5
        %v2998 = vsel %vm1441, %v2993, %v2997
        %v3000 = vshrl.u32 %v2643, 16
        %v3002 = vrot.slane %v3000, 4
        %v3003 = vshll.u32 %v2643, 16
        %v3005 = vrot.slane %v3003, 5
        %v3006 = vor.u32 %v3002, %v3005
        %v3007 = vrot.slane %v3006, 4
        %v3009 = vshll.u32 %v2644, 16
        %v3011 = vrot.slane %v3009, 5
        %v3012 = vsel %vm1441, %v3007, %v3011
        %v3013 = vshrl.u32 %v2644, 16
        %v3015 = vrot.slane %v3013, 4
        %v3016 = vor.u32 %v3015, %v3011
        %v3017 = vrot.slane %v3016, 4
        %v3019 = vshll.u32 %v2661, 16
        %v3021 = vrot.slane %v3019, 5
        %v3022 = vsel %vm1441, %v3017, %v3021
        %v3024 = vshrl.u32 %v2645, 16
        %v3026 = vrot.slane %v3024, 4
        %v3027 = vshll.u32 %v2645, 16
        %v3029 = vrot.slane %v3027, 5
        %v3030 = vor.u32 %v3026, %v3029
        %v3031 = vrot.slane %v3030, 4
        %v3033 = vshll.u32 %v2646, 16
        %v3035 = vrot.slane %v3033, 5
        %v3036 = vsel %vm1441, %v3031, %v3035
        %v3037 = vshrl.u32 %v2646, 16
        %v3039 = vrot.slane %v3037, 4
        %v3040 = vor.u32 %v3039, %v3035
        %v3041 = vrot.slane %v3040, 4
        %v3043 = vshll.u32 %v2662, 16
        %v3045 = vrot.slane %v3043, 5
        %v3046 = vsel %vm1441, %v3041, %v3045
        %v3047 = vld [vmem:[%s2614] sm:$0xe]
        %v3048 = vld [vmem:[%s2614 + $0xc] sm:$0xe]
        %v3049 = vld [vmem:[%s2614 + $0x18] sm:$0xe]
        %v3050 = vld [vmem:[%s2614 + $0x24] sm:$0xe]
        %v3051 = vld [vmem:[%s2614 + $0x30] sm:$0xe]
        %v3052 = vld [vmem:[%s2614 + $0x3c] sm:$0xe]
        %v3053 = vld [vmem:[%s2614 + $0x48] sm:$0xe]
        %v3054 = vld [vmem:[%s2614 + $0x54] sm:$0xe]
        %v3055 = vld [vmem:[%s2614 + $0x60] sm:$0xe]
        %v3056 = vld [vmem:[%s2614 + $0x6c] sm:$0xe]
        %v3057 = vld [vmem:[%s2614 + $0x78] sm:$0xe]
        %v3058 = vld [vmem:[%s2614 + $0x84] sm:$0xe]
        %v3059 = vld [vmem:[%s2614 + $0x90] sm:$0xe]
        %v3060 = vld [vmem:[%s2614 + $0x9c] sm:$0xe]
        %v3061 = vld [vmem:[%s2614 + $0xa8] sm:$0xe]
        %v3062 = vld [vmem:[%s2614 + $0xb4] sm:$0xe]
        %v3111 = vrot.slane %v3047, 5
        %v3112 = vrot.slane %v3111, 4
        %v3113 = vrot.slane %v2616, 5
        %v3114 = vsel %vm1892, %v3112, %v3113
        %v3115 = vrot.slane %v3113, 4
        %v3116 = vrot.slane %v2647, 5
        %v3117 = vsel %vm1892, %v3115, %v3116
        %v3118 = vrot.slane %v3048, 5
        %v3119 = vrot.slane %v3118, 4
        %v3120 = vrot.slane %v2618, 5
        %v3121 = vsel %vm1892, %v3119, %v3120
        %v3122 = vrot.slane %v3120, 4
        %v3123 = vrot.slane %v2648, 5
        %v3124 = vsel %vm1892, %v3122, %v3123
        %v3125 = vrot.slane %v3049, 5
        %v3126 = vrot.slane %v3125, 4
        %v3127 = vrot.slane %v2620, 5
        %v3128 = vsel %vm1892, %v3126, %v3127
        %v3129 = vrot.slane %v3127, 4
        %v3130 = vrot.slane %v2649, 5
        %v3131 = vsel %vm1892, %v3129, %v3130
        %v3132 = vrot.slane %v3050, 5
        %v3133 = vrot.slane %v3132, 4
        %v3134 = vrot.slane %v2622, 5
        %v3135 = vsel %vm1892, %v3133, %v3134
        %v3136 = vrot.slane %v3134, 4
        %v3137 = vrot.slane %v2650, 5
        %v3138 = vsel %vm1892, %v3136, %v3137
        %v3139 = vrot.slane %v3051, 5
        %v3140 = vrot.slane %v3139, 4
        %v3141 = vrot.slane %v2624, 5
        %v3142 = vsel %vm1892, %v3140, %v3141
        %v3143 = vrot.slane %v3141, 4
        %v3144 = vrot.slane %v2651, 5
        %v3145 = vsel %vm1892, %v3143, %v3144
        %v3146 = vrot.slane %v3052, 5
        %v3147 = vrot.slane %v3146, 4
        %v3148 = vrot.slane %v2626, 5
        %v3149 = vsel %vm1892, %v3147, %v3148
        %v3150 = vrot.slane %v3148, 4
        %v3151 = vrot.slane %v2652, 5
        %v3152 = vsel %vm1892, %v3150, %v3151
        %v3153 = vrot.slane %v3053, 5
        %v3154 = vrot.slane %v3153, 4
        %v3155 = vrot.slane %v2628, 5
        %v3156 = vsel %vm1892, %v3154, %v3155
        %v3157 = vrot.slane %v3155, 4
        %v3158 = vrot.slane %v2653, 5
        %v3159 = vsel %vm1892, %v3157, %v3158
        %v3160 = vrot.slane %v3054, 5
        %v3161 = vrot.slane %v3160, 4
        %v3162 = vrot.slane %v2630, 5
        %v3163 = vsel %vm1892, %v3161, %v3162
        %v3164 = vrot.slane %v3162, 4
        %v3165 = vrot.slane %v2654, 5
        %v3166 = vsel %vm1892, %v3164, %v3165
        %v3167 = vrot.slane %v3055, 5
        %v3168 = vrot.slane %v3167, 4
        %v3169 = vrot.slane %v2632, 5
        %v3170 = vsel %vm1892, %v3168, %v3169
        %v3171 = vrot.slane %v3169, 4
        %v3172 = vrot.slane %v2655, 5
        %v3173 = vsel %vm1892, %v3171, %v3172
        %v3174 = vrot.slane %v3056, 5
        %v3175 = vrot.slane %v3174, 4
        %v3176 = vrot.slane %v2634, 5
        %v3177 = vsel %vm1892, %v3175, %v3176
        %v3178 = vrot.slane %v3176, 4
        %v3179 = vrot.slane %v2656, 5
        %v3180 = vsel %vm1892, %v3178, %v3179
        %v3181 = vrot.slane %v3057, 5
        %v3182 = vrot.slane %v3181, 4
        %v3183 = vrot.slane %v2636, 5
        %v3184 = vsel %vm1892, %v3182, %v3183
        %v3185 = vrot.slane %v3183, 4
        %v3186 = vrot.slane %v2657, 5
        %v3187 = vsel %vm1892, %v3185, %v3186
        %v3188 = vrot.slane %v3058, 5
        %v3189 = vrot.slane %v3188, 4
        %v3190 = vrot.slane %v2638, 5
        %v3191 = vsel %vm1892, %v3189, %v3190
        %v3192 = vrot.slane %v3190, 4
        %v3193 = vrot.slane %v2658, 5
        %v3194 = vsel %vm1892, %v3192, %v3193
        %v3195 = vrot.slane %v3059, 5
        %v3196 = vrot.slane %v3195, 4
        %v3197 = vrot.slane %v2640, 5
        %v3198 = vsel %vm1892, %v3196, %v3197
        %v3199 = vrot.slane %v3197, 4
        %v3200 = vrot.slane %v2659, 5
        %v3201 = vsel %vm1892, %v3199, %v3200
        %v3202 = vrot.slane %v3060, 5
        %v3203 = vrot.slane %v3202, 4
        %v3204 = vrot.slane %v2642, 5
        %v3205 = vsel %vm1892, %v3203, %v3204
        %v3206 = vrot.slane %v3204, 4
        %v3207 = vrot.slane %v2660, 5
        %v3208 = vsel %vm1892, %v3206, %v3207
        %v3209 = vrot.slane %v3061, 5
        %v3210 = vrot.slane %v3209, 4
        %v3211 = vrot.slane %v2644, 5
        %v3212 = vsel %vm1892, %v3210, %v3211
        %v3213 = vrot.slane %v3211, 4
        %v3214 = vrot.slane %v2661, 5
        %v3215 = vsel %vm1892, %v3213, %v3214
        %v3216 = vrot.slane %v3062, 5
        %v3217 = vrot.slane %v3216, 4
        %v3218 = vrot.slane %v2646, 5
        %v3219 = vsel %vm1892, %v3217, %v3218
        %v3220 = vrot.slane %v3218, 4
        %v3221 = vrot.slane %v2662, 5
        %v3222 = vsel %vm1892, %v3220, %v3221
        %v3239 = vunpack.c.l.b16 %v1391
        %v3240 = vunpack.c.l.b16 %v1392
        %v3241 = vunpack.c.l.b16 %v1393
        %v3242 = vunpack.c.l.b16 %v1394
        %v3243 = vunpack.c.l.b16 %v1395
        %v3244 = vunpack.c.l.b16 %v1396
        %v3245 = vunpack.c.l.b16 %v1397
        %v3246 = vunpack.c.l.b16 %v1398
        %v3247 = vunpack.c.l.b16 %v1399
        %v3248 = vunpack.c.l.b16 %v1400
        %v3249 = vunpack.c.l.b16 %v1401
        %v3250 = vunpack.c.l.b16 %v1402
        %v3251 = vunpack.c.l.b16 %v1403
        %v3252 = vunpack.c.l.b16 %v1404
        %v3253 = vunpack.c.l.b16 %v1405
        %v3254 = vunpack.c.l.b16 %v1406
        %v3255 = vunpack.c.l.b16 %v1407
        %v3256 = vunpack.c.l.b16 %v1408
        %v3257 = vunpack.c.l.b16 %v1409
        %v3258 = vunpack.c.l.b16 %v1410
        %v3259 = vunpack.c.l.b16 %v1411
        %v3260 = vunpack.c.l.b16 %v1412
        %v3261 = vunpack.c.l.b16 %v1413
        %v3262 = vunpack.c.l.b16 %v1414
        %v3263 = vunpack.c.l.b16 %v1415
        %v3264 = vunpack.c.l.b16 %v1416
        %v3265 = vunpack.c.l.b16 %v1417
        %v3266 = vunpack.c.l.b16 %v1418
        %v3267 = vunpack.c.l.b16 %v1419
        %v3268 = vunpack.c.l.b16 %v1420
        %v3269 = vunpack.c.l.b16 %v1421
        %v3270 = vunpack.c.l.b16 %v1422
        %v3271 = vpack.c.b16 %v3240, %v3239
        %v3272 = vpack.c.b16 %v3242, %v3241
        %v3273 = vpack.c.b16 %v3244, %v3243
        %v3274 = vpack.c.b16 %v3246, %v3245
        %v3275 = vpack.c.b16 %v3248, %v3247
        %v3276 = vpack.c.b16 %v3250, %v3249
        %v3277 = vpack.c.b16 %v3252, %v3251
        %v3278 = vpack.c.b16 %v3254, %v3253
        %v3279 = vpack.c.b16 %v3256, %v3255
        %v3280 = vpack.c.b16 %v3258, %v3257
        %v3281 = vpack.c.b16 %v3260, %v3259
        %v3282 = vpack.c.b16 %v3262, %v3261
        %v3283 = vpack.c.b16 %v3264, %v3263
        %v3284 = vpack.c.b16 %v3266, %v3265
        %v3285 = vpack.c.b16 %v3268, %v3267
        %v3286 = vpack.c.b16 %v3270, %v3269
        %v3287 = vunpack.c.l.b16 %v1455
        %v3288 = vunpack.c.l.b16 %v1465
        %v3289 = vunpack.c.l.b16 %v1479
        %v3290 = vunpack.c.l.b16 %v1489
        %v3291 = vunpack.c.l.b16 %v1503
        %v3292 = vunpack.c.l.b16 %v1513
        %v3293 = vunpack.c.l.b16 %v1527
        %v3294 = vunpack.c.l.b16 %v1537
        %v3295 = vunpack.c.l.b16 %v1551
        %v3296 = vunpack.c.l.b16 %v1561
        %v3297 = vunpack.c.l.b16 %v1575
        %v3298 = vunpack.c.l.b16 %v1585
        %v3299 = vunpack.c.l.b16 %v1599
        %v3300 = vunpack.c.l.b16 %v1609
        %v3301 = vunpack.c.l.b16 %v1623
        %v3302 = vunpack.c.l.b16 %v1633
        %v3303 = vunpack.c.l.b16 %v1647
        %v3304 = vunpack.c.l.b16 %v1657
        %v3305 = vunpack.c.l.b16 %v1671
        %v3306 = vunpack.c.l.b16 %v1681
        %v3307 = vunpack.c.l.b16 %v1695
        %v3308 = vunpack.c.l.b16 %v1705
        %v3309 = vunpack.c.l.b16 %v1719
        %v3310 = vunpack.c.l.b16 %v1729
        %v3311 = vunpack.c.l.b16 %v1743
        %v3312 = vunpack.c.l.b16 %v1753
        %v3313 = vunpack.c.l.b16 %v1767
        %v3314 = vunpack.c.l.b16 %v1777
        %v3315 = vunpack.c.l.b16 %v1791
        %v3316 = vunpack.c.l.b16 %v1801
        %v3317 = vunpack.c.l.b16 %v1815
        %v3318 = vunpack.c.l.b16 %v1825
        %v3319 = vpack.c.b16 %v3288, %v3287
        %v3320 = vpack.c.b16 %v3290, %v3289
        %v3321 = vpack.c.b16 %v3292, %v3291
        %v3322 = vpack.c.b16 %v3294, %v3293
        %v3323 = vpack.c.b16 %v3296, %v3295
        %v3324 = vpack.c.b16 %v3298, %v3297
        %v3325 = vpack.c.b16 %v3300, %v3299
        %v3326 = vpack.c.b16 %v3302, %v3301
        %v3327 = vpack.c.b16 %v3304, %v3303
        %v3328 = vpack.c.b16 %v3306, %v3305
        %v3329 = vpack.c.b16 %v3308, %v3307
        %v3330 = vpack.c.b16 %v3310, %v3309
        %v3331 = vpack.c.b16 %v3312, %v3311
        %v3332 = vpack.c.b16 %v3314, %v3313
        %v3333 = vpack.c.b16 %v3316, %v3315
        %v3334 = vpack.c.b16 %v3318, %v3317
        %3335 = vrot.lane.b32.xlu0 %v3319, 8
        %v3336 = vpop.permute.xlu0 %3335
        %3337 = vrot.lane.b32.xlu0 %v3320, 8
        %v3338 = vpop.permute.xlu0 %3337
        %3339 = vrot.lane.b32.xlu0 %v3321, 8
        %v3340 = vpop.permute.xlu0 %3339
        %3341 = vrot.lane.b32.xlu0 %v3322, 8
        %v3342 = vpop.permute.xlu0 %3341
        %3343 = vrot.lane.b32.xlu0 %v3323, 8
        %v3344 = vpop.permute.xlu0 %3343
        %3345 = vrot.lane.b32.xlu0 %v3324, 8
        %v3346 = vpop.permute.xlu0 %3345
        %3347 = vrot.lane.b32.xlu0 %v3325, 8
        %v3348 = vpop.permute.xlu0 %3347
        %3349 = vrot.lane.b32.xlu0 %v3326, 8
        %v3350 = vpop.permute.xlu0 %3349
        %3351 = vrot.lane.b32.xlu0 %v3327, 8
        %v3352 = vpop.permute.xlu0 %3351
        %3353 = vrot.lane.b32.xlu0 %v3328, 8
        %v3354 = vpop.permute.xlu0 %3353
        %3355 = vrot.lane.b32.xlu0 %v3329, 8
        %v3356 = vpop.permute.xlu0 %3355
        %3357 = vrot.lane.b32.xlu0 %v3330, 8
        %v3358 = vpop.permute.xlu0 %3357
        %3359 = vrot.lane.b32.xlu0 %v3331, 8
        %v3360 = vpop.permute.xlu0 %3359
        %3361 = vrot.lane.b32.xlu0 %v3332, 8
        %v3362 = vpop.permute.xlu0 %3361
        %3363 = vrot.lane.b32.xlu0 %v3333, 8
        %v3364 = vpop.permute.xlu0 %3363
        %3365 = vrot.lane.b32.xlu0 %v3334, 8
        %v3366 = vpop.permute.xlu0 %3365
        %v3367 = vunpack.c.l.b16 %v1896
        %v3368 = vunpack.c.l.b16 %v1899
        %v3369 = vunpack.c.l.b16 %v1903
        %v3370 = vunpack.c.l.b16 %v1906
        %v3371 = vunpack.c.l.b16 %v1910
        %v3372 = vunpack.c.l.b16 %v1913
        %v3373 = vunpack.c.l.b16 %v1917
        %v3374 = vunpack.c.l.b16 %v1920
        %v3375 = vunpack.c.l.b16 %v1924
        %v3376 = vunpack.c.l.b16 %v1927
        %v3377 = vunpack.c.l.b16 %v1931
        %v3378 = vunpack.c.l.b16 %v1934
        %v3379 = vunpack.c.l.b16 %v1938
        %v3380 = vunpack.c.l.b16 %v1941
        %v3381 = vunpack.c.l.b16 %v1945
        %v3382 = vunpack.c.l.b16 %v1948
        %v3383 = vunpack.c.l.b16 %v1952
        %v3384 = vunpack.c.l.b16 %v1955
        %v3385 = vunpack.c.l.b16 %v1959
        %v3386 = vunpack.c.l.b16 %v1962
        %v3387 = vunpack.c.l.b16 %v1966
        %v3388 = vunpack.c.l.b16 %v1969
        %v3389 = vunpack.c.l.b16 %v1973
        %v3390 = vunpack.c.l.b16 %v1976
        %v3391 = vunpack.c.l.b16 %v1980
        %v3392 = vunpack.c.l.b16 %v1983
        %v3393 = vunpack.c.l.b16 %v1987
        %v3394 = vunpack.c.l.b16 %v1990
        %v3395 = vunpack.c.l.b16 %v1994
        %v3396 = vunpack.c.l.b16 %v1997
        %v3397 = vunpack.c.l.b16 %v2001
        %v3398 = vunpack.c.l.b16 %v2004
        %v3399 = vpack.c.b16 %v3368, %v3367
        %v3400 = vpack.c.b16 %v3370, %v3369
        %v3401 = vpack.c.b16 %v3372, %v3371
        %v3402 = vpack.c.b16 %v3374, %v3373
        %v3403 = vpack.c.b16 %v3376, %v3375
        %v3404 = vpack.c.b16 %v3378, %v3377
        %v3405 = vpack.c.b16 %v3380, %v3379
        %v3406 = vpack.c.b16 %v3382, %v3381
        %v3407 = vpack.c.b16 %v3384, %v3383
        %v3408 = vpack.c.b16 %v3386, %v3385
        %v3409 = vpack.c.b16 %v3388, %v3387
        %v3410 = vpack.c.b16 %v3390, %v3389
        %v3411 = vpack.c.b16 %v3392, %v3391
        %v3412 = vpack.c.b16 %v3394, %v3393
        %v3413 = vpack.c.b16 %v3396, %v3395
        %v3414 = vpack.c.b16 %v3398, %v3397
        %3415 = vrot.lane.b32.xlu0 %v3399, 16
        %v3416 = vpop.permute.xlu0 %3415
        %3417 = vrot.lane.b32.xlu0 %v3400, 16
        %v3418 = vpop.permute.xlu0 %3417
        %3419 = vrot.lane.b32.xlu0 %v3401, 16
        %v3420 = vpop.permute.xlu0 %3419
        %3421 = vrot.lane.b32.xlu0 %v3402, 16
        %v3422 = vpop.permute.xlu0 %3421
        %3423 = vrot.lane.b32.xlu0 %v3403, 16
        %v3424 = vpop.permute.xlu0 %3423
        %3425 = vrot.lane.b32.xlu0 %v3404, 16
        %v3426 = vpop.permute.xlu0 %3425
        %3427 = vrot.lane.b32.xlu0 %v3405, 16
        %v3428 = vpop.permute.xlu0 %3427
        %3429 = vrot.lane.b32.xlu0 %v3406, 16
        %v3430 = vpop.permute.xlu0 %3429
        %3431 = vrot.lane.b32.xlu0 %v3407, 16
        %v3432 = vpop.permute.xlu0 %3431
        %3433 = vrot.lane.b32.xlu0 %v3408, 16
        %v3434 = vpop.permute.xlu0 %3433
        %3435 = vrot.lane.b32.xlu0 %v3409, 16
        %v3436 = vpop.permute.xlu0 %3435
        %3437 = vrot.lane.b32.xlu0 %v3410, 16
        %v3438 = vpop.permute.xlu0 %3437
        %3439 = vrot.lane.b32.xlu0 %v3411, 16
        %v3440 = vpop.permute.xlu0 %3439
        %3441 = vrot.lane.b32.xlu0 %v3412, 16
        %v3442 = vpop.permute.xlu0 %3441
        %3443 = vrot.lane.b32.xlu0 %v3413, 16
        %v3444 = vpop.permute.xlu0 %3443
        %3445 = vrot.lane.b32.xlu0 %v3414, 16
        %v3446 = vpop.permute.xlu0 %3445
        %v3463 = vunpack.c.l.b16 %v2006
        %v3464 = vunpack.c.l.b16 %v2007
        %v3465 = vunpack.c.l.b16 %v2008
        %v3466 = vunpack.c.l.b16 %v2009
        %v3467 = vunpack.c.l.b16 %v2010
        %v3468 = vunpack.c.l.b16 %v2011
        %v3469 = vunpack.c.l.b16 %v2012
        %v3470 = vunpack.c.l.b16 %v2013
        %v3471 = vunpack.c.l.b16 %v2014
        %v3472 = vunpack.c.l.b16 %v2015
        %v3473 = vunpack.c.l.b16 %v2016
        %v3474 = vunpack.c.l.b16 %v2017
        %v3475 = vunpack.c.l.b16 %v2018
        %v3476 = vunpack.c.l.b16 %v2019
        %v3477 = vunpack.c.l.b16 %v2020
        %v3478 = vunpack.c.l.b16 %v2021
        %v3479 = vunpack.c.l.b16 %v2022
        %v3480 = vunpack.c.l.b16 %v2023
        %v3481 = vunpack.c.l.b16 %v2024
        %v3482 = vunpack.c.l.b16 %v2025
        %v3483 = vunpack.c.l.b16 %v2026
        %v3484 = vunpack.c.l.b16 %v2027
        %v3485 = vunpack.c.l.b16 %v2028
        %v3486 = vunpack.c.l.b16 %v2029
        %v3487 = vunpack.c.l.b16 %v2030
        %v3488 = vunpack.c.l.b16 %v2031
        %v3489 = vunpack.c.l.b16 %v2032
        %v3490 = vunpack.c.l.b16 %v2033
        %v3491 = vunpack.c.l.b16 %v2034
        %v3492 = vunpack.c.l.b16 %v2035
        %v3493 = vunpack.c.l.b16 %v2036
        %v3494 = vunpack.c.l.b16 %v2037
        %v3495 = vpack.c.b16 %v3464, %v3463
        %v3496 = vpack.c.b16 %v3466, %v3465
        %v3497 = vpack.c.b16 %v3468, %v3467
        %v3498 = vpack.c.b16 %v3470, %v3469
        %v3499 = vpack.c.b16 %v3472, %v3471
        %v3500 = vpack.c.b16 %v3474, %v3473
        %v3501 = vpack.c.b16 %v3476, %v3475
        %v3502 = vpack.c.b16 %v3478, %v3477
        %v3503 = vpack.c.b16 %v3480, %v3479
        %v3504 = vpack.c.b16 %v3482, %v3481
        %v3505 = vpack.c.b16 %v3484, %v3483
        %v3506 = vpack.c.b16 %v3486, %v3485
        %v3507 = vpack.c.b16 %v3488, %v3487
        %v3508 = vpack.c.b16 %v3490, %v3489
        %v3509 = vpack.c.b16 %v3492, %v3491
        %v3510 = vpack.c.b16 %v3494, %v3493
        %3511 = vrot.lane.b32.xlu0 %v3495, 24
        %v3512 = vpop.permute.xlu0 %3511
        %3513 = vrot.lane.b32.xlu0 %v3496, 24
        %v3514 = vpop.permute.xlu0 %3513
        %3515 = vrot.lane.b32.xlu0 %v3497, 24
        %v3516 = vpop.permute.xlu0 %3515
        %3517 = vrot.lane.b32.xlu0 %v3498, 24
        %v3518 = vpop.permute.xlu0 %3517
        %3519 = vrot.lane.b32.xlu0 %v3499, 24
        %v3520 = vpop.permute.xlu0 %3519
        %3521 = vrot.lane.b32.xlu0 %v3500, 24
        %v3522 = vpop.permute.xlu0 %3521
        %3523 = vrot.lane.b32.xlu0 %v3501, 24
        %v3524 = vpop.permute.xlu0 %3523
        %3525 = vrot.lane.b32.xlu0 %v3502, 24
        %v3526 = vpop.permute.xlu0 %3525
        %3527 = vrot.lane.b32.xlu0 %v3503, 24
        %v3528 = vpop.permute.xlu0 %3527
        %3529 = vrot.lane.b32.xlu0 %v3504, 24
        %v3530 = vpop.permute.xlu0 %3529
        %3531 = vrot.lane.b32.xlu0 %v3505, 24
        %v3532 = vpop.permute.xlu0 %3531
        %3533 = vrot.lane.b32.xlu0 %v3506, 24
        %v3534 = vpop.permute.xlu0 %3533
        %3535 = vrot.lane.b32.xlu0 %v3507, 24
        %v3536 = vpop.permute.xlu0 %3535
        %3537 = vrot.lane.b32.xlu0 %v3508, 24
        %v3538 = vpop.permute.xlu0 %3537
        %3539 = vrot.lane.b32.xlu0 %v3509, 24
        %v3540 = vpop.permute.xlu0 %3539
        %3541 = vrot.lane.b32.xlu0 %v3510, 24
        %v3542 = vpop.permute.xlu0 %3541
        %v3543 = vunpack.c.l.b16 %v2067
        %v3544 = vunpack.c.l.b16 %v2077
        %v3545 = vunpack.c.l.b16 %v2091
        %v3546 = vunpack.c.l.b16 %v2101
        %v3547 = vunpack.c.l.b16 %v2115
        %v3548 = vunpack.c.l.b16 %v2125
        %v3549 = vunpack.c.l.b16 %v2139
        %v3550 = vunpack.c.l.b16 %v2149
        %v3551 = vunpack.c.l.b16 %v2163
        %v3552 = vunpack.c.l.b16 %v2173
        %v3553 = vunpack.c.l.b16 %v2187
        %v3554 = vunpack.c.l.b16 %v2197
        %v3555 = vunpack.c.l.b16 %v2211
        %v3556 = vunpack.c.l.b16 %v2221
        %v3557 = vunpack.c.l.b16 %v2235
        %v3558 = vunpack.c.l.b16 %v2245
        %v3559 = vunpack.c.l.b16 %v2259
        %v3560 = vunpack.c.l.b16 %v2269
        %v3561 = vunpack.c.l.b16 %v2283
        %v3562 = vunpack.c.l.b16 %v2293
        %v3563 = vunpack.c.l.b16 %v2307
        %v3564 = vunpack.c.l.b16 %v2317
        %v3565 = vunpack.c.l.b16 %v2331
        %v3566 = vunpack.c.l.b16 %v2341
        %v3567 = vunpack.c.l.b16 %v2355
        %v3568 = vunpack.c.l.b16 %v2365
        %v3569 = vunpack.c.l.b16 %v2379
        %v3570 = vunpack.c.l.b16 %v2389
        %v3571 = vunpack.c.l.b16 %v2403
        %v3572 = vunpack.c.l.b16 %v2413
        %v3573 = vunpack.c.l.b16 %v2427
        %v3574 = vunpack.c.l.b16 %v2437
        %v3575 = vpack.c.b16 %v3544, %v3543
        %v3576 = vpack.c.b16 %v3546, %v3545
        %v3577 = vpack.c.b16 %v3548, %v3547
        %v3578 = vpack.c.b16 %v3550, %v3549
        %v3579 = vpack.c.b16 %v3552, %v3551
        %v3580 = vpack.c.b16 %v3554, %v3553
        %v3581 = vpack.c.b16 %v3556, %v3555
        %v3582 = vpack.c.b16 %v3558, %v3557
        %v3583 = vpack.c.b16 %v3560, %v3559
        %v3584 = vpack.c.b16 %v3562, %v3561
        %v3585 = vpack.c.b16 %v3564, %v3563
        %v3586 = vpack.c.b16 %v3566, %v3565
        %v3587 = vpack.c.b16 %v3568, %v3567
        %v3588 = vpack.c.b16 %v3570, %v3569
        %v3589 = vpack.c.b16 %v3572, %v3571
        %v3590 = vpack.c.b16 %v3574, %v3573
        %3591 = vrot.lane.b32.xlu0 %v3575, 32
        %v3592 = vpop.permute.xlu0 %3591
        %3593 = vrot.lane.b32.xlu0 %v3576, 32
        %v3594 = vpop.permute.xlu0 %3593
        %3595 = vrot.lane.b32.xlu0 %v3577, 32
        %v3596 = vpop.permute.xlu0 %3595
        %3597 = vrot.lane.b32.xlu0 %v3578, 32
        %v3598 = vpop.permute.xlu0 %3597
        %3599 = vrot.lane.b32.xlu0 %v3579, 32
        %v3600 = vpop.permute.xlu0 %3599
        %3601 = vrot.lane.b32.xlu0 %v3580, 32
        %v3602 = vpop.permute.xlu0 %3601
        %3603 = vrot.lane.b32.xlu0 %v3581, 32
        %v3604 = vpop.permute.xlu0 %3603
        %3605 = vrot.lane.b32.xlu0 %v3582, 32
        %v3606 = vpop.permute.xlu0 %3605
        %3607 = vrot.lane.b32.xlu0 %v3583, 32
        %v3608 = vpop.permute.xlu0 %3607
        %3609 = vrot.lane.b32.xlu0 %v3584, 32
        %v3610 = vpop.permute.xlu0 %3609
        %3611 = vrot.lane.b32.xlu0 %v3585, 32
        %v3612 = vpop.permute.xlu0 %3611
        %3613 = vrot.lane.b32.xlu0 %v3586, 32
        %v3614 = vpop.permute.xlu0 %3613
        %3615 = vrot.lane.b32.xlu0 %v3587, 32
        %v3616 = vpop.permute.xlu0 %3615
        %3617 = vrot.lane.b32.xlu0 %v3588, 32
        %v3618 = vpop.permute.xlu0 %3617
        %3619 = vrot.lane.b32.xlu0 %v3589, 32
        %v3620 = vpop.permute.xlu0 %3619
        %3621 = vrot.lane.b32.xlu0 %v3590, 32
        %v3622 = vpop.permute.xlu0 %3621
        %v3623 = vunpack.c.l.b16 %v2505
        %v3624 = vunpack.c.l.b16 %v2508
        %v3625 = vunpack.c.l.b16 %v2512
        %v3626 = vunpack.c.l.b16 %v2515
        %v3627 = vunpack.c.l.b16 %v2519
        %v3628 = vunpack.c.l.b16 %v2522
        %v3629 = vunpack.c.l.b16 %v2526
        %v3630 = vunpack.c.l.b16 %v2529
        %v3631 = vunpack.c.l.b16 %v2533
        %v3632 = vunpack.c.l.b16 %v2536
        %v3633 = vunpack.c.l.b16 %v2540
        %v3634 = vunpack.c.l.b16 %v2543
        %v3635 = vunpack.c.l.b16 %v2547
        %v3636 = vunpack.c.l.b16 %v2550
        %v3637 = vunpack.c.l.b16 %v2554
        %v3638 = vunpack.c.l.b16 %v2557
        %v3639 = vunpack.c.l.b16 %v2561
        %v3640 = vunpack.c.l.b16 %v2564
        %v3641 = vunpack.c.l.b16 %v2568
        %v3642 = vunpack.c.l.b16 %v2571
        %v3643 = vunpack.c.l.b16 %v2575
        %v3644 = vunpack.c.l.b16 %v2578
        %v3645 = vunpack.c.l.b16 %v2582
        %v3646 = vunpack.c.l.b16 %v2585
        %v3647 = vunpack.c.l.b16 %v2589
        %v3648 = vunpack.c.l.b16 %v2592
        %v3649 = vunpack.c.l.b16 %v2596
        %v3650 = vunpack.c.l.b16 %v2599
        %v3651 = vunpack.c.l.b16 %v2603
        %v3652 = vunpack.c.l.b16 %v2606
        %v3653 = vunpack.c.l.b16 %v2610
        %v3654 = vunpack.c.l.b16 %v2613
        %v3655 = vpack.c.b16 %v3624, %v3623
        %v3656 = vpack.c.b16 %v3626, %v3625
        %v3657 = vpack.c.b16 %v3628, %v3627
        %v3658 = vpack.c.b16 %v3630, %v3629
        %v3659 = vpack.c.b16 %v3632, %v3631
        %v3660 = vpack.c.b16 %v3634, %v3633
        %v3661 = vpack.c.b16 %v3636, %v3635
        %v3662 = vpack.c.b16 %v3638, %v3637
        %v3663 = vpack.c.b16 %v3640, %v3639
        %v3664 = vpack.c.b16 %v3642, %v3641
        %v3665 = vpack.c.b16 %v3644, %v3643
        %v3666 = vpack.c.b16 %v3646, %v3645
        %v3667 = vpack.c.b16 %v3648, %v3647
        %v3668 = vpack.c.b16 %v3650, %v3649
        %v3669 = vpack.c.b16 %v3652, %v3651
        %v3670 = vpack.c.b16 %v3654, %v3653
        %3671 = vrot.lane.b32.xlu0 %v3655, 40
        %v3672 = vpop.permute.xlu0 %3671
        %3673 = vrot.lane.b32.xlu0 %v3656, 40
        %v3674 = vpop.permute.xlu0 %3673
        %3675 = vrot.lane.b32.xlu0 %v3657, 40
        %v3676 = vpop.permute.xlu0 %3675
        %3677 = vrot.lane.b32.xlu0 %v3658, 40
        %v3678 = vpop.permute.xlu0 %3677
        %3679 = vrot.lane.b32.xlu0 %v3659, 40
        %v3680 = vpop.permute.xlu0 %3679
        %3681 = vrot.lane.b32.xlu0 %v3660, 40
        %v3682 = vpop.permute.xlu0 %3681
        %3683 = vrot.lane.b32.xlu0 %v3661, 40
        %v3684 = vpop.permute.xlu0 %3683
        %3685 = vrot.lane.b32.xlu0 %v3662, 40
        %v3686 = vpop.permute.xlu0 %3685
        %3687 = vrot.lane.b32.xlu0 %v3663, 40
        %v3688 = vpop.permute.xlu0 %3687
        %3689 = vrot.lane.b32.xlu0 %v3664, 40
        %v3690 = vpop.permute.xlu0 %3689
        %3691 = vrot.lane.b32.xlu0 %v3665, 40
        %v3692 = vpop.permute.xlu0 %3691
        %3693 = vrot.lane.b32.xlu0 %v3666, 40
        %v3694 = vpop.permute.xlu0 %3693
        %3695 = vrot.lane.b32.xlu0 %v3667, 40
        %v3696 = vpop.permute.xlu0 %3695
        %3697 = vrot.lane.b32.xlu0 %v3668, 40
        %v3698 = vpop.permute.xlu0 %3697
        %3699 = vrot.lane.b32.xlu0 %v3669, 40
        %v3700 = vpop.permute.xlu0 %3699
        %3701 = vrot.lane.b32.xlu0 %v3670, 40
        %v3702 = vpop.permute.xlu0 %3701
        %v3719 = vunpack.c.l.b16 %v2615
        %v3720 = vunpack.c.l.b16 %v2616
        %v3721 = vunpack.c.l.b16 %v2617
        %v3722 = vunpack.c.l.b16 %v2618
        %v3723 = vunpack.c.l.b16 %v2619
        %v3724 = vunpack.c.l.b16 %v2620
        %v3725 = vunpack.c.l.b16 %v2621
        %v3726 = vunpack.c.l.b16 %v2622
        %v3727 = vunpack.c.l.b16 %v2623
        %v3728 = vunpack.c.l.b16 %v2624
        %v3729 = vunpack.c.l.b16 %v2625
        %v3730 = vunpack.c.l.b16 %v2626
        %v3731 = vunpack.c.l.b16 %v2627
        %v3732 = vunpack.c.l.b16 %v2628
        %v3733 = vunpack.c.l.b16 %v2629
        %v3734 = vunpack.c.l.b16 %v2630
        %v3735 = vunpack.c.l.b16 %v2631
        %v3736 = vunpack.c.l.b16 %v2632
        %v3737 = vunpack.c.l.b16 %v2633
        %v3738 = vunpack.c.l.b16 %v2634
        %v3739 = vunpack.c.l.b16 %v2635
        %v3740 = vunpack.c.l.b16 %v2636
        %v3741 = vunpack.c.l.b16 %v2637
        %v3742 = vunpack.c.l.b16 %v2638
        %v3743 = vunpack.c.l.b16 %v2639
        %v3744 = vunpack.c.l.b16 %v2640
        %v3745 = vunpack.c.l.b16 %v2641
        %v3746 = vunpack.c.l.b16 %v2642
        %v3747 = vunpack.c.l.b16 %v2643
        %v3748 = vunpack.c.l.b16 %v2644
        %v3749 = vunpack.c.l.b16 %v2645
        %v3750 = vunpack.c.l.b16 %v2646
        %v3751 = vpack.c.b16 %v3720, %v3719
        %v3752 = vpack.c.b16 %v3722, %v3721
        %v3753 = vpack.c.b16 %v3724, %v3723
        %v3754 = vpack.c.b16 %v3726, %v3725
        %v3755 = vpack.c.b16 %v3728, %v3727
        %v3756 = vpack.c.b16 %v3730, %v3729
        %v3757 = vpack.c.b16 %v3732, %v3731
        %v3758 = vpack.c.b16 %v3734, %v3733
        %v3759 = vpack.c.b16 %v3736, %v3735
        %v3760 = vpack.c.b16 %v3738, %v3737
        %v3761 = vpack.c.b16 %v3740, %v3739
        %v3762 = vpack.c.b16 %v3742, %v3741
        %v3763 = vpack.c.b16 %v3744, %v3743
        %v3764 = vpack.c.b16 %v3746, %v3745
        %v3765 = vpack.c.b16 %v3748, %v3747
        %v3766 = vpack.c.b16 %v3750, %v3749
        %3767 = vrot.lane.b32.xlu0 %v3751, 48
        %v3768 = vpop.permute.xlu0 %3767
        %3769 = vrot.lane.b32.xlu0 %v3752, 48
        %v3770 = vpop.permute.xlu0 %3769
        %3771 = vrot.lane.b32.xlu0 %v3753, 48
        %v3772 = vpop.permute.xlu0 %3771
        %3773 = vrot.lane.b32.xlu0 %v3754, 48
        %v3774 = vpop.permute.xlu0 %3773
        %3775 = vrot.lane.b32.xlu0 %v3755, 48
        %v3776 = vpop.permute.xlu0 %3775
        %3777 = vrot.lane.b32.xlu0 %v3756, 48
        %v3778 = vpop.permute.xlu0 %3777
        %3779 = vrot.lane.b32.xlu0 %v3757, 48
        %v3780 = vpop.permute.xlu0 %3779
        %3781 = vrot.lane.b32.xlu0 %v3758, 48
        %v3782 = vpop.permute.xlu0 %3781
        %3783 = vrot.lane.b32.xlu0 %v3759, 48
        %v3784 = vpop.permute.xlu0 %3783
        %3785 = vrot.lane.b32.xlu0 %v3760, 48
        %v3786 = vpop.permute.xlu0 %3785
        %3787 = vrot.lane.b32.xlu0 %v3761, 48
        %v3788 = vpop.permute.xlu0 %3787
        %3789 = vrot.lane.b32.xlu0 %v3762, 48
        %v3790 = vpop.permute.xlu0 %3789
        %3791 = vrot.lane.b32.xlu0 %v3763, 48
        %v3792 = vpop.permute.xlu0 %3791
        %3793 = vrot.lane.b32.xlu0 %v3764, 48
        %v3794 = vpop.permute.xlu0 %3793
        %3795 = vrot.lane.b32.xlu0 %v3765, 48
        %v3796 = vpop.permute.xlu0 %3795
        %3797 = vrot.lane.b32.xlu0 %v3766, 48
        %v3798 = vpop.permute.xlu0 %3797
        %v3799 = vunpack.c.l.b16 %v2676
        %v3800 = vunpack.c.l.b16 %v2686
        %v3801 = vunpack.c.l.b16 %v2700
        %v3802 = vunpack.c.l.b16 %v2710
        %v3803 = vunpack.c.l.b16 %v2724
        %v3804 = vunpack.c.l.b16 %v2734
        %v3805 = vunpack.c.l.b16 %v2748
        %v3806 = vunpack.c.l.b16 %v2758
        %v3807 = vunpack.c.l.b16 %v2772
        %v3808 = vunpack.c.l.b16 %v2782
        %v3809 = vunpack.c.l.b16 %v2796
        %v3810 = vunpack.c.l.b16 %v2806
        %v3811 = vunpack.c.l.b16 %v2820
        %v3812 = vunpack.c.l.b16 %v2830
        %v3813 = vunpack.c.l.b16 %v2844
        %v3814 = vunpack.c.l.b16 %v2854
        %v3815 = vunpack.c.l.b16 %v2868
        %v3816 = vunpack.c.l.b16 %v2878
        %v3817 = vunpack.c.l.b16 %v2892
        %v3818 = vunpack.c.l.b16 %v2902
        %v3819 = vunpack.c.l.b16 %v2916
        %v3820 = vunpack.c.l.b16 %v2926
        %v3821 = vunpack.c.l.b16 %v2940
        %v3822 = vunpack.c.l.b16 %v2950
        %v3823 = vunpack.c.l.b16 %v2964
        %v3824 = vunpack.c.l.b16 %v2974
        %v3825 = vunpack.c.l.b16 %v2988
        %v3826 = vunpack.c.l.b16 %v2998
        %v3827 = vunpack.c.l.b16 %v3012
        %v3828 = vunpack.c.l.b16 %v3022
        %v3829 = vunpack.c.l.b16 %v3036
        %v3830 = vunpack.c.l.b16 %v3046
        %v3831 = vpack.c.b16 %v3800, %v3799
        %v3832 = vpack.c.b16 %v3802, %v3801
        %v3833 = vpack.c.b16 %v3804, %v3803
        %v3834 = vpack.c.b16 %v3806, %v3805
        %v3835 = vpack.c.b16 %v3808, %v3807
        %v3836 = vpack.c.b16 %v3810, %v3809
        %v3837 = vpack.c.b16 %v3812, %v3811
        %v3838 = vpack.c.b16 %v3814, %v3813
        %v3839 = vpack.c.b16 %v3816, %v3815
        %v3840 = vpack.c.b16 %v3818, %v3817
        %v3841 = vpack.c.b16 %v3820, %v3819
        %v3842 = vpack.c.b16 %v3822, %v3821
        %v3843 = vpack.c.b16 %v3824, %v3823
        %v3844 = vpack.c.b16 %v3826, %v3825
        %v3845 = vpack.c.b16 %v3828, %v3827
        %v3846 = vpack.c.b16 %v3830, %v3829
        %3847 = vrot.lane.b32.xlu0 %v3831, 56
        %v3848 = vpop.permute.xlu0 %3847
        %3849 = vrot.lane.b32.xlu0 %v3832, 56
        %v3850 = vpop.permute.xlu0 %3849
        %3851 = vrot.lane.b32.xlu0 %v3833, 56
        %v3852 = vpop.permute.xlu0 %3851
        %3853 = vrot.lane.b32.xlu0 %v3834, 56
        %v3854 = vpop.permute.xlu0 %3853
        %3855 = vrot.lane.b32.xlu0 %v3835, 56
        %v3856 = vpop.permute.xlu0 %3855
        %3857 = vrot.lane.b32.xlu0 %v3836, 56
        %v3858 = vpop.permute.xlu0 %3857
        %3859 = vrot.lane.b32.xlu0 %v3837, 56
        %v3860 = vpop.permute.xlu0 %3859
        %3861 = vrot.lane.b32.xlu0 %v3838, 56
        %v3862 = vpop.permute.xlu0 %3861
        %3863 = vrot.lane.b32.xlu0 %v3839, 56
        %v3864 = vpop.permute.xlu0 %3863
        %3865 = vrot.lane.b32.xlu0 %v3840, 56
        %v3866 = vpop.permute.xlu0 %3865
        %3867 = vrot.lane.b32.xlu0 %v3841, 56
        %v3868 = vpop.permute.xlu0 %3867
        %3869 = vrot.lane.b32.xlu0 %v3842, 56
        %v3870 = vpop.permute.xlu0 %3869
        %3871 = vrot.lane.b32.xlu0 %v3843, 56
        %v3872 = vpop.permute.xlu0 %3871
        %3873 = vrot.lane.b32.xlu0 %v3844, 56
        %v3874 = vpop.permute.xlu0 %3873
        %3875 = vrot.lane.b32.xlu0 %v3845, 56
        %v3876 = vpop.permute.xlu0 %3875
        %3877 = vrot.lane.b32.xlu0 %v3846, 56
        %v3878 = vpop.permute.xlu0 %3877
        %v3879 = vunpack.c.l.b16 %v3114
        %v3880 = vunpack.c.l.b16 %v3117
        %v3881 = vunpack.c.l.b16 %v3121
        %v3882 = vunpack.c.l.b16 %v3124
        %v3883 = vunpack.c.l.b16 %v3128
        %v3884 = vunpack.c.l.b16 %v3131
        %v3885 = vunpack.c.l.b16 %v3135
        %v3886 = vunpack.c.l.b16 %v3138
        %v3887 = vunpack.c.l.b16 %v3142
        %v3888 = vunpack.c.l.b16 %v3145
        %v3889 = vunpack.c.l.b16 %v3149
        %v3890 = vunpack.c.l.b16 %v3152
        %v3891 = vunpack.c.l.b16 %v3156
        %v3892 = vunpack.c.l.b16 %v3159
        %v3893 = vunpack.c.l.b16 %v3163
        %v3894 = vunpack.c.l.b16 %v3166
        %v3895 = vunpack.c.l.b16 %v3170
        %v3896 = vunpack.c.l.b16 %v3173
        %v3897 = vunpack.c.l.b16 %v3177
        %v3898 = vunpack.c.l.b16 %v3180
        %v3899 = vunpack.c.l.b16 %v3184
        %v3900 = vunpack.c.l.b16 %v3187
        %v3901 = vunpack.c.l.b16 %v3191
        %v3902 = vunpack.c.l.b16 %v3194
        %v3903 = vunpack.c.l.b16 %v3198
        %v3904 = vunpack.c.l.b16 %v3201
        %v3905 = vunpack.c.l.b16 %v3205
        %v3906 = vunpack.c.l.b16 %v3208
        %v3907 = vunpack.c.l.b16 %v3212
        %v3908 = vunpack.c.l.b16 %v3215
        %v3909 = vunpack.c.l.b16 %v3219
        %v3910 = vunpack.c.l.b16 %v3222
        %v3911 = vpack.c.b16 %v3880, %v3879
        %v3912 = vpack.c.b16 %v3882, %v3881
        %v3913 = vpack.c.b16 %v3884, %v3883
        %v3914 = vpack.c.b16 %v3886, %v3885
        %v3915 = vpack.c.b16 %v3888, %v3887
        %v3916 = vpack.c.b16 %v3890, %v3889
        %v3917 = vpack.c.b16 %v3892, %v3891
        %v3918 = vpack.c.b16 %v3894, %v3893
        %v3919 = vpack.c.b16 %v3896, %v3895
        %v3920 = vpack.c.b16 %v3898, %v3897
        %v3921 = vpack.c.b16 %v3900, %v3899
        %v3922 = vpack.c.b16 %v3902, %v3901
        %v3923 = vpack.c.b16 %v3904, %v3903
        %v3924 = vpack.c.b16 %v3906, %v3905
        %v3925 = vpack.c.b16 %v3908, %v3907
        %v3926 = vpack.c.b16 %v3910, %v3909
        %3927 = vrot.lane.b32.xlu0 %v3911, 64
        %v3928 = vpop.permute.xlu0 %3927
        %3929 = vrot.lane.b32.xlu0 %v3912, 64
        %v3930 = vpop.permute.xlu0 %3929
        %3931 = vrot.lane.b32.xlu0 %v3913, 64
        %v3932 = vpop.permute.xlu0 %3931
        %3933 = vrot.lane.b32.xlu0 %v3914, 64
        %v3934 = vpop.permute.xlu0 %3933
        %3935 = vrot.lane.b32.xlu0 %v3915, 64
        %v3936 = vpop.permute.xlu0 %3935
        %3937 = vrot.lane.b32.xlu0 %v3916, 64
        %v3938 = vpop.permute.xlu0 %3937
        %3939 = vrot.lane.b32.xlu0 %v3917, 64
        %v3940 = vpop.permute.xlu0 %3939
        %3941 = vrot.lane.b32.xlu0 %v3918, 64
        %v3942 = vpop.permute.xlu0 %3941
        %3943 = vrot.lane.b32.xlu0 %v3919, 64
        %v3944 = vpop.permute.xlu0 %3943
        %3945 = vrot.lane.b32.xlu0 %v3920, 64
        %v3946 = vpop.permute.xlu0 %3945
        %3947 = vrot.lane.b32.xlu0 %v3921, 64
        %v3948 = vpop.permute.xlu0 %3947
        %3949 = vrot.lane.b32.xlu0 %v3922, 64
        %v3950 = vpop.permute.xlu0 %3949
        %3951 = vrot.lane.b32.xlu0 %v3923, 64
        %v3952 = vpop.permute.xlu0 %3951
        %3953 = vrot.lane.b32.xlu0 %v3924, 64
        %v3954 = vpop.permute.xlu0 %3953
        %3955 = vrot.lane.b32.xlu0 %v3925, 64
        %v3956 = vpop.permute.xlu0 %3955
        %3957 = vrot.lane.b32.xlu0 %v3926, 64
        %v3958 = vpop.permute.xlu0 %3957
        %vm3959 = vcmask 64512
        %v3962 = vsel %vm3959, %v3271, %v3336
        %v3965 = vsel %vm3959, %v3272, %v3338
        %v3968 = vsel %vm3959, %v3273, %v3340
        %v3971 = vsel %vm3959, %v3274, %v3342
        %v3974 = vsel %vm3959, %v3275, %v3344
        %v3977 = vsel %vm3959, %v3276, %v3346
        %v3980 = vsel %vm3959, %v3277, %v3348
        %v3983 = vsel %vm3959, %v3278, %v3350
        %v3986 = vsel %vm3959, %v3279, %v3352
        %v3989 = vsel %vm3959, %v3280, %v3354
        %v3992 = vsel %vm3959, %v3281, %v3356
        %v3995 = vsel %vm3959, %v3282, %v3358
        %v3998 = vsel %vm3959, %v3283, %v3360
        %v4001 = vsel %vm3959, %v3284, %v3362
        %v4004 = vsel %vm3959, %v3285, %v3364
        %v4007 = vsel %vm3959, %v3286, %v3366
        %vm4008 = vcmask 130048
        %v4010 = vsel %vm4008, %v3962, %v3416
        %v4012 = vsel %vm4008, %v3965, %v3418
        %v4014 = vsel %vm4008, %v3968, %v3420
        %v4016 = vsel %vm4008, %v3971, %v3422
        %v4018 = vsel %vm4008, %v3974, %v3424
        %v4020 = vsel %vm4008, %v3977, %v3426
        %v4022 = vsel %vm4008, %v3980, %v3428
        %v4024 = vsel %vm4008, %v3983, %v3430
        %v4026 = vsel %vm4008, %v3986, %v3432
        %v4028 = vsel %vm4008, %v3989, %v3434
        %v4030 = vsel %vm4008, %v3992, %v3436
        %v4032 = vsel %vm4008, %v3995, %v3438
        %v4034 = vsel %vm4008, %v3998, %v3440
        %v4036 = vsel %vm4008, %v4001, %v3442
        %v4038 = vsel %vm4008, %v4004, %v3444
        %v4040 = vsel %vm4008, %v4007, %v3446
        %vm4041 = vcmask 195584
        %v4043 = vsel %vm4041, %v4010, %v3512
        %v4045 = vsel %vm4041, %v4012, %v3514
        %v4047 = vsel %vm4041, %v4014, %v3516
        %v4049 = vsel %vm4041, %v4016, %v3518
        %v4051 = vsel %vm4041, %v4018, %v3520
        %v4053 = vsel %vm4041, %v4020, %v3522
        %v4055 = vsel %vm4041, %v4022, %v3524
        %v4057 = vsel %vm4041, %v4024, %v3526
        %v4059 = vsel %vm4041, %v4026, %v3528
        %v4061 = vsel %vm4041, %v4028, %v3530
        %v4063 = vsel %vm4041, %v4030, %v3532
        %v4065 = vsel %vm4041, %v4032, %v3534
        %v4067 = vsel %vm4041, %v4034, %v3536
        %v4069 = vsel %vm4041, %v4036, %v3538
        %v4071 = vsel %vm4041, %v4038, %v3540
        %v4073 = vsel %vm4041, %v4040, %v3542
        %vm4074 = vcmask 261120
        %v4076 = vsel %vm4074, %v4043, %v3592
        %v4078 = vsel %vm4074, %v4045, %v3594
        %v4080 = vsel %vm4074, %v4047, %v3596
        %v4082 = vsel %vm4074, %v4049, %v3598
        %v4084 = vsel %vm4074, %v4051, %v3600
        %v4086 = vsel %vm4074, %v4053, %v3602
        %v4088 = vsel %vm4074, %v4055, %v3604
        %v4090 = vsel %vm4074, %v4057, %v3606
        %v4092 = vsel %vm4074, %v4059, %v3608
        %v4094 = vsel %vm4074, %v4061, %v3610
        %v4096 = vsel %vm4074, %v4063, %v3612
        %v4098 = vsel %vm4074, %v4065, %v3614
        %v4100 = vsel %vm4074, %v4067, %v3616
        %v4102 = vsel %vm4074, %v4069, %v3618
        %v4104 = vsel %vm4074, %v4071, %v3620
        %v4106 = vsel %vm4074, %v4073, %v3622
        %vm4107 = vcmask 326656
        %v4109 = vsel %vm4107, %v4076, %v3672
        %v4111 = vsel %vm4107, %v4078, %v3674
        %v4113 = vsel %vm4107, %v4080, %v3676
        %v4115 = vsel %vm4107, %v4082, %v3678
        %v4117 = vsel %vm4107, %v4084, %v3680
        %v4119 = vsel %vm4107, %v4086, %v3682
        %v4121 = vsel %vm4107, %v4088, %v3684
        %v4123 = vsel %vm4107, %v4090, %v3686
        %v4125 = vsel %vm4107, %v4092, %v3688
        %v4127 = vsel %vm4107, %v4094, %v3690
        %v4129 = vsel %vm4107, %v4096, %v3692
        %v4131 = vsel %vm4107, %v4098, %v3694
        %v4133 = vsel %vm4107, %v4100, %v3696
        %v4135 = vsel %vm4107, %v4102, %v3698
        %v4137 = vsel %vm4107, %v4104, %v3700
        %v4139 = vsel %vm4107, %v4106, %v3702
        %vm4140 = vcmask 392192
        %v4142 = vsel %vm4140, %v4109, %v3768
        %v4144 = vsel %vm4140, %v4111, %v3770
        %v4146 = vsel %vm4140, %v4113, %v3772
        %v4148 = vsel %vm4140, %v4115, %v3774
        %v4150 = vsel %vm4140, %v4117, %v3776
        %v4152 = vsel %vm4140, %v4119, %v3778
        %v4154 = vsel %vm4140, %v4121, %v3780
        %v4156 = vsel %vm4140, %v4123, %v3782
        %v4158 = vsel %vm4140, %v4125, %v3784
        %v4160 = vsel %vm4140, %v4127, %v3786
        %v4162 = vsel %vm4140, %v4129, %v3788
        %v4164 = vsel %vm4140, %v4131, %v3790
        %v4166 = vsel %vm4140, %v4133, %v3792
        %v4168 = vsel %vm4140, %v4135, %v3794
        %v4170 = vsel %vm4140, %v4137, %v3796
        %v4172 = vsel %vm4140, %v4139, %v3798
        %vm4173 = vcmask 457728
        %v4175 = vsel %vm4173, %v4142, %v3848
        %v4177 = vsel %vm4173, %v4144, %v3850
        %v4179 = vsel %vm4173, %v4146, %v3852
        %v4181 = vsel %vm4173, %v4148, %v3854
        %v4183 = vsel %vm4173, %v4150, %v3856
        %v4185 = vsel %vm4173, %v4152, %v3858
        %v4187 = vsel %vm4173, %v4154, %v3860
        %v4189 = vsel %vm4173, %v4156, %v3862
        %v4191 = vsel %vm4173, %v4158, %v3864
        %v4193 = vsel %vm4173, %v4160, %v3866
        %v4195 = vsel %vm4173, %v4162, %v3868
        %v4197 = vsel %vm4173, %v4164, %v3870
        %v4199 = vsel %vm4173, %v4166, %v3872
        %v4201 = vsel %vm4173, %v4168, %v3874
        %v4203 = vsel %vm4173, %v4170, %v3876
        %v4205 = vsel %vm4173, %v4172, %v3878
        %v4207 = vsel %vm401, %v4175, %v3928
        %v4209 = vsel %vm401, %v4177, %v3930
        %v4211 = vsel %vm401, %v4179, %v3932
        %v4213 = vsel %vm401, %v4181, %v3934
        %v4215 = vsel %vm401, %v4183, %v3936
        %v4217 = vsel %vm401, %v4185, %v3938
        %v4219 = vsel %vm401, %v4187, %v3940
        %v4221 = vsel %vm401, %v4189, %v3942
        %v4223 = vsel %vm401, %v4191, %v3944
        %v4225 = vsel %vm401, %v4193, %v3946
        %v4227 = vsel %vm401, %v4195, %v3948
        %v4229 = vsel %vm401, %v4197, %v3950
        %v4231 = vsel %vm401, %v4199, %v3952
        %v4233 = vsel %vm401, %v4201, %v3954
        %v4235 = vsel %vm401, %v4203, %v3956
        %v4237 = vsel %vm401, %v4205, %v3958
        %v4238 = vld [vmem:[%s3] sm:$0xf]
        %v4239 = vld [vmem:[%s3 + $0x4] sm:$0xf]
        %v4240 = vld [vmem:[%s3 + $0x8] sm:$0xf]
        %v4241 = vld [vmem:[%s3 + $0xc] sm:$0xf]
        %v4242 = vld [vmem:[%s3 + $0x10] sm:$0xf]
        %v4243 = vld [vmem:[%s3 + $0x14] sm:$0xf]
        %v4244 = vld [vmem:[%s3 + $0x18] sm:$0xf]
        %v4245 = vld [vmem:[%s3 + $0x1c] sm:$0xf]
        %v4246 = vld [vmem:[%s3 + $0x20] sm:$0xf]
        %v4256 = vunpack.c.l.b16 %v4238
        %v4257 = vunpack.c.l.b16 %v4239
        %v4258 = vunpack.c.l.b16 %v4240
        %v4259 = vunpack.c.l.b16 %v4241
        %v4260 = vunpack.c.l.b16 %v4242
        %v4261 = vunpack.c.l.b16 %v4243
        %v4262 = vunpack.c.l.b16 %v4244
        %v4263 = vunpack.c.l.b16 %v4245
        %v4264 = vunpack.c.l.b16 %v4246
        %v4265 = vpack.c.b16 %v4257, %v4256
        %v4266 = vpack.c.b16 %v4259, %v4258
        %v4267 = vpack.c.b16 %v4261, %v4260
        %v4268 = vpack.c.b16 %v4263, %v4262
        %v4269 = vpack.c.b16 %v4264, %v4264
        %vm4274 = vcmask 588800
        %v4275 = vsel %vm4274, %v4207, 0
        %v4277 = vsel %vm4274, %v4209, 0
        %v4279 = vsel %vm4274, %v4211, 0
        %v4281 = vsel %vm4274, %v4213, 0
        %v4283 = vsel %vm4274, %v4215, 0
        %v4285 = vsel %vm4274, %v4217, 0
        %v4287 = vsel %vm4274, %v4219, 0
        %v4289 = vsel %vm4274, %v4221, 0
        %v4291 = vsel %vm4274, %v4223, 0
        %v4293 = vsel %vm4274, %v4225, 0
        %v4295 = vsel %vm4274, %v4227, 0
        %v4297 = vsel %vm4274, %v4229, 0
        %v4299 = vsel %vm4274, %v4231, 0
        %v4301 = vsel %vm4274, %v4233, 0
        %v4303 = vsel %vm4274, %v4235, 0
        %v4305 = vsel %vm4274, %v4237, 0
        %vm4307 = vcmask 1043456
        %v4309 = vsel %vm4307, %v4269, 0
        %4311 = vmatpush.bf16.msra.mxu0 0
        %4312 = vmatpush.bf16.msra.mxu0 0
        %4313 = vmatpush.bf16.msra.mxu0 0
        %4314 = vmatpush.bf16.msra.mxu0 %v4309
        %4315 = vmatpush.bf16.msra.mxu0 %v4268
        %4316 = vmatpush.bf16.msra.mxu0 %v4267
        %4317 = vmatpush.bf16.msra.mxu0 %v4266
        %4318 = vmatpush.bf16.msra.mxu0 %v4265
        %4319 = vmatmul.bf16.gmra.mxu0 %v4275
        %v4320 = vpop.f32.mrf.mxu0
        %v4321 = vadd.f32 0.0, %v4320
        %v4322 = vpop.f32.mrf.mxu0
        %v4323 = vadd.f32 0.0, %v4322
        %4324 = vmatmul.bf16.gmra.mxu0 %v4277
        %v4325 = vpop.f32.mrf.mxu0
        %v4326 = vadd.f32 0.0, %v4325
        %v4327 = vpop.f32.mrf.mxu0
        %v4328 = vadd.f32 0.0, %v4327
        %4329 = vmatmul.bf16.gmra.mxu0 %v4279
        %v4330 = vpop.f32.mrf.mxu0
        %v4331 = vadd.f32 0.0, %v4330
        %v4332 = vpop.f32.mrf.mxu0
        %v4333 = vadd.f32 0.0, %v4332
        %4334 = vmatmul.bf16.gmra.mxu0 %v4281
        %v4335 = vpop.f32.mrf.mxu0
        %v4336 = vadd.f32 0.0, %v4335
        %v4337 = vpop.f32.mrf.mxu0
        %v4338 = vadd.f32 0.0, %v4337
        %4339 = vmatmul.bf16.gmra.mxu0 %v4283
        %v4340 = vpop.f32.mrf.mxu0
        %v4341 = vadd.f32 0.0, %v4340
        %v4342 = vpop.f32.mrf.mxu0
        %v4343 = vadd.f32 0.0, %v4342
        %4344 = vmatmul.bf16.gmra.mxu0 %v4285
        %v4345 = vpop.f32.mrf.mxu0
        %v4346 = vadd.f32 0.0, %v4345
        %v4347 = vpop.f32.mrf.mxu0
        %v4348 = vadd.f32 0.0, %v4347
        %4349 = vmatmul.bf16.gmra.mxu0 %v4287
        %v4350 = vpop.f32.mrf.mxu0
        %v4351 = vadd.f32 0.0, %v4350
        %v4352 = vpop.f32.mrf.mxu0
        %v4353 = vadd.f32 0.0, %v4352
        %4354 = vmatmul.bf16.gmra.mxu0 %v4289
        %v4355 = vpop.f32.mrf.mxu0
        %v4356 = vadd.f32 0.0, %v4355
        %v4357 = vpop.f32.mrf.mxu0
        %v4358 = vadd.f32 0.0, %v4357
        %4359 = vmatmul.bf16.gmra.mxu0 %v4291
        %v4360 = vpop.f32.mrf.mxu0
        %v4361 = vadd.f32 0.0, %v4360
        %v4362 = vpop.f32.mrf.mxu0
        %v4363 = vadd.f32 0.0, %v4362
        %4364 = vmatmul.bf16.gmra.mxu0 %v4293
        %v4365 = vpop.f32.mrf.mxu0
        %v4366 = vadd.f32 0.0, %v4365
        %v4367 = vpop.f32.mrf.mxu0
        %v4368 = vadd.f32 0.0, %v4367
        %4369 = vmatmul.bf16.gmra.mxu0 %v4295
        %v4370 = vpop.f32.mrf.mxu0
        %v4371 = vadd.f32 0.0, %v4370
        %v4372 = vpop.f32.mrf.mxu0
        %v4373 = vadd.f32 0.0, %v4372
        %4374 = vmatmul.bf16.gmra.mxu0 %v4297
        %v4375 = vpop.f32.mrf.mxu0
        %v4376 = vadd.f32 0.0, %v4375
        %v4377 = vpop.f32.mrf.mxu0
        %v4378 = vadd.f32 0.0, %v4377
        %4379 = vmatmul.bf16.gmra.mxu0 %v4299
        %v4380 = vpop.f32.mrf.mxu0
        %v4381 = vadd.f32 0.0, %v4380
        %v4382 = vpop.f32.mrf.mxu0
        %v4383 = vadd.f32 0.0, %v4382
        %4384 = vmatmul.bf16.gmra.mxu0 %v4301
        %v4385 = vpop.f32.mrf.mxu0
        %v4386 = vadd.f32 0.0, %v4385
        %v4387 = vpop.f32.mrf.mxu0
        %v4388 = vadd.f32 0.0, %v4387
        %4389 = vmatmul.bf16.gmra.mxu0 %v4303
        %v4390 = vpop.f32.mrf.mxu0
        %v4391 = vadd.f32 0.0, %v4390
        %v4392 = vpop.f32.mrf.mxu0
        %v4393 = vadd.f32 0.0, %v4392
        %4394 = vmatmul.bf16.gmra.mxu0 %v4305
        %v4395 = vpop.f32.mrf.mxu0
        %v4396 = vadd.f32 0.0, %v4395
        %v4397 = vpop.f32.mrf.mxu0
        %v4398 = vadd.f32 0.0, %v4397
        %4399 = vdwg.mxu0
        %v4400 = vld [vmem:[%s5] sm:$0x1]
        %v4402 = vperm.slane %v4400, 0
        %v4404 = vmul.f32 %v4321, %v4402
        %v4405 = vmul.f32 %v4323, %v4402
        %v4406 = vmul.f32 %v4326, %v4402
        %v4407 = vmul.f32 %v4328, %v4402
        %v4408 = vmul.f32 %v4331, %v4402
        %v4409 = vmul.f32 %v4333, %v4402
        %v4410 = vmul.f32 %v4336, %v4402
        %v4411 = vmul.f32 %v4338, %v4402
        %v4412 = vmul.f32 %v4341, %v4402
        %v4413 = vmul.f32 %v4343, %v4402
        %v4414 = vmul.f32 %v4346, %v4402
        %v4415 = vmul.f32 %v4348, %v4402
        %v4416 = vmul.f32 %v4351, %v4402
        %v4417 = vmul.f32 %v4353, %v4402
        %v4418 = vmul.f32 %v4356, %v4402
        %v4419 = vmul.f32 %v4358, %v4402
        %v4420 = vmul.f32 %v4361, %v4402
        %v4421 = vmul.f32 %v4363, %v4402
        %v4422 = vmul.f32 %v4366, %v4402
        %v4423 = vmul.f32 %v4368, %v4402
        %v4424 = vmul.f32 %v4371, %v4402
        %v4425 = vmul.f32 %v4373, %v4402
        %v4426 = vmul.f32 %v4376, %v4402
        %v4427 = vmul.f32 %v4378, %v4402
        %v4428 = vmul.f32 %v4381, %v4402
        %v4429 = vmul.f32 %v4383, %v4402
        %v4430 = vmul.f32 %v4386, %v4402
        %v4431 = vmul.f32 %v4388, %v4402
        %v4432 = vmul.f32 %v4391, %v4402
        %v4433 = vmul.f32 %v4393, %v4402
        %v4434 = vmul.f32 %v4396, %v4402
        %v4435 = vmul.f32 %v4398, %v4402
        %v4436 = vld [vmem:[%s6] sm:$0x1]
        %v4438 = vperm.slane %v4436, 0
        %v4440 = vadd.f32 %v4404, %v4438
        %v4441 = vadd.f32 %v4405, %v4438
        %v4442 = vadd.f32 %v4406, %v4438
        %v4443 = vadd.f32 %v4407, %v4438
        %v4444 = vadd.f32 %v4408, %v4438
        %v4445 = vadd.f32 %v4409, %v4438
        %v4446 = vadd.f32 %v4410, %v4438
        %v4447 = vadd.f32 %v4411, %v4438
        %v4448 = vadd.f32 %v4412, %v4438
        %v4449 = vadd.f32 %v4413, %v4438
        %v4450 = vadd.f32 %v4414, %v4438
        %v4451 = vadd.f32 %v4415, %v4438
        %v4452 = vadd.f32 %v4416, %v4438
        %v4453 = vadd.f32 %v4417, %v4438
        %v4454 = vadd.f32 %v4418, %v4438
        %v4455 = vadd.f32 %v4419, %v4438
        %v4456 = vadd.f32 %v4420, %v4438
        %v4457 = vadd.f32 %v4421, %v4438
        %v4458 = vadd.f32 %v4422, %v4438
        %v4459 = vadd.f32 %v4423, %v4438
        %v4460 = vadd.f32 %v4424, %v4438
        %v4461 = vadd.f32 %v4425, %v4438
        %v4462 = vadd.f32 %v4426, %v4438
        %v4463 = vadd.f32 %v4427, %v4438
        %v4464 = vadd.f32 %v4428, %v4438
        %v4465 = vadd.f32 %v4429, %v4438
        %v4466 = vadd.f32 %v4430, %v4438
        %v4467 = vadd.f32 %v4431, %v4438
        %v4468 = vadd.f32 %v4432, %v4438
        %v4469 = vadd.f32 %v4433, %v4438
        %v4470 = vadd.f32 %v4434, %v4438
        %v4471 = vadd.f32 %v4435, %v4438
        %v4472 = vmax.f32 %v4440, 0.0
        %v4473 = vmax.f32 %v4441, 0.0
        %v4474 = vmax.f32 %v4442, 0.0
        %v4475 = vmax.f32 %v4443, 0.0
        %v4476 = vmax.f32 %v4444, 0.0
        %v4477 = vmax.f32 %v4445, 0.0
        %v4478 = vmax.f32 %v4446, 0.0
        %v4479 = vmax.f32 %v4447, 0.0
        %v4480 = vmax.f32 %v4448, 0.0
        %v4481 = vmax.f32 %v4449, 0.0
        %v4482 = vmax.f32 %v4450, 0.0
        %v4483 = vmax.f32 %v4451, 0.0
        %v4484 = vmax.f32 %v4452, 0.0
        %v4485 = vmax.f32 %v4453, 0.0
        %v4486 = vmax.f32 %v4454, 0.0
        %v4487 = vmax.f32 %v4455, 0.0
        %v4488 = vmax.f32 %v4456, 0.0
        %v4489 = vmax.f32 %v4457, 0.0
        %v4490 = vmax.f32 %v4458, 0.0
        %v4491 = vmax.f32 %v4459, 0.0
        %v4492 = vmax.f32 %v4460, 0.0
        %v4493 = vmax.f32 %v4461, 0.0
        %v4494 = vmax.f32 %v4462, 0.0
        %v4495 = vmax.f32 %v4463, 0.0
        %v4496 = vmax.f32 %v4464, 0.0
        %v4497 = vmax.f32 %v4465, 0.0
        %v4498 = vmax.f32 %v4466, 0.0
        %v4499 = vmax.f32 %v4467, 0.0
        %v4500 = vmax.f32 %v4468, 0.0
        %v4501 = vmax.f32 %v4469, 0.0
        %v4502 = vmax.f32 %v4470, 0.0
        %v4503 = vmax.f32 %v4471, 0.0
        %v4504 = vpack.c.bf16 %v4472, %v4472
        %v4505 = vpack.c.bf16 %v4473, %v4473
        %v4506 = vpack.c.bf16 %v4474, %v4474
        %v4507 = vpack.c.bf16 %v4475, %v4475
        %v4508 = vpack.c.bf16 %v4476, %v4476
        %v4509 = vpack.c.bf16 %v4477, %v4477
        %v4510 = vpack.c.bf16 %v4478, %v4478
        %v4511 = vpack.c.bf16 %v4479, %v4479
        %v4512 = vpack.c.bf16 %v4480, %v4480
        %v4513 = vpack.c.bf16 %v4481, %v4481
        %v4514 = vpack.c.bf16 %v4482, %v4482
        %v4515 = vpack.c.bf16 %v4483, %v4483
        %v4516 = vpack.c.bf16 %v4484, %v4484
        %v4517 = vpack.c.bf16 %v4485, %v4485
        %v4518 = vpack.c.bf16 %v4486, %v4486
        %v4519 = vpack.c.bf16 %v4487, %v4487
        %v4520 = vpack.c.bf16 %v4488, %v4488
        %v4521 = vpack.c.bf16 %v4489, %v4489
        %v4522 = vpack.c.bf16 %v4490, %v4490
        %v4523 = vpack.c.bf16 %v4491, %v4491
        %v4524 = vpack.c.bf16 %v4492, %v4492
        %v4525 = vpack.c.bf16 %v4493, %v4493
        %v4526 = vpack.c.bf16 %v4494, %v4494
        %v4527 = vpack.c.bf16 %v4495, %v4495
        %v4528 = vpack.c.bf16 %v4496, %v4496
        %v4529 = vpack.c.bf16 %v4497, %v4497
        %v4530 = vpack.c.bf16 %v4498, %v4498
        %v4531 = vpack.c.bf16 %v4499, %v4499
        %v4532 = vpack.c.bf16 %v4500, %v4500
        %v4533 = vpack.c.bf16 %v4501, %v4501
        %v4534 = vpack.c.bf16 %v4502, %v4502
        %v4535 = vpack.c.bf16 %v4503, %v4503
        %v4568 = vunpack.c.l.b16 %v4504
        %v4569 = vunpack.c.l.b16 %v4505
        %v4570 = vunpack.c.l.b16 %v4506
        %v4571 = vunpack.c.l.b16 %v4507
        %v4572 = vunpack.c.l.b16 %v4508
        %v4573 = vunpack.c.l.b16 %v4509
        %v4574 = vunpack.c.l.b16 %v4510
        %v4575 = vunpack.c.l.b16 %v4511
        %v4576 = vunpack.c.l.b16 %v4512
        %v4577 = vunpack.c.l.b16 %v4513
        %v4578 = vunpack.c.l.b16 %v4514
        %v4579 = vunpack.c.l.b16 %v4515
        %v4580 = vunpack.c.l.b16 %v4516
        %v4581 = vunpack.c.l.b16 %v4517
        %v4582 = vunpack.c.l.b16 %v4518
        %v4583 = vunpack.c.l.b16 %v4519
        %v4584 = vunpack.c.l.b16 %v4520
        %v4585 = vunpack.c.l.b16 %v4521
        %v4586 = vunpack.c.l.b16 %v4522
        %v4587 = vunpack.c.l.b16 %v4523
        %v4588 = vunpack.c.l.b16 %v4524
        %v4589 = vunpack.c.l.b16 %v4525
        %v4590 = vunpack.c.l.b16 %v4526
        %v4591 = vunpack.c.l.b16 %v4527
        %v4592 = vunpack.c.l.b16 %v4528
        %v4593 = vunpack.c.l.b16 %v4529
        %v4594 = vunpack.c.l.b16 %v4530
        %v4595 = vunpack.c.l.b16 %v4531
        %v4596 = vunpack.c.l.b16 %v4532
        %v4597 = vunpack.c.l.b16 %v4533
        %v4598 = vunpack.c.l.b16 %v4534
        %v4599 = vunpack.c.l.b16 %v4535
        %v4600 = vpack.c.b16 %v4569, %v4568
        %v4601 = vpack.c.b16 %v4571, %v4570
        %v4602 = vpack.c.b16 %v4573, %v4572
        %v4603 = vpack.c.b16 %v4575, %v4574
        %v4604 = vpack.c.b16 %v4577, %v4576
        %v4605 = vpack.c.b16 %v4579, %v4578
        %v4606 = vpack.c.b16 %v4581, %v4580
        %v4607 = vpack.c.b16 %v4583, %v4582
        %v4608 = vpack.c.b16 %v4585, %v4584
        %v4609 = vpack.c.b16 %v4587, %v4586
        %v4610 = vpack.c.b16 %v4589, %v4588
        %v4611 = vpack.c.b16 %v4591, %v4590
        %v4612 = vpack.c.b16 %v4593, %v4592
        %v4613 = vpack.c.b16 %v4595, %v4594
        %v4614 = vpack.c.b16 %v4597, %v4596
        %v4615 = vpack.c.b16 %v4599, %v4598
        %v4617 = vshrl.u32 %v4600, 16
        %v4619 = vrot.slane %v4617, 7
        %v4620 = vshll.u32 %v4600, 16
        %v4622 = vor.u32 %v4619, %v4620
        %v4624 = vshrl.u32 %v4601, 16
        %v4626 = vrot.slane %v4624, 7
        %v4627 = vshll.u32 %v4601, 16
        %v4629 = vor.u32 %v4626, %v4627
        %v4631 = vshrl.u32 %v4602, 16
        %v4633 = vrot.slane %v4631, 7
        %v4634 = vshll.u32 %v4602, 16
        %v4636 = vor.u32 %v4633, %v4634
        %v4638 = vshrl.u32 %v4603, 16
        %v4640 = vrot.slane %v4638, 7
        %v4641 = vshll.u32 %v4603, 16
        %v4643 = vor.u32 %v4640, %v4641
        %v4645 = vshrl.u32 %v4604, 16
        %v4647 = vrot.slane %v4645, 7
        %v4648 = vshll.u32 %v4604, 16
        %v4650 = vor.u32 %v4647, %v4648
        %v4652 = vshrl.u32 %v4605, 16
        %v4654 = vrot.slane %v4652, 7
        %v4655 = vshll.u32 %v4605, 16
        %v4657 = vor.u32 %v4654, %v4655
        %v4659 = vshrl.u32 %v4606, 16
        %v4661 = vrot.slane %v4659, 7
        %v4662 = vshll.u32 %v4606, 16
        %v4664 = vor.u32 %v4661, %v4662
        %v4666 = vshrl.u32 %v4607, 16
        %v4668 = vrot.slane %v4666, 7
        %v4669 = vshll.u32 %v4607, 16
        %v4671 = vor.u32 %v4668, %v4669
        %v4673 = vshrl.u32 %v4608, 16
        %v4675 = vrot.slane %v4673, 7
        %v4676 = vshll.u32 %v4608, 16
        %v4678 = vor.u32 %v4675, %v4676
        %v4680 = vshrl.u32 %v4609, 16
        %v4682 = vrot.slane %v4680, 7
        %v4683 = vshll.u32 %v4609, 16
        %v4685 = vor.u32 %v4682, %v4683
        %v4687 = vshrl.u32 %v4610, 16
        %v4689 = vrot.slane %v4687, 7
        %v4690 = vshll.u32 %v4610, 16
        %v4692 = vor.u32 %v4689, %v4690
        %v4694 = vshrl.u32 %v4611, 16
        %v4696 = vrot.slane %v4694, 7
        %v4697 = vshll.u32 %v4611, 16
        %v4699 = vor.u32 %v4696, %v4697
        %v4701 = vshrl.u32 %v4612, 16
        %v4703 = vrot.slane %v4701, 7
        %v4704 = vshll.u32 %v4612, 16
        %v4706 = vor.u32 %v4703, %v4704
        %v4708 = vshrl.u32 %v4613, 16
        %v4710 = vrot.slane %v4708, 7
        %v4711 = vshll.u32 %v4613, 16
        %v4713 = vor.u32 %v4710, %v4711
        %v4715 = vshrl.u32 %v4614, 16
        %v4717 = vrot.slane %v4715, 7
        %v4718 = vshll.u32 %v4614, 16
        %v4720 = vor.u32 %v4717, %v4718
        %v4722 = vshrl.u32 %v4615, 16
        %v4724 = vrot.slane %v4722, 7
        %v4725 = vshll.u32 %v4615, 16
        %v4727 = vor.u32 %v4724, %v4725
        %v4760 = vsel %vm1113, 0, %v4622
        %v4761 = vsel %vm1113, 0, %v4629
        %v4762 = vsel %vm1113, 0, %v4636
        %v4763 = vsel %vm1113, 0, %v4643
        %v4764 = vsel %vm1113, 0, %v4650
        %v4765 = vsel %vm1113, 0, %v4657
        %v4766 = vsel %vm1113, 0, %v4664
        %v4767 = vsel %vm1113, 0, %v4671
        %v4768 = vsel %vm1113, 0, %v4678
        %v4769 = vsel %vm1113, 0, %v4685
        %v4770 = vsel %vm1113, 0, %v4692
        %v4771 = vsel %vm1113, 0, %v4699
        %v4772 = vsel %vm1113, 0, %v4706
        %v4773 = vsel %vm1113, 0, %v4713
        %v4774 = vsel %vm1113, 0, %v4720
        %v4775 = vsel %vm1113, 0, %v4727
        %v4776 = vsel %vm1113, %v4619, 0
        %v4777 = vsel %vm1113, %v4626, 0
        %v4778 = vsel %vm1113, %v4633, 0
        %v4779 = vsel %vm1113, %v4640, 0
        %v4780 = vsel %vm1113, %v4647, 0
        %v4781 = vsel %vm1113, %v4654, 0
        %v4782 = vsel %vm1113, %v4661, 0
        %v4783 = vsel %vm1113, %v4668, 0
        %v4784 = vsel %vm1113, %v4675, 0
        %v4785 = vsel %vm1113, %v4682, 0
        %v4786 = vsel %vm1113, %v4689, 0
        %v4787 = vsel %vm1113, %v4696, 0
        %v4788 = vsel %vm1113, %v4703, 0
        %v4789 = vsel %vm1113, %v4710, 0
        %v4790 = vsel %vm1113, %v4717, 0
        %v4791 = vsel %vm1113, %v4724, 0
        %v4824 = vunpack.c.l.b16 %v4760
        %v4825 = vunpack.c.h.b16 %v4760
        %v4826 = vunpack.c.l.b16 %v4776
        %v4827 = vunpack.c.l.b16 %v4761
        %v4828 = vunpack.c.h.b16 %v4761
        %v4829 = vunpack.c.l.b16 %v4777
        %v4830 = vunpack.c.l.b16 %v4762
        %v4831 = vunpack.c.h.b16 %v4762
        %v4832 = vunpack.c.l.b16 %v4778
        %v4833 = vunpack.c.l.b16 %v4763
        %v4834 = vunpack.c.h.b16 %v4763
        %v4835 = vunpack.c.l.b16 %v4779
        %v4836 = vunpack.c.l.b16 %v4764
        %v4837 = vunpack.c.h.b16 %v4764
        %v4838 = vunpack.c.l.b16 %v4780
        %v4839 = vunpack.c.l.b16 %v4765
        %v4840 = vunpack.c.h.b16 %v4765
        %v4841 = vunpack.c.l.b16 %v4781
        %v4842 = vunpack.c.l.b16 %v4766
        %v4843 = vunpack.c.h.b16 %v4766
        %v4844 = vunpack.c.l.b16 %v4782
        %v4845 = vunpack.c.l.b16 %v4767
        %v4846 = vunpack.c.h.b16 %v4767
        %v4847 = vunpack.c.l.b16 %v4783
        %v4848 = vunpack.c.l.b16 %v4768
        %v4849 = vunpack.c.h.b16 %v4768
        %v4850 = vunpack.c.l.b16 %v4784
        %v4851 = vunpack.c.l.b16 %v4769
        %v4852 = vunpack.c.h.b16 %v4769
        %v4853 = vunpack.c.l.b16 %v4785
        %v4854 = vunpack.c.l.b16 %v4770
        %v4855 = vunpack.c.h.b16 %v4770
        %v4856 = vunpack.c.l.b16 %v4786
        %v4857 = vunpack.c.l.b16 %v4771
        %v4858 = vunpack.c.h.b16 %v4771
        %v4859 = vunpack.c.l.b16 %v4787
        %v4860 = vunpack.c.l.b16 %v4772
        %v4861 = vunpack.c.h.b16 %v4772
        %v4862 = vunpack.c.l.b16 %v4788
        %v4863 = vunpack.c.l.b16 %v4773
        %v4864 = vunpack.c.h.b16 %v4773
        %v4865 = vunpack.c.l.b16 %v4789
        %v4866 = vunpack.c.l.b16 %v4774
        %v4867 = vunpack.c.h.b16 %v4774
        %v4868 = vunpack.c.l.b16 %v4790
        %v4869 = vunpack.c.l.b16 %v4775
        %v4870 = vunpack.c.h.b16 %v4775
        %v4871 = vunpack.c.l.b16 %v4791
        %v4872 = vpack.c.b16 %v4824, %v4824
        %v4873 = vpack.c.b16 %v4825, %v4825
        %v4874 = vpack.c.b16 %v4826, %v4826
        %v4875 = vpack.c.b16 %v4827, %v4827
        %v4876 = vpack.c.b16 %v4828, %v4828
        %v4877 = vpack.c.b16 %v4829, %v4829
        %v4878 = vpack.c.b16 %v4830, %v4830
        %v4879 = vpack.c.b16 %v4831, %v4831
        %v4880 = vpack.c.b16 %v4832, %v4832
        %v4881 = vpack.c.b16 %v4833, %v4833
        %v4882 = vpack.c.b16 %v4834, %v4834
        %v4883 = vpack.c.b16 %v4835, %v4835
        %v4884 = vpack.c.b16 %v4836, %v4836
        %v4885 = vpack.c.b16 %v4837, %v4837
        %v4886 = vpack.c.b16 %v4838, %v4838
        %v4887 = vpack.c.b16 %v4839, %v4839
        %v4888 = vpack.c.b16 %v4840, %v4840
        %v4889 = vpack.c.b16 %v4841, %v4841
        %v4890 = vpack.c.b16 %v4842, %v4842
        %v4891 = vpack.c.b16 %v4843, %v4843
        %v4892 = vpack.c.b16 %v4844, %v4844
        %v4893 = vpack.c.b16 %v4845, %v4845
        %v4894 = vpack.c.b16 %v4846, %v4846
        %v4895 = vpack.c.b16 %v4847, %v4847
        %v4896 = vpack.c.b16 %v4848, %v4848
        %v4897 = vpack.c.b16 %v4849, %v4849
        %v4898 = vpack.c.b16 %v4850, %v4850
        %v4899 = vpack.c.b16 %v4851, %v4851
        %v4900 = vpack.c.b16 %v4852, %v4852
        %v4901 = vpack.c.b16 %v4853, %v4853
        %v4902 = vpack.c.b16 %v4854, %v4854
        %v4903 = vpack.c.b16 %v4855, %v4855
        %v4904 = vpack.c.b16 %v4856, %v4856
        %v4905 = vpack.c.b16 %v4857, %v4857
        %v4906 = vpack.c.b16 %v4858, %v4858
        %v4907 = vpack.c.b16 %v4859, %v4859
        %v4908 = vpack.c.b16 %v4860, %v4860
        %v4909 = vpack.c.b16 %v4861, %v4861
        %v4910 = vpack.c.b16 %v4862, %v4862
        %v4911 = vpack.c.b16 %v4863, %v4863
        %v4912 = vpack.c.b16 %v4864, %v4864
        %v4913 = vpack.c.b16 %v4865, %v4865
        %v4914 = vpack.c.b16 %v4866, %v4866
        %v4915 = vpack.c.b16 %v4867, %v4867
        %v4916 = vpack.c.b16 %v4868, %v4868
        %v4917 = vpack.c.b16 %v4869, %v4869
        %v4918 = vpack.c.b16 %v4870, %v4870
        %v4919 = vpack.c.b16 %v4871, %v4871
        %vm4968 = vcmask 27648
        %4969 = vst.msk [vmem:[#allocation3] sm:$0xf] %vm4968, %v1233
        %4970 = vst.msk [vmem:[#allocation3 + $0x4] sm:$0xf] %vm4968, %v1234
        %vm4971 = vcmask 24576
        %4972 = vst.msk [vmem:[#allocation3 + $0x8] sm:$0x1] %vm4971, %v1235
        %4973 = vst.msk [vmem:[#allocation3 + $0xc] sm:$0xf] %vm4968, %v4872
        %4974 = vst.msk [vmem:[#allocation3 + $0x10] sm:$0xf] %vm4968, %v4873
        %4975 = vst.msk [vmem:[#allocation3 + $0x14] sm:$0x1] %vm4971, %v4874
        %4976 = vst.msk [vmem:[#allocation3 + $0x18] sm:$0xf] %vm4968, %v4875
        %4977 = vst.msk [vmem:[#allocation3 + $0x1c] sm:$0xf] %vm4968, %v4876
        %4978 = vst.msk [vmem:[#allocation3 + $0x20] sm:$0x1] %vm4971, %v4877
        %4979 = vst.msk [vmem:[#allocation3 + $0x24] sm:$0xf] %vm4968, %v4878
        %4980 = vst.msk [vmem:[#allocation3 + $0x28] sm:$0xf] %vm4968, %v4879
        %4981 = vst.msk [vmem:[#allocation3 + $0x2c] sm:$0x1] %vm4971, %v4880
        %4982 = vst.msk [vmem:[#allocation3 + $0x30] sm:$0xf] %vm4968, %v4881
        %4983 = vst.msk [vmem:[#allocation3 + $0x34] sm:$0xf] %vm4968, %v4882
        %4984 = vst.msk [vmem:[#allocation3 + $0x38] sm:$0x1] %vm4971, %v4883
        %4985 = vst.msk [vmem:[#allocation3 + $0x3c] sm:$0xf] %vm4968, %v4884
        %4986 = vst.msk [vmem:[#allocation3 + $0x40] sm:$0xf] %vm4968, %v4885
        %4987 = vst.msk [vmem:[#allocation3 + $0x44] sm:$0x1] %vm4971, %v4886
        %4988 = vst.msk [vmem:[#allocation3 + $0x48] sm:$0xf] %vm4968, %v4887
        %4989 = vst.msk [vmem:[#allocation3 + $0x4c] sm:$0xf] %vm4968, %v4888
        %4990 = vst.msk [vmem:[#allocation3 + $0x50] sm:$0x1] %vm4971, %v4889
        %4991 = vst.msk [vmem:[#allocation3 + $0x54] sm:$0xf] %vm4968, %v4890
        %4992 = vst.msk [vmem:[#allocation3 + $0x58] sm:$0xf] %vm4968, %v4891
        %4993 = vst.msk [vmem:[#allocation3 + $0x5c] sm:$0x1] %vm4971, %v4892
        %4994 = vst.msk [vmem:[#allocation3 + $0x60] sm:$0xf] %vm4968, %v4893
        %4995 = vst.msk [vmem:[#allocation3 + $0x64] sm:$0xf] %vm4968, %v4894
        %4996 = vst.msk [vmem:[#allocation3 + $0x68] sm:$0x1] %vm4971, %v4895
        %4997 = vst.msk [vmem:[#allocation3 + $0x6c] sm:$0xf] %vm4968, %v4896
        %4998 = vst.msk [vmem:[#allocation3 + $0x70] sm:$0xf] %vm4968, %v4897
        %4999 = vst.msk [vmem:[#allocation3 + $0x74] sm:$0x1] %vm4971, %v4898
        %5000 = vst.msk [vmem:[#allocation3 + $0x78] sm:$0xf] %vm4968, %v4899
        %5001 = vst.msk [vmem:[#allocation3 + $0x7c] sm:$0xf] %vm4968, %v4900
        %5002 = vst.msk [vmem:[#allocation3 + $0x80] sm:$0x1] %vm4971, %v4901
        %5003 = vst.msk [vmem:[#allocation3 + $0x84] sm:$0xf] %vm4968, %v4902
        %5004 = vst.msk [vmem:[#allocation3 + $0x88] sm:$0xf] %vm4968, %v4903
        %5005 = vst.msk [vmem:[#allocation3 + $0x8c] sm:$0x1] %vm4971, %v4904
        %5006 = vst.msk [vmem:[#allocation3 + $0x90] sm:$0xf] %vm4968, %v4905
        %5007 = vst.msk [vmem:[#allocation3 + $0x94] sm:$0xf] %vm4968, %v4906
        %5008 = vst.msk [vmem:[#allocation3 + $0x98] sm:$0x1] %vm4971, %v4907
        %5009 = vst.msk [vmem:[#allocation3 + $0x9c] sm:$0xf] %vm4968, %v4908
        %5010 = vst.msk [vmem:[#allocation3 + $0xa0] sm:$0xf] %vm4968, %v4909
        %5011 = vst.msk [vmem:[#allocation3 + $0xa4] sm:$0x1] %vm4971, %v4910
        %5012 = vst.msk [vmem:[#allocation3 + $0xa8] sm:$0xf] %vm4968, %v4911
        %5013 = vst.msk [vmem:[#allocation3 + $0xac] sm:$0xf] %vm4968, %v4912
        %5014 = vst.msk [vmem:[#allocation3 + $0xb0] sm:$0x1] %vm4971, %v4913
        %5015 = vst.msk [vmem:[#allocation3 + $0xb4] sm:$0xf] %vm4968, %v4914
        %5016 = vst.msk [vmem:[#allocation3 + $0xb8] sm:$0xf] %vm4968, %v4915
        %5017 = vst.msk [vmem:[#allocation3 + $0xbc] sm:$0x1] %vm4971, %v4916
        %5018 = vst.msk [vmem:[#allocation3 + $0xc0] sm:$0xf] %vm4968, %v4917
        %5019 = vst.msk [vmem:[#allocation3 + $0xc4] sm:$0xf] %vm4968, %v4918
        %5020 = vst.msk [vmem:[#allocation3 + $0xc8] sm:$0x1] %vm4971, %v4919
        %5021 = vst.msk [vmem:[#allocation3 + $0xcc] sm:$0xf] %vm4968, %v1233
        %5022 = vst.msk [vmem:[#allocation3 + $0xd0] sm:$0xf] %vm4968, %v1234
        %5023 = vst.msk [vmem:[#allocation3 + $0xd4] sm:$0x1] %vm4971, %v1235
        %v5024 = vld [vmem:[#allocation3] sm:$0xf]
        %v5025 = vld [vmem:[#allocation3 + $0x4] sm:$0xf]
        %v5026 = vld [vmem:[#allocation3 + $0xc] sm:$0xf]
        %v5027 = vld [vmem:[#allocation3 + $0x10] sm:$0xf]
        %v5028 = vld [vmem:[#allocation3 + $0x18] sm:$0xf]
        %v5029 = vld [vmem:[#allocation3 + $0x1c] sm:$0xf]
        %v5030 = vld [vmem:[#allocation3 + $0x24] sm:$0xf]
        %v5031 = vld [vmem:[#allocation3 + $0x28] sm:$0xf]
        %v5032 = vld [vmem:[#allocation3 + $0x30] sm:$0xf]
        %v5033 = vld [vmem:[#allocation3 + $0x34] sm:$0xf]
        %v5034 = vld [vmem:[#allocation3 + $0x3c] sm:$0xf]
        %v5035 = vld [vmem:[#allocation3 + $0x40] sm:$0xf]
        %v5036 = vld [vmem:[#allocation3 + $0x48] sm:$0xf]
        %v5037 = vld [vmem:[#allocation3 + $0x4c] sm:$0xf]
        %v5038 = vld [vmem:[#allocation3 + $0x54] sm:$0xf]
        %v5039 = vld [vmem:[#allocation3 + $0x58] sm:$0xf]
        %v5040 = vld [vmem:[#allocation3 + $0x60] sm:$0xf]
        %v5041 = vld [vmem:[#allocation3 + $0x64] sm:$0xf]
        %v5042 = vld [vmem:[#allocation3 + $0x6c] sm:$0xf]
        %v5043 = vld [vmem:[#allocation3 + $0x70] sm:$0xf]
        %v5044 = vld [vmem:[#allocation3 + $0x78] sm:$0xf]
        %v5045 = vld [vmem:[#allocation3 + $0x7c] sm:$0xf]
        %v5046 = vld [vmem:[#allocation3 + $0x84] sm:$0xf]
        %v5047 = vld [vmem:[#allocation3 + $0x88] sm:$0xf]
        %v5048 = vld [vmem:[#allocation3 + $0x90] sm:$0xf]
        %v5049 = vld [vmem:[#allocation3 + $0x94] sm:$0xf]
        %v5050 = vld [vmem:[#allocation3 + $0x9c] sm:$0xf]
        %v5051 = vld [vmem:[#allocation3 + $0xa0] sm:$0xf]
        %v5052 = vld [vmem:[#allocation3 + $0xa8] sm:$0xf]
        %v5053 = vld [vmem:[#allocation3 + $0xac] sm:$0xf]
        %v5054 = vld [vmem:[#allocation3 + $0xb4] sm:$0xf]
        %v5055 = vld [vmem:[#allocation3 + $0xb8] sm:$0xf]
        %v5056 = vld [vmem:[#allocation3 + $0x8] sm:$0x1]
        %v5057 = vld [vmem:[#allocation3 + $0x14] sm:$0x1]
        %v5058 = vld [vmem:[#allocation3 + $0x20] sm:$0x1]
        %v5059 = vld [vmem:[#allocation3 + $0x2c] sm:$0x1]
        %v5060 = vld [vmem:[#allocation3 + $0x38] sm:$0x1]
        %v5061 = vld [vmem:[#allocation3 + $0x44] sm:$0x1]
        %v5062 = vld [vmem:[#allocation3 + $0x50] sm:$0x1]
        %v5063 = vld [vmem:[#allocation3 + $0x5c] sm:$0x1]
        %v5064 = vld [vmem:[#allocation3 + $0x68] sm:$0x1]
        %v5065 = vld [vmem:[#allocation3 + $0x74] sm:$0x1]
        %v5066 = vld [vmem:[#allocation3 + $0x80] sm:$0x1]
        %v5067 = vld [vmem:[#allocation3 + $0x8c] sm:$0x1]
        %v5068 = vld [vmem:[#allocation3 + $0x98] sm:$0x1]
        %v5069 = vld [vmem:[#allocation3 + $0xa4] sm:$0x1]
        %v5070 = vld [vmem:[#allocation3 + $0xb0] sm:$0x1]
        %v5071 = vld [vmem:[#allocation3 + $0xbc] sm:$0x1]
        %v5073 = vshrl.u32 %v5024, 16
        %v5075 = vrot.slane %v5073, 4
        %v5076 = vshll.u32 %v5024, 16
        %v5078 = vrot.slane %v5076, 5
        %v5079 = vor.u32 %v5075, %v5078
        %v5080 = vrot.slane %v5079, 4
        %v5082 = vshll.u32 %v5025, 16
        %v5084 = vrot.slane %v5082, 5
        %v5085 = vsel %vm1441, %v5080, %v5084
        %v5086 = vshrl.u32 %v5025, 16
        %v5088 = vrot.slane %v5086, 4
        %v5089 = vor.u32 %v5088, %v5084
        %v5090 = vrot.slane %v5089, 4
        %v5092 = vshll.u32 %v5056, 16
        %v5094 = vrot.slane %v5092, 5
        %v5095 = vsel %vm1441, %v5090, %v5094
        %v5097 = vshrl.u32 %v5026, 16
        %v5099 = vrot.slane %v5097, 4
        %v5100 = vshll.u32 %v5026, 16
        %v5102 = vrot.slane %v5100, 5
        %v5103 = vor.u32 %v5099, %v5102
        %v5104 = vrot.slane %v5103, 4
        %v5106 = vshll.u32 %v5027, 16
        %v5108 = vrot.slane %v5106, 5
        %v5109 = vsel %vm1441, %v5104, %v5108
        %v5110 = vshrl.u32 %v5027, 16
        %v5112 = vrot.slane %v5110, 4
        %v5113 = vor.u32 %v5112, %v5108
        %v5114 = vrot.slane %v5113, 4
        %v5116 = vshll.u32 %v5057, 16
        %v5118 = vrot.slane %v5116, 5
        %v5119 = vsel %vm1441, %v5114, %v5118
        %v5121 = vshrl.u32 %v5028, 16
        %v5123 = vrot.slane %v5121, 4
        %v5124 = vshll.u32 %v5028, 16
        %v5126 = vrot.slane %v5124, 5
        %v5127 = vor.u32 %v5123, %v5126
        %v5128 = vrot.slane %v5127, 4
        %v5130 = vshll.u32 %v5029, 16
        %v5132 = vrot.slane %v5130, 5
        %v5133 = vsel %vm1441, %v5128, %v5132
        %v5134 = vshrl.u32 %v5029, 16
        %v5136 = vrot.slane %v5134, 4
        %v5137 = vor.u32 %v5136, %v5132
        %v5138 = vrot.slane %v5137, 4
        %v5140 = vshll.u32 %v5058, 16
        %v5142 = vrot.slane %v5140, 5
        %v5143 = vsel %vm1441, %v5138, %v5142
        %v5145 = vshrl.u32 %v5030, 16
        %v5147 = vrot.slane %v5145, 4
        %v5148 = vshll.u32 %v5030, 16
        %v5150 = vrot.slane %v5148, 5
        %v5151 = vor.u32 %v5147, %v5150
        %v5152 = vrot.slane %v5151, 4
        %v5154 = vshll.u32 %v5031, 16
        %v5156 = vrot.slane %v5154, 5
        %v5157 = vsel %vm1441, %v5152, %v5156
        %v5158 = vshrl.u32 %v5031, 16
        %v5160 = vrot.slane %v5158, 4
        %v5161 = vor.u32 %v5160, %v5156
        %v5162 = vrot.slane %v5161, 4
        %v5164 = vshll.u32 %v5059, 16
        %v5166 = vrot.slane %v5164, 5
        %v5167 = vsel %vm1441, %v5162, %v5166
        %v5169 = vshrl.u32 %v5032, 16
        %v5171 = vrot.slane %v5169, 4
        %v5172 = vshll.u32 %v5032, 16
        %v5174 = vrot.slane %v5172, 5
        %v5175 = vor.u32 %v5171, %v5174
        %v5176 = vrot.slane %v5175, 4
        %v5178 = vshll.u32 %v5033, 16
        %v5180 = vrot.slane %v5178, 5
        %v5181 = vsel %vm1441, %v5176, %v5180
        %v5182 = vshrl.u32 %v5033, 16
        %v5184 = vrot.slane %v5182, 4
        %v5185 = vor.u32 %v5184, %v5180
        %v5186 = vrot.slane %v5185, 4
        %v5188 = vshll.u32 %v5060, 16
        %v5190 = vrot.slane %v5188, 5
        %v5191 = vsel %vm1441, %v5186, %v5190
        %v5193 = vshrl.u32 %v5034, 16
        %v5195 = vrot.slane %v5193, 4
        %v5196 = vshll.u32 %v5034, 16
        %v5198 = vrot.slane %v5196, 5
        %v5199 = vor.u32 %v5195, %v5198
        %v5200 = vrot.slane %v5199, 4
        %v5202 = vshll.u32 %v5035, 16
        %v5204 = vrot.slane %v5202, 5
        %v5205 = vsel %vm1441, %v5200, %v5204
        %v5206 = vshrl.u32 %v5035, 16
        %v5208 = vrot.slane %v5206, 4
        %v5209 = vor.u32 %v5208, %v5204
        %v5210 = vrot.slane %v5209, 4
        %v5212 = vshll.u32 %v5061, 16
        %v5214 = vrot.slane %v5212, 5
        %v5215 = vsel %vm1441, %v5210, %v5214
        %v5217 = vshrl.u32 %v5036, 16
        %v5219 = vrot.slane %v5217, 4
        %v5220 = vshll.u32 %v5036, 16
        %v5222 = vrot.slane %v5220, 5
        %v5223 = vor.u32 %v5219, %v5222
        %v5224 = vrot.slane %v5223, 4
        %v5226 = vshll.u32 %v5037, 16
        %v5228 = vrot.slane %v5226, 5
        %v5229 = vsel %vm1441, %v5224, %v5228
        %v5230 = vshrl.u32 %v5037, 16
        %v5232 = vrot.slane %v5230, 4
        %v5233 = vor.u32 %v5232, %v5228
        %v5234 = vrot.slane %v5233, 4
        %v5236 = vshll.u32 %v5062, 16
        %v5238 = vrot.slane %v5236, 5
        %v5239 = vsel %vm1441, %v5234, %v5238
        %v5241 = vshrl.u32 %v5038, 16
        %v5243 = vrot.slane %v5241, 4
        %v5244 = vshll.u32 %v5038, 16
        %v5246 = vrot.slane %v5244, 5
        %v5247 = vor.u32 %v5243, %v5246
        %v5248 = vrot.slane %v5247, 4
        %v5250 = vshll.u32 %v5039, 16
        %v5252 = vrot.slane %v5250, 5
        %v5253 = vsel %vm1441, %v5248, %v5252
        %v5254 = vshrl.u32 %v5039, 16
        %v5256 = vrot.slane %v5254, 4
        %v5257 = vor.u32 %v5256, %v5252
        %v5258 = vrot.slane %v5257, 4
        %v5260 = vshll.u32 %v5063, 16
        %v5262 = vrot.slane %v5260, 5
        %v5263 = vsel %vm1441, %v5258, %v5262
        %v5265 = vshrl.u32 %v5040, 16
        %v5267 = vrot.slane %v5265, 4
        %v5268 = vshll.u32 %v5040, 16
        %v5270 = vrot.slane %v5268, 5
        %v5271 = vor.u32 %v5267, %v5270
        %v5272 = vrot.slane %v5271, 4
        %v5274 = vshll.u32 %v5041, 16
        %v5276 = vrot.slane %v5274, 5
        %v5277 = vsel %vm1441, %v5272, %v5276
        %v5278 = vshrl.u32 %v5041, 16
        %v5280 = vrot.slane %v5278, 4
        %v5281 = vor.u32 %v5280, %v5276
        %v5282 = vrot.slane %v5281, 4
        %v5284 = vshll.u32 %v5064, 16
        %v5286 = vrot.slane %v5284, 5
        %v5287 = vsel %vm1441, %v5282, %v5286
        %v5289 = vshrl.u32 %v5042, 16
        %v5291 = vrot.slane %v5289, 4
        %v5292 = vshll.u32 %v5042, 16
        %v5294 = vrot.slane %v5292, 5
        %v5295 = vor.u32 %v5291, %v5294
        %v5296 = vrot.slane %v5295, 4
        %v5298 = vshll.u32 %v5043, 16
        %v5300 = vrot.slane %v5298, 5
        %v5301 = vsel %vm1441, %v5296, %v5300
        %v5302 = vshrl.u32 %v5043, 16
        %v5304 = vrot.slane %v5302, 4
        %v5305 = vor.u32 %v5304, %v5300
        %v5306 = vrot.slane %v5305, 4
        %v5308 = vshll.u32 %v5065, 16
        %v5310 = vrot.slane %v5308, 5
        %v5311 = vsel %vm1441, %v5306, %v5310
        %v5313 = vshrl.u32 %v5044, 16
        %v5315 = vrot.slane %v5313, 4
        %v5316 = vshll.u32 %v5044, 16
        %v5318 = vrot.slane %v5316, 5
        %v5319 = vor.u32 %v5315, %v5318
        %v5320 = vrot.slane %v5319, 4
        %v5322 = vshll.u32 %v5045, 16
        %v5324 = vrot.slane %v5322, 5
        %v5325 = vsel %vm1441, %v5320, %v5324
        %v5326 = vshrl.u32 %v5045, 16
        %v5328 = vrot.slane %v5326, 4
        %v5329 = vor.u32 %v5328, %v5324
        %v5330 = vrot.slane %v5329, 4
        %v5332 = vshll.u32 %v5066, 16
        %v5334 = vrot.slane %v5332, 5
        %v5335 = vsel %vm1441, %v5330, %v5334
        %v5337 = vshrl.u32 %v5046, 16
        %v5339 = vrot.slane %v5337, 4
        %v5340 = vshll.u32 %v5046, 16
        %v5342 = vrot.slane %v5340, 5
        %v5343 = vor.u32 %v5339, %v5342
        %v5344 = vrot.slane %v5343, 4
        %v5346 = vshll.u32 %v5047, 16
        %v5348 = vrot.slane %v5346, 5
        %v5349 = vsel %vm1441, %v5344, %v5348
        %v5350 = vshrl.u32 %v5047, 16
        %v5352 = vrot.slane %v5350, 4
        %v5353 = vor.u32 %v5352, %v5348
        %v5354 = vrot.slane %v5353, 4
        %v5356 = vshll.u32 %v5067, 16
        %v5358 = vrot.slane %v5356, 5
        %v5359 = vsel %vm1441, %v5354, %v5358
        %v5361 = vshrl.u32 %v5048, 16
        %v5363 = vrot.slane %v5361, 4
        %v5364 = vshll.u32 %v5048, 16
        %v5366 = vrot.slane %v5364, 5
        %v5367 = vor.u32 %v5363, %v5366
        %v5368 = vrot.slane %v5367, 4
        %v5370 = vshll.u32 %v5049, 16
        %v5372 = vrot.slane %v5370, 5
        %v5373 = vsel %vm1441, %v5368, %v5372
        %v5374 = vshrl.u32 %v5049, 16
        %v5376 = vrot.slane %v5374, 4
        %v5377 = vor.u32 %v5376, %v5372
        %v5378 = vrot.slane %v5377, 4
        %v5380 = vshll.u32 %v5068, 16
        %v5382 = vrot.slane %v5380, 5
        %v5383 = vsel %vm1441, %v5378, %v5382
        %v5385 = vshrl.u32 %v5050, 16
        %v5387 = vrot.slane %v5385, 4
        %v5388 = vshll.u32 %v5050, 16
        %v5390 = vrot.slane %v5388, 5
        %v5391 = vor.u32 %v5387, %v5390
        %v5392 = vrot.slane %v5391, 4
        %v5394 = vshll.u32 %v5051, 16
        %v5396 = vrot.slane %v5394, 5
        %v5397 = vsel %vm1441, %v5392, %v5396
        %v5398 = vshrl.u32 %v5051, 16
        %v5400 = vrot.slane %v5398, 4
        %v5401 = vor.u32 %v5400, %v5396
        %v5402 = vrot.slane %v5401, 4
        %v5404 = vshll.u32 %v5069, 16
        %v5406 = vrot.slane %v5404, 5
        %v5407 = vsel %vm1441, %v5402, %v5406
        %v5409 = vshrl.u32 %v5052, 16
        %v5411 = vrot.slane %v5409, 4
        %v5412 = vshll.u32 %v5052, 16
        %v5414 = vrot.slane %v5412, 5
        %v5415 = vor.u32 %v5411, %v5414
        %v5416 = vrot.slane %v5415, 4
        %v5418 = vshll.u32 %v5053, 16
        %v5420 = vrot.slane %v5418, 5
        %v5421 = vsel %vm1441, %v5416, %v5420
        %v5422 = vshrl.u32 %v5053, 16
        %v5424 = vrot.slane %v5422, 4
        %v5425 = vor.u32 %v5424, %v5420
        %v5426 = vrot.slane %v5425, 4
        %v5428 = vshll.u32 %v5070, 16
        %v5430 = vrot.slane %v5428, 5
        %v5431 = vsel %vm1441, %v5426, %v5430
        %v5433 = vshrl.u32 %v5054, 16
        %v5435 = vrot.slane %v5433, 4
        %v5436 = vshll.u32 %v5054, 16
        %v5438 = vrot.slane %v5436, 5
        %v5439 = vor.u32 %v5435, %v5438
        %v5440 = vrot.slane %v5439, 4
        %v5442 = vshll.u32 %v5055, 16
        %v5444 = vrot.slane %v5442, 5
        %v5445 = vsel %vm1441, %v5440, %v5444
        %v5446 = vshrl.u32 %v5055, 16
        %v5448 = vrot.slane %v5446, 4
        %v5449 = vor.u32 %v5448, %v5444
        %v5450 = vrot.slane %v5449, 4
        %v5452 = vshll.u32 %v5071, 16
        %v5454 = vrot.slane %v5452, 5
        %v5455 = vsel %vm1441, %v5450, %v5454
        %v5456 = vld [vmem:[#allocation3] sm:$0xe]
        %v5457 = vld [vmem:[#allocation3 + $0xc] sm:$0xe]
        %v5458 = vld [vmem:[#allocation3 + $0x18] sm:$0xe]
        %v5459 = vld [vmem:[#allocation3 + $0x24] sm:$0xe]
        %v5460 = vld [vmem:[#allocation3 + $0x30] sm:$0xe]
        %v5461 = vld [vmem:[#allocation3 + $0x3c] sm:$0xe]
        %v5462 = vld [vmem:[#allocation3 + $0x48] sm:$0xe]
        %v5463 = vld [vmem:[#allocation3 + $0x54] sm:$0xe]
        %v5464 = vld [vmem:[#allocation3 + $0x60] sm:$0xe]
        %v5465 = vld [vmem:[#allocation3 + $0x6c] sm:$0xe]
        %v5466 = vld [vmem:[#allocation3 + $0x78] sm:$0xe]
        %v5467 = vld [vmem:[#allocation3 + $0x84] sm:$0xe]
        %v5468 = vld [vmem:[#allocation3 + $0x90] sm:$0xe]
        %v5469 = vld [vmem:[#allocation3 + $0x9c] sm:$0xe]
        %v5470 = vld [vmem:[#allocation3 + $0xa8] sm:$0xe]
        %v5471 = vld [vmem:[#allocation3 + $0xb4] sm:$0xe]
        %v5520 = vrot.slane %v5456, 5
        %v5521 = vrot.slane %v5520, 4
        %v5522 = vrot.slane %v5025, 5
        %v5523 = vsel %vm1892, %v5521, %v5522
        %v5524 = vrot.slane %v5522, 4
        %v5525 = vrot.slane %v5056, 5
        %v5526 = vsel %vm1892, %v5524, %v5525
        %v5527 = vrot.slane %v5457, 5
        %v5528 = vrot.slane %v5527, 4
        %v5529 = vrot.slane %v5027, 5
        %v5530 = vsel %vm1892, %v5528, %v5529
        %v5531 = vrot.slane %v5529, 4
        %v5532 = vrot.slane %v5057, 5
        %v5533 = vsel %vm1892, %v5531, %v5532
        %v5534 = vrot.slane %v5458, 5
        %v5535 = vrot.slane %v5534, 4
        %v5536 = vrot.slane %v5029, 5
        %v5537 = vsel %vm1892, %v5535, %v5536
        %v5538 = vrot.slane %v5536, 4
        %v5539 = vrot.slane %v5058, 5
        %v5540 = vsel %vm1892, %v5538, %v5539
        %v5541 = vrot.slane %v5459, 5
        %v5542 = vrot.slane %v5541, 4
        %v5543 = vrot.slane %v5031, 5
        %v5544 = vsel %vm1892, %v5542, %v5543
        %v5545 = vrot.slane %v5543, 4
        %v5546 = vrot.slane %v5059, 5
        %v5547 = vsel %vm1892, %v5545, %v5546
        %v5548 = vrot.slane %v5460, 5
        %v5549 = vrot.slane %v5548, 4
        %v5550 = vrot.slane %v5033, 5
        %v5551 = vsel %vm1892, %v5549, %v5550
        %v5552 = vrot.slane %v5550, 4
        %v5553 = vrot.slane %v5060, 5
        %v5554 = vsel %vm1892, %v5552, %v5553
        %v5555 = vrot.slane %v5461, 5
        %v5556 = vrot.slane %v5555, 4
        %v5557 = vrot.slane %v5035, 5
        %v5558 = vsel %vm1892, %v5556, %v5557
        %v5559 = vrot.slane %v5557, 4
        %v5560 = vrot.slane %v5061, 5
        %v5561 = vsel %vm1892, %v5559, %v5560
        %v5562 = vrot.slane %v5462, 5
        %v5563 = vrot.slane %v5562, 4
        %v5564 = vrot.slane %v5037, 5
        %v5565 = vsel %vm1892, %v5563, %v5564
        %v5566 = vrot.slane %v5564, 4
        %v5567 = vrot.slane %v5062, 5
        %v5568 = vsel %vm1892, %v5566, %v5567
        %v5569 = vrot.slane %v5463, 5
        %v5570 = vrot.slane %v5569, 4
        %v5571 = vrot.slane %v5039, 5
        %v5572 = vsel %vm1892, %v5570, %v5571
        %v5573 = vrot.slane %v5571, 4
        %v5574 = vrot.slane %v5063, 5
        %v5575 = vsel %vm1892, %v5573, %v5574
        %v5576 = vrot.slane %v5464, 5
        %v5577 = vrot.slane %v5576, 4
        %v5578 = vrot.slane %v5041, 5
        %v5579 = vsel %vm1892, %v5577, %v5578
        %v5580 = vrot.slane %v5578, 4
        %v5581 = vrot.slane %v5064, 5
        %v5582 = vsel %vm1892, %v5580, %v5581
        %v5583 = vrot.slane %v5465, 5
        %v5584 = vrot.slane %v5583, 4
        %v5585 = vrot.slane %v5043, 5
        %v5586 = vsel %vm1892, %v5584, %v5585
        %v5587 = vrot.slane %v5585, 4
        %v5588 = vrot.slane %v5065, 5
        %v5589 = vsel %vm1892, %v5587, %v5588
        %v5590 = vrot.slane %v5466, 5
        %v5591 = vrot.slane %v5590, 4
        %v5592 = vrot.slane %v5045, 5
        %v5593 = vsel %vm1892, %v5591, %v5592
        %v5594 = vrot.slane %v5592, 4
        %v5595 = vrot.slane %v5066, 5
        %v5596 = vsel %vm1892, %v5594, %v5595
        %v5597 = vrot.slane %v5467, 5
        %v5598 = vrot.slane %v5597, 4
        %v5599 = vrot.slane %v5047, 5
        %v5600 = vsel %vm1892, %v5598, %v5599
        %v5601 = vrot.slane %v5599, 4
        %v5602 = vrot.slane %v5067, 5
        %v5603 = vsel %vm1892, %v5601, %v5602
        %v5604 = vrot.slane %v5468, 5
        %v5605 = vrot.slane %v5604, 4
        %v5606 = vrot.slane %v5049, 5
        %v5607 = vsel %vm1892, %v5605, %v5606
        %v5608 = vrot.slane %v5606, 4
        %v5609 = vrot.slane %v5068, 5
        %v5610 = vsel %vm1892, %v5608, %v5609
        %v5611 = vrot.slane %v5469, 5
        %v5612 = vrot.slane %v5611, 4
        %v5613 = vrot.slane %v5051, 5
        %v5614 = vsel %vm1892, %v5612, %v5613
        %v5615 = vrot.slane %v5613, 4
        %v5616 = vrot.slane %v5069, 5
        %v5617 = vsel %vm1892, %v5615, %v5616
        %v5618 = vrot.slane %v5470, 5
        %v5619 = vrot.slane %v5618, 4
        %v5620 = vrot.slane %v5053, 5
        %v5621 = vsel %vm1892, %v5619, %v5620
        %v5622 = vrot.slane %v5620, 4
        %v5623 = vrot.slane %v5070, 5
        %v5624 = vsel %vm1892, %v5622, %v5623
        %v5625 = vrot.slane %v5471, 5
        %v5626 = vrot.slane %v5625, 4
        %v5627 = vrot.slane %v5055, 5
        %v5628 = vsel %vm1892, %v5626, %v5627
        %v5629 = vrot.slane %v5627, 4
        %v5630 = vrot.slane %v5071, 5
        %v5631 = vsel %vm1892, %v5629, %v5630
        %s5632 = scalar_lea.vmem [#allocation3], 12
        %v5633 = vld [vmem:[%s5632] sm:$0xf]
        %v5634 = vld [vmem:[%s5632 + $0x4] sm:$0xf]
        %v5635 = vld [vmem:[%s5632 + $0xc] sm:$0xf]
        %v5636 = vld [vmem:[%s5632 + $0x10] sm:$0xf]
        %v5637 = vld [vmem:[%s5632 + $0x18] sm:$0xf]
        %v5638 = vld [vmem:[%s5632 + $0x1c] sm:$0xf]
        %v5639 = vld [vmem:[%s5632 + $0x24] sm:$0xf]
        %v5640 = vld [vmem:[%s5632 + $0x28] sm:$0xf]
        %v5641 = vld [vmem:[%s5632 + $0x30] sm:$0xf]
        %v5642 = vld [vmem:[%s5632 + $0x34] sm:$0xf]
        %v5643 = vld [vmem:[%s5632 + $0x3c] sm:$0xf]
        %v5644 = vld [vmem:[%s5632 + $0x40] sm:$0xf]
        %v5645 = vld [vmem:[%s5632 + $0x48] sm:$0xf]
        %v5646 = vld [vmem:[%s5632 + $0x4c] sm:$0xf]
        %v5647 = vld [vmem:[%s5632 + $0x54] sm:$0xf]
        %v5648 = vld [vmem:[%s5632 + $0x58] sm:$0xf]
        %v5649 = vld [vmem:[%s5632 + $0x60] sm:$0xf]
        %v5650 = vld [vmem:[%s5632 + $0x64] sm:$0xf]
        %v5651 = vld [vmem:[%s5632 + $0x6c] sm:$0xf]
        %v5652 = vld [vmem:[%s5632 + $0x70] sm:$0xf]
        %v5653 = vld [vmem:[%s5632 + $0x78] sm:$0xf]
        %v5654 = vld [vmem:[%s5632 + $0x7c] sm:$0xf]
        %v5655 = vld [vmem:[%s5632 + $0x84] sm:$0xf]
        %v5656 = vld [vmem:[%s5632 + $0x88] sm:$0xf]
        %v5657 = vld [vmem:[%s5632 + $0x90] sm:$0xf]
        %v5658 = vld [vmem:[%s5632 + $0x94] sm:$0xf]
        %v5659 = vld [vmem:[%s5632 + $0x9c] sm:$0xf]
        %v5660 = vld [vmem:[%s5632 + $0xa0] sm:$0xf]
        %v5661 = vld [vmem:[%s5632 + $0xa8] sm:$0xf]
        %v5662 = vld [vmem:[%s5632 + $0xac] sm:$0xf]
        %v5663 = vld [vmem:[%s5632 + $0xb4] sm:$0xf]
        %v5664 = vld [vmem:[%s5632 + $0xb8] sm:$0xf]
        %v5665 = vld [vmem:[%s5632 + $0x8] sm:$0x1]
        %v5666 = vld [vmem:[%s5632 + $0x14] sm:$0x1]
        %v5667 = vld [vmem:[%s5632 + $0x20] sm:$0x1]
        %v5668 = vld [vmem:[%s5632 + $0x2c] sm:$0x1]
        %v5669 = vld [vmem:[%s5632 + $0x38] sm:$0x1]
        %v5670 = vld [vmem:[%s5632 + $0x44] sm:$0x1]
        %v5671 = vld [vmem:[%s5632 + $0x50] sm:$0x1]
        %v5672 = vld [vmem:[%s5632 + $0x5c] sm:$0x1]
        %v5673 = vld [vmem:[%s5632 + $0x68] sm:$0x1]
        %v5674 = vld [vmem:[%s5632 + $0x74] sm:$0x1]
        %v5675 = vld [vmem:[%s5632 + $0x80] sm:$0x1]
        %v5676 = vld [vmem:[%s5632 + $0x8c] sm:$0x1]
        %v5677 = vld [vmem:[%s5632 + $0x98] sm:$0x1]
        %v5678 = vld [vmem:[%s5632 + $0xa4] sm:$0x1]
        %v5679 = vld [vmem:[%s5632 + $0xb0] sm:$0x1]
        %v5680 = vld [vmem:[%s5632 + $0xbc] sm:$0x1]
        %v5682 = vshrl.u32 %v5633, 16
        %v5684 = vrot.slane %v5682, 4
        %v5685 = vshll.u32 %v5633, 16
        %v5687 = vrot.slane %v5685, 5
        %v5688 = vor.u32 %v5684, %v5687
        %v5689 = vrot.slane %v5688, 4
        %v5691 = vshll.u32 %v5634, 16
        %v5693 = vrot.slane %v5691, 5
        %v5694 = vsel %vm1441, %v5689, %v5693
        %v5695 = vshrl.u32 %v5634, 16
        %v5697 = vrot.slane %v5695, 4
        %v5698 = vor.u32 %v5697, %v5693
        %v5699 = vrot.slane %v5698, 4
        %v5701 = vshll.u32 %v5665, 16
        %v5703 = vrot.slane %v5701, 5
        %v5704 = vsel %vm1441, %v5699, %v5703
        %v5706 = vshrl.u32 %v5635, 16
        %v5708 = vrot.slane %v5706, 4
        %v5709 = vshll.u32 %v5635, 16
        %v5711 = vrot.slane %v5709, 5
        %v5712 = vor.u32 %v5708, %v5711
        %v5713 = vrot.slane %v5712, 4
        %v5715 = vshll.u32 %v5636, 16
        %v5717 = vrot.slane %v5715, 5
        %v5718 = vsel %vm1441, %v5713, %v5717
        %v5719 = vshrl.u32 %v5636, 16
        %v5721 = vrot.slane %v5719, 4
        %v5722 = vor.u32 %v5721, %v5717
        %v5723 = vrot.slane %v5722, 4
        %v5725 = vshll.u32 %v5666, 16
        %v5727 = vrot.slane %v5725, 5
        %v5728 = vsel %vm1441, %v5723, %v5727
        %v5730 = vshrl.u32 %v5637, 16
        %v5732 = vrot.slane %v5730, 4
        %v5733 = vshll.u32 %v5637, 16
        %v5735 = vrot.slane %v5733, 5
        %v5736 = vor.u32 %v5732, %v5735
        %v5737 = vrot.slane %v5736, 4
        %v5739 = vshll.u32 %v5638, 16
        %v5741 = vrot.slane %v5739, 5
        %v5742 = vsel %vm1441, %v5737, %v5741
        %v5743 = vshrl.u32 %v5638, 16
        %v5745 = vrot.slane %v5743, 4
        %v5746 = vor.u32 %v5745, %v5741
        %v5747 = vrot.slane %v5746, 4
        %v5749 = vshll.u32 %v5667, 16
        %v5751 = vrot.slane %v5749, 5
        %v5752 = vsel %vm1441, %v5747, %v5751
        %v5754 = vshrl.u32 %v5639, 16
        %v5756 = vrot.slane %v5754, 4
        %v5757 = vshll.u32 %v5639, 16
        %v5759 = vrot.slane %v5757, 5
        %v5760 = vor.u32 %v5756, %v5759
        %v5761 = vrot.slane %v5760, 4
        %v5763 = vshll.u32 %v5640, 16
        %v5765 = vrot.slane %v5763, 5
        %v5766 = vsel %vm1441, %v5761, %v5765
        %v5767 = vshrl.u32 %v5640, 16
        %v5769 = vrot.slane %v5767, 4
        %v5770 = vor.u32 %v5769, %v5765
        %v5771 = vrot.slane %v5770, 4
        %v5773 = vshll.u32 %v5668, 16
        %v5775 = vrot.slane %v5773, 5
        %v5776 = vsel %vm1441, %v5771, %v5775
        %v5778 = vshrl.u32 %v5641, 16
        %v5780 = vrot.slane %v5778, 4
        %v5781 = vshll.u32 %v5641, 16
        %v5783 = vrot.slane %v5781, 5
        %v5784 = vor.u32 %v5780, %v5783
        %v5785 = vrot.slane %v5784, 4
        %v5787 = vshll.u32 %v5642, 16
        %v5789 = vrot.slane %v5787, 5
        %v5790 = vsel %vm1441, %v5785, %v5789
        %v5791 = vshrl.u32 %v5642, 16
        %v5793 = vrot.slane %v5791, 4
        %v5794 = vor.u32 %v5793, %v5789
        %v5795 = vrot.slane %v5794, 4
        %v5797 = vshll.u32 %v5669, 16
        %v5799 = vrot.slane %v5797, 5
        %v5800 = vsel %vm1441, %v5795, %v5799
        %v5802 = vshrl.u32 %v5643, 16
        %v5804 = vrot.slane %v5802, 4
        %v5805 = vshll.u32 %v5643, 16
        %v5807 = vrot.slane %v5805, 5
        %v5808 = vor.u32 %v5804, %v5807
        %v5809 = vrot.slane %v5808, 4
        %v5811 = vshll.u32 %v5644, 16
        %v5813 = vrot.slane %v5811, 5
        %v5814 = vsel %vm1441, %v5809, %v5813
        %v5815 = vshrl.u32 %v5644, 16
        %v5817 = vrot.slane %v5815, 4
        %v5818 = vor.u32 %v5817, %v5813
        %v5819 = vrot.slane %v5818, 4
        %v5821 = vshll.u32 %v5670, 16
        %v5823 = vrot.slane %v5821, 5
        %v5824 = vsel %vm1441, %v5819, %v5823
        %v5826 = vshrl.u32 %v5645, 16
        %v5828 = vrot.slane %v5826, 4
        %v5829 = vshll.u32 %v5645, 16
        %v5831 = vrot.slane %v5829, 5
        %v5832 = vor.u32 %v5828, %v5831
        %v5833 = vrot.slane %v5832, 4
        %v5835 = vshll.u32 %v5646, 16
        %v5837 = vrot.slane %v5835, 5
        %v5838 = vsel %vm1441, %v5833, %v5837
        %v5839 = vshrl.u32 %v5646, 16
        %v5841 = vrot.slane %v5839, 4
        %v5842 = vor.u32 %v5841, %v5837
        %v5843 = vrot.slane %v5842, 4
        %v5845 = vshll.u32 %v5671, 16
        %v5847 = vrot.slane %v5845, 5
        %v5848 = vsel %vm1441, %v5843, %v5847
        %v5850 = vshrl.u32 %v5647, 16
        %v5852 = vrot.slane %v5850, 4
        %v5853 = vshll.u32 %v5647, 16
        %v5855 = vrot.slane %v5853, 5
        %v5856 = vor.u32 %v5852, %v5855
        %v5857 = vrot.slane %v5856, 4
        %v5859 = vshll.u32 %v5648, 16
        %v5861 = vrot.slane %v5859, 5
        %v5862 = vsel %vm1441, %v5857, %v5861
        %v5863 = vshrl.u32 %v5648, 16
        %v5865 = vrot.slane %v5863, 4
        %v5866 = vor.u32 %v5865, %v5861
        %v5867 = vrot.slane %v5866, 4
        %v5869 = vshll.u32 %v5672, 16
        %v5871 = vrot.slane %v5869, 5
        %v5872 = vsel %vm1441, %v5867, %v5871
        %v5874 = vshrl.u32 %v5649, 16
        %v5876 = vrot.slane %v5874, 4
        %v5877 = vshll.u32 %v5649, 16
        %v5879 = vrot.slane %v5877, 5
        %v5880 = vor.u32 %v5876, %v5879
        %v5881 = vrot.slane %v5880, 4
        %v5883 = vshll.u32 %v5650, 16
        %v5885 = vrot.slane %v5883, 5
        %v5886 = vsel %vm1441, %v5881, %v5885
        %v5887 = vshrl.u32 %v5650, 16
        %v5889 = vrot.slane %v5887, 4
        %v5890 = vor.u32 %v5889, %v5885
        %v5891 = vrot.slane %v5890, 4
        %v5893 = vshll.u32 %v5673, 16
        %v5895 = vrot.slane %v5893, 5
        %v5896 = vsel %vm1441, %v5891, %v5895
        %v5898 = vshrl.u32 %v5651, 16
        %v5900 = vrot.slane %v5898, 4
        %v5901 = vshll.u32 %v5651, 16
        %v5903 = vrot.slane %v5901, 5
        %v5904 = vor.u32 %v5900, %v5903
        %v5905 = vrot.slane %v5904, 4
        %v5907 = vshll.u32 %v5652, 16
        %v5909 = vrot.slane %v5907, 5
        %v5910 = vsel %vm1441, %v5905, %v5909
        %v5911 = vshrl.u32 %v5652, 16
        %v5913 = vrot.slane %v5911, 4
        %v5914 = vor.u32 %v5913, %v5909
        %v5915 = vrot.slane %v5914, 4
        %v5917 = vshll.u32 %v5674, 16
        %v5919 = vrot.slane %v5917, 5
        %v5920 = vsel %vm1441, %v5915, %v5919
        %v5922 = vshrl.u32 %v5653, 16
        %v5924 = vrot.slane %v5922, 4
        %v5925 = vshll.u32 %v5653, 16
        %v5927 = vrot.slane %v5925, 5
        %v5928 = vor.u32 %v5924, %v5927
        %v5929 = vrot.slane %v5928, 4
        %v5931 = vshll.u32 %v5654, 16
        %v5933 = vrot.slane %v5931, 5
        %v5934 = vsel %vm1441, %v5929, %v5933
        %v5935 = vshrl.u32 %v5654, 16
        %v5937 = vrot.slane %v5935, 4
        %v5938 = vor.u32 %v5937, %v5933
        %v5939 = vrot.slane %v5938, 4
        %v5941 = vshll.u32 %v5675, 16
        %v5943 = vrot.slane %v5941, 5
        %v5944 = vsel %vm1441, %v5939, %v5943
        %v5946 = vshrl.u32 %v5655, 16
        %v5948 = vrot.slane %v5946, 4
        %v5949 = vshll.u32 %v5655, 16
        %v5951 = vrot.slane %v5949, 5
        %v5952 = vor.u32 %v5948, %v5951
        %v5953 = vrot.slane %v5952, 4
        %v5955 = vshll.u32 %v5656, 16
        %v5957 = vrot.slane %v5955, 5
        %v5958 = vsel %vm1441, %v5953, %v5957
        %v5959 = vshrl.u32 %v5656, 16
        %v5961 = vrot.slane %v5959, 4
        %v5962 = vor.u32 %v5961, %v5957
        %v5963 = vrot.slane %v5962, 4
        %v5965 = vshll.u32 %v5676, 16
        %v5967 = vrot.slane %v5965, 5
        %v5968 = vsel %vm1441, %v5963, %v5967
        %v5970 = vshrl.u32 %v5657, 16
        %v5972 = vrot.slane %v5970, 4
        %v5973 = vshll.u32 %v5657, 16
        %v5975 = vrot.slane %v5973, 5
        %v5976 = vor.u32 %v5972, %v5975
        %v5977 = vrot.slane %v5976, 4
        %v5979 = vshll.u32 %v5658, 16
        %v5981 = vrot.slane %v5979, 5
        %v5982 = vsel %vm1441, %v5977, %v5981
        %v5983 = vshrl.u32 %v5658, 16
        %v5985 = vrot.slane %v5983, 4
        %v5986 = vor.u32 %v5985, %v5981
        %v5987 = vrot.slane %v5986, 4
        %v5989 = vshll.u32 %v5677, 16
        %v5991 = vrot.slane %v5989, 5
        %v5992 = vsel %vm1441, %v5987, %v5991
        %v5994 = vshrl.u32 %v5659, 16
        %v5996 = vrot.slane %v5994, 4
        %v5997 = vshll.u32 %v5659, 16
        %v5999 = vrot.slane %v5997, 5
        %v6000 = vor.u32 %v5996, %v5999
        %v6001 = vrot.slane %v6000, 4
        %v6003 = vshll.u32 %v5660, 16
        %v6005 = vrot.slane %v6003, 5
        %v6006 = vsel %vm1441, %v6001, %v6005
        %v6007 = vshrl.u32 %v5660, 16
        %v6009 = vrot.slane %v6007, 4
        %v6010 = vor.u32 %v6009, %v6005
        %v6011 = vrot.slane %v6010, 4
        %v6013 = vshll.u32 %v5678, 16
        %v6015 = vrot.slane %v6013, 5
        %v6016 = vsel %vm1441, %v6011, %v6015
        %v6018 = vshrl.u32 %v5661, 16
        %v6020 = vrot.slane %v6018, 4
        %v6021 = vshll.u32 %v5661, 16
        %v6023 = vrot.slane %v6021, 5
        %v6024 = vor.u32 %v6020, %v6023
        %v6025 = vrot.slane %v6024, 4
        %v6027 = vshll.u32 %v5662, 16
        %v6029 = vrot.slane %v6027, 5
        %v6030 = vsel %vm1441, %v6025, %v6029
        %v6031 = vshrl.u32 %v5662, 16
        %v6033 = vrot.slane %v6031, 4
        %v6034 = vor.u32 %v6033, %v6029
        %v6035 = vrot.slane %v6034, 4
        %v6037 = vshll.u32 %v5679, 16
        %v6039 = vrot.slane %v6037, 5
        %v6040 = vsel %vm1441, %v6035, %v6039
        %v6042 = vshrl.u32 %v5663, 16
        %v6044 = vrot.slane %v6042, 4
        %v6045 = vshll.u32 %v5663, 16
        %v6047 = vrot.slane %v6045, 5
        %v6048 = vor.u32 %v6044, %v6047
        %v6049 = vrot.slane %v6048, 4
        %v6051 = vshll.u32 %v5664, 16
        %v6053 = vrot.slane %v6051, 5
        %v6054 = vsel %vm1441, %v6049, %v6053
        %v6055 = vshrl.u32 %v5664, 16
        %v6057 = vrot.slane %v6055, 4
        %v6058 = vor.u32 %v6057, %v6053
        %v6059 = vrot.slane %v6058, 4
        %v6061 = vshll.u32 %v5680, 16
        %v6063 = vrot.slane %v6061, 5
        %v6064 = vsel %vm1441, %v6059, %v6063
        %v6065 = vld [vmem:[%s5632] sm:$0xe]
        %v6066 = vld [vmem:[%s5632 + $0xc] sm:$0xe]
        %v6067 = vld [vmem:[%s5632 + $0x18] sm:$0xe]
        %v6068 = vld [vmem:[%s5632 + $0x24] sm:$0xe]
        %v6069 = vld [vmem:[%s5632 + $0x30] sm:$0xe]
        %v6070 = vld [vmem:[%s5632 + $0x3c] sm:$0xe]
        %v6071 = vld [vmem:[%s5632 + $0x48] sm:$0xe]
        %v6072 = vld [vmem:[%s5632 + $0x54] sm:$0xe]
        %v6073 = vld [vmem:[%s5632 + $0x60] sm:$0xe]
        %v6074 = vld [vmem:[%s5632 + $0x6c] sm:$0xe]
        %v6075 = vld [vmem:[%s5632 + $0x78] sm:$0xe]
        %v6076 = vld [vmem:[%s5632 + $0x84] sm:$0xe]
        %v6077 = vld [vmem:[%s5632 + $0x90] sm:$0xe]
        %v6078 = vld [vmem:[%s5632 + $0x9c] sm:$0xe]
        %v6079 = vld [vmem:[%s5632 + $0xa8] sm:$0xe]
        %v6080 = vld [vmem:[%s5632 + $0xb4] sm:$0xe]
        %v6129 = vrot.slane %v6065, 5
        %v6130 = vrot.slane %v6129, 4
        %v6131 = vrot.slane %v5634, 5
        %v6132 = vsel %vm1892, %v6130, %v6131
        %v6133 = vrot.slane %v6131, 4
        %v6134 = vrot.slane %v5665, 5
        %v6135 = vsel %vm1892, %v6133, %v6134
        %v6136 = vrot.slane %v6066, 5
        %v6137 = vrot.slane %v6136, 4
        %v6138 = vrot.slane %v5636, 5
        %v6139 = vsel %vm1892, %v6137, %v6138
        %v6140 = vrot.slane %v6138, 4
        %v6141 = vrot.slane %v5666, 5
        %v6142 = vsel %vm1892, %v6140, %v6141
        %v6143 = vrot.slane %v6067, 5
        %v6144 = vrot.slane %v6143, 4
        %v6145 = vrot.slane %v5638, 5
        %v6146 = vsel %vm1892, %v6144, %v6145
        %v6147 = vrot.slane %v6145, 4
        %v6148 = vrot.slane %v5667, 5
        %v6149 = vsel %vm1892, %v6147, %v6148
        %v6150 = vrot.slane %v6068, 5
        %v6151 = vrot.slane %v6150, 4
        %v6152 = vrot.slane %v5640, 5
        %v6153 = vsel %vm1892, %v6151, %v6152
        %v6154 = vrot.slane %v6152, 4
        %v6155 = vrot.slane %v5668, 5
        %v6156 = vsel %vm1892, %v6154, %v6155
        %v6157 = vrot.slane %v6069, 5
        %v6158 = vrot.slane %v6157, 4
        %v6159 = vrot.slane %v5642, 5
        %v6160 = vsel %vm1892, %v6158, %v6159
        %v6161 = vrot.slane %v6159, 4
        %v6162 = vrot.slane %v5669, 5
        %v6163 = vsel %vm1892, %v6161, %v6162
        %v6164 = vrot.slane %v6070, 5
        %v6165 = vrot.slane %v6164, 4
        %v6166 = vrot.slane %v5644, 5
        %v6167 = vsel %vm1892, %v6165, %v6166
        %v6168 = vrot.slane %v6166, 4
        %v6169 = vrot.slane %v5670, 5
        %v6170 = vsel %vm1892, %v6168, %v6169
        %v6171 = vrot.slane %v6071, 5
        %v6172 = vrot.slane %v6171, 4
        %v6173 = vrot.slane %v5646, 5
        %v6174 = vsel %vm1892, %v6172, %v6173
        %v6175 = vrot.slane %v6173, 4
        %v6176 = vrot.slane %v5671, 5
        %v6177 = vsel %vm1892, %v6175, %v6176
        %v6178 = vrot.slane %v6072, 5
        %v6179 = vrot.slane %v6178, 4
        %v6180 = vrot.slane %v5648, 5
        %v6181 = vsel %vm1892, %v6179, %v6180
        %v6182 = vrot.slane %v6180, 4
        %v6183 = vrot.slane %v5672, 5
        %v6184 = vsel %vm1892, %v6182, %v6183
        %v6185 = vrot.slane %v6073, 5
        %v6186 = vrot.slane %v6185, 4
        %v6187 = vrot.slane %v5650, 5
        %v6188 = vsel %vm1892, %v6186, %v6187
        %v6189 = vrot.slane %v6187, 4
        %v6190 = vrot.slane %v5673, 5
        %v6191 = vsel %vm1892, %v6189, %v6190
        %v6192 = vrot.slane %v6074, 5
        %v6193 = vrot.slane %v6192, 4
        %v6194 = vrot.slane %v5652, 5
        %v6195 = vsel %vm1892, %v6193, %v6194
        %v6196 = vrot.slane %v6194, 4
        %v6197 = vrot.slane %v5674, 5
        %v6198 = vsel %vm1892, %v6196, %v6197
        %v6199 = vrot.slane %v6075, 5
        %v6200 = vrot.slane %v6199, 4
        %v6201 = vrot.slane %v5654, 5
        %v6202 = vsel %vm1892, %v6200, %v6201
        %v6203 = vrot.slane %v6201, 4
        %v6204 = vrot.slane %v5675, 5
        %v6205 = vsel %vm1892, %v6203, %v6204
        %v6206 = vrot.slane %v6076, 5
        %v6207 = vrot.slane %v6206, 4
        %v6208 = vrot.slane %v5656, 5
        %v6209 = vsel %vm1892, %v6207, %v6208
        %v6210 = vrot.slane %v6208, 4
        %v6211 = vrot.slane %v5676, 5
        %v6212 = vsel %vm1892, %v6210, %v6211
        %v6213 = vrot.slane %v6077, 5
        %v6214 = vrot.slane %v6213, 4
        %v6215 = vrot.slane %v5658, 5
        %v6216 = vsel %vm1892, %v6214, %v6215
        %v6217 = vrot.slane %v6215, 4
        %v6218 = vrot.slane %v5677, 5
        %v6219 = vsel %vm1892, %v6217, %v6218
        %v6220 = vrot.slane %v6078, 5
        %v6221 = vrot.slane %v6220, 4
        %v6222 = vrot.slane %v5660, 5
        %v6223 = vsel %vm1892, %v6221, %v6222
        %v6224 = vrot.slane %v6222, 4
        %v6225 = vrot.slane %v5678, 5
        %v6226 = vsel %vm1892, %v6224, %v6225
        %v6227 = vrot.slane %v6079, 5
        %v6228 = vrot.slane %v6227, 4
        %v6229 = vrot.slane %v5662, 5
        %v6230 = vsel %vm1892, %v6228, %v6229
        %v6231 = vrot.slane %v6229, 4
        %v6232 = vrot.slane %v5679, 5
        %v6233 = vsel %vm1892, %v6231, %v6232
        %v6234 = vrot.slane %v6080, 5
        %v6235 = vrot.slane %v6234, 4
        %v6236 = vrot.slane %v5664, 5
        %v6237 = vsel %vm1892, %v6235, %v6236
        %v6238 = vrot.slane %v6236, 4
        %v6239 = vrot.slane %v5680, 5
        %v6240 = vsel %vm1892, %v6238, %v6239
        %s6241 = scalar_lea.vmem [#allocation3], 24
        %v6242 = vld [vmem:[%s6241] sm:$0xf]
        %v6243 = vld [vmem:[%s6241 + $0x4] sm:$0xf]
        %v6244 = vld [vmem:[%s6241 + $0xc] sm:$0xf]
        %v6245 = vld [vmem:[%s6241 + $0x10] sm:$0xf]
        %v6246 = vld [vmem:[%s6241 + $0x18] sm:$0xf]
        %v6247 = vld [vmem:[%s6241 + $0x1c] sm:$0xf]
        %v6248 = vld [vmem:[%s6241 + $0x24] sm:$0xf]
        %v6249 = vld [vmem:[%s6241 + $0x28] sm:$0xf]
        %v6250 = vld [vmem:[%s6241 + $0x30] sm:$0xf]
        %v6251 = vld [vmem:[%s6241 + $0x34] sm:$0xf]
        %v6252 = vld [vmem:[%s6241 + $0x3c] sm:$0xf]
        %v6253 = vld [vmem:[%s6241 + $0x40] sm:$0xf]
        %v6254 = vld [vmem:[%s6241 + $0x48] sm:$0xf]
        %v6255 = vld [vmem:[%s6241 + $0x4c] sm:$0xf]
        %v6256 = vld [vmem:[%s6241 + $0x54] sm:$0xf]
        %v6257 = vld [vmem:[%s6241 + $0x58] sm:$0xf]
        %v6258 = vld [vmem:[%s6241 + $0x60] sm:$0xf]
        %v6259 = vld [vmem:[%s6241 + $0x64] sm:$0xf]
        %v6260 = vld [vmem:[%s6241 + $0x6c] sm:$0xf]
        %v6261 = vld [vmem:[%s6241 + $0x70] sm:$0xf]
        %v6262 = vld [vmem:[%s6241 + $0x78] sm:$0xf]
        %v6263 = vld [vmem:[%s6241 + $0x7c] sm:$0xf]
        %v6264 = vld [vmem:[%s6241 + $0x84] sm:$0xf]
        %v6265 = vld [vmem:[%s6241 + $0x88] sm:$0xf]
        %v6266 = vld [vmem:[%s6241 + $0x90] sm:$0xf]
        %v6267 = vld [vmem:[%s6241 + $0x94] sm:$0xf]
        %v6268 = vld [vmem:[%s6241 + $0x9c] sm:$0xf]
        %v6269 = vld [vmem:[%s6241 + $0xa0] sm:$0xf]
        %v6270 = vld [vmem:[%s6241 + $0xa8] sm:$0xf]
        %v6271 = vld [vmem:[%s6241 + $0xac] sm:$0xf]
        %v6272 = vld [vmem:[%s6241 + $0xb4] sm:$0xf]
        %v6273 = vld [vmem:[%s6241 + $0xb8] sm:$0xf]
        %v6274 = vld [vmem:[%s6241 + $0x8] sm:$0x1]
        %v6275 = vld [vmem:[%s6241 + $0x14] sm:$0x1]
        %v6276 = vld [vmem:[%s6241 + $0x20] sm:$0x1]
        %v6277 = vld [vmem:[%s6241 + $0x2c] sm:$0x1]
        %v6278 = vld [vmem:[%s6241 + $0x38] sm:$0x1]
        %v6279 = vld [vmem:[%s6241 + $0x44] sm:$0x1]
        %v6280 = vld [vmem:[%s6241 + $0x50] sm:$0x1]
        %v6281 = vld [vmem:[%s6241 + $0x5c] sm:$0x1]
        %v6282 = vld [vmem:[%s6241 + $0x68] sm:$0x1]
        %v6283 = vld [vmem:[%s6241 + $0x74] sm:$0x1]
        %v6284 = vld [vmem:[%s6241 + $0x80] sm:$0x1]
        %v6285 = vld [vmem:[%s6241 + $0x8c] sm:$0x1]
        %v6286 = vld [vmem:[%s6241 + $0x98] sm:$0x1]
        %v6287 = vld [vmem:[%s6241 + $0xa4] sm:$0x1]
        %v6288 = vld [vmem:[%s6241 + $0xb0] sm:$0x1]
        %v6289 = vld [vmem:[%s6241 + $0xbc] sm:$0x1]
        %v6291 = vshrl.u32 %v6242, 16
        %v6293 = vrot.slane %v6291, 4
        %v6294 = vshll.u32 %v6242, 16
        %v6296 = vrot.slane %v6294, 5
        %v6297 = vor.u32 %v6293, %v6296
        %v6298 = vrot.slane %v6297, 4
        %v6300 = vshll.u32 %v6243, 16
        %v6302 = vrot.slane %v6300, 5
        %v6303 = vsel %vm1441, %v6298, %v6302
        %v6304 = vshrl.u32 %v6243, 16
        %v6306 = vrot.slane %v6304, 4
        %v6307 = vor.u32 %v6306, %v6302
        %v6308 = vrot.slane %v6307, 4
        %v6310 = vshll.u32 %v6274, 16
        %v6312 = vrot.slane %v6310, 5
        %v6313 = vsel %vm1441, %v6308, %v6312
        %v6315 = vshrl.u32 %v6244, 16
        %v6317 = vrot.slane %v6315, 4
        %v6318 = vshll.u32 %v6244, 16
        %v6320 = vrot.slane %v6318, 5
        %v6321 = vor.u32 %v6317, %v6320
        %v6322 = vrot.slane %v6321, 4
        %v6324 = vshll.u32 %v6245, 16
        %v6326 = vrot.slane %v6324, 5
        %v6327 = vsel %vm1441, %v6322, %v6326
        %v6328 = vshrl.u32 %v6245, 16
        %v6330 = vrot.slane %v6328, 4
        %v6331 = vor.u32 %v6330, %v6326
        %v6332 = vrot.slane %v6331, 4
        %v6334 = vshll.u32 %v6275, 16
        %v6336 = vrot.slane %v6334, 5
        %v6337 = vsel %vm1441, %v6332, %v6336
        %v6339 = vshrl.u32 %v6246, 16
        %v6341 = vrot.slane %v6339, 4
        %v6342 = vshll.u32 %v6246, 16
        %v6344 = vrot.slane %v6342, 5
        %v6345 = vor.u32 %v6341, %v6344
        %v6346 = vrot.slane %v6345, 4
        %v6348 = vshll.u32 %v6247, 16
        %v6350 = vrot.slane %v6348, 5
        %v6351 = vsel %vm1441, %v6346, %v6350
        %v6352 = vshrl.u32 %v6247, 16
        %v6354 = vrot.slane %v6352, 4
        %v6355 = vor.u32 %v6354, %v6350
        %v6356 = vrot.slane %v6355, 4
        %v6358 = vshll.u32 %v6276, 16
        %v6360 = vrot.slane %v6358, 5
        %v6361 = vsel %vm1441, %v6356, %v6360
        %v6363 = vshrl.u32 %v6248, 16
        %v6365 = vrot.slane %v6363, 4
        %v6366 = vshll.u32 %v6248, 16
        %v6368 = vrot.slane %v6366, 5
        %v6369 = vor.u32 %v6365, %v6368
        %v6370 = vrot.slane %v6369, 4
        %v6372 = vshll.u32 %v6249, 16
        %v6374 = vrot.slane %v6372, 5
        %v6375 = vsel %vm1441, %v6370, %v6374
        %v6376 = vshrl.u32 %v6249, 16
        %v6378 = vrot.slane %v6376, 4
        %v6379 = vor.u32 %v6378, %v6374
        %v6380 = vrot.slane %v6379, 4
        %v6382 = vshll.u32 %v6277, 16
        %v6384 = vrot.slane %v6382, 5
        %v6385 = vsel %vm1441, %v6380, %v6384
        %v6387 = vshrl.u32 %v6250, 16
        %v6389 = vrot.slane %v6387, 4
        %v6390 = vshll.u32 %v6250, 16
        %v6392 = vrot.slane %v6390, 5
        %v6393 = vor.u32 %v6389, %v6392
        %v6394 = vrot.slane %v6393, 4
        %v6396 = vshll.u32 %v6251, 16
        %v6398 = vrot.slane %v6396, 5
        %v6399 = vsel %vm1441, %v6394, %v6398
        %v6400 = vshrl.u32 %v6251, 16
        %v6402 = vrot.slane %v6400, 4
        %v6403 = vor.u32 %v6402, %v6398
        %v6404 = vrot.slane %v6403, 4
        %v6406 = vshll.u32 %v6278, 16
        %v6408 = vrot.slane %v6406, 5
        %v6409 = vsel %vm1441, %v6404, %v6408
        %v6411 = vshrl.u32 %v6252, 16
        %v6413 = vrot.slane %v6411, 4
        %v6414 = vshll.u32 %v6252, 16
        %v6416 = vrot.slane %v6414, 5
        %v6417 = vor.u32 %v6413, %v6416
        %v6418 = vrot.slane %v6417, 4
        %v6420 = vshll.u32 %v6253, 16
        %v6422 = vrot.slane %v6420, 5
        %v6423 = vsel %vm1441, %v6418, %v6422
        %v6424 = vshrl.u32 %v6253, 16
        %v6426 = vrot.slane %v6424, 4
        %v6427 = vor.u32 %v6426, %v6422
        %v6428 = vrot.slane %v6427, 4
        %v6430 = vshll.u32 %v6279, 16
        %v6432 = vrot.slane %v6430, 5
        %v6433 = vsel %vm1441, %v6428, %v6432
        %v6435 = vshrl.u32 %v6254, 16
        %v6437 = vrot.slane %v6435, 4
        %v6438 = vshll.u32 %v6254, 16
        %v6440 = vrot.slane %v6438, 5
        %v6441 = vor.u32 %v6437, %v6440
        %v6442 = vrot.slane %v6441, 4
        %v6444 = vshll.u32 %v6255, 16
        %v6446 = vrot.slane %v6444, 5
        %v6447 = vsel %vm1441, %v6442, %v6446
        %v6448 = vshrl.u32 %v6255, 16
        %v6450 = vrot.slane %v6448, 4
        %v6451 = vor.u32 %v6450, %v6446
        %v6452 = vrot.slane %v6451, 4
        %v6454 = vshll.u32 %v6280, 16
        %v6456 = vrot.slane %v6454, 5
        %v6457 = vsel %vm1441, %v6452, %v6456
        %v6459 = vshrl.u32 %v6256, 16
        %v6461 = vrot.slane %v6459, 4
        %v6462 = vshll.u32 %v6256, 16
        %v6464 = vrot.slane %v6462, 5
        %v6465 = vor.u32 %v6461, %v6464
        %v6466 = vrot.slane %v6465, 4
        %v6468 = vshll.u32 %v6257, 16
        %v6470 = vrot.slane %v6468, 5
        %v6471 = vsel %vm1441, %v6466, %v6470
        %v6472 = vshrl.u32 %v6257, 16
        %v6474 = vrot.slane %v6472, 4
        %v6475 = vor.u32 %v6474, %v6470
        %v6476 = vrot.slane %v6475, 4
        %v6478 = vshll.u32 %v6281, 16
        %v6480 = vrot.slane %v6478, 5
        %v6481 = vsel %vm1441, %v6476, %v6480
        %v6483 = vshrl.u32 %v6258, 16
        %v6485 = vrot.slane %v6483, 4
        %v6486 = vshll.u32 %v6258, 16
        %v6488 = vrot.slane %v6486, 5
        %v6489 = vor.u32 %v6485, %v6488
        %v6490 = vrot.slane %v6489, 4
        %v6492 = vshll.u32 %v6259, 16
        %v6494 = vrot.slane %v6492, 5
        %v6495 = vsel %vm1441, %v6490, %v6494
        %v6496 = vshrl.u32 %v6259, 16
        %v6498 = vrot.slane %v6496, 4
        %v6499 = vor.u32 %v6498, %v6494
        %v6500 = vrot.slane %v6499, 4
        %v6502 = vshll.u32 %v6282, 16
        %v6504 = vrot.slane %v6502, 5
        %v6505 = vsel %vm1441, %v6500, %v6504
        %v6507 = vshrl.u32 %v6260, 16
        %v6509 = vrot.slane %v6507, 4
        %v6510 = vshll.u32 %v6260, 16
        %v6512 = vrot.slane %v6510, 5
        %v6513 = vor.u32 %v6509, %v6512
        %v6514 = vrot.slane %v6513, 4
        %v6516 = vshll.u32 %v6261, 16
        %v6518 = vrot.slane %v6516, 5
        %v6519 = vsel %vm1441, %v6514, %v6518
        %v6520 = vshrl.u32 %v6261, 16
        %v6522 = vrot.slane %v6520, 4
        %v6523 = vor.u32 %v6522, %v6518
        %v6524 = vrot.slane %v6523, 4
        %v6526 = vshll.u32 %v6283, 16
        %v6528 = vrot.slane %v6526, 5
        %v6529 = vsel %vm1441, %v6524, %v6528
        %v6531 = vshrl.u32 %v6262, 16
        %v6533 = vrot.slane %v6531, 4
        %v6534 = vshll.u32 %v6262, 16
        %v6536 = vrot.slane %v6534, 5
        %v6537 = vor.u32 %v6533, %v6536
        %v6538 = vrot.slane %v6537, 4
        %v6540 = vshll.u32 %v6263, 16
        %v6542 = vrot.slane %v6540, 5
        %v6543 = vsel %vm1441, %v6538, %v6542
        %v6544 = vshrl.u32 %v6263, 16
        %v6546 = vrot.slane %v6544, 4
        %v6547 = vor.u32 %v6546, %v6542
        %v6548 = vrot.slane %v6547, 4
        %v6550 = vshll.u32 %v6284, 16
        %v6552 = vrot.slane %v6550, 5
        %v6553 = vsel %vm1441, %v6548, %v6552
        %v6555 = vshrl.u32 %v6264, 16
        %v6557 = vrot.slane %v6555, 4
        %v6558 = vshll.u32 %v6264, 16
        %v6560 = vrot.slane %v6558, 5
        %v6561 = vor.u32 %v6557, %v6560
        %v6562 = vrot.slane %v6561, 4
        %v6564 = vshll.u32 %v6265, 16
        %v6566 = vrot.slane %v6564, 5
        %v6567 = vsel %vm1441, %v6562, %v6566
        %v6568 = vshrl.u32 %v6265, 16
        %v6570 = vrot.slane %v6568, 4
        %v6571 = vor.u32 %v6570, %v6566
        %v6572 = vrot.slane %v6571, 4
        %v6574 = vshll.u32 %v6285, 16
        %v6576 = vrot.slane %v6574, 5
        %v6577 = vsel %vm1441, %v6572, %v6576
        %v6579 = vshrl.u32 %v6266, 16
        %v6581 = vrot.slane %v6579, 4
        %v6582 = vshll.u32 %v6266, 16
        %v6584 = vrot.slane %v6582, 5
        %v6585 = vor.u32 %v6581, %v6584
        %v6586 = vrot.slane %v6585, 4
        %v6588 = vshll.u32 %v6267, 16
        %v6590 = vrot.slane %v6588, 5
        %v6591 = vsel %vm1441, %v6586, %v6590
        %v6592 = vshrl.u32 %v6267, 16
        %v6594 = vrot.slane %v6592, 4
        %v6595 = vor.u32 %v6594, %v6590
        %v6596 = vrot.slane %v6595, 4
        %v6598 = vshll.u32 %v6286, 16
        %v6600 = vrot.slane %v6598, 5
        %v6601 = vsel %vm1441, %v6596, %v6600
        %v6603 = vshrl.u32 %v6268, 16
        %v6605 = vrot.slane %v6603, 4
        %v6606 = vshll.u32 %v6268, 16
        %v6608 = vrot.slane %v6606, 5
        %v6609 = vor.u32 %v6605, %v6608
        %v6610 = vrot.slane %v6609, 4
        %v6612 = vshll.u32 %v6269, 16
        %v6614 = vrot.slane %v6612, 5
        %v6615 = vsel %vm1441, %v6610, %v6614
        %v6616 = vshrl.u32 %v6269, 16
        %v6618 = vrot.slane %v6616, 4
        %v6619 = vor.u32 %v6618, %v6614
        %v6620 = vrot.slane %v6619, 4
        %v6622 = vshll.u32 %v6287, 16
        %v6624 = vrot.slane %v6622, 5
        %v6625 = vsel %vm1441, %v6620, %v6624
        %v6627 = vshrl.u32 %v6270, 16
        %v6629 = vrot.slane %v6627, 4
        %v6630 = vshll.u32 %v6270, 16
        %v6632 = vrot.slane %v6630, 5
        %v6633 = vor.u32 %v6629, %v6632
        %v6634 = vrot.slane %v6633, 4
        %v6636 = vshll.u32 %v6271, 16
        %v6638 = vrot.slane %v6636, 5
        %v6639 = vsel %vm1441, %v6634, %v6638
        %v6640 = vshrl.u32 %v6271, 16
        %v6642 = vrot.slane %v6640, 4
        %v6643 = vor.u32 %v6642, %v6638
        %v6644 = vrot.slane %v6643, 4
        %v6646 = vshll.u32 %v6288, 16
        %v6648 = vrot.slane %v6646, 5
        %v6649 = vsel %vm1441, %v6644, %v6648
        %v6651 = vshrl.u32 %v6272, 16
        %v6653 = vrot.slane %v6651, 4
        %v6654 = vshll.u32 %v6272, 16
        %v6656 = vrot.slane %v6654, 5
        %v6657 = vor.u32 %v6653, %v6656
        %v6658 = vrot.slane %v6657, 4
        %v6660 = vshll.u32 %v6273, 16
        %v6662 = vrot.slane %v6660, 5
        %v6663 = vsel %vm1441, %v6658, %v6662
        %v6664 = vshrl.u32 %v6273, 16
        %v6666 = vrot.slane %v6664, 4
        %v6667 = vor.u32 %v6666, %v6662
        %v6668 = vrot.slane %v6667, 4
        %v6670 = vshll.u32 %v6289, 16
        %v6672 = vrot.slane %v6670, 5
        %v6673 = vsel %vm1441, %v6668, %v6672
        %v6674 = vld [vmem:[%s6241] sm:$0xe]
        %v6675 = vld [vmem:[%s6241 + $0xc] sm:$0xe]
        %v6676 = vld [vmem:[%s6241 + $0x18] sm:$0xe]
        %v6677 = vld [vmem:[%s6241 + $0x24] sm:$0xe]
        %v6678 = vld [vmem:[%s6241 + $0x30] sm:$0xe]
        %v6679 = vld [vmem:[%s6241 + $0x3c] sm:$0xe]
        %v6680 = vld [vmem:[%s6241 + $0x48] sm:$0xe]
        %v6681 = vld [vmem:[%s6241 + $0x54] sm:$0xe]
        %v6682 = vld [vmem:[%s6241 + $0x60] sm:$0xe]
        %v6683 = vld [vmem:[%s6241 + $0x6c] sm:$0xe]
        %v6684 = vld [vmem:[%s6241 + $0x78] sm:$0xe]
        %v6685 = vld [vmem:[%s6241 + $0x84] sm:$0xe]
        %v6686 = vld [vmem:[%s6241 + $0x90] sm:$0xe]
        %v6687 = vld [vmem:[%s6241 + $0x9c] sm:$0xe]
        %v6688 = vld [vmem:[%s6241 + $0xa8] sm:$0xe]
        %v6689 = vld [vmem:[%s6241 + $0xb4] sm:$0xe]
        %v6738 = vrot.slane %v6674, 5
        %v6739 = vrot.slane %v6738, 4
        %v6740 = vrot.slane %v6243, 5
        %v6741 = vsel %vm1892, %v6739, %v6740
        %v6742 = vrot.slane %v6740, 4
        %v6743 = vrot.slane %v6274, 5
        %v6744 = vsel %vm1892, %v6742, %v6743
        %v6745 = vrot.slane %v6675, 5
        %v6746 = vrot.slane %v6745, 4
        %v6747 = vrot.slane %v6245, 5
        %v6748 = vsel %vm1892, %v6746, %v6747
        %v6749 = vrot.slane %v6747, 4
        %v6750 = vrot.slane %v6275, 5
        %v6751 = vsel %vm1892, %v6749, %v6750
        %v6752 = vrot.slane %v6676, 5
        %v6753 = vrot.slane %v6752, 4
        %v6754 = vrot.slane %v6247, 5
        %v6755 = vsel %vm1892, %v6753, %v6754
        %v6756 = vrot.slane %v6754, 4
        %v6757 = vrot.slane %v6276, 5
        %v6758 = vsel %vm1892, %v6756, %v6757
        %v6759 = vrot.slane %v6677, 5
        %v6760 = vrot.slane %v6759, 4
        %v6761 = vrot.slane %v6249, 5
        %v6762 = vsel %vm1892, %v6760, %v6761
        %v6763 = vrot.slane %v6761, 4
        %v6764 = vrot.slane %v6277, 5
        %v6765 = vsel %vm1892, %v6763, %v6764
        %v6766 = vrot.slane %v6678, 5
        %v6767 = vrot.slane %v6766, 4
        %v6768 = vrot.slane %v6251, 5
        %v6769 = vsel %vm1892, %v6767, %v6768
        %v6770 = vrot.slane %v6768, 4
        %v6771 = vrot.slane %v6278, 5
        %v6772 = vsel %vm1892, %v6770, %v6771
        %v6773 = vrot.slane %v6679, 5
        %v6774 = vrot.slane %v6773, 4
        %v6775 = vrot.slane %v6253, 5
        %v6776 = vsel %vm1892, %v6774, %v6775
        %v6777 = vrot.slane %v6775, 4
        %v6778 = vrot.slane %v6279, 5
        %v6779 = vsel %vm1892, %v6777, %v6778
        %v6780 = vrot.slane %v6680, 5
        %v6781 = vrot.slane %v6780, 4
        %v6782 = vrot.slane %v6255, 5
        %v6783 = vsel %vm1892, %v6781, %v6782
        %v6784 = vrot.slane %v6782, 4
        %v6785 = vrot.slane %v6280, 5
        %v6786 = vsel %vm1892, %v6784, %v6785
        %v6787 = vrot.slane %v6681, 5
        %v6788 = vrot.slane %v6787, 4
        %v6789 = vrot.slane %v6257, 5
        %v6790 = vsel %vm1892, %v6788, %v6789
        %v6791 = vrot.slane %v6789, 4
        %v6792 = vrot.slane %v6281, 5
        %v6793 = vsel %vm1892, %v6791, %v6792
        %v6794 = vrot.slane %v6682, 5
        %v6795 = vrot.slane %v6794, 4
        %v6796 = vrot.slane %v6259, 5
        %v6797 = vsel %vm1892, %v6795, %v6796
        %v6798 = vrot.slane %v6796, 4
        %v6799 = vrot.slane %v6282, 5
        %v6800 = vsel %vm1892, %v6798, %v6799
        %v6801 = vrot.slane %v6683, 5
        %v6802 = vrot.slane %v6801, 4
        %v6803 = vrot.slane %v6261, 5
        %v6804 = vsel %vm1892, %v6802, %v6803
        %v6805 = vrot.slane %v6803, 4
        %v6806 = vrot.slane %v6283, 5
        %v6807 = vsel %vm1892, %v6805, %v6806
        %v6808 = vrot.slane %v6684, 5
        %v6809 = vrot.slane %v6808, 4
        %v6810 = vrot.slane %v6263, 5
        %v6811 = vsel %vm1892, %v6809, %v6810
        %v6812 = vrot.slane %v6810, 4
        %v6813 = vrot.slane %v6284, 5
        %v6814 = vsel %vm1892, %v6812, %v6813
        %v6815 = vrot.slane %v6685, 5
        %v6816 = vrot.slane %v6815, 4
        %v6817 = vrot.slane %v6265, 5
        %v6818 = vsel %vm1892, %v6816, %v6817
        %v6819 = vrot.slane %v6817, 4
        %v6820 = vrot.slane %v6285, 5
        %v6821 = vsel %vm1892, %v6819, %v6820
        %v6822 = vrot.slane %v6686, 5
        %v6823 = vrot.slane %v6822, 4
        %v6824 = vrot.slane %v6267, 5
        %v6825 = vsel %vm1892, %v6823, %v6824
        %v6826 = vrot.slane %v6824, 4
        %v6827 = vrot.slane %v6286, 5
        %v6828 = vsel %vm1892, %v6826, %v6827
        %v6829 = vrot.slane %v6687, 5
        %v6830 = vrot.slane %v6829, 4
        %v6831 = vrot.slane %v6269, 5
        %v6832 = vsel %vm1892, %v6830, %v6831
        %v6833 = vrot.slane %v6831, 4
        %v6834 = vrot.slane %v6287, 5
        %v6835 = vsel %vm1892, %v6833, %v6834
        %v6836 = vrot.slane %v6688, 5
        %v6837 = vrot.slane %v6836, 4
        %v6838 = vrot.slane %v6271, 5
        %v6839 = vsel %vm1892, %v6837, %v6838
        %v6840 = vrot.slane %v6838, 4
        %v6841 = vrot.slane %v6288, 5
        %v6842 = vsel %vm1892, %v6840, %v6841
        %v6843 = vrot.slane %v6689, 5
        %v6844 = vrot.slane %v6843, 4
        %v6845 = vrot.slane %v6273, 5
        %v6846 = vsel %vm1892, %v6844, %v6845
        %v6847 = vrot.slane %v6845, 4
        %v6848 = vrot.slane %v6289, 5
        %v6849 = vsel %vm1892, %v6847, %v6848
        %v6866 = vunpack.c.l.b16 %v5024
        %v6867 = vunpack.c.l.b16 %v5025
        %v6868 = vunpack.c.l.b16 %v5026
        %v6869 = vunpack.c.l.b16 %v5027
        %v6870 = vunpack.c.l.b16 %v5028
        %v6871 = vunpack.c.l.b16 %v5029
        %v6872 = vunpack.c.l.b16 %v5030
        %v6873 = vunpack.c.l.b16 %v5031
        %v6874 = vunpack.c.l.b16 %v5032
        %v6875 = vunpack.c.l.b16 %v5033
        %v6876 = vunpack.c.l.b16 %v5034
        %v6877 = vunpack.c.l.b16 %v5035
        %v6878 = vunpack.c.l.b16 %v5036
        %v6879 = vunpack.c.l.b16 %v5037
        %v6880 = vunpack.c.l.b16 %v5038
        %v6881 = vunpack.c.l.b16 %v5039
        %v6882 = vunpack.c.l.b16 %v5040
        %v6883 = vunpack.c.l.b16 %v5041
        %v6884 = vunpack.c.l.b16 %v5042
        %v6885 = vunpack.c.l.b16 %v5043
        %v6886 = vunpack.c.l.b16 %v5044
        %v6887 = vunpack.c.l.b16 %v5045
        %v6888 = vunpack.c.l.b16 %v5046
        %v6889 = vunpack.c.l.b16 %v5047
        %v6890 = vunpack.c.l.b16 %v5048
        %v6891 = vunpack.c.l.b16 %v5049
        %v6892 = vunpack.c.l.b16 %v5050
        %v6893 = vunpack.c.l.b16 %v5051
        %v6894 = vunpack.c.l.b16 %v5052
        %v6895 = vunpack.c.l.b16 %v5053
        %v6896 = vunpack.c.l.b16 %v5054
        %v6897 = vunpack.c.l.b16 %v5055
        %v6898 = vpack.c.b16 %v6867, %v6866
        %v6899 = vpack.c.b16 %v6869, %v6868
        %v6900 = vpack.c.b16 %v6871, %v6870
        %v6901 = vpack.c.b16 %v6873, %v6872
        %v6902 = vpack.c.b16 %v6875, %v6874
        %v6903 = vpack.c.b16 %v6877, %v6876
        %v6904 = vpack.c.b16 %v6879, %v6878
        %v6905 = vpack.c.b16 %v6881, %v6880
        %v6906 = vpack.c.b16 %v6883, %v6882
        %v6907 = vpack.c.b16 %v6885, %v6884
        %v6908 = vpack.c.b16 %v6887, %v6886
        %v6909 = vpack.c.b16 %v6889, %v6888
        %v6910 = vpack.c.b16 %v6891, %v6890
        %v6911 = vpack.c.b16 %v6893, %v6892
        %v6912 = vpack.c.b16 %v6895, %v6894
        %v6913 = vpack.c.b16 %v6897, %v6896
        %v6914 = vunpack.c.l.b16 %v5085
        %v6915 = vunpack.c.l.b16 %v5095
        %v6916 = vunpack.c.l.b16 %v5109
        %v6917 = vunpack.c.l.b16 %v5119
        %v6918 = vunpack.c.l.b16 %v5133
        %v6919 = vunpack.c.l.b16 %v5143
        %v6920 = vunpack.c.l.b16 %v5157
        %v6921 = vunpack.c.l.b16 %v5167
        %v6922 = vunpack.c.l.b16 %v5181
        %v6923 = vunpack.c.l.b16 %v5191
        %v6924 = vunpack.c.l.b16 %v5205
        %v6925 = vunpack.c.l.b16 %v5215
        %v6926 = vunpack.c.l.b16 %v5229
        %v6927 = vunpack.c.l.b16 %v5239
        %v6928 = vunpack.c.l.b16 %v5253
        %v6929 = vunpack.c.l.b16 %v5263
        %v6930 = vunpack.c.l.b16 %v5277
        %v6931 = vunpack.c.l.b16 %v5287
        %v6932 = vunpack.c.l.b16 %v5301
        %v6933 = vunpack.c.l.b16 %v5311
        %v6934 = vunpack.c.l.b16 %v5325
        %v6935 = vunpack.c.l.b16 %v5335
        %v6936 = vunpack.c.l.b16 %v5349
        %v6937 = vunpack.c.l.b16 %v5359
        %v6938 = vunpack.c.l.b16 %v5373
        %v6939 = vunpack.c.l.b16 %v5383
        %v6940 = vunpack.c.l.b16 %v5397
        %v6941 = vunpack.c.l.b16 %v5407
        %v6942 = vunpack.c.l.b16 %v5421
        %v6943 = vunpack.c.l.b16 %v5431
        %v6944 = vunpack.c.l.b16 %v5445
        %v6945 = vunpack.c.l.b16 %v5455
        %v6946 = vpack.c.b16 %v6915, %v6914
        %v6947 = vpack.c.b16 %v6917, %v6916
        %v6948 = vpack.c.b16 %v6919, %v6918
        %v6949 = vpack.c.b16 %v6921, %v6920
        %v6950 = vpack.c.b16 %v6923, %v6922
        %v6951 = vpack.c.b16 %v6925, %v6924
        %v6952 = vpack.c.b16 %v6927, %v6926
        %v6953 = vpack.c.b16 %v6929, %v6928
        %v6954 = vpack.c.b16 %v6931, %v6930
        %v6955 = vpack.c.b16 %v6933, %v6932
        %v6956 = vpack.c.b16 %v6935, %v6934
        %v6957 = vpack.c.b16 %v6937, %v6936
        %v6958 = vpack.c.b16 %v6939, %v6938
        %v6959 = vpack.c.b16 %v6941, %v6940
        %v6960 = vpack.c.b16 %v6943, %v6942
        %v6961 = vpack.c.b16 %v6945, %v6944
        %6962 = vrot.lane.b32.xlu0 %v6946, 4
        %v6963 = vpop.permute.xlu0 %6962
        %6964 = vrot.lane.b32.xlu0 %v6947, 4
        %v6965 = vpop.permute.xlu0 %6964
        %6966 = vrot.lane.b32.xlu0 %v6948, 4
        %v6967 = vpop.permute.xlu0 %6966
        %6968 = vrot.lane.b32.xlu0 %v6949, 4
        %v6969 = vpop.permute.xlu0 %6968
        %6970 = vrot.lane.b32.xlu0 %v6950, 4
        %v6971 = vpop.permute.xlu0 %6970
        %6972 = vrot.lane.b32.xlu0 %v6951, 4
        %v6973 = vpop.permute.xlu0 %6972
        %6974 = vrot.lane.b32.xlu0 %v6952, 4
        %v6975 = vpop.permute.xlu0 %6974
        %6976 = vrot.lane.b32.xlu0 %v6953, 4
        %v6977 = vpop.permute.xlu0 %6976
        %6978 = vrot.lane.b32.xlu0 %v6954, 4
        %v6979 = vpop.permute.xlu0 %6978
        %6980 = vrot.lane.b32.xlu0 %v6955, 4
        %v6981 = vpop.permute.xlu0 %6980
        %6982 = vrot.lane.b32.xlu0 %v6956, 4
        %v6983 = vpop.permute.xlu0 %6982
        %6984 = vrot.lane.b32.xlu0 %v6957, 4
        %v6985 = vpop.permute.xlu0 %6984
        %6986 = vrot.lane.b32.xlu0 %v6958, 4
        %v6987 = vpop.permute.xlu0 %6986
        %6988 = vrot.lane.b32.xlu0 %v6959, 4
        %v6989 = vpop.permute.xlu0 %6988
        %6990 = vrot.lane.b32.xlu0 %v6960, 4
        %v6991 = vpop.permute.xlu0 %6990
        %6992 = vrot.lane.b32.xlu0 %v6961, 4
        %v6993 = vpop.permute.xlu0 %6992
        %v6994 = vunpack.c.l.b16 %v5523
        %v6995 = vunpack.c.l.b16 %v5526
        %v6996 = vunpack.c.l.b16 %v5530
        %v6997 = vunpack.c.l.b16 %v5533
        %v6998 = vunpack.c.l.b16 %v5537
        %v6999 = vunpack.c.l.b16 %v5540
        %v7000 = vunpack.c.l.b16 %v5544
        %v7001 = vunpack.c.l.b16 %v5547
        %v7002 = vunpack.c.l.b16 %v5551
        %v7003 = vunpack.c.l.b16 %v5554
        %v7004 = vunpack.c.l.b16 %v5558
        %v7005 = vunpack.c.l.b16 %v5561
        %v7006 = vunpack.c.l.b16 %v5565
        %v7007 = vunpack.c.l.b16 %v5568
        %v7008 = vunpack.c.l.b16 %v5572
        %v7009 = vunpack.c.l.b16 %v5575
        %v7010 = vunpack.c.l.b16 %v5579
        %v7011 = vunpack.c.l.b16 %v5582
        %v7012 = vunpack.c.l.b16 %v5586
        %v7013 = vunpack.c.l.b16 %v5589
        %v7014 = vunpack.c.l.b16 %v5593
        %v7015 = vunpack.c.l.b16 %v5596
        %v7016 = vunpack.c.l.b16 %v5600
        %v7017 = vunpack.c.l.b16 %v5603
        %v7018 = vunpack.c.l.b16 %v5607
        %v7019 = vunpack.c.l.b16 %v5610
        %v7020 = vunpack.c.l.b16 %v5614
        %v7021 = vunpack.c.l.b16 %v5617
        %v7022 = vunpack.c.l.b16 %v5621
        %v7023 = vunpack.c.l.b16 %v5624
        %v7024 = vunpack.c.l.b16 %v5628
        %v7025 = vunpack.c.l.b16 %v5631
        %v7026 = vpack.c.b16 %v6995, %v6994
        %v7027 = vpack.c.b16 %v6997, %v6996
        %v7028 = vpack.c.b16 %v6999, %v6998
        %v7029 = vpack.c.b16 %v7001, %v7000
        %v7030 = vpack.c.b16 %v7003, %v7002
        %v7031 = vpack.c.b16 %v7005, %v7004
        %v7032 = vpack.c.b16 %v7007, %v7006
        %v7033 = vpack.c.b16 %v7009, %v7008
        %v7034 = vpack.c.b16 %v7011, %v7010
        %v7035 = vpack.c.b16 %v7013, %v7012
        %v7036 = vpack.c.b16 %v7015, %v7014
        %v7037 = vpack.c.b16 %v7017, %v7016
        %v7038 = vpack.c.b16 %v7019, %v7018
        %v7039 = vpack.c.b16 %v7021, %v7020
        %v7040 = vpack.c.b16 %v7023, %v7022
        %v7041 = vpack.c.b16 %v7025, %v7024
        %7042 = vrot.lane.b32.xlu0 %v7026, 8
        %v7043 = vpop.permute.xlu0 %7042
        %7044 = vrot.lane.b32.xlu0 %v7027, 8
        %v7045 = vpop.permute.xlu0 %7044
        %7046 = vrot.lane.b32.xlu0 %v7028, 8
        %v7047 = vpop.permute.xlu0 %7046
        %7048 = vrot.lane.b32.xlu0 %v7029, 8
        %v7049 = vpop.permute.xlu0 %7048
        %7050 = vrot.lane.b32.xlu0 %v7030, 8
        %v7051 = vpop.permute.xlu0 %7050
        %7052 = vrot.lane.b32.xlu0 %v7031, 8
        %v7053 = vpop.permute.xlu0 %7052
        %7054 = vrot.lane.b32.xlu0 %v7032, 8
        %v7055 = vpop.permute.xlu0 %7054
        %7056 = vrot.lane.b32.xlu0 %v7033, 8
        %v7057 = vpop.permute.xlu0 %7056
        %7058 = vrot.lane.b32.xlu0 %v7034, 8
        %v7059 = vpop.permute.xlu0 %7058
        %7060 = vrot.lane.b32.xlu0 %v7035, 8
        %v7061 = vpop.permute.xlu0 %7060
        %7062 = vrot.lane.b32.xlu0 %v7036, 8
        %v7063 = vpop.permute.xlu0 %7062
        %7064 = vrot.lane.b32.xlu0 %v7037, 8
        %v7065 = vpop.permute.xlu0 %7064
        %7066 = vrot.lane.b32.xlu0 %v7038, 8
        %v7067 = vpop.permute.xlu0 %7066
        %7068 = vrot.lane.b32.xlu0 %v7039, 8
        %v7069 = vpop.permute.xlu0 %7068
        %7070 = vrot.lane.b32.xlu0 %v7040, 8
        %v7071 = vpop.permute.xlu0 %7070
        %7072 = vrot.lane.b32.xlu0 %v7041, 8
        %v7073 = vpop.permute.xlu0 %7072
        %v7090 = vunpack.c.l.b16 %v5633
        %v7091 = vunpack.c.l.b16 %v5634
        %v7092 = vunpack.c.l.b16 %v5635
        %v7093 = vunpack.c.l.b16 %v5636
        %v7094 = vunpack.c.l.b16 %v5637
        %v7095 = vunpack.c.l.b16 %v5638
        %v7096 = vunpack.c.l.b16 %v5639
        %v7097 = vunpack.c.l.b16 %v5640
        %v7098 = vunpack.c.l.b16 %v5641
        %v7099 = vunpack.c.l.b16 %v5642
        %v7100 = vunpack.c.l.b16 %v5643
        %v7101 = vunpack.c.l.b16 %v5644
        %v7102 = vunpack.c.l.b16 %v5645
        %v7103 = vunpack.c.l.b16 %v5646
        %v7104 = vunpack.c.l.b16 %v5647
        %v7105 = vunpack.c.l.b16 %v5648
        %v7106 = vunpack.c.l.b16 %v5649
        %v7107 = vunpack.c.l.b16 %v5650
        %v7108 = vunpack.c.l.b16 %v5651
        %v7109 = vunpack.c.l.b16 %v5652
        %v7110 = vunpack.c.l.b16 %v5653
        %v7111 = vunpack.c.l.b16 %v5654
        %v7112 = vunpack.c.l.b16 %v5655
        %v7113 = vunpack.c.l.b16 %v5656
        %v7114 = vunpack.c.l.b16 %v5657
        %v7115 = vunpack.c.l.b16 %v5658
        %v7116 = vunpack.c.l.b16 %v5659
        %v7117 = vunpack.c.l.b16 %v5660
        %v7118 = vunpack.c.l.b16 %v5661
        %v7119 = vunpack.c.l.b16 %v5662
        %v7120 = vunpack.c.l.b16 %v5663
        %v7121 = vunpack.c.l.b16 %v5664
        %v7122 = vpack.c.b16 %v7091, %v7090
        %v7123 = vpack.c.b16 %v7093, %v7092
        %v7124 = vpack.c.b16 %v7095, %v7094
        %v7125 = vpack.c.b16 %v7097, %v7096
        %v7126 = vpack.c.b16 %v7099, %v7098
        %v7127 = vpack.c.b16 %v7101, %v7100
        %v7128 = vpack.c.b16 %v7103, %v7102
        %v7129 = vpack.c.b16 %v7105, %v7104
        %v7130 = vpack.c.b16 %v7107, %v7106
        %v7131 = vpack.c.b16 %v7109, %v7108
        %v7132 = vpack.c.b16 %v7111, %v7110
        %v7133 = vpack.c.b16 %v7113, %v7112
        %v7134 = vpack.c.b16 %v7115, %v7114
        %v7135 = vpack.c.b16 %v7117, %v7116
        %v7136 = vpack.c.b16 %v7119, %v7118
        %v7137 = vpack.c.b16 %v7121, %v7120
        %7138 = vrot.lane.b32.xlu0 %v7122, 12
        %v7139 = vpop.permute.xlu0 %7138
        %7140 = vrot.lane.b32.xlu0 %v7123, 12
        %v7141 = vpop.permute.xlu0 %7140
        %7142 = vrot.lane.b32.xlu0 %v7124, 12
        %v7143 = vpop.permute.xlu0 %7142
        %7144 = vrot.lane.b32.xlu0 %v7125, 12
        %v7145 = vpop.permute.xlu0 %7144
        %7146 = vrot.lane.b32.xlu0 %v7126, 12
        %v7147 = vpop.permute.xlu0 %7146
        %7148 = vrot.lane.b32.xlu0 %v7127, 12
        %v7149 = vpop.permute.xlu0 %7148
        %7150 = vrot.lane.b32.xlu0 %v7128, 12
        %v7151 = vpop.permute.xlu0 %7150
        %7152 = vrot.lane.b32.xlu0 %v7129, 12
        %v7153 = vpop.permute.xlu0 %7152
        %7154 = vrot.lane.b32.xlu0 %v7130, 12
        %v7155 = vpop.permute.xlu0 %7154
        %7156 = vrot.lane.b32.xlu0 %v7131, 12
        %v7157 = vpop.permute.xlu0 %7156
        %7158 = vrot.lane.b32.xlu0 %v7132, 12
        %v7159 = vpop.permute.xlu0 %7158
        %7160 = vrot.lane.b32.xlu0 %v7133, 12
        %v7161 = vpop.permute.xlu0 %7160
        %7162 = vrot.lane.b32.xlu0 %v7134, 12
        %v7163 = vpop.permute.xlu0 %7162
        %7164 = vrot.lane.b32.xlu0 %v7135, 12
        %v7165 = vpop.permute.xlu0 %7164
        %7166 = vrot.lane.b32.xlu0 %v7136, 12
        %v7167 = vpop.permute.xlu0 %7166
        %7168 = vrot.lane.b32.xlu0 %v7137, 12
        %v7169 = vpop.permute.xlu0 %7168
        %v7170 = vunpack.c.l.b16 %v5694
        %v7171 = vunpack.c.l.b16 %v5704
        %v7172 = vunpack.c.l.b16 %v5718
        %v7173 = vunpack.c.l.b16 %v5728
        %v7174 = vunpack.c.l.b16 %v5742
        %v7175 = vunpack.c.l.b16 %v5752
        %v7176 = vunpack.c.l.b16 %v5766
        %v7177 = vunpack.c.l.b16 %v5776
        %v7178 = vunpack.c.l.b16 %v5790
        %v7179 = vunpack.c.l.b16 %v5800
        %v7180 = vunpack.c.l.b16 %v5814
        %v7181 = vunpack.c.l.b16 %v5824
        %v7182 = vunpack.c.l.b16 %v5838
        %v7183 = vunpack.c.l.b16 %v5848
        %v7184 = vunpack.c.l.b16 %v5862
        %v7185 = vunpack.c.l.b16 %v5872
        %v7186 = vunpack.c.l.b16 %v5886
        %v7187 = vunpack.c.l.b16 %v5896
        %v7188 = vunpack.c.l.b16 %v5910
        %v7189 = vunpack.c.l.b16 %v5920
        %v7190 = vunpack.c.l.b16 %v5934
        %v7191 = vunpack.c.l.b16 %v5944
        %v7192 = vunpack.c.l.b16 %v5958
        %v7193 = vunpack.c.l.b16 %v5968
        %v7194 = vunpack.c.l.b16 %v5982
        %v7195 = vunpack.c.l.b16 %v5992
        %v7196 = vunpack.c.l.b16 %v6006
        %v7197 = vunpack.c.l.b16 %v6016
        %v7198 = vunpack.c.l.b16 %v6030
        %v7199 = vunpack.c.l.b16 %v6040
        %v7200 = vunpack.c.l.b16 %v6054
        %v7201 = vunpack.c.l.b16 %v6064
        %v7202 = vpack.c.b16 %v7171, %v7170
        %v7203 = vpack.c.b16 %v7173, %v7172
        %v7204 = vpack.c.b16 %v7175, %v7174
        %v7205 = vpack.c.b16 %v7177, %v7176
        %v7206 = vpack.c.b16 %v7179, %v7178
        %v7207 = vpack.c.b16 %v7181, %v7180
        %v7208 = vpack.c.b16 %v7183, %v7182
        %v7209 = vpack.c.b16 %v7185, %v7184
        %v7210 = vpack.c.b16 %v7187, %v7186
        %v7211 = vpack.c.b16 %v7189, %v7188
        %v7212 = vpack.c.b16 %v7191, %v7190
        %v7213 = vpack.c.b16 %v7193, %v7192
        %v7214 = vpack.c.b16 %v7195, %v7194
        %v7215 = vpack.c.b16 %v7197, %v7196
        %v7216 = vpack.c.b16 %v7199, %v7198
        %v7217 = vpack.c.b16 %v7201, %v7200
        %7218 = vrot.lane.b32.xlu0 %v7202, 16
        %v7219 = vpop.permute.xlu0 %7218
        %7220 = vrot.lane.b32.xlu0 %v7203, 16
        %v7221 = vpop.permute.xlu0 %7220
        %7222 = vrot.lane.b32.xlu0 %v7204, 16
        %v7223 = vpop.permute.xlu0 %7222
        %7224 = vrot.lane.b32.xlu0 %v7205, 16
        %v7225 = vpop.permute.xlu0 %7224
        %7226 = vrot.lane.b32.xlu0 %v7206, 16
        %v7227 = vpop.permute.xlu0 %7226
        %7228 = vrot.lane.b32.xlu0 %v7207, 16
        %v7229 = vpop.permute.xlu0 %7228
        %7230 = vrot.lane.b32.xlu0 %v7208, 16
        %v7231 = vpop.permute.xlu0 %7230
        %7232 = vrot.lane.b32.xlu0 %v7209, 16
        %v7233 = vpop.permute.xlu0 %7232
        %7234 = vrot.lane.b32.xlu0 %v7210, 16
        %v7235 = vpop.permute.xlu0 %7234
        %7236 = vrot.lane.b32.xlu0 %v7211, 16
        %v7237 = vpop.permute.xlu0 %7236
        %7238 = vrot.lane.b32.xlu0 %v7212, 16
        %v7239 = vpop.permute.xlu0 %7238
        %7240 = vrot.lane.b32.xlu0 %v7213, 16
        %v7241 = vpop.permute.xlu0 %7240
        %7242 = vrot.lane.b32.xlu0 %v7214, 16
        %v7243 = vpop.permute.xlu0 %7242
        %7244 = vrot.lane.b32.xlu0 %v7215, 16
        %v7245 = vpop.permute.xlu0 %7244
        %7246 = vrot.lane.b32.xlu0 %v7216, 16
        %v7247 = vpop.permute.xlu0 %7246
        %7248 = vrot.lane.b32.xlu0 %v7217, 16
        %v7249 = vpop.permute.xlu0 %7248
        %v7250 = vunpack.c.l.b16 %v6132
        %v7251 = vunpack.c.l.b16 %v6135
        %v7252 = vunpack.c.l.b16 %v6139
        %v7253 = vunpack.c.l.b16 %v6142
        %v7254 = vunpack.c.l.b16 %v6146
        %v7255 = vunpack.c.l.b16 %v6149
        %v7256 = vunpack.c.l.b16 %v6153
        %v7257 = vunpack.c.l.b16 %v6156
        %v7258 = vunpack.c.l.b16 %v6160
        %v7259 = vunpack.c.l.b16 %v6163
        %v7260 = vunpack.c.l.b16 %v6167
        %v7261 = vunpack.c.l.b16 %v6170
        %v7262 = vunpack.c.l.b16 %v6174
        %v7263 = vunpack.c.l.b16 %v6177
        %v7264 = vunpack.c.l.b16 %v6181
        %v7265 = vunpack.c.l.b16 %v6184
        %v7266 = vunpack.c.l.b16 %v6188
        %v7267 = vunpack.c.l.b16 %v6191
        %v7268 = vunpack.c.l.b16 %v6195
        %v7269 = vunpack.c.l.b16 %v6198
        %v7270 = vunpack.c.l.b16 %v6202
        %v7271 = vunpack.c.l.b16 %v6205
        %v7272 = vunpack.c.l.b16 %v6209
        %v7273 = vunpack.c.l.b16 %v6212
        %v7274 = vunpack.c.l.b16 %v6216
        %v7275 = vunpack.c.l.b16 %v6219
        %v7276 = vunpack.c.l.b16 %v6223
        %v7277 = vunpack.c.l.b16 %v6226
        %v7278 = vunpack.c.l.b16 %v6230
        %v7279 = vunpack.c.l.b16 %v6233
        %v7280 = vunpack.c.l.b16 %v6237
        %v7281 = vunpack.c.l.b16 %v6240
        %v7282 = vpack.c.b16 %v7251, %v7250
        %v7283 = vpack.c.b16 %v7253, %v7252
        %v7284 = vpack.c.b16 %v7255, %v7254
        %v7285 = vpack.c.b16 %v7257, %v7256
        %v7286 = vpack.c.b16 %v7259, %v7258
        %v7287 = vpack.c.b16 %v7261, %v7260
        %v7288 = vpack.c.b16 %v7263, %v7262
        %v7289 = vpack.c.b16 %v7265, %v7264
        %v7290 = vpack.c.b16 %v7267, %v7266
        %v7291 = vpack.c.b16 %v7269, %v7268
        %v7292 = vpack.c.b16 %v7271, %v7270
        %v7293 = vpack.c.b16 %v7273, %v7272
        %v7294 = vpack.c.b16 %v7275, %v7274
        %v7295 = vpack.c.b16 %v7277, %v7276
        %v7296 = vpack.c.b16 %v7279, %v7278
        %v7297 = vpack.c.b16 %v7281, %v7280
        %7298 = vrot.lane.b32.xlu0 %v7282, 20
        %v7299 = vpop.permute.xlu0 %7298
        %7300 = vrot.lane.b32.xlu0 %v7283, 20
        %v7301 = vpop.permute.xlu0 %7300
        %7302 = vrot.lane.b32.xlu0 %v7284, 20
        %v7303 = vpop.permute.xlu0 %7302
        %7304 = vrot.lane.b32.xlu0 %v7285, 20
        %v7305 = vpop.permute.xlu0 %7304
        %7306 = vrot.lane.b32.xlu0 %v7286, 20
        %v7307 = vpop.permute.xlu0 %7306
        %7308 = vrot.lane.b32.xlu0 %v7287, 20
        %v7309 = vpop.permute.xlu0 %7308
        %7310 = vrot.lane.b32.xlu0 %v7288, 20
        %v7311 = vpop.permute.xlu0 %7310
        %7312 = vrot.lane.b32.xlu0 %v7289, 20
        %v7313 = vpop.permute.xlu0 %7312
        %7314 = vrot.lane.b32.xlu0 %v7290, 20
        %v7315 = vpop.permute.xlu0 %7314
        %7316 = vrot.lane.b32.xlu0 %v7291, 20
        %v7317 = vpop.permute.xlu0 %7316
        %7318 = vrot.lane.b32.xlu0 %v7292, 20
        %v7319 = vpop.permute.xlu0 %7318
        %7320 = vrot.lane.b32.xlu0 %v7293, 20
        %v7321 = vpop.permute.xlu0 %7320
        %7322 = vrot.lane.b32.xlu0 %v7294, 20
        %v7323 = vpop.permute.xlu0 %7322
        %7324 = vrot.lane.b32.xlu0 %v7295, 20
        %v7325 = vpop.permute.xlu0 %7324
        %7326 = vrot.lane.b32.xlu0 %v7296, 20
        %v7327 = vpop.permute.xlu0 %7326
        %7328 = vrot.lane.b32.xlu0 %v7297, 20
        %v7329 = vpop.permute.xlu0 %7328
        %v7346 = vunpack.c.l.b16 %v6242
        %v7347 = vunpack.c.l.b16 %v6243
        %v7348 = vunpack.c.l.b16 %v6244
        %v7349 = vunpack.c.l.b16 %v6245
        %v7350 = vunpack.c.l.b16 %v6246
        %v7351 = vunpack.c.l.b16 %v6247
        %v7352 = vunpack.c.l.b16 %v6248
        %v7353 = vunpack.c.l.b16 %v6249
        %v7354 = vunpack.c.l.b16 %v6250
        %v7355 = vunpack.c.l.b16 %v6251
        %v7356 = vunpack.c.l.b16 %v6252
        %v7357 = vunpack.c.l.b16 %v6253
        %v7358 = vunpack.c.l.b16 %v6254
        %v7359 = vunpack.c.l.b16 %v6255
        %v7360 = vunpack.c.l.b16 %v6256
        %v7361 = vunpack.c.l.b16 %v6257
        %v7362 = vunpack.c.l.b16 %v6258
        %v7363 = vunpack.c.l.b16 %v6259
        %v7364 = vunpack.c.l.b16 %v6260
        %v7365 = vunpack.c.l.b16 %v6261
        %v7366 = vunpack.c.l.b16 %v6262
        %v7367 = vunpack.c.l.b16 %v6263
        %v7368 = vunpack.c.l.b16 %v6264
        %v7369 = vunpack.c.l.b16 %v6265
        %v7370 = vunpack.c.l.b16 %v6266
        %v7371 = vunpack.c.l.b16 %v6267
        %v7372 = vunpack.c.l.b16 %v6268
        %v7373 = vunpack.c.l.b16 %v6269
        %v7374 = vunpack.c.l.b16 %v6270
        %v7375 = vunpack.c.l.b16 %v6271
        %v7376 = vunpack.c.l.b16 %v6272
        %v7377 = vunpack.c.l.b16 %v6273
        %v7378 = vpack.c.b16 %v7347, %v7346
        %v7379 = vpack.c.b16 %v7349, %v7348
        %v7380 = vpack.c.b16 %v7351, %v7350
        %v7381 = vpack.c.b16 %v7353, %v7352
        %v7382 = vpack.c.b16 %v7355, %v7354
        %v7383 = vpack.c.b16 %v7357, %v7356
        %v7384 = vpack.c.b16 %v7359, %v7358
        %v7385 = vpack.c.b16 %v7361, %v7360
        %v7386 = vpack.c.b16 %v7363, %v7362
        %v7387 = vpack.c.b16 %v7365, %v7364
        %v7388 = vpack.c.b16 %v7367, %v7366
        %v7389 = vpack.c.b16 %v7369, %v7368
        %v7390 = vpack.c.b16 %v7371, %v7370
        %v7391 = vpack.c.b16 %v7373, %v7372
        %v7392 = vpack.c.b16 %v7375, %v7374
        %v7393 = vpack.c.b16 %v7377, %v7376
        %7394 = vrot.lane.b32.xlu0 %v7378, 24
        %v7395 = vpop.permute.xlu0 %7394
        %7396 = vrot.lane.b32.xlu0 %v7379, 24
        %v7397 = vpop.permute.xlu0 %7396
        %7398 = vrot.lane.b32.xlu0 %v7380, 24
        %v7399 = vpop.permute.xlu0 %7398
        %7400 = vrot.lane.b32.xlu0 %v7381, 24
        %v7401 = vpop.permute.xlu0 %7400
        %7402 = vrot.lane.b32.xlu0 %v7382, 24
        %v7403 = vpop.permute.xlu0 %7402
        %7404 = vrot.lane.b32.xlu0 %v7383, 24
        %v7405 = vpop.permute.xlu0 %7404
        %7406 = vrot.lane.b32.xlu0 %v7384, 24
        %v7407 = vpop.permute.xlu0 %7406
        %7408 = vrot.lane.b32.xlu0 %v7385, 24
        %v7409 = vpop.permute.xlu0 %7408
        %7410 = vrot.lane.b32.xlu0 %v7386, 24
        %v7411 = vpop.permute.xlu0 %7410
        %7412 = vrot.lane.b32.xlu0 %v7387, 24
        %v7413 = vpop.permute.xlu0 %7412
        %7414 = vrot.lane.b32.xlu0 %v7388, 24
        %v7415 = vpop.permute.xlu0 %7414
        %7416 = vrot.lane.b32.xlu0 %v7389, 24
        %v7417 = vpop.permute.xlu0 %7416
        %7418 = vrot.lane.b32.xlu0 %v7390, 24
        %v7419 = vpop.permute.xlu0 %7418
        %7420 = vrot.lane.b32.xlu0 %v7391, 24
        %v7421 = vpop.permute.xlu0 %7420
        %7422 = vrot.lane.b32.xlu0 %v7392, 24
        %v7423 = vpop.permute.xlu0 %7422
        %7424 = vrot.lane.b32.xlu0 %v7393, 24
        %v7425 = vpop.permute.xlu0 %7424
        %v7426 = vunpack.c.l.b16 %v6303
        %v7427 = vunpack.c.l.b16 %v6313
        %v7428 = vunpack.c.l.b16 %v6327
        %v7429 = vunpack.c.l.b16 %v6337
        %v7430 = vunpack.c.l.b16 %v6351
        %v7431 = vunpack.c.l.b16 %v6361
        %v7432 = vunpack.c.l.b16 %v6375
        %v7433 = vunpack.c.l.b16 %v6385
        %v7434 = vunpack.c.l.b16 %v6399
        %v7435 = vunpack.c.l.b16 %v6409
        %v7436 = vunpack.c.l.b16 %v6423
        %v7437 = vunpack.c.l.b16 %v6433
        %v7438 = vunpack.c.l.b16 %v6447
        %v7439 = vunpack.c.l.b16 %v6457
        %v7440 = vunpack.c.l.b16 %v6471
        %v7441 = vunpack.c.l.b16 %v6481
        %v7442 = vunpack.c.l.b16 %v6495
        %v7443 = vunpack.c.l.b16 %v6505
        %v7444 = vunpack.c.l.b16 %v6519
        %v7445 = vunpack.c.l.b16 %v6529
        %v7446 = vunpack.c.l.b16 %v6543
        %v7447 = vunpack.c.l.b16 %v6553
        %v7448 = vunpack.c.l.b16 %v6567
        %v7449 = vunpack.c.l.b16 %v6577
        %v7450 = vunpack.c.l.b16 %v6591
        %v7451 = vunpack.c.l.b16 %v6601
        %v7452 = vunpack.c.l.b16 %v6615
        %v7453 = vunpack.c.l.b16 %v6625
        %v7454 = vunpack.c.l.b16 %v6639
        %v7455 = vunpack.c.l.b16 %v6649
        %v7456 = vunpack.c.l.b16 %v6663
        %v7457 = vunpack.c.l.b16 %v6673
        %v7458 = vpack.c.b16 %v7427, %v7426
        %v7459 = vpack.c.b16 %v7429, %v7428
        %v7460 = vpack.c.b16 %v7431, %v7430
        %v7461 = vpack.c.b16 %v7433, %v7432
        %v7462 = vpack.c.b16 %v7435, %v7434
        %v7463 = vpack.c.b16 %v7437, %v7436
        %v7464 = vpack.c.b16 %v7439, %v7438
        %v7465 = vpack.c.b16 %v7441, %v7440
        %v7466 = vpack.c.b16 %v7443, %v7442
        %v7467 = vpack.c.b16 %v7445, %v7444
        %v7468 = vpack.c.b16 %v7447, %v7446
        %v7469 = vpack.c.b16 %v7449, %v7448
        %v7470 = vpack.c.b16 %v7451, %v7450
        %v7471 = vpack.c.b16 %v7453, %v7452
        %v7472 = vpack.c.b16 %v7455, %v7454
        %v7473 = vpack.c.b16 %v7457, %v7456
        %7474 = vrot.lane.b32.xlu0 %v7458, 28
        %v7475 = vpop.permute.xlu0 %7474
        %7476 = vrot.lane.b32.xlu0 %v7459, 28
        %v7477 = vpop.permute.xlu0 %7476
        %7478 = vrot.lane.b32.xlu0 %v7460, 28
        %v7479 = vpop.permute.xlu0 %7478
        %7480 = vrot.lane.b32.xlu0 %v7461, 28
        %v7481 = vpop.permute.xlu0 %7480
        %7482 = vrot.lane.b32.xlu0 %v7462, 28
        %v7483 = vpop.permute.xlu0 %7482
        %7484 = vrot.lane.b32.xlu0 %v7463, 28
        %v7485 = vpop.permute.xlu0 %7484
        %7486 = vrot.lane.b32.xlu0 %v7464, 28
        %v7487 = vpop.permute.xlu0 %7486
        %7488 = vrot.lane.b32.xlu0 %v7465, 28
        %v7489 = vpop.permute.xlu0 %7488
        %7490 = vrot.lane.b32.xlu0 %v7466, 28
        %v7491 = vpop.permute.xlu0 %7490
        %7492 = vrot.lane.b32.xlu0 %v7467, 28
        %v7493 = vpop.permute.xlu0 %7492
        %7494 = vrot.lane.b32.xlu0 %v7468, 28
        %v7495 = vpop.permute.xlu0 %7494
        %7496 = vrot.lane.b32.xlu0 %v7469, 28
        %v7497 = vpop.permute.xlu0 %7496
        %7498 = vrot.lane.b32.xlu0 %v7470, 28
        %v7499 = vpop.permute.xlu0 %7498
        %7500 = vrot.lane.b32.xlu0 %v7471, 28
        %v7501 = vpop.permute.xlu0 %7500
        %7502 = vrot.lane.b32.xlu0 %v7472, 28
        %v7503 = vpop.permute.xlu0 %7502
        %7504 = vrot.lane.b32.xlu0 %v7473, 28
        %v7505 = vpop.permute.xlu0 %7504
        %v7506 = vunpack.c.l.b16 %v6741
        %v7507 = vunpack.c.l.b16 %v6744
        %v7508 = vunpack.c.l.b16 %v6748
        %v7509 = vunpack.c.l.b16 %v6751
        %v7510 = vunpack.c.l.b16 %v6755
        %v7511 = vunpack.c.l.b16 %v6758
        %v7512 = vunpack.c.l.b16 %v6762
        %v7513 = vunpack.c.l.b16 %v6765
        %v7514 = vunpack.c.l.b16 %v6769
        %v7515 = vunpack.c.l.b16 %v6772
        %v7516 = vunpack.c.l.b16 %v6776
        %v7517 = vunpack.c.l.b16 %v6779
        %v7518 = vunpack.c.l.b16 %v6783
        %v7519 = vunpack.c.l.b16 %v6786
        %v7520 = vunpack.c.l.b16 %v6790
        %v7521 = vunpack.c.l.b16 %v6793
        %v7522 = vunpack.c.l.b16 %v6797
        %v7523 = vunpack.c.l.b16 %v6800
        %v7524 = vunpack.c.l.b16 %v6804
        %v7525 = vunpack.c.l.b16 %v6807
        %v7526 = vunpack.c.l.b16 %v6811
        %v7527 = vunpack.c.l.b16 %v6814
        %v7528 = vunpack.c.l.b16 %v6818
        %v7529 = vunpack.c.l.b16 %v6821
        %v7530 = vunpack.c.l.b16 %v6825
        %v7531 = vunpack.c.l.b16 %v6828
        %v7532 = vunpack.c.l.b16 %v6832
        %v7533 = vunpack.c.l.b16 %v6835
        %v7534 = vunpack.c.l.b16 %v6839
        %v7535 = vunpack.c.l.b16 %v6842
        %v7536 = vunpack.c.l.b16 %v6846
        %v7537 = vunpack.c.l.b16 %v6849
        %v7538 = vpack.c.b16 %v7507, %v7506
        %v7539 = vpack.c.b16 %v7509, %v7508
        %v7540 = vpack.c.b16 %v7511, %v7510
        %v7541 = vpack.c.b16 %v7513, %v7512
        %v7542 = vpack.c.b16 %v7515, %v7514
        %v7543 = vpack.c.b16 %v7517, %v7516
        %v7544 = vpack.c.b16 %v7519, %v7518
        %v7545 = vpack.c.b16 %v7521, %v7520
        %v7546 = vpack.c.b16 %v7523, %v7522
        %v7547 = vpack.c.b16 %v7525, %v7524
        %v7548 = vpack.c.b16 %v7527, %v7526
        %v7549 = vpack.c.b16 %v7529, %v7528
        %v7550 = vpack.c.b16 %v7531, %v7530
        %v7551 = vpack.c.b16 %v7533, %v7532
        %v7552 = vpack.c.b16 %v7535, %v7534
        %v7553 = vpack.c.b16 %v7537, %v7536
        %7554 = vrot.lane.b32.xlu0 %v7538, 32
        %v7555 = vpop.permute.xlu0 %7554
        %7556 = vrot.lane.b32.xlu0 %v7539, 32
        %v7557 = vpop.permute.xlu0 %7556
        %7558 = vrot.lane.b32.xlu0 %v7540, 32
        %v7559 = vpop.permute.xlu0 %7558
        %7560 = vrot.lane.b32.xlu0 %v7541, 32
        %v7561 = vpop.permute.xlu0 %7560
        %7562 = vrot.lane.b32.xlu0 %v7542, 32
        %v7563 = vpop.permute.xlu0 %7562
        %7564 = vrot.lane.b32.xlu0 %v7543, 32
        %v7565 = vpop.permute.xlu0 %7564
        %7566 = vrot.lane.b32.xlu0 %v7544, 32
        %v7567 = vpop.permute.xlu0 %7566
        %7568 = vrot.lane.b32.xlu0 %v7545, 32
        %v7569 = vpop.permute.xlu0 %7568
        %7570 = vrot.lane.b32.xlu0 %v7546, 32
        %v7571 = vpop.permute.xlu0 %7570
        %7572 = vrot.lane.b32.xlu0 %v7547, 32
        %v7573 = vpop.permute.xlu0 %7572
        %7574 = vrot.lane.b32.xlu0 %v7548, 32
        %v7575 = vpop.permute.xlu0 %7574
        %7576 = vrot.lane.b32.xlu0 %v7549, 32
        %v7577 = vpop.permute.xlu0 %7576
        %7578 = vrot.lane.b32.xlu0 %v7550, 32
        %v7579 = vpop.permute.xlu0 %7578
        %7580 = vrot.lane.b32.xlu0 %v7551, 32
        %v7581 = vpop.permute.xlu0 %7580
        %7582 = vrot.lane.b32.xlu0 %v7552, 32
        %v7583 = vpop.permute.xlu0 %7582
        %7584 = vrot.lane.b32.xlu0 %v7553, 32
        %v7585 = vpop.permute.xlu0 %7584
        %v7588 = vsel %vm813, %v6898, %v6963
        %v7591 = vsel %vm813, %v6899, %v6965
        %v7594 = vsel %vm813, %v6900, %v6967
        %v7597 = vsel %vm813, %v6901, %v6969
        %v7600 = vsel %vm813, %v6902, %v6971
        %v7603 = vsel %vm813, %v6903, %v6973
        %v7606 = vsel %vm813, %v6904, %v6975
        %v7609 = vsel %vm813, %v6905, %v6977
        %v7612 = vsel %vm813, %v6906, %v6979
        %v7615 = vsel %vm813, %v6907, %v6981
        %v7618 = vsel %vm813, %v6908, %v6983
        %v7621 = vsel %vm813, %v6909, %v6985
        %v7624 = vsel %vm813, %v6910, %v6987
        %v7627 = vsel %vm813, %v6911, %v6989
        %v7630 = vsel %vm813, %v6912, %v6991
        %v7633 = vsel %vm813, %v6913, %v6993
        %v7635 = vsel %vm3959, %v7588, %v7043
        %v7637 = vsel %vm3959, %v7591, %v7045
        %v7639 = vsel %vm3959, %v7594, %v7047
        %v7641 = vsel %vm3959, %v7597, %v7049
        %v7643 = vsel %vm3959, %v7600, %v7051
        %v7645 = vsel %vm3959, %v7603, %v7053
        %v7647 = vsel %vm3959, %v7606, %v7055
        %v7649 = vsel %vm3959, %v7609, %v7057
        %v7651 = vsel %vm3959, %v7612, %v7059
        %v7653 = vsel %vm3959, %v7615, %v7061
        %v7655 = vsel %vm3959, %v7618, %v7063
        %v7657 = vsel %vm3959, %v7621, %v7065
        %v7659 = vsel %vm3959, %v7624, %v7067
        %v7661 = vsel %vm3959, %v7627, %v7069
        %v7663 = vsel %vm3959, %v7630, %v7071
        %v7665 = vsel %vm3959, %v7633, %v7073
        %vm7666 = vcmask 97280
        %v7668 = vsel %vm7666, %v7635, %v7139
        %v7670 = vsel %vm7666, %v7637, %v7141
        %v7672 = vsel %vm7666, %v7639, %v7143
        %v7674 = vsel %vm7666, %v7641, %v7145
        %v7676 = vsel %vm7666, %v7643, %v7147
        %v7678 = vsel %vm7666, %v7645, %v7149
        %v7680 = vsel %vm7666, %v7647, %v7151
        %v7682 = vsel %vm7666, %v7649, %v7153
        %v7684 = vsel %vm7666, %v7651, %v7155
        %v7686 = vsel %vm7666, %v7653, %v7157
        %v7688 = vsel %vm7666, %v7655, %v7159
        %v7690 = vsel %vm7666, %v7657, %v7161
        %v7692 = vsel %vm7666, %v7659, %v7163
        %v7694 = vsel %vm7666, %v7661, %v7165
        %v7696 = vsel %vm7666, %v7663, %v7167
        %v7698 = vsel %vm7666, %v7665, %v7169
        %v7700 = vsel %vm4008, %v7668, %v7219
        %v7702 = vsel %vm4008, %v7670, %v7221
        %v7704 = vsel %vm4008, %v7672, %v7223
        %v7706 = vsel %vm4008, %v7674, %v7225
        %v7708 = vsel %vm4008, %v7676, %v7227
        %v7710 = vsel %vm4008, %v7678, %v7229
        %v7712 = vsel %vm4008, %v7680, %v7231
        %v7714 = vsel %vm4008, %v7682, %v7233
        %v7716 = vsel %vm4008, %v7684, %v7235
        %v7718 = vsel %vm4008, %v7686, %v7237
        %v7720 = vsel %vm4008, %v7688, %v7239
        %v7722 = vsel %vm4008, %v7690, %v7241
        %v7724 = vsel %vm4008, %v7692, %v7243
        %v7726 = vsel %vm4008, %v7694, %v7245
        %v7728 = vsel %vm4008, %v7696, %v7247
        %v7730 = vsel %vm4008, %v7698, %v7249
        %vm7731 = vcmask 162816
        %v7733 = vsel %vm7731, %v7700, %v7299
        %v7735 = vsel %vm7731, %v7702, %v7301
        %v7737 = vsel %vm7731, %v7704, %v7303
        %v7739 = vsel %vm7731, %v7706, %v7305
        %v7741 = vsel %vm7731, %v7708, %v7307
        %v7743 = vsel %vm7731, %v7710, %v7309
        %v7745 = vsel %vm7731, %v7712, %v7311
        %v7747 = vsel %vm7731, %v7714, %v7313
        %v7749 = vsel %vm7731, %v7716, %v7315
        %v7751 = vsel %vm7731, %v7718, %v7317
        %v7753 = vsel %vm7731, %v7720, %v7319
        %v7755 = vsel %vm7731, %v7722, %v7321
        %v7757 = vsel %vm7731, %v7724, %v7323
        %v7759 = vsel %vm7731, %v7726, %v7325
        %v7761 = vsel %vm7731, %v7728, %v7327
        %v7763 = vsel %vm7731, %v7730, %v7329
        %v7765 = vsel %vm4041, %v7733, %v7395
        %v7767 = vsel %vm4041, %v7735, %v7397
        %v7769 = vsel %vm4041, %v7737, %v7399
        %v7771 = vsel %vm4041, %v7739, %v7401
        %v7773 = vsel %vm4041, %v7741, %v7403
        %v7775 = vsel %vm4041, %v7743, %v7405
        %v7777 = vsel %vm4041, %v7745, %v7407
        %v7779 = vsel %vm4041, %v7747, %v7409
        %v7781 = vsel %vm4041, %v7749, %v7411
        %v7783 = vsel %vm4041, %v7751, %v7413
        %v7785 = vsel %vm4041, %v7753, %v7415
        %v7787 = vsel %vm4041, %v7755, %v7417
        %v7789 = vsel %vm4041, %v7757, %v7419
        %v7791 = vsel %vm4041, %v7759, %v7421
        %v7793 = vsel %vm4041, %v7761, %v7423
        %v7795 = vsel %vm4041, %v7763, %v7425
        %vm7796 = vcmask 228352
        %v7798 = vsel %vm7796, %v7765, %v7475
        %v7800 = vsel %vm7796, %v7767, %v7477
        %v7802 = vsel %vm7796, %v7769, %v7479
        %v7804 = vsel %vm7796, %v7771, %v7481
        %v7806 = vsel %vm7796, %v7773, %v7483
        %v7808 = vsel %vm7796, %v7775, %v7485
        %v7810 = vsel %vm7796, %v7777, %v7487
        %v7812 = vsel %vm7796, %v7779, %v7489
        %v7814 = vsel %vm7796, %v7781, %v7491
        %v7816 = vsel %vm7796, %v7783, %v7493
        %v7818 = vsel %vm7796, %v7785, %v7495
        %v7820 = vsel %vm7796, %v7787, %v7497
        %v7822 = vsel %vm7796, %v7789, %v7499
        %v7824 = vsel %vm7796, %v7791, %v7501
        %v7826 = vsel %vm7796, %v7793, %v7503
        %v7828 = vsel %vm7796, %v7795, %v7505
        %v7830 = vsel %vm4074, %v7798, %v7555
        %v7832 = vsel %vm4074, %v7800, %v7557
        %v7834 = vsel %vm4074, %v7802, %v7559
        %v7836 = vsel %vm4074, %v7804, %v7561
        %v7838 = vsel %vm4074, %v7806, %v7563
        %v7840 = vsel %vm4074, %v7808, %v7565
        %v7842 = vsel %vm4074, %v7810, %v7567
        %v7844 = vsel %vm4074, %v7812, %v7569
        %v7846 = vsel %vm4074, %v7814, %v7571
        %v7848 = vsel %vm4074, %v7816, %v7573
        %v7850 = vsel %vm4074, %v7818, %v7575
        %v7852 = vsel %vm4074, %v7820, %v7577
        %v7854 = vsel %vm4074, %v7822, %v7579
        %v7856 = vsel %vm4074, %v7824, %v7581
        %v7858 = vsel %vm4074, %v7826, %v7583
        %v7860 = vsel %vm4074, %v7828, %v7585
        %v7861 = vld [vmem:[%s4] sm:$0xf]
        %v7862 = vld [vmem:[%s4 + $0x4] sm:$0xf]
        %v7863 = vld [vmem:[%s4 + $0x8] sm:$0xf]
        %v7864 = vld [vmem:[%s4 + $0xc] sm:$0xf]
        %v7865 = vld [vmem:[%s4 + $0x10] sm:$0x3]
        %v7871 = vunpack.c.l.b16 %v7861
        %v7872 = vunpack.c.l.b16 %v7862
        %v7873 = vunpack.c.l.b16 %v7863
        %v7874 = vunpack.c.l.b16 %v7864
        %v7875 = vunpack.c.l.b16 %v7865
        %v7876 = vpack.c.b16 %v7872, %v7871
        %v7877 = vpack.c.b16 %v7874, %v7873
        %v7878 = vpack.c.b16 %v7875, %v7875
        %vm7881 = vcmask 293888
        %v7882 = vsel %vm7881, %v7830, 0
        %v7884 = vsel %vm7881, %v7832, 0
        %v7886 = vsel %vm7881, %v7834, 0
        %v7888 = vsel %vm7881, %v7836, 0
        %v7890 = vsel %vm7881, %v7838, 0
        %v7892 = vsel %vm7881, %v7840, 0
        %v7894 = vsel %vm7881, %v7842, 0
        %v7896 = vsel %vm7881, %v7844, 0
        %v7898 = vsel %vm7881, %v7846, 0
        %v7900 = vsel %vm7881, %v7848, 0
        %v7902 = vsel %vm7881, %v7850, 0
        %v7904 = vsel %vm7881, %v7852, 0
        %v7906 = vsel %vm7881, %v7854, 0
        %v7908 = vsel %vm7881, %v7856, 0
        %v7910 = vsel %vm7881, %v7858, 0
        %v7912 = vsel %vm7881, %v7860, 0
        %vm7914 = vcmask 1041408
        %v7916 = vsel %vm7914, %v7878, 0
        %7918 = vmatpush.bf16.msra.mxu0 0
        %7919 = vmatpush.bf16.msra.mxu0 0
        %7920 = vmatpush.bf16.msra.mxu0 0
        %7921 = vmatpush.bf16.msra.mxu0 0
        %7922 = vmatpush.bf16.msra.mxu0 0
        %7923 = vmatpush.bf16.msra.mxu0 %v7916
        %7924 = vmatpush.bf16.msra.mxu0 %v7877
        %7925 = vmatpush.bf16.msra.mxu0 %v7876
        %7926 = vmatmul.bf16.gmra.mxu0 %v7882
        %v7927 = vpop.f32.mrf.mxu0
        %v7928 = vadd.f32 0.0, %v7927
        %v7929 = vpop.f32.mrf.mxu0
        %v7930 = vadd.f32 0.0, %v7929
        %7931 = vmatmul.bf16.gmra.mxu0 %v7884
        %v7932 = vpop.f32.mrf.mxu0
        %v7933 = vadd.f32 0.0, %v7932
        %v7934 = vpop.f32.mrf.mxu0
        %v7935 = vadd.f32 0.0, %v7934
        %7936 = vmatmul.bf16.gmra.mxu0 %v7886
        %v7937 = vpop.f32.mrf.mxu0
        %v7938 = vadd.f32 0.0, %v7937
        %v7939 = vpop.f32.mrf.mxu0
        %v7940 = vadd.f32 0.0, %v7939
        %7941 = vmatmul.bf16.gmra.mxu0 %v7888
        %v7942 = vpop.f32.mrf.mxu0
        %v7943 = vadd.f32 0.0, %v7942
        %v7944 = vpop.f32.mrf.mxu0
        %v7945 = vadd.f32 0.0, %v7944
        %7946 = vmatmul.bf16.gmra.mxu0 %v7890
        %v7947 = vpop.f32.mrf.mxu0
        %v7948 = vadd.f32 0.0, %v7947
        %v7949 = vpop.f32.mrf.mxu0
        %v7950 = vadd.f32 0.0, %v7949
        %7951 = vmatmul.bf16.gmra.mxu0 %v7892
        %v7952 = vpop.f32.mrf.mxu0
        %v7953 = vadd.f32 0.0, %v7952
        %v7954 = vpop.f32.mrf.mxu0
        %v7955 = vadd.f32 0.0, %v7954
        %7956 = vmatmul.bf16.gmra.mxu0 %v7894
        %v7957 = vpop.f32.mrf.mxu0
        %v7958 = vadd.f32 0.0, %v7957
        %v7959 = vpop.f32.mrf.mxu0
        %v7960 = vadd.f32 0.0, %v7959
        %7961 = vmatmul.bf16.gmra.mxu0 %v7896
        %v7962 = vpop.f32.mrf.mxu0
        %v7963 = vadd.f32 0.0, %v7962
        %v7964 = vpop.f32.mrf.mxu0
        %v7965 = vadd.f32 0.0, %v7964
        %7966 = vmatmul.bf16.gmra.mxu0 %v7898
        %v7967 = vpop.f32.mrf.mxu0
        %v7968 = vadd.f32 0.0, %v7967
        %v7969 = vpop.f32.mrf.mxu0
        %v7970 = vadd.f32 0.0, %v7969
        %7971 = vmatmul.bf16.gmra.mxu0 %v7900
        %v7972 = vpop.f32.mrf.mxu0
        %v7973 = vadd.f32 0.0, %v7972
        %v7974 = vpop.f32.mrf.mxu0
        %v7975 = vadd.f32 0.0, %v7974
        %7976 = vmatmul.bf16.gmra.mxu0 %v7902
        %v7977 = vpop.f32.mrf.mxu0
        %v7978 = vadd.f32 0.0, %v7977
        %v7979 = vpop.f32.mrf.mxu0
        %v7980 = vadd.f32 0.0, %v7979
        %7981 = vmatmul.bf16.gmra.mxu0 %v7904
        %v7982 = vpop.f32.mrf.mxu0
        %v7983 = vadd.f32 0.0, %v7982
        %v7984 = vpop.f32.mrf.mxu0
        %v7985 = vadd.f32 0.0, %v7984
        %7986 = vmatmul.bf16.gmra.mxu0 %v7906
        %v7987 = vpop.f32.mrf.mxu0
        %v7988 = vadd.f32 0.0, %v7987
        %v7989 = vpop.f32.mrf.mxu0
        %v7990 = vadd.f32 0.0, %v7989
        %7991 = vmatmul.bf16.gmra.mxu0 %v7908
        %v7992 = vpop.f32.mrf.mxu0
        %v7993 = vadd.f32 0.0, %v7992
        %v7994 = vpop.f32.mrf.mxu0
        %v7995 = vadd.f32 0.0, %v7994
        %7996 = vmatmul.bf16.gmra.mxu0 %v7910
        %v7997 = vpop.f32.mrf.mxu0
        %v7998 = vadd.f32 0.0, %v7997
        %v7999 = vpop.f32.mrf.mxu0
        %v8000 = vadd.f32 0.0, %v7999
        %8001 = vmatmul.bf16.gmra.mxu0 %v7912
        %v8002 = vpop.f32.mrf.mxu0
        %v8003 = vadd.f32 0.0, %v8002
        %v8004 = vpop.f32.mrf.mxu0
        %v8005 = vadd.f32 0.0, %v8004
        %8006 = vdwg.mxu0
        %v8007 = vld [vmem:[%s7] sm:$0x1]
        %v8009 = vperm.slane %v8007, 0
        %v8011 = vmul.f32 %v7928, %v8009
        %v8012 = vmul.f32 %v7930, %v8009
        %v8013 = vmul.f32 %v7933, %v8009
        %v8014 = vmul.f32 %v7935, %v8009
        %v8015 = vmul.f32 %v7938, %v8009
        %v8016 = vmul.f32 %v7940, %v8009
        %v8017 = vmul.f32 %v7943, %v8009
        %v8018 = vmul.f32 %v7945, %v8009
        %v8019 = vmul.f32 %v7948, %v8009
        %v8020 = vmul.f32 %v7950, %v8009
        %v8021 = vmul.f32 %v7953, %v8009
        %v8022 = vmul.f32 %v7955, %v8009
        %v8023 = vmul.f32 %v7958, %v8009
        %v8024 = vmul.f32 %v7960, %v8009
        %v8025 = vmul.f32 %v7963, %v8009
        %v8026 = vmul.f32 %v7965, %v8009
        %v8027 = vmul.f32 %v7968, %v8009
        %v8028 = vmul.f32 %v7970, %v8009
        %v8029 = vmul.f32 %v7973, %v8009
        %v8030 = vmul.f32 %v7975, %v8009
        %v8031 = vmul.f32 %v7978, %v8009
        %v8032 = vmul.f32 %v7980, %v8009
        %v8033 = vmul.f32 %v7983, %v8009
        %v8034 = vmul.f32 %v7985, %v8009
        %v8035 = vmul.f32 %v7988, %v8009
        %v8036 = vmul.f32 %v7990, %v8009
        %v8037 = vmul.f32 %v7993, %v8009
        %v8038 = vmul.f32 %v7995, %v8009
        %v8039 = vmul.f32 %v7998, %v8009
        %v8040 = vmul.f32 %v8000, %v8009
        %v8041 = vmul.f32 %v8003, %v8009
        %v8042 = vmul.f32 %v8005, %v8009
        %v8043 = vld [vmem:[%s8] sm:$0x1]
        %v8045 = vperm.slane %v8043, 0
        %v8047 = vadd.f32 %v8011, %v8045
        %v8048 = vadd.f32 %v8012, %v8045
        %v8049 = vadd.f32 %v8013, %v8045
        %v8050 = vadd.f32 %v8014, %v8045
        %v8051 = vadd.f32 %v8015, %v8045
        %v8052 = vadd.f32 %v8016, %v8045
        %v8053 = vadd.f32 %v8017, %v8045
        %v8054 = vadd.f32 %v8018, %v8045
        %v8055 = vadd.f32 %v8019, %v8045
        %v8056 = vadd.f32 %v8020, %v8045
        %v8057 = vadd.f32 %v8021, %v8045
        %v8058 = vadd.f32 %v8022, %v8045
        %v8059 = vadd.f32 %v8023, %v8045
        %v8060 = vadd.f32 %v8024, %v8045
        %v8061 = vadd.f32 %v8025, %v8045
        %v8062 = vadd.f32 %v8026, %v8045
        %v8063 = vadd.f32 %v8027, %v8045
        %v8064 = vadd.f32 %v8028, %v8045
        %v8065 = vadd.f32 %v8029, %v8045
        %v8066 = vadd.f32 %v8030, %v8045
        %v8067 = vadd.f32 %v8031, %v8045
        %v8068 = vadd.f32 %v8032, %v8045
        %v8069 = vadd.f32 %v8033, %v8045
        %v8070 = vadd.f32 %v8034, %v8045
        %v8071 = vadd.f32 %v8035, %v8045
        %v8072 = vadd.f32 %v8036, %v8045
        %v8073 = vadd.f32 %v8037, %v8045
        %v8074 = vadd.f32 %v8038, %v8045
        %v8075 = vadd.f32 %v8039, %v8045
        %v8076 = vadd.f32 %v8040, %v8045
        %v8077 = vadd.f32 %v8041, %v8045
        %v8078 = vadd.f32 %v8042, %v8045
        %v8079 = vmax.f32 %v8047, 0.0
        %v8080 = vmax.f32 %v8048, 0.0
        %v8081 = vmax.f32 %v8049, 0.0
        %v8082 = vmax.f32 %v8050, 0.0
        %v8083 = vmax.f32 %v8051, 0.0
        %v8084 = vmax.f32 %v8052, 0.0
        %v8085 = vmax.f32 %v8053, 0.0
        %v8086 = vmax.f32 %v8054, 0.0
        %v8087 = vmax.f32 %v8055, 0.0
        %v8088 = vmax.f32 %v8056, 0.0
        %v8089 = vmax.f32 %v8057, 0.0
        %v8090 = vmax.f32 %v8058, 0.0
        %v8091 = vmax.f32 %v8059, 0.0
        %v8092 = vmax.f32 %v8060, 0.0
        %v8093 = vmax.f32 %v8061, 0.0
        %v8094 = vmax.f32 %v8062, 0.0
        %v8095 = vmax.f32 %v8063, 0.0
        %v8096 = vmax.f32 %v8064, 0.0
        %v8097 = vmax.f32 %v8065, 0.0
        %v8098 = vmax.f32 %v8066, 0.0
        %v8099 = vmax.f32 %v8067, 0.0
        %v8100 = vmax.f32 %v8068, 0.0
        %v8101 = vmax.f32 %v8069, 0.0
        %v8102 = vmax.f32 %v8070, 0.0
        %v8103 = vmax.f32 %v8071, 0.0
        %v8104 = vmax.f32 %v8072, 0.0
        %v8105 = vmax.f32 %v8073, 0.0
        %v8106 = vmax.f32 %v8074, 0.0
        %v8107 = vmax.f32 %v8075, 0.0
        %v8108 = vmax.f32 %v8076, 0.0
        %v8109 = vmax.f32 %v8077, 0.0
        %v8110 = vmax.f32 %v8078, 0.0
        %8111 = vxpose.xlu0.b32.start [1/16] %v8079, 128
        %8112 = vxpose.xlu0.b32.cont [2/16] %v8080, 128
        %8113 = vxpose.xlu0.b32.cont [3/16] %v8081, 128
        %8114 = vxpose.xlu0.b32.cont [4/16] %v8082, 128
        %8115 = vxpose.xlu0.b32.cont [5/16] %v8083, 128
        %8116 = vxpose.xlu0.b32.cont [6/16] %v8084, 128
        %8117 = vxpose.xlu0.b32.cont [7/16] %v8085, 128
        %8118 = vxpose.xlu0.b32.cont [8/16] %v8086, 128
        %8119 = vxpose.xlu0.b32.cont [9/16] %v8087, 128
        %8120 = vxpose.xlu0.b32.cont [10/16] %v8088, 128
        %8121 = vxpose.xlu0.b32.cont [11/16] %v8089, 128
        %8122 = vxpose.xlu0.b32.cont [12/16] %v8090, 128
        %8123 = vxpose.xlu0.b32.cont [13/16] %v8091, 128
        %8124 = vxpose.xlu0.b32.cont [14/16] %v8092, 128
        %8125 = vxpose.xlu0.b32.cont [15/16] %v8093, 128
        %8126 = vxpose.xlu0.b32.end [16/16] %v8094, 128
        %v8127 = vpop.trf.xlu0
        %v8128 = vpop.trf.xlu0
        %v8129 = vpop.trf.xlu0
        %v8130 = vpop.trf.xlu0
        %v8131 = vpop.trf.xlu0
        %v8132 = vpop.trf.xlu0
        %v8133 = vpop.trf.xlu0
        %v8134 = vpop.trf.xlu0
        %v8135 = vpop.trf.xlu0
        %v8136 = vpop.trf.xlu0
        %v8137 = vpop.trf.xlu0
        %v8138 = vpop.trf.xlu0
        %v8139 = vpop.trf.xlu0
        %v8140 = vpop.trf.xlu0
        %v8141 = vpop.trf.xlu0
        %v8142 = vpop.trf.xlu0
        %8143 = vxpose.xlu0.b32.start [1/16] %v8095, 128
        %8144 = vxpose.xlu0.b32.cont [2/16] %v8096, 128
        %8145 = vxpose.xlu0.b32.cont [3/16] %v8097, 128
        %8146 = vxpose.xlu0.b32.cont [4/16] %v8098, 128
        %8147 = vxpose.xlu0.b32.cont [5/16] %v8099, 128
        %8148 = vxpose.xlu0.b32.cont [6/16] %v8100, 128
        %8149 = vxpose.xlu0.b32.cont [7/16] %v8101, 128
        %8150 = vxpose.xlu0.b32.cont [8/16] %v8102, 128
        %8151 = vxpose.xlu0.b32.cont [9/16] %v8103, 128
        %8152 = vxpose.xlu0.b32.cont [10/16] %v8104, 128
        %8153 = vxpose.xlu0.b32.cont [11/16] %v8105, 128
        %8154 = vxpose.xlu0.b32.cont [12/16] %v8106, 128
        %8155 = vxpose.xlu0.b32.cont [13/16] %v8107, 128
        %8156 = vxpose.xlu0.b32.cont [14/16] %v8108, 128
        %8157 = vxpose.xlu0.b32.cont [15/16] %v8109, 128
        %8158 = vxpose.xlu0.b32.end [16/16] %v8110, 128
        %v8159 = vpop.trf.xlu0
        %v8160 = vpop.trf.xlu0
        %v8161 = vpop.trf.xlu0
        %v8162 = vpop.trf.xlu0
        %v8163 = vpop.trf.xlu0
        %v8164 = vpop.trf.xlu0
        %v8165 = vpop.trf.xlu0
        %v8166 = vpop.trf.xlu0
        %v8167 = vpop.trf.xlu0
        %v8168 = vpop.trf.xlu0
        %v8169 = vpop.trf.xlu0
        %v8170 = vpop.trf.xlu0
        %v8171 = vpop.trf.xlu0
        %v8172 = vpop.trf.xlu0
        %v8173 = vpop.trf.xlu0
        %v8174 = vpop.trf.xlu0
        %v8177 = vrot.slane %v8159, 4
        %v8178 = vsel %vm4307, %v8127, %v8177
        %8180 = vst [vmem:[%s366] sm:$0xff] %v8178
        %p8181 = scmp.lt.s32.totalorder %s21, 1
        %s8182 = scalar_select %p8181, %s21, 1
        %s8183 = smul.addr %s8182, 2
        %s8184 = smul.addr %s8183, 4
        %s8185 = scalar_lea.vmem %s9, %s8184
        // Predicated region
        $region61: #{upsampling_forward.1} parent=55 // pred_check
          %p8186 = pneg %p238
        $region62: #{upsampling_forward.1} parent=55 // pred_check_branch
          %8188 = sbr.rel (%p8186) target = $region64
        $region63: #{upsampling_forward.1} parent=55 // pred_region
          _
        $region64: #{upsampling_forward.1} parent=55 // pred_fallthru
          _
      $region56: #{upsampling_forward.1} parent=5 // pred_fallthru
        _
      %p8189 = scmp.le.s32.totalorder 2, %s16
      // Predicated region
      $region65: #{upsampling_forward.1} parent=5 // pred_check
        %p8190 = pneg %p8189
      $region66: #{upsampling_forward.1} parent=5 // pred_check_branch
        %8192 = sbr.rel (%p8190) target = $region68
      $region67: #{upsampling_forward.1} parent=5 // pred_region
        %s8193 = ssub.s32 %s16, 2
        // Predicated region
        $region69: #{upsampling_forward.1} parent=67 // pred_check
          %p8194 = pneg %p244
        $region70: #{upsampling_forward.1} parent=67 // pred_check_branch
          %8196 = sbr.rel (%p8194) target = $region72
        $region71: #{upsampling_forward.1} parent=67 // pred_region
          %p8197 = scmp.lt.s32.totalorder %s22, 1
          %s8198 = scalar_select %p8197, %s22, 1
          %s8199 = smul.addr %s8198, 2
          %s8200 = smul.addr %s8199, 4
          %s8201 = scalar_lea.vmem %s9, %s8200
        $region72: #{upsampling_forward.1} parent=67 // pred_fallthru
          _
      $region68: #{upsampling_forward.1} parent=5 // pred_fallthru
        _
    $region6: #{upsampling_forward.1} parent=1 // loop_footer
      %s20 = sadd.s32 1, %s16
    $region7: #{upsampling_forward.1} parent=1 // loop_footer_branch
      %15 = sbr.rel target = $region3
    $region8: #{upsampling_forward.1} parent=1 // loop_exit
      _
    %8202 = vsyncpa [#allocation5], 1
    %s8203 = scalar_lea.sflag [#allocation5], 1
    %8204 = vsyncpa %s8203, 1

</llo_original>
